<compile_context>
chip_gen: v6e
topology: v6e:2x2x1
jax: 0.10.0
libtpu: 0.0.40
codegen_flags: <defaults>
</compile_context>

<pallas_src>
import math
import functools

import jax
import jax.numpy as jnp
from jax.experimental import pallas as pl
from jax.experimental.pallas import tpu as pltpu  # noqa: F401  (kept for TPU-specific knobs)


# ----------------------------- Pallas kernels ------------------------------

def _lstm2_ln_kernel(x_ref, w0_ref, b0_ref, w1_ref, b1_ref, g_ref, beta_ref,
                     o_ref, *, hidden, eps):
    """2-layer LSTM (PyTorch gate order i,f,g,o) + fused per-row LayerNorm.

    Single invocation: everything lives in VMEM, the time loop is fully
    unrolled (T is static), MXU operands are bf16, gate math / accum are f32.
    """
    T, B, _ = x_ref.shape
    H = hidden

    w0 = w0_ref[...]          # (F+H, 4H) bf16
    w1 = w1_ref[...]          # (H+H, 4H) bf16
    b0 = b0_ref[...]          # (1, 4H) f32
    b1 = b1_ref[...]
    g = g_ref[...]            # (1, H) f32
    beta = beta_ref[...]      # (1, H) f32

    def cell(x_bf, h, c, w, b):
        xh = jnp.concatenate([x_bf, h.astype(jnp.bfloat16)], axis=-1)   # (B, F+H)
        gates = jnp.dot(xh, w, preferred_element_type=jnp.float32) + b  # (B, 4H) f32
        i = jax.nn.sigmoid(gates[:, 0:H])
        f = jax.nn.sigmoid(gates[:, H:2 * H])
        gg = jnp.tanh(gates[:, 2 * H:3 * H])
        o = jax.nn.sigmoid(gates[:, 3 * H:4 * H])
        c_new = f * c + i * gg
        h_new = o * jnp.tanh(c_new)
        return h_new, c_new

    h0 = jnp.zeros((B, H), jnp.float32)
    c0 = jnp.zeros((B, H), jnp.float32)
    h1 = jnp.zeros((B, H), jnp.float32)
    c1 = jnp.zeros((B, H), jnp.float32)

    for t in range(T):                               # fully unrolled (static T)
        h0, c0 = cell(x_ref[t], h0, c0, w0, b0)                      # layer 0
        h1, c1 = cell(h0.astype(jnp.bfloat16), h1, c1, w1, b1)       # layer 1
        # fused LayerNorm (== torch pre_norm1, applied per (b, t) row)
        mu = jnp.mean(h1, axis=-1, keepdims=True)
        var = jnp.mean((h1 - mu) ** 2, axis=-1, keepdims=True)
        o_ref[t] = ((h1 - mu) * jax.lax.rsqrt(var + eps)) * g + beta


def pallas_lstm2_ln(x_btf, w0, b0, w1, b1, ln_g, ln_b, hidden, eps=1e-5):
    """x: (B, T, 128) f32 -> LayerNorm(LSTM(x)) of shape (B, T, H) f32."""
    B, T, _ = x_btf.shape
    x_tbf = jnp.transpose(x_btf, (1, 0, 2)).astype(jnp.bfloat16)     # (T, B, F)
    out = pl.pallas_call(
        functools.partial(_lstm2_ln_kernel, hidden=hidden, eps=eps),
        out_shape=jax.ShapeDtypeStruct((T, B, hidden), jnp.float32),
    )(x_tbf, w0, b0.reshape(1, -1), w1, b1.reshape(1, -1),
      ln_g.reshape(1, -1), ln_b.reshape(1, -1))
    return jnp.transpose(out, (1, 0, 2))                             # (B, T, H)


def _dual_mlp_kernel(xs_ref, xt_ref,
                     ws1_ref, bs1_ref, ws2_ref, bs2_ref,
                     wt1_ref, bt1_ref, wt2_ref, bt2_ref,
                     os_ref, ot_ref):
    """Both Pro_MLP_for_SimCLR heads (Linear-ReLU-Linear) in a single launch."""
    def mlp(x, w1, b1, w2, b2, o_ref):
        h = jnp.dot(x, w1, preferred_element_type=jnp.float32) + b1
        h = jnp.maximum(h, 0.0)
        y = jnp.dot(h.astype(jnp.bfloat16), w2,
                    preferred_element_type=jnp.float32) + b2
        o_ref[...] = y.astype(o_ref.dtype)

    mlp(xs_ref[...], ws1_ref[...], bs1_ref[...], ws2_ref[...], bs2_ref[...], os_ref)
    mlp(xt_ref[...], wt1_ref[...], bt1_ref[...], wt2_ref[...], bt2_ref[...], ot_ref)


def pallas_dual_mlp(xs, xt, p):
    """xs/xt: (M, 64) stacked samples for the S head / T head."""
    M = xs.shape[0]
    return pl.pallas_call(
        _dual_mlp_kernel,
        out_shape=(jax.ShapeDtypeStruct((M, 64), jnp.float32),
                   jax.ShapeDtypeStruct((M, 64), jnp.float32)),
    )(xs.astype(jnp.bfloat16), xt.astype(jnp.bfloat16),
      p['proS_w1'], p['proS_b1'].reshape(1, -1),
      p['proS_w2'], p['proS_b2'].reshape(1, -1),
      p['proT_w1'], p['proT_b1'].reshape(1, -1),
      p['proT_w2'], p['proT_b2'].reshape(1, -1))


# --------------------------- parameter init --------------------------------

def trunc_normal(key, shape, std=0.02):
    return std * jax.random.truncated_normal(key, -2.0, 2.0, shape, jnp.float32)


def init_linear(key, in_dim, out_dim, w_dtype=jnp.float32):
    k1, k2 = jax.random.split(key)
    bound = 1.0 / math.sqrt(in_dim)
    w = jax.random.uniform(k1, (in_dim, out_dim), jnp.float32, -bound, bound)
    b = jax.random.uniform(k2, (out_dim,), jnp.float32, -bound, bound)
    return w.astype(w_dtype), b


def init_params(key, seq_len, pred_len, topk, hidden=128):
    keys = jax.random.split(key, 16)
    p = {}
    # TDCM projections (d_model = 1) -- consumed by jnp glue.
    p['q_w'], p['q_b'] = init_linear(keys[0], 1, 1)
    p['k_w'], p['k_b'] = init_linear(keys[1], 1, 1)
    p['v_w'], p['v_b'] = init_linear(keys[2], 1, 1)

    # 2-layer LSTM (input 128, hidden H); weights packed [Wih; Whh] in bf16,
    # biases combined (bih + bhh) in f32.
    bound = 1.0 / math.sqrt(hidden)

    def lstm_layer(k, in_dim):
        k1, k2, k3, k4 = jax.random.split(k, 4)
        wih = jax.random.uniform(k1, (in_dim, 4 * hidden), jnp.float32, -bound, bound)
        whh = jax.random.uniform(k2, (hidden, 4 * hidden), jnp.float32, -bound, bound)
        bih = jax.random.uniform(k3, (4 * hidden,), jnp.float32, -bound, bound)
        bhh = jax.random.uniform(k4, (4 * hidden,), jnp.float32, -bound, bound)
        return jnp.concatenate([wih, whh], axis=0).astype(jnp.bfloat16), bih + bhh

    p['W0'], p['b0'] = lstm_layer(keys[3], 128)
    p['W1'], p['b1'] = lstm_layer(keys[4], hidden)

    p['fc_w'], p['fc_b'] = init_linear(keys[5], hidden, 1)
    p['ln_g'] = jnp.ones((hidden,), jnp.float32)
    p['ln_b'] = jnp.zeros((hidden,), jnp.float32)

    p['encS_w'], p['encS_b'] = init_linear(keys[6], 1, 64)
    p['encT_w'], p['encT_b'] = init_linear(keys[7], topk, 64)

    p['cls_S'] = trunc_normal(keys[8], (1, 1, 1))
    p['cls_T'] = trunc_normal(keys[9], (1, 1, topk))

    # SimCLR projection heads (MXU operands -> bf16 weights, f32 biases).
    p['proS_w1'], p['proS_b1'] = init_linear(keys[10], 64, 512, jnp.bfloat16)
    p['proS_w2'], p['proS_b2'] = init_linear(keys[11], 512, 64, jnp.bfloat16)
    p['proT_w1'], p['proT_b1'] = init_linear(keys[12], 64, 512, jnp.bfloat16)
    p['proT_w2'], p['proT_b2'] = init_linear(keys[13], 512, 64, jnp.bfloat16)
    return p


# ----------------------------- model forward --------------------------------

def tdcm_cross_correlation(p, x1, x2, K_out, topk_full):
    """TDCM.cross_correlation with d_model=1 (exact torch semantics, in jnp)."""
    B, L, _ = x1.shape
    E = x2.shape[2]
    scale = 1.0 / math.sqrt(E)
    q = (x1 * p['q_w'][0, 0] + p['q_b'][0])[..., 0]       # (B, L)
    k = (x2 * p['k_w'][0, 0] + p['k_b'][0])[..., 0]       # (B, L)
    values = x2 * p['v_w'][0, 0] + p['v_b'][0]            # (B, L, 1)

    q_f = jnp.fft.rfft(q, axis=-1)
    k_f = jnp.fft.rfft(k, axis=-1)
    corr = jnp.fft.irfft(q_f * jnp.conj(k_f), n=L, axis=-1)   # (B, L)

    mean_value = corr                                     # mean over channel dim (size 1)
    _, index = jax.lax.top_k(jnp.mean(mean_value, axis=0), topk_full)   # (topk_full,)
    weights = mean_value[:, index]                        # (B, topk_full)
    tmp_corr = jax.nn.softmax(weights * scale, axis=-1)   # (B, topk_full)

    m = jnp.arange(L)
    pos = (m[None, :] + index[:, None]) % L               # roll(values, -index[i])
    rolled = values[:, :, 0][:, pos]                      # (B, topk_full, L)
    v = jnp.transpose(rolled, (0, 2, 1)) * tmp_corr[:, None, :]   # (B, L, topk_full)
    return v[..., :K_out], v[..., -K_out:]


def info_nce(series, series_nc, text, text_nc, temp):
    Bn = series.shape[0]
    series_feat_all = jnp.concatenate([series.T, series_nc.T], axis=1)   # (64, 2B)
    text_feat_all = jnp.concatenate([text.T, text_nc.T], axis=1)         # (64, 2B)
    sim_s2t = series @ text_feat_all / temp                              # (B, 2B)
    sim_t2s = text @ series_feat_all / temp
    targets = jnp.concatenate([jnp.eye(Bn, dtype=jnp.float32),
                               jnp.zeros((Bn, Bn), jnp.float32)], axis=1)

    def ce(sim):
        return -jnp.sum(jax.nn.log_softmax(sim, axis=1) * targets, axis=1).mean()

    return 0.5 * (ce(sim_s2t) + ce(sim_t2s))


def _l2_normalize(x, eps=1e-12):
    return x / jnp.maximum(jnp.linalg.norm(x, axis=-1, keepdims=True), eps)


def lstm_model_forward(p, target, st_s_embedding, target_label, *,
                       seq_len, pred_len, topk, hidden=128, temp=0.7, rand_idx=3):
    B = target.shape[0]
    st = st_s_embedding[..., None]                                    # (B, L, 1)
    st_c, st_nc = tdcm_cross_correlation(p, target, st, topk, seq_len)

    x_init = jnp.concatenate(
        [target, jnp.zeros((B, pred_len, target.shape[2]), jnp.float32)], axis=1)
    st_init = jnp.concatenate(
        [st_c, jnp.zeros((B, pred_len, st_c.shape[2]), jnp.float32)], axis=1)
    cls_S = jnp.broadcast_to(p['cls_S'], (B, 1, 1))
    cls_T = jnp.broadcast_to(p['cls_T'], (B, 1, topk))
    x_init = jnp.concatenate([cls_S, x_init], axis=1)                 # (B, 1+L+P, 1)
    st_init = jnp.concatenate([cls_T, st_init], axis=1)               # (B, 1+L+P, topk)
    st_nc = jnp.concatenate([cls_T, st_nc], axis=1)                   # (B, 1+L, topk)

    # Tiny encoders as plain jnp: launch overhead of a pallas_call >> compute.
    x_init_e = x_init @ p['encS_w'] + p['encS_b']                     # (B, 1+L+P, 64)
    st_init_e = st_init @ p['encT_w'] + p['encT_b']                   # (B, 1+L+P, 64)
    st_nc_S = st_nc[..., -1:] @ p['encS_w'] + p['encS_b']             # (B, 1+L, 64)
    st_nc_T = st_nc @ p['encT_w'] + p['encT_b']                       # (B, 1+L, 64)

    # TODO(synk): torch draws rand_idx with np.random each forward; fixed here
    # to a deterministic static index (must be static for slicing).
    xs = jnp.concatenate([x_init_e[:, rand_idx, :], st_nc_S[:, rand_idx, :],
                          x_init_e[:, 0, :], st_nc_S[:, 0, :]], axis=0)   # (4B, 64)
    xt = jnp.concatenate([st_init_e[:, rand_idx, :], st_nc_T[:, rand_idx, :],
                          st_init_e[:, 0, :], st_nc_T[:, 0, :]], axis=0)  # (4B, 64)
    proS, proT = pallas_dual_mlp(xs, xt, p)                           # one launch, both heads
    proS = _l2_normalize(proS)
    proT = _l2_normalize(proT)
    Pro_S, Pro_S_nc, Pro_S_cls, Pro_S_cls_nc = jnp.split(proS, 4, axis=0)
    Pro_T, Pro_T_nc, Pro_T_cls, Pro_T_cls_nc = jnp.split(proT, 4, axis=0)

    x_enc = jnp.concatenate([x_init_e, st_init_e], axis=-1)           # (B, T, 128)
    out_ln = pallas_lstm2_ln(x_enc, p['W0'], p['b0'], p['W1'], p['b1'],
                             p['ln_g'], p['ln_b'], hidden)            # (B, T, H), LN fused
    pre = out_ln[:, -pred_len:, :] @ p['fc_w'] + p['fc_b']            # (B, P, 1)

    mse = jnp.mean((pre - target_label) ** 2)
    loss = (mse
            + info_nce(Pro_S, Pro_S_nc, Pro_T, Pro_T_nc, temp)
            + info_nce(Pro_S_cls, Pro_S_cls_nc, Pro_T_cls, Pro_T_cls_nc, temp))
    return loss, pre


# --------------------------------- main -------------------------------------

if __name__ == "__main__":
    seq_len, pred_len, topk = 8, 4, 4
    B, hidden = 2, 128

    key = jax.random.PRNGKey(0)
    kp, k1, k2, k3 = jax.random.split(key, 4)
    params = init_params(kp, seq_len, pred_len, topk, hidden)

    target = jax.random.normal(k1, (B, seq_len, 1), jnp.float32)
    st_s_embedding = jax.random.normal(k2, (B, seq_len), jnp.float32)
    target_label = jax.random.normal(k3, (B, pred_len, 1), jnp.float32)

    fwd = jax.jit(functools.partial(lstm_model_forward, seq_len=seq_len,
                                    pred_len=pred_len, topk=topk, hidden=hidden))
    loss, pre = fwd(params, target, st_s_embedding, target_label)
    jax.block_until_ready((loss, pre))
    assert pre.shape == (B, pred_len, 1)
    assert loss.shape == ()
    assert bool(jnp.isfinite(loss))
    print("KERNEL_OK")
</pallas_src>

<mosaic_0001>
module attributes {stable_mosaic.version = 11 : i64} {
  func.func @_lstm2_ln_kernel(%arg0: memref<13x2x128xbf16, #tpu.memory_space<vmem>>, %arg1: memref<256x512xbf16, #tpu.memory_space<vmem>>, %arg2: memref<1x512xf32, #tpu.memory_space<vmem>>, %arg3: memref<256x512xbf16, #tpu.memory_space<vmem>>, %arg4: memref<1x512xf32, #tpu.memory_space<vmem>>, %arg5: memref<1x128xf32, #tpu.memory_space<vmem>>, %arg6: memref<1x128xf32, #tpu.memory_space<vmem>>, %arg7: memref<13x2x128xf32, #tpu.memory_space<vmem>>) attributes {dimension_semantics = [], scalar_prefetch = 0 : i64, scratch_operands = 0 : i64, tpu.core_type = #tpu.core_type<tc>} {
    %c0 = arith.constant 0 : index
    %c0_0 = arith.constant 0 : index
    %0 = vector.load %arg1[%c0, %c0_0] : memref<256x512xbf16, #tpu.memory_space<vmem>>, vector<256x512xbf16>
    %c0_1 = arith.constant 0 : index
    %c0_2 = arith.constant 0 : index
    %1 = vector.load %arg3[%c0_1, %c0_2] : memref<256x512xbf16, #tpu.memory_space<vmem>>, vector<256x512xbf16>
    %c0_3 = arith.constant 0 : index
    %c0_4 = arith.constant 0 : index
    %2 = vector.load %arg2[%c0_3, %c0_4] : memref<1x512xf32, #tpu.memory_space<vmem>>, vector<1x512xf32>
    %c0_5 = arith.constant 0 : index
    %c0_6 = arith.constant 0 : index
    %3 = vector.load %arg4[%c0_5, %c0_6] : memref<1x512xf32, #tpu.memory_space<vmem>>, vector<1x512xf32>
    %c0_7 = arith.constant 0 : index
    %c0_8 = arith.constant 0 : index
    %4 = vector.load %arg5[%c0_7, %c0_8] : memref<1x128xf32, #tpu.memory_space<vmem>>, vector<1x128xf32>
    %c0_9 = arith.constant 0 : index
    %c0_10 = arith.constant 0 : index
    %5 = vector.load %arg6[%c0_9, %c0_10] : memref<1x128xf32, #tpu.memory_space<vmem>>, vector<1x128xf32>
    %cst = arith.constant 0.000000e+00 : f32
    %6 = vector.broadcast %cst : f32 to vector<2x128xf32>
    %cst_11 = arith.constant 0.000000e+00 : f32
    %7 = vector.broadcast %cst_11 : f32 to vector<2x128xf32>
    %cst_12 = arith.constant 0.000000e+00 : f32
    %8 = vector.broadcast %cst_12 : f32 to vector<2x128xf32>
    %cst_13 = arith.constant 0.000000e+00 : f32
    %9 = vector.broadcast %cst_13 : f32 to vector<2x128xf32>
    %c0_14 = arith.constant 0 : index
    %c0_15 = arith.constant 0 : index
    %c0_16 = arith.constant 0 : index
    %10 = vector.load %arg0[%c0_14, %c0_15, %c0_16] : memref<13x2x128xbf16, #tpu.memory_space<vmem>>, vector<1x2x128xbf16>
    %11 = vector.shape_cast %10 : vector<1x2x128xbf16> to vector<2x128xbf16>
    %12 = arith.truncf %6 : vector<2x128xf32> to vector<2x128xbf16>
    %13 = tpu.concatenate %11, %12 in 1 : vector<2x128xbf16>, vector<2x128xbf16> -> vector<2x256xbf16>
    %cst_17 = arith.constant dense<0.000000e+00> : vector<2x512xf32>
    %14 = tpu.matmul %13, %0, %cst_17 {dimension_numbers = #tpu.dot_dimension_numbers<[1], [0], [0], [1], [0, 0, 1, 1], [], []>} : vector<2x256xbf16>, vector<256x512xbf16>, vector<2x512xf32> -> vector<2x512xf32>
    %15 = vector.broadcast %2 : vector<1x512xf32> to vector<2x512xf32>
    %16 = arith.addf %14, %15 : vector<2x512xf32>
    %17 = vector.extract_strided_slice %16 {offsets = [0, 0], sizes = [2, 128], strides = [1, 1]} : vector<2x512xf32> to vector<2x128xf32>
    %18 = arith.negf %17 : vector<2x128xf32>
    %19 = math.exp %18 : vector<2x128xf32>
    %cst_18 = arith.constant 1.000000e+00 : f32
    %20 = vector.broadcast %cst_18 : f32 to vector<2x128xf32>
    %21 = arith.addf %20, %19 : vector<2x128xf32>
    %22 = arith.divf %20, %21 : vector<2x128xf32>
    %23 = vector.extract_strided_slice %16 {offsets = [0, 128], sizes = [2, 128], strides = [1, 1]} : vector<2x512xf32> to vector<2x128xf32>
    %24 = arith.negf %23 : vector<2x128xf32>
    %25 = math.exp %24 : vector<2x128xf32>
    %cst_19 = arith.constant 1.000000e+00 : f32
    %26 = vector.broadcast %cst_19 : f32 to vector<2x128xf32>
    %27 = arith.addf %26, %25 : vector<2x128xf32>
    %28 = arith.divf %26, %27 : vector<2x128xf32>
    %29 = vector.extract_strided_slice %16 {offsets = [0, 256], sizes = [2, 128], strides = [1, 1]} : vector<2x512xf32> to vector<2x128xf32>
    %30 = math.tanh %29 : vector<2x128xf32>
    %31 = vector.extract_strided_slice %16 {offsets = [0, 384], sizes = [2, 128], strides = [1, 1]} : vector<2x512xf32> to vector<2x128xf32>
    %32 = arith.negf %31 : vector<2x128xf32>
    %33 = math.exp %32 : vector<2x128xf32>
    %cst_20 = arith.constant 1.000000e+00 : f32
    %34 = vector.broadcast %cst_20 : f32 to vector<2x128xf32>
    %35 = arith.addf %34, %33 : vector<2x128xf32>
    %36 = arith.divf %34, %35 : vector<2x128xf32>
    %37 = arith.mulf %28, %7 : vector<2x128xf32>
    %38 = arith.mulf %22, %30 : vector<2x128xf32>
    %39 = arith.addf %37, %38 : vector<2x128xf32>
    %40 = math.tanh %39 : vector<2x128xf32>
    %41 = arith.mulf %36, %40 : vector<2x128xf32>
    %42 = arith.truncf %41 : vector<2x128xf32> to vector<2x128xbf16>
    %43 = arith.truncf %8 : vector<2x128xf32> to vector<2x128xbf16>
    %44 = tpu.concatenate %42, %43 in 1 : vector<2x128xbf16>, vector<2x128xbf16> -> vector<2x256xbf16>
    %cst_21 = arith.constant dense<0.000000e+00> : vector<2x512xf32>
    %45 = tpu.matmul %44, %1, %cst_21 {dimension_numbers = #tpu.dot_dimension_numbers<[1], [0], [0], [1], [0, 0, 1, 1], [], []>} : vector<2x256xbf16>, vector<256x512xbf16>, vector<2x512xf32> -> vector<2x512xf32>
    %46 = vector.broadcast %3 : vector<1x512xf32> to vector<2x512xf32>
    %47 = arith.addf %45, %46 : vector<2x512xf32>
    %48 = vector.extract_strided_slice %47 {offsets = [0, 0], sizes = [2, 128], strides = [1, 1]} : vector<2x512xf32> to vector<2x128xf32>
    %49 = arith.negf %48 : vector<2x128xf32>
    %50 = math.exp %49 : vector<2x128xf32>
    %cst_22 = arith.constant 1.000000e+00 : f32
    %51 = vector.broadcast %cst_22 : f32 to vector<2x128xf32>
    %52 = arith.addf %51, %50 : vector<2x128xf32>
    %53 = arith.divf %51, %52 : vector<2x128xf32>
    %54 = vector.extract_strided_slice %47 {offsets = [0, 128], sizes = [2, 128], strides = [1, 1]} : vector<2x512xf32> to vector<2x128xf32>
    %55 = arith.negf %54 : vector<2x128xf32>
    %56 = math.exp %55 : vector<2x128xf32>
    %cst_23 = arith.constant 1.000000e+00 : f32
    %57 = vector.broadcast %cst_23 : f32 to vector<2x128xf32>
    %58 = arith.addf %57, %56 : vector<2x128xf32>
    %59 = arith.divf %57, %58 : vector<2x128xf32>
    %60 = vector.extract_strided_slice %47 {offsets = [0, 256], sizes = [2, 128], strides = [1, 1]} : vector<2x512xf32> to vector<2x128xf32>
    %61 = math.tanh %60 : vector<2x128xf32>
    %62 = vector.extract_strided_slice %47 {offsets = [0, 384], sizes = [2, 128], strides = [1, 1]} : vector<2x512xf32> to vector<2x128xf32>
    %63 = arith.negf %62 : vector<2x128xf32>
    %64 = math.exp %63 : vector<2x128xf32>
    %cst_24 = arith.constant 1.000000e+00 : f32
    %65 = vector.broadcast %cst_24 : f32 to vector<2x128xf32>
    %66 = arith.addf %65, %64 : vector<2x128xf32>
    %67 = arith.divf %65, %66 : vector<2x128xf32>
    %68 = arith.mulf %59, %9 : vector<2x128xf32>
    %69 = arith.mulf %53, %61 : vector<2x128xf32>
    %70 = arith.addf %68, %69 : vector<2x128xf32>
    %71 = math.tanh %70 : vector<2x128xf32>
    %72 = arith.mulf %67, %71 : vector<2x128xf32>
    %cst_25 = arith.constant dense<0.000000e+00> : vector<2xf32>
    %73 = vector.multi_reduction <add>, %72, %cst_25 [1] : vector<2x128xf32> to vector<2xf32>
    %74 = vector.shape_cast %73 : vector<2xf32> to vector<2x1xf32>
    %cst_26 = arith.constant 1.280000e+02 : f32
    %75 = vector.broadcast %cst_26 : f32 to vector<2x1xf32>
    %76 = arith.divf %74, %75 : vector<2x1xf32>
    %77 = vector.broadcast %76 : vector<2x1xf32> to vector<2x128xf32>
    %78 = arith.subf %72, %77 : vector<2x128xf32>
    %79 = arith.mulf %78, %78 : vector<2x128xf32>
    %cst_27 = arith.constant dense<0.000000e+00> : vector<2xf32>
    %80 = vector.multi_reduction <add>, %79, %cst_27 [1] : vector<2x128xf32> to vector<2xf32>
    %81 = vector.shape_cast %80 : vector<2xf32> to vector<2x1xf32>
    %cst_28 = arith.constant 1.280000e+02 : f32
    %82 = vector.broadcast %cst_28 : f32 to vector<2x1xf32>
    %83 = arith.divf %81, %82 : vector<2x1xf32>
    %84 = vector.broadcast %76 : vector<2x1xf32> to vector<2x128xf32>
    %85 = arith.subf %72, %84 : vector<2x128xf32>
    %cst_29 = arith.constant 9.99999974E-6 : f32
    %86 = vector.broadcast %cst_29 : f32 to vector<2x1xf32>
    %87 = arith.addf %83, %86 : vector<2x1xf32>
    %88 = math.rsqrt %87 : vector<2x1xf32>
    %89 = vector.broadcast %88 : vector<2x1xf32> to vector<2x128xf32>
    %90 = arith.mulf %85, %89 : vector<2x128xf32>
    %91 = vector.broadcast %4 : vector<1x128xf32> to vector<2x128xf32>
    %92 = arith.mulf %90, %91 : vector<2x128xf32>
    %93 = vector.broadcast %5 : vector<1x128xf32> to vector<2x128xf32>
    %94 = arith.addf %92, %93 : vector<2x128xf32>
    %c0_30 = arith.constant 0 : index
    %c0_31 = arith.constant 0 : index
    %c0_32 = arith.constant 0 : index
    %95 = vector.load %arg7[%c0_30, %c0_31, %c0_32] : memref<13x2x128xf32, #tpu.memory_space<vmem>>, vector<1x2x128xf32>
    %96 = vector.shape_cast %95 : vector<1x2x128xf32> to vector<2x128xf32>
    %97 = vector.shape_cast %94 : vector<2x128xf32> to vector<1x2x128xf32>
    tpu.vector_store %arg7[%c0_30, %c0_31, %c0_32], %97 {strides = array<i32>} : memref<13x2x128xf32, #tpu.memory_space<vmem>>, vector<1x2x128xf32>,
    %c1 = arith.constant 1 : index
    %c0_33 = arith.constant 0 : index
    %c0_34 = arith.constant 0 : index
    %98 = vector.load %arg0[%c1, %c0_33, %c0_34] : memref<13x2x128xbf16, #tpu.memory_space<vmem>>, vector<1x2x128xbf16>
    %99 = vector.shape_cast %98 : vector<1x2x128xbf16> to vector<2x128xbf16>
    %100 = arith.truncf %41 : vector<2x128xf32> to vector<2x128xbf16>
    %101 = tpu.concatenate %99, %100 in 1 : vector<2x128xbf16>, vector<2x128xbf16> -> vector<2x256xbf16>
    %cst_35 = arith.constant dense<0.000000e+00> : vector<2x512xf32>
    %102 = tpu.matmul %101, %0, %cst_35 {dimension_numbers = #tpu.dot_dimension_numbers<[1], [0], [0], [1], [0, 0, 1, 1], [], []>} : vector<2x256xbf16>, vector<256x512xbf16>, vector<2x512xf32> -> vector<2x512xf32>
    %103 = vector.broadcast %2 : vector<1x512xf32> to vector<2x512xf32>
    %104 = arith.addf %102, %103 : vector<2x512xf32>
    %105 = vector.extract_strided_slice %104 {offsets = [0, 0], sizes = [2, 128], strides = [1, 1]} : vector<2x512xf32> to vector<2x128xf32>
    %106 = arith.negf %105 : vector<2x128xf32>
    %107 = math.exp %106 : vector<2x128xf32>
    %cst_36 = arith.constant 1.000000e+00 : f32
    %108 = vector.broadcast %cst_36 : f32 to vector<2x128xf32>
    %109 = arith.addf %108, %107 : vector<2x128xf32>
    %110 = arith.divf %108, %109 : vector<2x128xf32>
    %111 = vector.extract_strided_slice %104 {offsets = [0, 128], sizes = [2, 128], strides = [1, 1]} : vector<2x512xf32> to vector<2x128xf32>
    %112 = arith.negf %111 : vector<2x128xf32>
    %113 = math.exp %112 : vector<2x128xf32>
    %cst_37 = arith.constant 1.000000e+00 : f32
    %114 = vector.broadcast %cst_37 : f32 to vector<2x128xf32>
    %115 = arith.addf %114, %113 : vector<2x128xf32>
    %116 = arith.divf %114, %115 : vector<2x128xf32>
    %117 = vector.extract_strided_slice %104 {offsets = [0, 256], sizes = [2, 128], strides = [1, 1]} : vector<2x512xf32> to vector<2x128xf32>
    %118 = math.tanh %117 : vector<2x128xf32>
    %119 = vector.extract_strided_slice %104 {offsets = [0, 384], sizes = [2, 128], strides = [1, 1]} : vector<2x512xf32> to vector<2x128xf32>
    %120 = arith.negf %119 : vector<2x128xf32>
    %121 = math.exp %120 : vector<2x128xf32>
    %cst_38 = arith.constant 1.000000e+00 : f32
    %122 = vector.broadcast %cst_38 : f32 to vector<2x128xf32>
    %123 = arith.addf %122, %121 : vector<2x128xf32>
    %124 = arith.divf %122, %123 : vector<2x128xf32>
    %125 = arith.mulf %116, %39 : vector<2x128xf32>
    %126 = arith.mulf %110, %118 : vector<2x128xf32>
    %127 = arith.addf %125, %126 : vector<2x128xf32>
    %128 = math.tanh %127 : vector<2x128xf32>
    %129 = arith.mulf %124, %128 : vector<2x128xf32>
    %130 = arith.truncf %129 : vector<2x128xf32> to vector<2x128xbf16>
    %131 = arith.truncf %72 : vector<2x128xf32> to vector<2x128xbf16>
    %132 = tpu.concatenate %130, %131 in 1 : vector<2x128xbf16>, vector<2x128xbf16> -> vector<2x256xbf16>
    %cst_39 = arith.constant dense<0.000000e+00> : vector<2x512xf32>
    %133 = tpu.matmul %132, %1, %cst_39 {dimension_numbers = #tpu.dot_dimension_numbers<[1], [0], [0], [1], [0, 0, 1, 1], [], []>} : vector<2x256xbf16>, vector<256x512xbf16>, vector<2x512xf32> -> vector<2x512xf32>
    %134 = vector.broadcast %3 : vector<1x512xf32> to vector<2x512xf32>
    %135 = arith.addf %133, %134 : vector<2x512xf32>
    %136 = vector.extract_strided_slice %135 {offsets = [0, 0], sizes = [2, 128], strides = [1, 1]} : vector<2x512xf32> to vector<2x128xf32>
    %137 = arith.negf %136 : vector<2x128xf32>
    %138 = math.exp %137 : vector<2x128xf32>
    %cst_40 = arith.constant 1.000000e+00 : f32
    %139 = vector.broadcast %cst_40 : f32 to vector<2x128xf32>
    %140 = arith.addf %139, %138 : vector<2x128xf32>
    %141 = arith.divf %139, %140 : vector<2x128xf32>
    %142 = vector.extract_strided_slice %135 {offsets = [0, 128], sizes = [2, 128], strides = [1, 1]} : vector<2x512xf32> to vector<2x128xf32>
    %143 = arith.negf %142 : vector<2x128xf32>
    %144 = math.exp %143 : vector<2x128xf32>
    %cst_41 = arith.constant 1.000000e+00 : f32
    %145 = vector.broadcast %cst_41 : f32 to vector<2x128xf32>
    %146 = arith.addf %145, %144 : vector<2x128xf32>
    %147 = arith.divf %145, %146 : vector<2x128xf32>
    %148 = vector.extract_strided_slice %135 {offsets = [0, 256], sizes = [2, 128], strides = [1, 1]} : vector<2x512xf32> to vector<2x128xf32>
    %149 = math.tanh %148 : vector<2x128xf32>
    %150 = vector.extract_strided_slice %135 {offsets = [0, 384], sizes = [2, 128], strides = [1, 1]} : vector<2x512xf32> to vector<2x128xf32>
    %151 = arith.negf %150 : vector<2x128xf32>
    %152 = math.exp %151 : vector<2x128xf32>
    %cst_42 = arith.constant 1.000000e+00 : f32
    %153 = vector.broadcast %cst_42 : f32 to vector<2x128xf32>
    %154 = arith.addf %153, %152 : vector<2x128xf32>
    %155 = arith.divf %153, %154 : vector<2x128xf32>
    %156 = arith.mulf %147, %70 : vector<2x128xf32>
    %157 = arith.mulf %141, %149 : vector<2x128xf32>
    %158 = arith.addf %156, %157 : vector<2x128xf32>
    %159 = math.tanh %158 : vector<2x128xf32>
    %160 = arith.mulf %155, %159 : vector<2x128xf32>
    %cst_43 = arith.constant dense<0.000000e+00> : vector<2xf32>
    %161 = vector.multi_reduction <add>, %160, %cst_43 [1] : vector<2x128xf32> to vector<2xf32>
    %162 = vector.shape_cast %161 : vector<2xf32> to vector<2x1xf32>
    %cst_44 = arith.constant 1.280000e+02 : f32
    %163 = vector.broadcast %cst_44 : f32 to vector<2x1xf32>
    %164 = arith.divf %162, %163 : vector<2x1xf32>
    %165 = vector.broadcast %164 : vector<2x1xf32> to vector<2x128xf32>
    %166 = arith.subf %160, %165 : vector<2x128xf32>
    %167 = arith.mulf %166, %166 : vector<2x128xf32>
    %cst_45 = arith.constant dense<0.000000e+00> : vector<2xf32>
    %168 = vector.multi_reduction <add>, %167, %cst_45 [1] : vector<2x128xf32> to vector<2xf32>
    %169 = vector.shape_cast %168 : vector<2xf32> to vector<2x1xf32>
    %cst_46 = arith.constant 1.280000e+02 : f32
    %170 = vector.broadcast %cst_46 : f32 to vector<2x1xf32>
    %171 = arith.divf %169, %170 : vector<2x1xf32>
    %172 = vector.broadcast %164 : vector<2x1xf32> to vector<2x128xf32>
    %173 = arith.subf %160, %172 : vector<2x128xf32>
    %cst_47 = arith.constant 9.99999974E-6 : f32
    %174 = vector.broadcast %cst_47 : f32 to vector<2x1xf32>
    %175 = arith.addf %171, %174 : vector<2x1xf32>
    %176 = math.rsqrt %175 : vector<2x1xf32>
    %177 = vector.broadcast %176 : vector<2x1xf32> to vector<2x128xf32>
    %178 = arith.mulf %173, %177 : vector<2x128xf32>
    %179 = vector.broadcast %4 : vector<1x128xf32> to vector<2x128xf32>
    %180 = arith.mulf %178, %179 : vector<2x128xf32>
    %181 = vector.broadcast %5 : vector<1x128xf32> to vector<2x128xf32>
    %182 = arith.addf %180, %181 : vector<2x128xf32>
    %c1_48 = arith.constant 1 : index
    %c0_49 = arith.constant 0 : index
    %c0_50 = arith.constant 0 : index
    %183 = vector.load %arg7[%c1_48, %c0_49, %c0_50] : memref<13x2x128xf32, #tpu.memory_space<vmem>>, vector<1x2x128xf32>
    %184 = vector.shape_cast %183 : vector<1x2x128xf32> to vector<2x128xf32>
    %185 = vector.shape_cast %182 : vector<2x128xf32> to vector<1x2x128xf32>
    tpu.vector_store %arg7[%c1_48, %c0_49, %c0_50], %185 {strides = array<i32>} : memref<13x2x128xf32, #tpu.memory_space<vmem>>, vector<1x2x128xf32>,
    %c2 = arith.constant 2 : index
    %c0_51 = arith.constant 0 : index
    %c0_52 = arith.constant 0 : index
    %186 = vector.load %arg0[%c2, %c0_51, %c0_52] : memref<13x2x128xbf16, #tpu.memory_space<vmem>>, vector<1x2x128xbf16>
    %187 = vector.shape_cast %186 : vector<1x2x128xbf16> to vector<2x128xbf16>
    %188 = arith.truncf %129 : vector<2x128xf32> to vector<2x128xbf16>
    %189 = tpu.concatenate %187, %188 in 1 : vector<2x128xbf16>, vector<2x128xbf16> -> vector<2x256xbf16>
    %cst_53 = arith.constant dense<0.000000e+00> : vector<2x512xf32>
    %190 = tpu.matmul %189, %0, %cst_53 {dimension_numbers = #tpu.dot_dimension_numbers<[1], [0], [0], [1], [0, 0, 1, 1], [], []>} : vector<2x256xbf16>, vector<256x512xbf16>, vector<2x512xf32> -> vector<2x512xf32>
    %191 = vector.broadcast %2 : vector<1x512xf32> to vector<2x512xf32>
    %192 = arith.addf %190, %191 : vector<2x512xf32>
    %193 = vector.extract_strided_slice %192 {offsets = [0, 0], sizes = [2, 128], strides = [1, 1]} : vector<2x512xf32> to vector<2x128xf32>
    %194 = arith.negf %193 : vector<2x128xf32>
    %195 = math.exp %194 : vector<2x128xf32>
    %cst_54 = arith.constant 1.000000e+00 : f32
    %196 = vector.broadcast %cst_54 : f32 to vector<2x128xf32>
    %197 = arith.addf %196, %195 : vector<2x128xf32>
    %198 = arith.divf %196, %197 : vector<2x128xf32>
    %199 = vector.extract_strided_slice %192 {offsets = [0, 128], sizes = [2, 128], strides = [1, 1]} : vector<2x512xf32> to vector<2x128xf32>
    %200 = arith.negf %199 : vector<2x128xf32>
    %201 = math.exp %200 : vector<2x128xf32>
    %cst_55 = arith.constant 1.000000e+00 : f32
    %202 = vector.broadcast %cst_55 : f32 to vector<2x128xf32>
    %203 = arith.addf %202, %201 : vector<2x128xf32>
    %204 = arith.divf %202, %203 : vector<2x128xf32>
    %205 = vector.extract_strided_slice %192 {offsets = [0, 256], sizes = [2, 128], strides = [1, 1]} : vector<2x512xf32> to vector<2x128xf32>
    %206 = math.tanh %205 : vector<2x128xf32>
    %207 = vector.extract_strided_slice %192 {offsets = [0, 384], sizes = [2, 128], strides = [1, 1]} : vector<2x512xf32> to vector<2x128xf32>
    %208 = arith.negf %207 : vector<2x128xf32>
    %209 = math.exp %208 : vector<2x128xf32>
    %cst_56 = arith.constant 1.000000e+00 : f32
    %210 = vector.broadcast %cst_56 : f32 to vector<2x128xf32>
    %211 = arith.addf %210, %209 : vector<2x128xf32>
    %212 = arith.divf %210, %211 : vector<2x128xf32>
    %213 = arith.mulf %204, %127 : vector<2x128xf32>
    %214 = arith.mulf %198, %206 : vector<2x128xf32>
    %215 = arith.addf %213, %214 : vector<2x128xf32>
    %216 = math.tanh %215 : vector<2x128xf32>
    %217 = arith.mulf %212, %216 : vector<2x128xf32>
    %218 = arith.truncf %217 : vector<2x128xf32> to vector<2x128xbf16>
    %219 = arith.truncf %160 : vector<2x128xf32> to vector<2x128xbf16>
    %220 = tpu.concatenate %218, %219 in 1 : vector<2x128xbf16>, vector<2x128xbf16> -> vector<2x256xbf16>
    %cst_57 = arith.constant dense<0.000000e+00> : vector<2x512xf32>
    %221 = tpu.matmul %220, %1, %cst_57 {dimension_numbers = #tpu.dot_dimension_numbers<[1], [0], [0], [1], [0, 0, 1, 1], [], []>} : vector<2x256xbf16>, vector<256x512xbf16>, vector<2x512xf32> -> vector<2x512xf32>
    %222 = vector.broadcast %3 : vector<1x512xf32> to vector<2x512xf32>
    %223 = arith.addf %221, %222 : vector<2x512xf32>
    %224 = vector.extract_strided_slice %223 {offsets = [0, 0], sizes = [2, 128], strides = [1, 1]} : vector<2x512xf32> to vector<2x128xf32>
    %225 = arith.negf %224 : vector<2x128xf32>
    %226 = math.exp %225 : vector<2x128xf32>
    %cst_58 = arith.constant 1.000000e+00 : f32
    %227 = vector.broadcast %cst_58 : f32 to vector<2x128xf32>
    %228 = arith.addf %227, %226 : vector<2x128xf32>
    %229 = arith.divf %227, %228 : vector<2x128xf32>
    %230 = vector.extract_strided_slice %223 {offsets = [0, 128], sizes = [2, 128], strides = [1, 1]} : vector<2x512xf32> to vector<2x128xf32>
    %231 = arith.negf %230 : vector<2x128xf32>
    %232 = math.exp %231 : vector<2x128xf32>
    %cst_59 = arith.constant 1.000000e+00 : f32
    %233 = vector.broadcast %cst_59 : f32 to vector<2x128xf32>
    %234 = arith.addf %233, %232 : vector<2x128xf32>
    %235 = arith.divf %233, %234 : vector<2x128xf32>
    %236 = vector.extract_strided_slice %223 {offsets = [0, 256], sizes = [2, 128], strides = [1, 1]} : vector<2x512xf32> to vector<2x128xf32>
    %237 = math.tanh %236 : vector<2x128xf32>
    %238 = vector.extract_strided_slice %223 {offsets = [0, 384], sizes = [2, 128], strides = [1, 1]} : vector<2x512xf32> to vector<2x128xf32>
    %239 = arith.negf %238 : vector<2x128xf32>
    %240 = math.exp %239 : vector<2x128xf32>
    %cst_60 = arith.constant 1.000000e+00 : f32
    %241 = vector.broadcast %cst_60 : f32 to vector<2x128xf32>
    %242 = arith.addf %241, %240 : vector<2x128xf32>
    %243 = arith.divf %241, %242 : vector<2x128xf32>
    %244 = arith.mulf %235, %158 : vector<2x128xf32>
    %245 = arith.mulf %229, %237 : vector<2x128xf32>
    %246 = arith.addf %244, %245 : vector<2x128xf32>
    %247 = math.tanh %246 : vector<2x128xf32>
    %248 = arith.mulf %243, %247 : vector<2x128xf32>
    %cst_61 = arith.constant dense<0.000000e+00> : vector<2xf32>
    %249 = vector.multi_reduction <add>, %248, %cst_61 [1] : vector<2x128xf32> to vector<2xf32>
    %250 = vector.shape_cast %249 : vector<2xf32> to vector<2x1xf32>
    %cst_62 = arith.constant 1.280000e+02 : f32
    %251 = vector.broadcast %cst_62 : f32 to vector<2x1xf32>
    %252 = arith.divf %250, %251 : vector<2x1xf32>
    %253 = vector.broadcast %252 : vector<2x1xf32> to vector<2x128xf32>
    %254 = arith.subf %248, %253 : vector<2x128xf32>
    %255 = arith.mulf %254, %254 : vector<2x128xf32>
    %cst_63 = arith.constant dense<0.000000e+00> : vector<2xf32>
    %256 = vector.multi_reduction <add>, %255, %cst_63 [1] : vector<2x128xf32> to vector<2xf32>
    %257 = vector.shape_cast %256 : vector<2xf32> to vector<2x1xf32>
    %cst_64 = arith.constant 1.280000e+02 : f32
    %258 = vector.broadcast %cst_64 : f32 to vector<2x1xf32>
    %259 = arith.divf %257, %258 : vector<2x1xf32>
    %260 = vector.broadcast %252 : vector<2x1xf32> to vector<2x128xf32>
    %261 = arith.subf %248, %260 : vector<2x128xf32>
    %cst_65 = arith.constant 9.99999974E-6 : f32
    %262 = vector.broadcast %cst_65 : f32 to vector<2x1xf32>
    %263 = arith.addf %259, %262 : vector<2x1xf32>
    %264 = math.rsqrt %263 : vector<2x1xf32>
    %265 = vector.broadcast %264 : vector<2x1xf32> to vector<2x128xf32>
    %266 = arith.mulf %261, %265 : vector<2x128xf32>
    %267 = vector.broadcast %4 : vector<1x128xf32> to vector<2x128xf32>
    %268 = arith.mulf %266, %267 : vector<2x128xf32>
    %269 = vector.broadcast %5 : vector<1x128xf32> to vector<2x128xf32>
    %270 = arith.addf %268, %269 : vector<2x128xf32>
    %c2_66 = arith.constant 2 : index
    %c0_67 = arith.constant 0 : index
    %c0_68 = arith.constant 0 : index
    %271 = vector.load %arg7[%c2_66, %c0_67, %c0_68] : memref<13x2x128xf32, #tpu.memory_space<vmem>>, vector<1x2x128xf32>
    %272 = vector.shape_cast %271 : vector<1x2x128xf32> to vector<2x128xf32>
    %273 = vector.shape_cast %270 : vector<2x128xf32> to vector<1x2x128xf32>
    tpu.vector_store %arg7[%c2_66, %c0_67, %c0_68], %273 {strides = array<i32>} : memref<13x2x128xf32, #tpu.memory_space<vmem>>, vector<1x2x128xf32>,
    %c3 = arith.constant 3 : index
    %c0_69 = arith.constant 0 : index
    %c0_70 = arith.constant 0 : index
    %274 = vector.load %arg0[%c3, %c0_69, %c0_70] : memref<13x2x128xbf16, #tpu.memory_space<vmem>>, vector<1x2x128xbf16>
    %275 = vector.shape_cast %274 : vector<1x2x128xbf16> to vector<2x128xbf16>
    %276 = arith.truncf %217 : vector<2x128xf32> to vector<2x128xbf16>
    %277 = tpu.concatenate %275, %276 in 1 : vector<2x128xbf16>, vector<2x128xbf16> -> vector<2x256xbf16>
    %cst_71 = arith.constant dense<0.000000e+00> : vector<2x512xf32>
    %278 = tpu.matmul %277, %0, %cst_71 {dimension_numbers = #tpu.dot_dimension_numbers<[1], [0], [0], [1], [0, 0, 1, 1], [], []>} : vector<2x256xbf16>, vector<256x512xbf16>, vector<2x512xf32> -> vector<2x512xf32>
    %279 = vector.broadcast %2 : vector<1x512xf32> to vector<2x512xf32>
    %280 = arith.addf %278, %279 : vector<2x512xf32>
    %281 = vector.extract_strided_slice %280 {offsets = [0, 0], sizes = [2, 128], strides = [1, 1]} : vector<2x512xf32> to vector<2x128xf32>
    %282 = arith.negf %281 : vector<2x128xf32>
    %283 = math.exp %282 : vector<2x128xf32>
    %cst_72 = arith.constant 1.000000e+00 : f32
    %284 = vector.broadcast %cst_72 : f32 to vector<2x128xf32>
    %285 = arith.addf %284, %283 : vector<2x128xf32>
    %286 = arith.divf %284, %285 : vector<2x128xf32>
    %287 = vector.extract_strided_slice %280 {offsets = [0, 128], sizes = [2, 128], strides = [1, 1]} : vector<2x512xf32> to vector<2x128xf32>
    %288 = arith.negf %287 : vector<2x128xf32>
    %289 = math.exp %288 : vector<2x128xf32>
    %cst_73 = arith.constant 1.000000e+00 : f32
    %290 = vector.broadcast %cst_73 : f32 to vector<2x128xf32>
    %291 = arith.addf %290, %289 : vector<2x128xf32>
    %292 = arith.divf %290, %291 : vector<2x128xf32>
    %293 = vector.extract_strided_slice %280 {offsets = [0, 256], sizes = [2, 128], strides = [1, 1]} : vector<2x512xf32> to vector<2x128xf32>
    %294 = math.tanh %293 : vector<2x128xf32>
    %295 = vector.extract_strided_slice %280 {offsets = [0, 384], sizes = [2, 128], strides = [1, 1]} : vector<2x512xf32> to vector<2x128xf32>
    %296 = arith.negf %295 : vector<2x128xf32>
    %297 = math.exp %296 : vector<2x128xf32>
    %cst_74 = arith.constant 1.000000e+00 : f32
    %298 = vector.broadcast %cst_74 : f32 to vector<2x128xf32>
    %299 = arith.addf %298, %297 : vector<2x128xf32>
    %300 = arith.divf %298, %299 : vector<2x128xf32>
    %301 = arith.mulf %292, %215 : vector<2x128xf32>
    %302 = arith.mulf %286, %294 : vector<2x128xf32>
    %303 = arith.addf %301, %302 : vector<2x128xf32>
    %304 = math.tanh %303 : vector<2x128xf32>
    %305 = arith.mulf %300, %304 : vector<2x128xf32>
    %306 = arith.truncf %305 : vector<2x128xf32> to vector<2x128xbf16>
    %307 = arith.truncf %248 : vector<2x128xf32> to vector<2x128xbf16>
    %308 = tpu.concatenate %306, %307 in 1 : vector<2x128xbf16>, vector<2x128xbf16> -> vector<2x256xbf16>
    %cst_75 = arith.constant dense<0.000000e+00> : vector<2x512xf32>
    %309 = tpu.matmul %308, %1, %cst_75 {dimension_numbers = #tpu.dot_dimension_numbers<[1], [0], [0], [1], [0, 0, 1, 1], [], []>} : vector<2x256xbf16>, vector<256x512xbf16>, vector<2x512xf32> -> vector<2x512xf32>
    %310 = vector.broadcast %3 : vector<1x512xf32> to vector<2x512xf32>
    %311 = arith.addf %309, %310 : vector<2x512xf32>
    %312 = vector.extract_strided_slice %311 {offsets = [0, 0], sizes = [2, 128], strides = [1, 1]} : vector<2x512xf32> to vector<2x128xf32>
    %313 = arith.negf %312 : vector<2x128xf32>
    %314 = math.exp %313 : vector<2x128xf32>
    %cst_76 = arith.constant 1.000000e+00 : f32
    %315 = vector.broadcast %cst_76 : f32 to vector<2x128xf32>
    %316 = arith.addf %315, %314 : vector<2x128xf32>
    %317 = arith.divf %315, %316 : vector<2x128xf32>
    %318 = vector.extract_strided_slice %311 {offsets = [0, 128], sizes = [2, 128], strides = [1, 1]} : vector<2x512xf32> to vector<2x128xf32>
    %319 = arith.negf %318 : vector<2x128xf32>
    %320 = math.exp %319 : vector<2x128xf32>
    %cst_77 = arith.constant 1.000000e+00 : f32
    %321 = vector.broadcast %cst_77 : f32 to vector<2x128xf32>
    %322 = arith.addf %321, %320 : vector<2x128xf32>
    %323 = arith.divf %321, %322 : vector<2x128xf32>
    %324 = vector.extract_strided_slice %311 {offsets = [0, 256], sizes = [2, 128], strides = [1, 1]} : vector<2x512xf32> to vector<2x128xf32>
    %325 = math.tanh %324 : vector<2x128xf32>
    %326 = vector.extract_strided_slice %311 {offsets = [0, 384], sizes = [2, 128], strides = [1, 1]} : vector<2x512xf32> to vector<2x128xf32>
    %327 = arith.negf %326 : vector<2x128xf32>
    %328 = math.exp %327 : vector<2x128xf32>
    %cst_78 = arith.constant 1.000000e+00 : f32
    %329 = vector.broadcast %cst_78 : f32 to vector<2x128xf32>
    %330 = arith.addf %329, %328 : vector<2x128xf32>
    %331 = arith.divf %329, %330 : vector<2x128xf32>
    %332 = arith.mulf %323, %246 : vector<2x128xf32>
    %333 = arith.mulf %317, %325 : vector<2x128xf32>
    %334 = arith.addf %332, %333 : vector<2x128xf32>
    %335 = math.tanh %334 : vector<2x128xf32>
    %336 = arith.mulf %331, %335 : vector<2x128xf32>
    %cst_79 = arith.constant dense<0.000000e+00> : vector<2xf32>
    %337 = vector.multi_reduction <add>, %336, %cst_79 [1] : vector<2x128xf32> to vector<2xf32>
    %338 = vector.shape_cast %337 : vector<2xf32> to vector<2x1xf32>
    %cst_80 = arith.constant 1.280000e+02 : f32
    %339 = vector.broadcast %cst_80 : f32 to vector<2x1xf32>
    %340 = arith.divf %338, %339 : vector<2x1xf32>
    %341 = vector.broadcast %340 : vector<2x1xf32> to vector<2x128xf32>
    %342 = arith.subf %336, %341 : vector<2x128xf32>
    %343 = arith.mulf %342, %342 : vector<2x128xf32>
    %cst_81 = arith.constant dense<0.000000e+00> : vector<2xf32>
    %344 = vector.multi_reduction <add>, %343, %cst_81 [1] : vector<2x128xf32> to vector<2xf32>
    %345 = vector.shape_cast %344 : vector<2xf32> to vector<2x1xf32>
    %cst_82 = arith.constant 1.280000e+02 : f32
    %346 = vector.broadcast %cst_82 : f32 to vector<2x1xf32>
    %347 = arith.divf %345, %346 : vector<2x1xf32>
    %348 = vector.broadcast %340 : vector<2x1xf32> to vector<2x128xf32>
    %349 = arith.subf %336, %348 : vector<2x128xf32>
    %cst_83 = arith.constant 9.99999974E-6 : f32
    %350 = vector.broadcast %cst_83 : f32 to vector<2x1xf32>
    %351 = arith.addf %347, %350 : vector<2x1xf32>
    %352 = math.rsqrt %351 : vector<2x1xf32>
    %353 = vector.broadcast %352 : vector<2x1xf32> to vector<2x128xf32>
    %354 = arith.mulf %349, %353 : vector<2x128xf32>
    %355 = vector.broadcast %4 : vector<1x128xf32> to vector<2x128xf32>
    %356 = arith.mulf %354, %355 : vector<2x128xf32>
    %357 = vector.broadcast %5 : vector<1x128xf32> to vector<2x128xf32>
    %358 = arith.addf %356, %357 : vector<2x128xf32>
    %c3_84 = arith.constant 3 : index
    %c0_85 = arith.constant 0 : index
    %c0_86 = arith.constant 0 : index
    %359 = vector.load %arg7[%c3_84, %c0_85, %c0_86] : memref<13x2x128xf32, #tpu.memory_space<vmem>>, vector<1x2x128xf32>
    %360 = vector.shape_cast %359 : vector<1x2x128xf32> to vector<2x128xf32>
    %361 = vector.shape_cast %358 : vector<2x128xf32> to vector<1x2x128xf32>
    tpu.vector_store %arg7[%c3_84, %c0_85, %c0_86], %361 {strides = array<i32>} : memref<13x2x128xf32, #tpu.memory_space<vmem>>, vector<1x2x128xf32>,
    %c4 = arith.constant 4 : index
    %c0_87 = arith.constant 0 : index
    %c0_88 = arith.constant 0 : index
    %362 = vector.load %arg0[%c4, %c0_87, %c0_88] : memref<13x2x128xbf16, #tpu.memory_space<vmem>>, vector<1x2x128xbf16>
    %363 = vector.shape_cast %362 : vector<1x2x128xbf16> to vector<2x128xbf16>
    %364 = arith.truncf %305 : vector<2x128xf32> to vector<2x128xbf16>
    %365 = tpu.concatenate %363, %364 in 1 : vector<2x128xbf16>, vector<2x128xbf16> -> vector<2x256xbf16>
    %cst_89 = arith.constant dense<0.000000e+00> : vector<2x512xf32>
    %366 = tpu.matmul %365, %0, %cst_89 {dimension_numbers = #tpu.dot_dimension_numbers<[1], [0], [0], [1], [0, 0, 1, 1], [], []>} : vector<2x256xbf16>, vector<256x512xbf16>, vector<2x512xf32> -> vector<2x512xf32>
    %367 = vector.broadcast %2 : vector<1x512xf32> to vector<2x512xf32>
    %368 = arith.addf %366, %367 : vector<2x512xf32>
    %369 = vector.extract_strided_slice %368 {offsets = [0, 0], sizes = [2, 128], strides = [1, 1]} : vector<2x512xf32> to vector<2x128xf32>
    %370 = arith.negf %369 : vector<2x128xf32>
    %371 = math.exp %370 : vector<2x128xf32>
    %cst_90 = arith.constant 1.000000e+00 : f32
    %372 = vector.broadcast %cst_90 : f32 to vector<2x128xf32>
    %373 = arith.addf %372, %371 : vector<2x128xf32>
    %374 = arith.divf %372, %373 : vector<2x128xf32>
    %375 = vector.extract_strided_slice %368 {offsets = [0, 128], sizes = [2, 128], strides = [1, 1]} : vector<2x512xf32> to vector<2x128xf32>
    %376 = arith.negf %375 : vector<2x128xf32>
    %377 = math.exp %376 : vector<2x128xf32>
    %cst_91 = arith.constant 1.000000e+00 : f32
    %378 = vector.broadcast %cst_91 : f32 to vector<2x128xf32>
    %379 = arith.addf %378, %377 : vector<2x128xf32>
    %380 = arith.divf %378, %379 : vector<2x128xf32>
    %381 = vector.extract_strided_slice %368 {offsets = [0, 256], sizes = [2, 128], strides = [1, 1]} : vector<2x512xf32> to vector<2x128xf32>
    %382 = math.tanh %381 : vector<2x128xf32>
    %383 = vector.extract_strided_slice %368 {offsets = [0, 384], sizes = [2, 128], strides = [1, 1]} : vector<2x512xf32> to vector<2x128xf32>
    %384 = arith.negf %383 : vector<2x128xf32>
    %385 = math.exp %384 : vector<2x128xf32>
    %cst_92 = arith.constant 1.000000e+00 : f32
    %386 = vector.broadcast %cst_92 : f32 to vector<2x128xf32>
    %387 = arith.addf %386, %385 : vector<2x128xf32>
    %388 = arith.divf %386, %387 : vector<2x128xf32>
    %389 = arith.mulf %380, %303 : vector<2x128xf32>
    %390 = arith.mulf %374, %382 : vector<2x128xf32>
    %391 = arith.addf %389, %390 : vector<2x128xf32>
    %392 = math.tanh %391 : vector<2x128xf32>
    %393 = arith.mulf %388, %392 : vector<2x128xf32>
    %394 = arith.truncf %393 : vector<2x128xf32> to vector<2x128xbf16>
    %395 = arith.truncf %336 : vector<2x128xf32> to vector<2x128xbf16>
    %396 = tpu.concatenate %394, %395 in 1 : vector<2x128xbf16>, vector<2x128xbf16> -> vector<2x256xbf16>
    %cst_93 = arith.constant dense<0.000000e+00> : vector<2x512xf32>
    %397 = tpu.matmul %396, %1, %cst_93 {dimension_numbers = #tpu.dot_dimension_numbers<[1], [0], [0], [1], [0, 0, 1, 1], [], []>} : vector<2x256xbf16>, vector<256x512xbf16>, vector<2x512xf32> -> vector<2x512xf32>
    %398 = vector.broadcast %3 : vector<1x512xf32> to vector<2x512xf32>
    %399 = arith.addf %397, %398 : vector<2x512xf32>
    %400 = vector.extract_strided_slice %399 {offsets = [0, 0], sizes = [2, 128], strides = [1, 1]} : vector<2x512xf32> to vector<2x128xf32>
    %401 = arith.negf %400 : vector<2x128xf32>
    %402 = math.exp %401 : vector<2x128xf32>
    %cst_94 = arith.constant 1.000000e+00 : f32
    %403 = vector.broadcast %cst_94 : f32 to vector<2x128xf32>
    %404 = arith.addf %403, %402 : vector<2x128xf32>
    %405 = arith.divf %403, %404 : vector<2x128xf32>
    %406 = vector.extract_strided_slice %399 {offsets = [0, 128], sizes = [2, 128], strides = [1, 1]} : vector<2x512xf32> to vector<2x128xf32>
    %407 = arith.negf %406 : vector<2x128xf32>
    %408 = math.exp %407 : vector<2x128xf32>
    %cst_95 = arith.constant 1.000000e+00 : f32
    %409 = vector.broadcast %cst_95 : f32 to vector<2x128xf32>
    %410 = arith.addf %409, %408 : vector<2x128xf32>
    %411 = arith.divf %409, %410 : vector<2x128xf32>
    %412 = vector.extract_strided_slice %399 {offsets = [0, 256], sizes = [2, 128], strides = [1, 1]} : vector<2x512xf32> to vector<2x128xf32>
    %413 = math.tanh %412 : vector<2x128xf32>
    %414 = vector.extract_strided_slice %399 {offsets = [0, 384], sizes = [2, 128], strides = [1, 1]} : vector<2x512xf32> to vector<2x128xf32>
    %415 = arith.negf %414 : vector<2x128xf32>
    %416 = math.exp %415 : vector<2x128xf32>
    %cst_96 = arith.constant 1.000000e+00 : f32
    %417 = vector.broadcast %cst_96 : f32 to vector<2x128xf32>
    %418 = arith.addf %417, %416 : vector<2x128xf32>
    %419 = arith.divf %417, %418 : vector<2x128xf32>
    %420 = arith.mulf %411, %334 : vector<2x128xf32>
    %421 = arith.mulf %405, %413 : vector<2x128xf32>
    %422 = arith.addf %420, %421 : vector<2x128xf32>
    %423 = math.tanh %422 : vector<2x128xf32>
    %424 = arith.mulf %419, %423 : vector<2x128xf32>
    %cst_97 = arith.constant dense<0.000000e+00> : vector<2xf32>
    %425 = vector.multi_reduction <add>, %424, %cst_97 [1] : vector<2x128xf32> to vector<2xf32>
    %426 = vector.shape_cast %425 : vector<2xf32> to vector<2x1xf32>
    %cst_98 = arith.constant 1.280000e+02 : f32
    %427 = vector.broadcast %cst_98 : f32 to vector<2x1xf32>
    %428 = arith.divf %426, %427 : vector<2x1xf32>
    %429 = vector.broadcast %428 : vector<2x1xf32> to vector<2x128xf32>
    %430 = arith.subf %424, %429 : vector<2x128xf32>
    %431 = arith.mulf %430, %430 : vector<2x128xf32>
    %cst_99 = arith.constant dense<0.000000e+00> : vector<2xf32>
    %432 = vector.multi_reduction <add>, %431, %cst_99 [1] : vector<2x128xf32> to vector<2xf32>
    %433 = vector.shape_cast %432 : vector<2xf32> to vector<2x1xf32>
    %cst_100 = arith.constant 1.280000e+02 : f32
    %434 = vector.broadcast %cst_100 : f32 to vector<2x1xf32>
    %435 = arith.divf %433, %434 : vector<2x1xf32>
    %436 = vector.broadcast %428 : vector<2x1xf32> to vector<2x128xf32>
    %437 = arith.subf %424, %436 : vector<2x128xf32>
    %cst_101 = arith.constant 9.99999974E-6 : f32
    %438 = vector.broadcast %cst_101 : f32 to vector<2x1xf32>
    %439 = arith.addf %435, %438 : vector<2x1xf32>
    %440 = math.rsqrt %439 : vector<2x1xf32>
    %441 = vector.broadcast %440 : vector<2x1xf32> to vector<2x128xf32>
    %442 = arith.mulf %437, %441 : vector<2x128xf32>
    %443 = vector.broadcast %4 : vector<1x128xf32> to vector<2x128xf32>
    %444 = arith.mulf %442, %443 : vector<2x128xf32>
    %445 = vector.broadcast %5 : vector<1x128xf32> to vector<2x128xf32>
    %446 = arith.addf %444, %445 : vector<2x128xf32>
    %c4_102 = arith.constant 4 : index
    %c0_103 = arith.constant 0 : index
    %c0_104 = arith.constant 0 : index
    %447 = vector.load %arg7[%c4_102, %c0_103, %c0_104] : memref<13x2x128xf32, #tpu.memory_space<vmem>>, vector<1x2x128xf32>
    %448 = vector.shape_cast %447 : vector<1x2x128xf32> to vector<2x128xf32>
    %449 = vector.shape_cast %446 : vector<2x128xf32> to vector<1x2x128xf32>
    tpu.vector_store %arg7[%c4_102, %c0_103, %c0_104], %449 {strides = array<i32>} : memref<13x2x128xf32, #tpu.memory_space<vmem>>, vector<1x2x128xf32>,
    %c5 = arith.constant 5 : index
    %c0_105 = arith.constant 0 : index
    %c0_106 = arith.constant 0 : index
    %450 = vector.load %arg0[%c5, %c0_105, %c0_106] : memref<13x2x128xbf16, #tpu.memory_space<vmem>>, vector<1x2x128xbf16>
    %451 = vector.shape_cast %450 : vector<1x2x128xbf16> to vector<2x128xbf16>
    %452 = arith.truncf %393 : vector<2x128xf32> to vector<2x128xbf16>
    %453 = tpu.concatenate %451, %452 in 1 : vector<2x128xbf16>, vector<2x128xbf16> -> vector<2x256xbf16>
    %cst_107 = arith.constant dense<0.000000e+00> : vector<2x512xf32>
    %454 = tpu.matmul %453, %0, %cst_107 {dimension_numbers = #tpu.dot_dimension_numbers<[1], [0], [0], [1], [0, 0, 1, 1], [], []>} : vector<2x256xbf16>, vector<256x512xbf16>, vector<2x512xf32> -> vector<2x512xf32>
    %455 = vector.broadcast %2 : vector<1x512xf32> to vector<2x512xf32>
    %456 = arith.addf %454, %455 : vector<2x512xf32>
    %457 = vector.extract_strided_slice %456 {offsets = [0, 0], sizes = [2, 128], strides = [1, 1]} : vector<2x512xf32> to vector<2x128xf32>
    %458 = arith.negf %457 : vector<2x128xf32>
    %459 = math.exp %458 : vector<2x128xf32>
    %cst_108 = arith.constant 1.000000e+00 : f32
    %460 = vector.broadcast %cst_108 : f32 to vector<2x128xf32>
    %461 = arith.addf %460, %459 : vector<2x128xf32>
    %462 = arith.divf %460, %461 : vector<2x128xf32>
    %463 = vector.extract_strided_slice %456 {offsets = [0, 128], sizes = [2, 128], strides = [1, 1]} : vector<2x512xf32> to vector<2x128xf32>
    %464 = arith.negf %463 : vector<2x128xf32>
    %465 = math.exp %464 : vector<2x128xf32>
    %cst_109 = arith.constant 1.000000e+00 : f32
    %466 = vector.broadcast %cst_109 : f32 to vector<2x128xf32>
    %467 = arith.addf %466, %465 : vector<2x128xf32>
    %468 = arith.divf %466, %467 : vector<2x128xf32>
    %469 = vector.extract_strided_slice %456 {offsets = [0, 256], sizes = [2, 128], strides = [1, 1]} : vector<2x512xf32> to vector<2x128xf32>
    %470 = math.tanh %469 : vector<2x128xf32>
    %471 = vector.extract_strided_slice %456 {offsets = [0, 384], sizes = [2, 128], strides = [1, 1]} : vector<2x512xf32> to vector<2x128xf32>
    %472 = arith.negf %471 : vector<2x128xf32>
    %473 = math.exp %472 : vector<2x128xf32>
    %cst_110 = arith.constant 1.000000e+00 : f32
    %474 = vector.broadcast %cst_110 : f32 to vector<2x128xf32>
    %475 = arith.addf %474, %473 : vector<2x128xf32>
    %476 = arith.divf %474, %475 : vector<2x128xf32>
    %477 = arith.mulf %468, %391 : vector<2x128xf32>
    %478 = arith.mulf %462, %470 : vector<2x128xf32>
    %479 = arith.addf %477, %478 : vector<2x128xf32>
    %480 = math.tanh %479 : vector<2x128xf32>
    %481 = arith.mulf %476, %480 : vector<2x128xf32>
    %482 = arith.truncf %481 : vector<2x128xf32> to vector<2x128xbf16>
    %483 = arith.truncf %424 : vector<2x128xf32> to vector<2x128xbf16>
    %484 = tpu.concatenate %482, %483 in 1 : vector<2x128xbf16>, vector<2x128xbf16> -> vector<2x256xbf16>
    %cst_111 = arith.constant dense<0.000000e+00> : vector<2x512xf32>
    %485 = tpu.matmul %484, %1, %cst_111 {dimension_numbers = #tpu.dot_dimension_numbers<[1], [0], [0], [1], [0, 0, 1, 1], [], []>} : vector<2x256xbf16>, vector<256x512xbf16>, vector<2x512xf32> -> vector<2x512xf32>
    %486 = vector.broadcast %3 : vector<1x512xf32> to vector<2x512xf32>
    %487 = arith.addf %485, %486 : vector<2x512xf32>
    %488 = vector.extract_strided_slice %487 {offsets = [0, 0], sizes = [2, 128], strides = [1, 1]} : vector<2x512xf32> to vector<2x128xf32>
    %489 = arith.negf %488 : vector<2x128xf32>
    %490 = math.exp %489 : vector<2x128xf32>
    %cst_112 = arith.constant 1.000000e+00 : f32
    %491 = vector.broadcast %cst_112 : f32 to vector<2x128xf32>
    %492 = arith.addf %491, %490 : vector<2x128xf32>
    %493 = arith.divf %491, %492 : vector<2x128xf32>
    %494 = vector.extract_strided_slice %487 {offsets = [0, 128], sizes = [2, 128], strides = [1, 1]} : vector<2x512xf32> to vector<2x128xf32>
    %495 = arith.negf %494 : vector<2x128xf32>
    %496 = math.exp %495 : vector<2x128xf32>
    %cst_113 = arith.constant 1.000000e+00 : f32
    %497 = vector.broadcast %cst_113 : f32 to vector<2x128xf32>
    %498 = arith.addf %497, %496 : vector<2x128xf32>
    %499 = arith.divf %497, %498 : vector<2x128xf32>
    %500 = vector.extract_strided_slice %487 {offsets = [0, 256], sizes = [2, 128], strides = [1, 1]} : vector<2x512xf32> to vector<2x128xf32>
    %501 = math.tanh %500 : vector<2x128xf32>
    %502 = vector.extract_strided_slice %487 {offsets = [0, 384], sizes = [2, 128], strides = [1, 1]} : vector<2x512xf32> to vector<2x128xf32>
    %503 = arith.negf %502 : vector<2x128xf32>
    %504 = math.exp %503 : vector<2x128xf32>
    %cst_114 = arith.constant 1.000000e+00 : f32
    %505 = vector.broadcast %cst_114 : f32 to vector<2x128xf32>
    %506 = arith.addf %505, %504 : vector<2x128xf32>
    %507 = arith.divf %505, %506 : vector<2x128xf32>
    %508 = arith.mulf %499, %422 : vector<2x128xf32>
    %509 = arith.mulf %493, %501 : vector<2x128xf32>
    %510 = arith.addf %508, %509 : vector<2x128xf32>
    %511 = math.tanh %510 : vector<2x128xf32>
    %512 = arith.mulf %507, %511 : vector<2x128xf32>
    %cst_115 = arith.constant dense<0.000000e+00> : vector<2xf32>
    %513 = vector.multi_reduction <add>, %512, %cst_115 [1] : vector<2x128xf32> to vector<2xf32>
    %514 = vector.shape_cast %513 : vector<2xf32> to vector<2x1xf32>
    %cst_116 = arith.constant 1.280000e+02 : f32
    %515 = vector.broadcast %cst_116 : f32 to vector<2x1xf32>
    %516 = arith.divf %514, %515 : vector<2x1xf32>
    %517 = vector.broadcast %516 : vector<2x1xf32> to vector<2x128xf32>
    %518 = arith.subf %512, %517 : vector<2x128xf32>
    %519 = arith.mulf %518, %518 : vector<2x128xf32>
    %cst_117 = arith.constant dense<0.000000e+00> : vector<2xf32>
    %520 = vector.multi_reduction <add>, %519, %cst_117 [1] : vector<2x128xf32> to vector<2xf32>
    %521 = vector.shape_cast %520 : vector<2xf32> to vector<2x1xf32>
    %cst_118 = arith.constant 1.280000e+02 : f32
    %522 = vector.broadcast %cst_118 : f32 to vector<2x1xf32>
    %523 = arith.divf %521, %522 : vector<2x1xf32>
    %524 = vector.broadcast %516 : vector<2x1xf32> to vector<2x128xf32>
    %525 = arith.subf %512, %524 : vector<2x128xf32>
    %cst_119 = arith.constant 9.99999974E-6 : f32
    %526 = vector.broadcast %cst_119 : f32 to vector<2x1xf32>
    %527 = arith.addf %523, %526 : vector<2x1xf32>
    %528 = math.rsqrt %527 : vector<2x1xf32>
    %529 = vector.broadcast %528 : vector<2x1xf32> to vector<2x128xf32>
    %530 = arith.mulf %525, %529 : vector<2x128xf32>
    %531 = vector.broadcast %4 : vector<1x128xf32> to vector<2x128xf32>
    %532 = arith.mulf %530, %531 : vector<2x128xf32>
    %533 = vector.broadcast %5 : vector<1x128xf32> to vector<2x128xf32>
    %534 = arith.addf %532, %533 : vector<2x128xf32>
    %c5_120 = arith.constant 5 : index
    %c0_121 = arith.constant 0 : index
    %c0_122 = arith.constant 0 : index
    %535 = vector.load %arg7[%c5_120, %c0_121, %c0_122] : memref<13x2x128xf32, #tpu.memory_space<vmem>>, vector<1x2x128xf32>
    %536 = vector.shape_cast %535 : vector<1x2x128xf32> to vector<2x128xf32>
    %537 = vector.shape_cast %534 : vector<2x128xf32> to vector<1x2x128xf32>
    tpu.vector_store %arg7[%c5_120, %c0_121, %c0_122], %537 {strides = array<i32>} : memref<13x2x128xf32, #tpu.memory_space<vmem>>, vector<1x2x128xf32>,
    %c6 = arith.constant 6 : index
    %c0_123 = arith.constant 0 : index
    %c0_124 = arith.constant 0 : index
    %538 = vector.load %arg0[%c6, %c0_123, %c0_124] : memref<13x2x128xbf16, #tpu.memory_space<vmem>>, vector<1x2x128xbf16>
    %539 = vector.shape_cast %538 : vector<1x2x128xbf16> to vector<2x128xbf16>
    %540 = arith.truncf %481 : vector<2x128xf32> to vector<2x128xbf16>
    %541 = tpu.concatenate %539, %540 in 1 : vector<2x128xbf16>, vector<2x128xbf16> -> vector<2x256xbf16>
    %cst_125 = arith.constant dense<0.000000e+00> : vector<2x512xf32>
    %542 = tpu.matmul %541, %0, %cst_125 {dimension_numbers = #tpu.dot_dimension_numbers<[1], [0], [0], [1], [0, 0, 1, 1], [], []>} : vector<2x256xbf16>, vector<256x512xbf16>, vector<2x512xf32> -> vector<2x512xf32>
    %543 = vector.broadcast %2 : vector<1x512xf32> to vector<2x512xf32>
    %544 = arith.addf %542, %543 : vector<2x512xf32>
    %545 = vector.extract_strided_slice %544 {offsets = [0, 0], sizes = [2, 128], strides = [1, 1]} : vector<2x512xf32> to vector<2x128xf32>
    %546 = arith.negf %545 : vector<2x128xf32>
    %547 = math.exp %546 : vector<2x128xf32>
    %cst_126 = arith.constant 1.000000e+00 : f32
    %548 = vector.broadcast %cst_126 : f32 to vector<2x128xf32>
    %549 = arith.addf %548, %547 : vector<2x128xf32>
    %550 = arith.divf %548, %549 : vector<2x128xf32>
    %551 = vector.extract_strided_slice %544 {offsets = [0, 128], sizes = [2, 128], strides = [1, 1]} : vector<2x512xf32> to vector<2x128xf32>
    %552 = arith.negf %551 : vector<2x128xf32>
    %553 = math.exp %552 : vector<2x128xf32>
    %cst_127 = arith.constant 1.000000e+00 : f32
    %554 = vector.broadcast %cst_127 : f32 to vector<2x128xf32>
    %555 = arith.addf %554, %553 : vector<2x128xf32>
    %556 = arith.divf %554, %555 : vector<2x128xf32>
    %557 = vector.extract_strided_slice %544 {offsets = [0, 256], sizes = [2, 128], strides = [1, 1]} : vector<2x512xf32> to vector<2x128xf32>
    %558 = math.tanh %557 : vector<2x128xf32>
    %559 = vector.extract_strided_slice %544 {offsets = [0, 384], sizes = [2, 128], strides = [1, 1]} : vector<2x512xf32> to vector<2x128xf32>
    %560 = arith.negf %559 : vector<2x128xf32>
    %561 = math.exp %560 : vector<2x128xf32>
    %cst_128 = arith.constant 1.000000e+00 : f32
    %562 = vector.broadcast %cst_128 : f32 to vector<2x128xf32>
    %563 = arith.addf %562, %561 : vector<2x128xf32>
    %564 = arith.divf %562, %563 : vector<2x128xf32>
    %565 = arith.mulf %556, %479 : vector<2x128xf32>
    %566 = arith.mulf %550, %558 : vector<2x128xf32>
    %567 = arith.addf %565, %566 : vector<2x128xf32>
    %568 = math.tanh %567 : vector<2x128xf32>
    %569 = arith.mulf %564, %568 : vector<2x128xf32>
    %570 = arith.truncf %569 : vector<2x128xf32> to vector<2x128xbf16>
    %571 = arith.truncf %512 : vector<2x128xf32> to vector<2x128xbf16>
    %572 = tpu.concatenate %570, %571 in 1 : vector<2x128xbf16>, vector<2x128xbf16> -> vector<2x256xbf16>
    %cst_129 = arith.constant dense<0.000000e+00> : vector<2x512xf32>
    %573 = tpu.matmul %572, %1, %cst_129 {dimension_numbers = #tpu.dot_dimension_numbers<[1], [0], [0], [1], [0, 0, 1, 1], [], []>} : vector<2x256xbf16>, vector<256x512xbf16>, vector<2x512xf32> -> vector<2x512xf32>
    %574 = vector.broadcast %3 : vector<1x512xf32> to vector<2x512xf32>
    %575 = arith.addf %573, %574 : vector<2x512xf32>
    %576 = vector.extract_strided_slice %575 {offsets = [0, 0], sizes = [2, 128], strides = [1, 1]} : vector<2x512xf32> to vector<2x128xf32>
    %577 = arith.negf %576 : vector<2x128xf32>
    %578 = math.exp %577 : vector<2x128xf32>
    %cst_130 = arith.constant 1.000000e+00 : f32
    %579 = vector.broadcast %cst_130 : f32 to vector<2x128xf32>
    %580 = arith.addf %579, %578 : vector<2x128xf32>
    %581 = arith.divf %579, %580 : vector<2x128xf32>
    %582 = vector.extract_strided_slice %575 {offsets = [0, 128], sizes = [2, 128], strides = [1, 1]} : vector<2x512xf32> to vector<2x128xf32>
    %583 = arith.negf %582 : vector<2x128xf32>
    %584 = math.exp %583 : vector<2x128xf32>
    %cst_131 = arith.constant 1.000000e+00 : f32
    %585 = vector.broadcast %cst_131 : f32 to vector<2x128xf32>
    %586 = arith.addf %585, %584 : vector<2x128xf32>
    %587 = arith.divf %585, %586 : vector<2x128xf32>
    %588 = vector.extract_strided_slice %575 {offsets = [0, 256], sizes = [2, 128], strides = [1, 1]} : vector<2x512xf32> to vector<2x128xf32>
    %589 = math.tanh %588 : vector<2x128xf32>
    %590 = vector.extract_strided_slice %575 {offsets = [0, 384], sizes = [2, 128], strides = [1, 1]} : vector<2x512xf32> to vector<2x128xf32>
    %591 = arith.negf %590 : vector<2x128xf32>
    %592 = math.exp %591 : vector<2x128xf32>
    %cst_132 = arith.constant 1.000000e+00 : f32
    %593 = vector.broadcast %cst_132 : f32 to vector<2x128xf32>
    %594 = arith.addf %593, %592 : vector<2x128xf32>
    %595 = arith.divf %593, %594 : vector<2x128xf32>
    %596 = arith.mulf %587, %510 : vector<2x128xf32>
    %597 = arith.mulf %581, %589 : vector<2x128xf32>
    %598 = arith.addf %596, %597 : vector<2x128xf32>
    %599 = math.tanh %598 : vector<2x128xf32>
    %600 = arith.mulf %595, %599 : vector<2x128xf32>
    %cst_133 = arith.constant dense<0.000000e+00> : vector<2xf32>
    %601 = vector.multi_reduction <add>, %600, %cst_133 [1] : vector<2x128xf32> to vector<2xf32>
    %602 = vector.shape_cast %601 : vector<2xf32> to vector<2x1xf32>
    %cst_134 = arith.constant 1.280000e+02 : f32
    %603 = vector.broadcast %cst_134 : f32 to vector<2x1xf32>
    %604 = arith.divf %602, %603 : vector<2x1xf32>
    %605 = vector.broadcast %604 : vector<2x1xf32> to vector<2x128xf32>
    %606 = arith.subf %600, %605 : vector<2x128xf32>
    %607 = arith.mulf %606, %606 : vector<2x128xf32>
    %cst_135 = arith.constant dense<0.000000e+00> : vector<2xf32>
    %608 = vector.multi_reduction <add>, %607, %cst_135 [1] : vector<2x128xf32> to vector<2xf32>
    %609 = vector.shape_cast %608 : vector<2xf32> to vector<2x1xf32>
    %cst_136 = arith.constant 1.280000e+02 : f32
    %610 = vector.broadcast %cst_136 : f32 to vector<2x1xf32>
    %611 = arith.divf %609, %610 : vector<2x1xf32>
    %612 = vector.broadcast %604 : vector<2x1xf32> to vector<2x128xf32>
    %613 = arith.subf %600, %612 : vector<2x128xf32>
    %cst_137 = arith.constant 9.99999974E-6 : f32
    %614 = vector.broadcast %cst_137 : f32 to vector<2x1xf32>
    %615 = arith.addf %611, %614 : vector<2x1xf32>
    %616 = math.rsqrt %615 : vector<2x1xf32>
    %617 = vector.broadcast %616 : vector<2x1xf32> to vector<2x128xf32>
    %618 = arith.mulf %613, %617 : vector<2x128xf32>
    %619 = vector.broadcast %4 : vector<1x128xf32> to vector<2x128xf32>
    %620 = arith.mulf %618, %619 : vector<2x128xf32>
    %621 = vector.broadcast %5 : vector<1x128xf32> to vector<2x128xf32>
    %622 = arith.addf %620, %621 : vector<2x128xf32>
    %c6_138 = arith.constant 6 : index
    %c0_139 = arith.constant 0 : index
    %c0_140 = arith.constant 0 : index
    %623 = vector.load %arg7[%c6_138, %c0_139, %c0_140] : memref<13x2x128xf32, #tpu.memory_space<vmem>>, vector<1x2x128xf32>
    %624 = vector.shape_cast %623 : vector<1x2x128xf32> to vector<2x128xf32>
    %625 = vector.shape_cast %622 : vector<2x128xf32> to vector<1x2x128xf32>
    tpu.vector_store %arg7[%c6_138, %c0_139, %c0_140], %625 {strides = array<i32>} : memref<13x2x128xf32, #tpu.memory_space<vmem>>, vector<1x2x128xf32>,
    %c7 = arith.constant 7 : index
    %c0_141 = arith.constant 0 : index
    %c0_142 = arith.constant 0 : index
    %626 = vector.load %arg0[%c7, %c0_141, %c0_142] : memref<13x2x128xbf16, #tpu.memory_space<vmem>>, vector<1x2x128xbf16>
    %627 = vector.shape_cast %626 : vector<1x2x128xbf16> to vector<2x128xbf16>
    %628 = arith.truncf %569 : vector<2x128xf32> to vector<2x128xbf16>
    %629 = tpu.concatenate %627, %628 in 1 : vector<2x128xbf16>, vector<2x128xbf16> -> vector<2x256xbf16>
    %cst_143 = arith.constant dense<0.000000e+00> : vector<2x512xf32>
    %630 = tpu.matmul %629, %0, %cst_143 {dimension_numbers = #tpu.dot_dimension_numbers<[1], [0], [0], [1], [0, 0, 1, 1], [], []>} : vector<2x256xbf16>, vector<256x512xbf16>, vector<2x512xf32> -> vector<2x512xf32>
    %631 = vector.broadcast %2 : vector<1x512xf32> to vector<2x512xf32>
    %632 = arith.addf %630, %631 : vector<2x512xf32>
    %633 = vector.extract_strided_slice %632 {offsets = [0, 0], sizes = [2, 128], strides = [1, 1]} : vector<2x512xf32> to vector<2x128xf32>
    %634 = arith.negf %633 : vector<2x128xf32>
    %635 = math.exp %634 : vector<2x128xf32>
    %cst_144 = arith.constant 1.000000e+00 : f32
    %636 = vector.broadcast %cst_144 : f32 to vector<2x128xf32>
    %637 = arith.addf %636, %635 : vector<2x128xf32>
    %638 = arith.divf %636, %637 : vector<2x128xf32>
    %639 = vector.extract_strided_slice %632 {offsets = [0, 128], sizes = [2, 128], strides = [1, 1]} : vector<2x512xf32> to vector<2x128xf32>
    %640 = arith.negf %639 : vector<2x128xf32>
    %641 = math.exp %640 : vector<2x128xf32>
    %cst_145 = arith.constant 1.000000e+00 : f32
    %642 = vector.broadcast %cst_145 : f32 to vector<2x128xf32>
    %643 = arith.addf %642, %641 : vector<2x128xf32>
    %644 = arith.divf %642, %643 : vector<2x128xf32>
    %645 = vector.extract_strided_slice %632 {offsets = [0, 256], sizes = [2, 128], strides = [1, 1]} : vector<2x512xf32> to vector<2x128xf32>
    %646 = math.tanh %645 : vector<2x128xf32>
    %647 = vector.extract_strided_slice %632 {offsets = [0, 384], sizes = [2, 128], strides = [1, 1]} : vector<2x512xf32> to vector<2x128xf32>
    %648 = arith.negf %647 : vector<2x128xf32>
    %649 = math.exp %648 : vector<2x128xf32>
    %cst_146 = arith.constant 1.000000e+00 : f32
    %650 = vector.broadcast %cst_146 : f32 to vector<2x128xf32>
    %651 = arith.addf %650, %649 : vector<2x128xf32>
    %652 = arith.divf %650, %651 : vector<2x128xf32>
    %653 = arith.mulf %644, %567 : vector<2x128xf32>
    %654 = arith.mulf %638, %646 : vector<2x128xf32>
    %655 = arith.addf %653, %654 : vector<2x128xf32>
    %656 = math.tanh %655 : vector<2x128xf32>
    %657 = arith.mulf %652, %656 : vector<2x128xf32>
    %658 = arith.truncf %657 : vector<2x128xf32> to vector<2x128xbf16>
    %659 = arith.truncf %600 : vector<2x128xf32> to vector<2x128xbf16>
    %660 = tpu.concatenate %658, %659 in 1 : vector<2x128xbf16>, vector<2x128xbf16> -> vector<2x256xbf16>
    %cst_147 = arith.constant dense<0.000000e+00> : vector<2x512xf32>
    %661 = tpu.matmul %660, %1, %cst_147 {dimension_numbers = #tpu.dot_dimension_numbers<[1], [0], [0], [1], [0, 0, 1, 1], [], []>} : vector<2x256xbf16>, vector<256x512xbf16>, vector<2x512xf32> -> vector<2x512xf32>
    %662 = vector.broadcast %3 : vector<1x512xf32> to vector<2x512xf32>
    %663 = arith.addf %661, %662 : vector<2x512xf32>
    %664 = vector.extract_strided_slice %663 {offsets = [0, 0], sizes = [2, 128], strides = [1, 1]} : vector<2x512xf32> to vector<2x128xf32>
    %665 = arith.negf %664 : vector<2x128xf32>
    %666 = math.exp %665 : vector<2x128xf32>
    %cst_148 = arith.constant 1.000000e+00 : f32
    %667 = vector.broadcast %cst_148 : f32 to vector<2x128xf32>
    %668 = arith.addf %667, %666 : vector<2x128xf32>
    %669 = arith.divf %667, %668 : vector<2x128xf32>
    %670 = vector.extract_strided_slice %663 {offsets = [0, 128], sizes = [2, 128], strides = [1, 1]} : vector<2x512xf32> to vector<2x128xf32>
    %671 = arith.negf %670 : vector<2x128xf32>
    %672 = math.exp %671 : vector<2x128xf32>
    %cst_149 = arith.constant 1.000000e+00 : f32
    %673 = vector.broadcast %cst_149 : f32 to vector<2x128xf32>
    %674 = arith.addf %673, %672 : vector<2x128xf32>
    %675 = arith.divf %673, %674 : vector<2x128xf32>
    %676 = vector.extract_strided_slice %663 {offsets = [0, 256], sizes = [2, 128], strides = [1, 1]} : vector<2x512xf32> to vector<2x128xf32>
    %677 = math.tanh %676 : vector<2x128xf32>
    %678 = vector.extract_strided_slice %663 {offsets = [0, 384], sizes = [2, 128], strides = [1, 1]} : vector<2x512xf32> to vector<2x128xf32>
    %679 = arith.negf %678 : vector<2x128xf32>
    %680 = math.exp %679 : vector<2x128xf32>
    %cst_150 = arith.constant 1.000000e+00 : f32
    %681 = vector.broadcast %cst_150 : f32 to vector<2x128xf32>
    %682 = arith.addf %681, %680 : vector<2x128xf32>
    %683 = arith.divf %681, %682 : vector<2x128xf32>
    %684 = arith.mulf %675, %598 : vector<2x128xf32>
    %685 = arith.mulf %669, %677 : vector<2x128xf32>
    %686 = arith.addf %684, %685 : vector<2x128xf32>
    %687 = math.tanh %686 : vector<2x128xf32>
    %688 = arith.mulf %683, %687 : vector<2x128xf32>
    %cst_151 = arith.constant dense<0.000000e+00> : vector<2xf32>
    %689 = vector.multi_reduction <add>, %688, %cst_151 [1] : vector<2x128xf32> to vector<2xf32>
    %690 = vector.shape_cast %689 : vector<2xf32> to vector<2x1xf32>
    %cst_152 = arith.constant 1.280000e+02 : f32
    %691 = vector.broadcast %cst_152 : f32 to vector<2x1xf32>
    %692 = arith.divf %690, %691 : vector<2x1xf32>
    %693 = vector.broadcast %692 : vector<2x1xf32> to vector<2x128xf32>
    %694 = arith.subf %688, %693 : vector<2x128xf32>
    %695 = arith.mulf %694, %694 : vector<2x128xf32>
    %cst_153 = arith.constant dense<0.000000e+00> : vector<2xf32>
    %696 = vector.multi_reduction <add>, %695, %cst_153 [1] : vector<2x128xf32> to vector<2xf32>
    %697 = vector.shape_cast %696 : vector<2xf32> to vector<2x1xf32>
    %cst_154 = arith.constant 1.280000e+02 : f32
    %698 = vector.broadcast %cst_154 : f32 to vector<2x1xf32>
    %699 = arith.divf %697, %698 : vector<2x1xf32>
    %700 = vector.broadcast %692 : vector<2x1xf32> to vector<2x128xf32>
    %701 = arith.subf %688, %700 : vector<2x128xf32>
    %cst_155 = arith.constant 9.99999974E-6 : f32
    %702 = vector.broadcast %cst_155 : f32 to vector<2x1xf32>
    %703 = arith.addf %699, %702 : vector<2x1xf32>
    %704 = math.rsqrt %703 : vector<2x1xf32>
    %705 = vector.broadcast %704 : vector<2x1xf32> to vector<2x128xf32>
    %706 = arith.mulf %701, %705 : vector<2x128xf32>
    %707 = vector.broadcast %4 : vector<1x128xf32> to vector<2x128xf32>
    %708 = arith.mulf %706, %707 : vector<2x128xf32>
    %709 = vector.broadcast %5 : vector<1x128xf32> to vector<2x128xf32>
    %710 = arith.addf %708, %709 : vector<2x128xf32>
    %c7_156 = arith.constant 7 : index
    %c0_157 = arith.constant 0 : index
    %c0_158 = arith.constant 0 : index
    %711 = vector.load %arg7[%c7_156, %c0_157, %c0_158] : memref<13x2x128xf32, #tpu.memory_space<vmem>>, vector<1x2x128xf32>
    %712 = vector.shape_cast %711 : vector<1x2x128xf32> to vector<2x128xf32>
    %713 = vector.shape_cast %710 : vector<2x128xf32> to vector<1x2x128xf32>
    tpu.vector_store %arg7[%c7_156, %c0_157, %c0_158], %713 {strides = array<i32>} : memref<13x2x128xf32, #tpu.memory_space<vmem>>, vector<1x2x128xf32>,
    %c8 = arith.constant 8 : index
    %c0_159 = arith.constant 0 : index
    %c0_160 = arith.constant 0 : index
    %714 = vector.load %arg0[%c8, %c0_159, %c0_160] : memref<13x2x128xbf16, #tpu.memory_space<vmem>>, vector<1x2x128xbf16>
    %715 = vector.shape_cast %714 : vector<1x2x128xbf16> to vector<2x128xbf16>
    %716 = arith.truncf %657 : vector<2x128xf32> to vector<2x128xbf16>
    %717 = tpu.concatenate %715, %716 in 1 : vector<2x128xbf16>, vector<2x128xbf16> -> vector<2x256xbf16>
    %cst_161 = arith.constant dense<0.000000e+00> : vector<2x512xf32>
    %718 = tpu.matmul %717, %0, %cst_161 {dimension_numbers = #tpu.dot_dimension_numbers<[1], [0], [0], [1], [0, 0, 1, 1], [], []>} : vector<2x256xbf16>, vector<256x512xbf16>, vector<2x512xf32> -> vector<2x512xf32>
    %719 = vector.broadcast %2 : vector<1x512xf32> to vector<2x512xf32>
    %720 = arith.addf %718, %719 : vector<2x512xf32>
    %721 = vector.extract_strided_slice %720 {offsets = [0, 0], sizes = [2, 128], strides = [1, 1]} : vector<2x512xf32> to vector<2x128xf32>
    %722 = arith.negf %721 : vector<2x128xf32>
    %723 = math.exp %722 : vector<2x128xf32>
    %cst_162 = arith.constant 1.000000e+00 : f32
    %724 = vector.broadcast %cst_162 : f32 to vector<2x128xf32>
    %725 = arith.addf %724, %723 : vector<2x128xf32>
    %726 = arith.divf %724, %725 : vector<2x128xf32>
    %727 = vector.extract_strided_slice %720 {offsets = [0, 128], sizes = [2, 128], strides = [1, 1]} : vector<2x512xf32> to vector<2x128xf32>
    %728 = arith.negf %727 : vector<2x128xf32>
    %729 = math.exp %728 : vector<2x128xf32>
    %cst_163 = arith.constant 1.000000e+00 : f32
    %730 = vector.broadcast %cst_163 : f32 to vector<2x128xf32>
    %731 = arith.addf %730, %729 : vector<2x128xf32>
    %732 = arith.divf %730, %731 : vector<2x128xf32>
    %733 = vector.extract_strided_slice %720 {offsets = [0, 256], sizes = [2, 128], strides = [1, 1]} : vector<2x512xf32> to vector<2x128xf32>
    %734 = math.tanh %733 : vector<2x128xf32>
    %735 = vector.extract_strided_slice %720 {offsets = [0, 384], sizes = [2, 128], strides = [1, 1]} : vector<2x512xf32> to vector<2x128xf32>
    %736 = arith.negf %735 : vector<2x128xf32>
    %737 = math.exp %736 : vector<2x128xf32>
    %cst_164 = arith.constant 1.000000e+00 : f32
    %738 = vector.broadcast %cst_164 : f32 to vector<2x128xf32>
    %739 = arith.addf %738, %737 : vector<2x128xf32>
    %740 = arith.divf %738, %739 : vector<2x128xf32>
    %741 = arith.mulf %732, %655 : vector<2x128xf32>
    %742 = arith.mulf %726, %734 : vector<2x128xf32>
    %743 = arith.addf %741, %742 : vector<2x128xf32>
    %744 = math.tanh %743 : vector<2x128xf32>
    %745 = arith.mulf %740, %744 : vector<2x128xf32>
    %746 = arith.truncf %745 : vector<2x128xf32> to vector<2x128xbf16>
    %747 = arith.truncf %688 : vector<2x128xf32> to vector<2x128xbf16>
    %748 = tpu.concatenate %746, %747 in 1 : vector<2x128xbf16>, vector<2x128xbf16> -> vector<2x256xbf16>
    %cst_165 = arith.constant dense<0.000000e+00> : vector<2x512xf32>
    %749 = tpu.matmul %748, %1, %cst_165 {dimension_numbers = #tpu.dot_dimension_numbers<[1], [0], [0], [1], [0, 0, 1, 1], [], []>} : vector<2x256xbf16>, vector<256x512xbf16>, vector<2x512xf32> -> vector<2x512xf32>
    %750 = vector.broadcast %3 : vector<1x512xf32> to vector<2x512xf32>
    %751 = arith.addf %749, %750 : vector<2x512xf32>
    %752 = vector.extract_strided_slice %751 {offsets = [0, 0], sizes = [2, 128], strides = [1, 1]} : vector<2x512xf32> to vector<2x128xf32>
    %753 = arith.negf %752 : vector<2x128xf32>
    %754 = math.exp %753 : vector<2x128xf32>
    %cst_166 = arith.constant 1.000000e+00 : f32
    %755 = vector.broadcast %cst_166 : f32 to vector<2x128xf32>
    %756 = arith.addf %755, %754 : vector<2x128xf32>
    %757 = arith.divf %755, %756 : vector<2x128xf32>
    %758 = vector.extract_strided_slice %751 {offsets = [0, 128], sizes = [2, 128], strides = [1, 1]} : vector<2x512xf32> to vector<2x128xf32>
    %759 = arith.negf %758 : vector<2x128xf32>
    %760 = math.exp %759 : vector<2x128xf32>
    %cst_167 = arith.constant 1.000000e+00 : f32
    %761 = vector.broadcast %cst_167 : f32 to vector<2x128xf32>
    %762 = arith.addf %761, %760 : vector<2x128xf32>
    %763 = arith.divf %761, %762 : vector<2x128xf32>
    %764 = vector.extract_strided_slice %751 {offsets = [0, 256], sizes = [2, 128], strides = [1, 1]} : vector<2x512xf32> to vector<2x128xf32>
    %765 = math.tanh %764 : vector<2x128xf32>
    %766 = vector.extract_strided_slice %751 {offsets = [0, 384], sizes = [2, 128], strides = [1, 1]} : vector<2x512xf32> to vector<2x128xf32>
    %767 = arith.negf %766 : vector<2x128xf32>
    %768 = math.exp %767 : vector<2x128xf32>
    %cst_168 = arith.constant 1.000000e+00 : f32
    %769 = vector.broadcast %cst_168 : f32 to vector<2x128xf32>
    %770 = arith.addf %769, %768 : vector<2x128xf32>
    %771 = arith.divf %769, %770 : vector<2x128xf32>
    %772 = arith.mulf %763, %686 : vector<2x128xf32>
    %773 = arith.mulf %757, %765 : vector<2x128xf32>
    %774 = arith.addf %772, %773 : vector<2x128xf32>
    %775 = math.tanh %774 : vector<2x128xf32>
    %776 = arith.mulf %771, %775 : vector<2x128xf32>
    %cst_169 = arith.constant dense<0.000000e+00> : vector<2xf32>
    %777 = vector.multi_reduction <add>, %776, %cst_169 [1] : vector<2x128xf32> to vector<2xf32>
    %778 = vector.shape_cast %777 : vector<2xf32> to vector<2x1xf32>
    %cst_170 = arith.constant 1.280000e+02 : f32
    %779 = vector.broadcast %cst_170 : f32 to vector<2x1xf32>
    %780 = arith.divf %778, %779 : vector<2x1xf32>
    %781 = vector.broadcast %780 : vector<2x1xf32> to vector<2x128xf32>
    %782 = arith.subf %776, %781 : vector<2x128xf32>
    %783 = arith.mulf %782, %782 : vector<2x128xf32>
    %cst_171 = arith.constant dense<0.000000e+00> : vector<2xf32>
    %784 = vector.multi_reduction <add>, %783, %cst_171 [1] : vector<2x128xf32> to vector<2xf32>
    %785 = vector.shape_cast %784 : vector<2xf32> to vector<2x1xf32>
    %cst_172 = arith.constant 1.280000e+02 : f32
    %786 = vector.broadcast %cst_172 : f32 to vector<2x1xf32>
    %787 = arith.divf %785, %786 : vector<2x1xf32>
    %788 = vector.broadcast %780 : vector<2x1xf32> to vector<2x128xf32>
    %789 = arith.subf %776, %788 : vector<2x128xf32>
    %cst_173 = arith.constant 9.99999974E-6 : f32
    %790 = vector.broadcast %cst_173 : f32 to vector<2x1xf32>
    %791 = arith.addf %787, %790 : vector<2x1xf32>
    %792 = math.rsqrt %791 : vector<2x1xf32>
    %793 = vector.broadcast %792 : vector<2x1xf32> to vector<2x128xf32>
    %794 = arith.mulf %789, %793 : vector<2x128xf32>
    %795 = vector.broadcast %4 : vector<1x128xf32> to vector<2x128xf32>
    %796 = arith.mulf %794, %795 : vector<2x128xf32>
    %797 = vector.broadcast %5 : vector<1x128xf32> to vector<2x128xf32>
    %798 = arith.addf %796, %797 : vector<2x128xf32>
    %c8_174 = arith.constant 8 : index
    %c0_175 = arith.constant 0 : index
    %c0_176 = arith.constant 0 : index
    %799 = vector.load %arg7[%c8_174, %c0_175, %c0_176] : memref<13x2x128xf32, #tpu.memory_space<vmem>>, vector<1x2x128xf32>
    %800 = vector.shape_cast %799 : vector<1x2x128xf32> to vector<2x128xf32>
    %801 = vector.shape_cast %798 : vector<2x128xf32> to vector<1x2x128xf32>
    tpu.vector_store %arg7[%c8_174, %c0_175, %c0_176], %801 {strides = array<i32>} : memref<13x2x128xf32, #tpu.memory_space<vmem>>, vector<1x2x128xf32>,
    %c9 = arith.constant 9 : index
    %c0_177 = arith.constant 0 : index
    %c0_178 = arith.constant 0 : index
    %802 = vector.load %arg0[%c9, %c0_177, %c0_178] : memref<13x2x128xbf16, #tpu.memory_space<vmem>>, vector<1x2x128xbf16>
    %803 = vector.shape_cast %802 : vector<1x2x128xbf16> to vector<2x128xbf16>
    %804 = arith.truncf %745 : vector<2x128xf32> to vector<2x128xbf16>
    %805 = tpu.concatenate %803, %804 in 1 : vector<2x128xbf16>, vector<2x128xbf16> -> vector<2x256xbf16>
    %cst_179 = arith.constant dense<0.000000e+00> : vector<2x512xf32>
    %806 = tpu.matmul %805, %0, %cst_179 {dimension_numbers = #tpu.dot_dimension_numbers<[1], [0], [0], [1], [0, 0, 1, 1], [], []>} : vector<2x256xbf16>, vector<256x512xbf16>, vector<2x512xf32> -> vector<2x512xf32>
    %807 = vector.broadcast %2 : vector<1x512xf32> to vector<2x512xf32>
    %808 = arith.addf %806, %807 : vector<2x512xf32>
    %809 = vector.extract_strided_slice %808 {offsets = [0, 0], sizes = [2, 128], strides = [1, 1]} : vector<2x512xf32> to vector<2x128xf32>
    %810 = arith.negf %809 : vector<2x128xf32>
    %811 = math.exp %810 : vector<2x128xf32>
    %cst_180 = arith.constant 1.000000e+00 : f32
    %812 = vector.broadcast %cst_180 : f32 to vector<2x128xf32>
    %813 = arith.addf %812, %811 : vector<2x128xf32>
    %814 = arith.divf %812, %813 : vector<2x128xf32>
    %815 = vector.extract_strided_slice %808 {offsets = [0, 128], sizes = [2, 128], strides = [1, 1]} : vector<2x512xf32> to vector<2x128xf32>
    %816 = arith.negf %815 : vector<2x128xf32>
    %817 = math.exp %816 : vector<2x128xf32>
    %cst_181 = arith.constant 1.000000e+00 : f32
    %818 = vector.broadcast %cst_181 : f32 to vector<2x128xf32>
    %819 = arith.addf %818, %817 : vector<2x128xf32>
    %820 = arith.divf %818, %819 : vector<2x128xf32>
    %821 = vector.extract_strided_slice %808 {offsets = [0, 256], sizes = [2, 128], strides = [1, 1]} : vector<2x512xf32> to vector<2x128xf32>
    %822 = math.tanh %821 : vector<2x128xf32>
    %823 = vector.extract_strided_slice %808 {offsets = [0, 384], sizes = [2, 128], strides = [1, 1]} : vector<2x512xf32> to vector<2x128xf32>
    %824 = arith.negf %823 : vector<2x128xf32>
    %825 = math.exp %824 : vector<2x128xf32>
    %cst_182 = arith.constant 1.000000e+00 : f32
    %826 = vector.broadcast %cst_182 : f32 to vector<2x128xf32>
    %827 = arith.addf %826, %825 : vector<2x128xf32>
    %828 = arith.divf %826, %827 : vector<2x128xf32>
    %829 = arith.mulf %820, %743 : vector<2x128xf32>
    %830 = arith.mulf %814, %822 : vector<2x128xf32>
    %831 = arith.addf %829, %830 : vector<2x128xf32>
    %832 = math.tanh %831 : vector<2x128xf32>
    %833 = arith.mulf %828, %832 : vector<2x128xf32>
    %834 = arith.truncf %833 : vector<2x128xf32> to vector<2x128xbf16>
    %835 = arith.truncf %776 : vector<2x128xf32> to vector<2x128xbf16>
    %836 = tpu.concatenate %834, %835 in 1 : vector<2x128xbf16>, vector<2x128xbf16> -> vector<2x256xbf16>
    %cst_183 = arith.constant dense<0.000000e+00> : vector<2x512xf32>
    %837 = tpu.matmul %836, %1, %cst_183 {dimension_numbers = #tpu.dot_dimension_numbers<[1], [0], [0], [1], [0, 0, 1, 1], [], []>} : vector<2x256xbf16>, vector<256x512xbf16>, vector<2x512xf32> -> vector<2x512xf32>
    %838 = vector.broadcast %3 : vector<1x512xf32> to vector<2x512xf32>
    %839 = arith.addf %837, %838 : vector<2x512xf32>
    %840 = vector.extract_strided_slice %839 {offsets = [0, 0], sizes = [2, 128], strides = [1, 1]} : vector<2x512xf32> to vector<2x128xf32>
    %841 = arith.negf %840 : vector<2x128xf32>
    %842 = math.exp %841 : vector<2x128xf32>
    %cst_184 = arith.constant 1.000000e+00 : f32
    %843 = vector.broadcast %cst_184 : f32 to vector<2x128xf32>
    %844 = arith.addf %843, %842 : vector<2x128xf32>
    %845 = arith.divf %843, %844 : vector<2x128xf32>
    %846 = vector.extract_strided_slice %839 {offsets = [0, 128], sizes = [2, 128], strides = [1, 1]} : vector<2x512xf32> to vector<2x128xf32>
    %847 = arith.negf %846 : vector<2x128xf32>
    %848 = math.exp %847 : vector<2x128xf32>
    %cst_185 = arith.constant 1.000000e+00 : f32
    %849 = vector.broadcast %cst_185 : f32 to vector<2x128xf32>
    %850 = arith.addf %849, %848 : vector<2x128xf32>
    %851 = arith.divf %849, %850 : vector<2x128xf32>
    %852 = vector.extract_strided_slice %839 {offsets = [0, 256], sizes = [2, 128], strides = [1, 1]} : vector<2x512xf32> to vector<2x128xf32>
    %853 = math.tanh %852 : vector<2x128xf32>
    %854 = vector.extract_strided_slice %839 {offsets = [0, 384], sizes = [2, 128], strides = [1, 1]} : vector<2x512xf32> to vector<2x128xf32>
    %855 = arith.negf %854 : vector<2x128xf32>
    %856 = math.exp %855 : vector<2x128xf32>
    %cst_186 = arith.constant 1.000000e+00 : f32
    %857 = vector.broadcast %cst_186 : f32 to vector<2x128xf32>
    %858 = arith.addf %857, %856 : vector<2x128xf32>
    %859 = arith.divf %857, %858 : vector<2x128xf32>
    %860 = arith.mulf %851, %774 : vector<2x128xf32>
    %861 = arith.mulf %845, %853 : vector<2x128xf32>
    %862 = arith.addf %860, %861 : vector<2x128xf32>
    %863 = math.tanh %862 : vector<2x128xf32>
    %864 = arith.mulf %859, %863 : vector<2x128xf32>
    %cst_187 = arith.constant dense<0.000000e+00> : vector<2xf32>
    %865 = vector.multi_reduction <add>, %864, %cst_187 [1] : vector<2x128xf32> to vector<2xf32>
    %866 = vector.shape_cast %865 : vector<2xf32> to vector<2x1xf32>
    %cst_188 = arith.constant 1.280000e+02 : f32
    %867 = vector.broadcast %cst_188 : f32 to vector<2x1xf32>
    %868 = arith.divf %866, %867 : vector<2x1xf32>
    %869 = vector.broadcast %868 : vector<2x1xf32> to vector<2x128xf32>
    %870 = arith.subf %864, %869 : vector<2x128xf32>
    %871 = arith.mulf %870, %870 : vector<2x128xf32>
    %cst_189 = arith.constant dense<0.000000e+00> : vector<2xf32>
    %872 = vector.multi_reduction <add>, %871, %cst_189 [1] : vector<2x128xf32> to vector<2xf32>
    %873 = vector.shape_cast %872 : vector<2xf32> to vector<2x1xf32>
    %cst_190 = arith.constant 1.280000e+02 : f32
    %874 = vector.broadcast %cst_190 : f32 to vector<2x1xf32>
    %875 = arith.divf %873, %874 : vector<2x1xf32>
    %876 = vector.broadcast %868 : vector<2x1xf32> to vector<2x128xf32>
    %877 = arith.subf %864, %876 : vector<2x128xf32>
    %cst_191 = arith.constant 9.99999974E-6 : f32
    %878 = vector.broadcast %cst_191 : f32 to vector<2x1xf32>
    %879 = arith.addf %875, %878 : vector<2x1xf32>
    %880 = math.rsqrt %879 : vector<2x1xf32>
    %881 = vector.broadcast %880 : vector<2x1xf32> to vector<2x128xf32>
    %882 = arith.mulf %877, %881 : vector<2x128xf32>
    %883 = vector.broadcast %4 : vector<1x128xf32> to vector<2x128xf32>
    %884 = arith.mulf %882, %883 : vector<2x128xf32>
    %885 = vector.broadcast %5 : vector<1x128xf32> to vector<2x128xf32>
    %886 = arith.addf %884, %885 : vector<2x128xf32>
    %c9_192 = arith.constant 9 : index
    %c0_193 = arith.constant 0 : index
    %c0_194 = arith.constant 0 : index
    %887 = vector.load %arg7[%c9_192, %c0_193, %c0_194] : memref<13x2x128xf32, #tpu.memory_space<vmem>>, vector<1x2x128xf32>
    %888 = vector.shape_cast %887 : vector<1x2x128xf32> to vector<2x128xf32>
    %889 = vector.shape_cast %886 : vector<2x128xf32> to vector<1x2x128xf32>
    tpu.vector_store %arg7[%c9_192, %c0_193, %c0_194], %889 {strides = array<i32>} : memref<13x2x128xf32, #tpu.memory_space<vmem>>, vector<1x2x128xf32>,
    %c10 = arith.constant 10 : index
    %c0_195 = arith.constant 0 : index
    %c0_196 = arith.constant 0 : index
    %890 = vector.load %arg0[%c10, %c0_195, %c0_196] : memref<13x2x128xbf16, #tpu.memory_space<vmem>>, vector<1x2x128xbf16>
    %891 = vector.shape_cast %890 : vector<1x2x128xbf16> to vector<2x128xbf16>
    %892 = arith.truncf %833 : vector<2x128xf32> to vector<2x128xbf16>
    %893 = tpu.concatenate %891, %892 in 1 : vector<2x128xbf16>, vector<2x128xbf16> -> vector<2x256xbf16>
    %cst_197 = arith.constant dense<0.000000e+00> : vector<2x512xf32>
    %894 = tpu.matmul %893, %0, %cst_197 {dimension_numbers = #tpu.dot_dimension_numbers<[1], [0], [0], [1], [0, 0, 1, 1], [], []>} : vector<2x256xbf16>, vector<256x512xbf16>, vector<2x512xf32> -> vector<2x512xf32>
    %895 = vector.broadcast %2 : vector<1x512xf32> to vector<2x512xf32>
    %896 = arith.addf %894, %895 : vector<2x512xf32>
    %897 = vector.extract_strided_slice %896 {offsets = [0, 0], sizes = [2, 128], strides = [1, 1]} : vector<2x512xf32> to vector<2x128xf32>
    %898 = arith.negf %897 : vector<2x128xf32>
    %899 = math.exp %898 : vector<2x128xf32>
    %cst_198 = arith.constant 1.000000e+00 : f32
    %900 = vector.broadcast %cst_198 : f32 to vector<2x128xf32>
    %901 = arith.addf %900, %899 : vector<2x128xf32>
    %902 = arith.divf %900, %901 : vector<2x128xf32>
    %903 = vector.extract_strided_slice %896 {offsets = [0, 128], sizes = [2, 128], strides = [1, 1]} : vector<2x512xf32> to vector<2x128xf32>
    %904 = arith.negf %903 : vector<2x128xf32>
    %905 = math.exp %904 : vector<2x128xf32>
    %cst_199 = arith.constant 1.000000e+00 : f32
    %906 = vector.broadcast %cst_199 : f32 to vector<2x128xf32>
    %907 = arith.addf %906, %905 : vector<2x128xf32>
    %908 = arith.divf %906, %907 : vector<2x128xf32>
    %909 = vector.extract_strided_slice %896 {offsets = [0, 256], sizes = [2, 128], strides = [1, 1]} : vector<2x512xf32> to vector<2x128xf32>
    %910 = math.tanh %909 : vector<2x128xf32>
    %911 = vector.extract_strided_slice %896 {offsets = [0, 384], sizes = [2, 128], strides = [1, 1]} : vector<2x512xf32> to vector<2x128xf32>
    %912 = arith.negf %911 : vector<2x128xf32>
    %913 = math.exp %912 : vector<2x128xf32>
    %cst_200 = arith.constant 1.000000e+00 : f32
    %914 = vector.broadcast %cst_200 : f32 to vector<2x128xf32>
    %915 = arith.addf %914, %913 : vector<2x128xf32>
    %916 = arith.divf %914, %915 : vector<2x128xf32>
    %917 = arith.mulf %908, %831 : vector<2x128xf32>
    %918 = arith.mulf %902, %910 : vector<2x128xf32>
    %919 = arith.addf %917, %918 : vector<2x128xf32>
    %920 = math.tanh %919 : vector<2x128xf32>
    %921 = arith.mulf %916, %920 : vector<2x128xf32>
    %922 = arith.truncf %921 : vector<2x128xf32> to vector<2x128xbf16>
    %923 = arith.truncf %864 : vector<2x128xf32> to vector<2x128xbf16>
    %924 = tpu.concatenate %922, %923 in 1 : vector<2x128xbf16>, vector<2x128xbf16> -> vector<2x256xbf16>
    %cst_201 = arith.constant dense<0.000000e+00> : vector<2x512xf32>
    %925 = tpu.matmul %924, %1, %cst_201 {dimension_numbers = #tpu.dot_dimension_numbers<[1], [0], [0], [1], [0, 0, 1, 1], [], []>} : vector<2x256xbf16>, vector<256x512xbf16>, vector<2x512xf32> -> vector<2x512xf32>
    %926 = vector.broadcast %3 : vector<1x512xf32> to vector<2x512xf32>
    %927 = arith.addf %925, %926 : vector<2x512xf32>
    %928 = vector.extract_strided_slice %927 {offsets = [0, 0], sizes = [2, 128], strides = [1, 1]} : vector<2x512xf32> to vector<2x128xf32>
    %929 = arith.negf %928 : vector<2x128xf32>
    %930 = math.exp %929 : vector<2x128xf32>
    %cst_202 = arith.constant 1.000000e+00 : f32
    %931 = vector.broadcast %cst_202 : f32 to vector<2x128xf32>
    %932 = arith.addf %931, %930 : vector<2x128xf32>
    %933 = arith.divf %931, %932 : vector<2x128xf32>
    %934 = vector.extract_strided_slice %927 {offsets = [0, 128], sizes = [2, 128], strides = [1, 1]} : vector<2x512xf32> to vector<2x128xf32>
    %935 = arith.negf %934 : vector<2x128xf32>
    %936 = math.exp %935 : vector<2x128xf32>
    %cst_203 = arith.constant 1.000000e+00 : f32
    %937 = vector.broadcast %cst_203 : f32 to vector<2x128xf32>
    %938 = arith.addf %937, %936 : vector<2x128xf32>
    %939 = arith.divf %937, %938 : vector<2x128xf32>
    %940 = vector.extract_strided_slice %927 {offsets = [0, 256], sizes = [2, 128], strides = [1, 1]} : vector<2x512xf32> to vector<2x128xf32>
    %941 = math.tanh %940 : vector<2x128xf32>
    %942 = vector.extract_strided_slice %927 {offsets = [0, 384], sizes = [2, 128], strides = [1, 1]} : vector<2x512xf32> to vector<2x128xf32>
    %943 = arith.negf %942 : vector<2x128xf32>
    %944 = math.exp %943 : vector<2x128xf32>
    %cst_204 = arith.constant 1.000000e+00 : f32
    %945 = vector.broadcast %cst_204 : f32 to vector<2x128xf32>
    %946 = arith.addf %945, %944 : vector<2x128xf32>
    %947 = arith.divf %945, %946 : vector<2x128xf32>
    %948 = arith.mulf %939, %862 : vector<2x128xf32>
    %949 = arith.mulf %933, %941 : vector<2x128xf32>
    %950 = arith.addf %948, %949 : vector<2x128xf32>
    %951 = math.tanh %950 : vector<2x128xf32>
    %952 = arith.mulf %947, %951 : vector<2x128xf32>
    %cst_205 = arith.constant dense<0.000000e+00> : vector<2xf32>
    %953 = vector.multi_reduction <add>, %952, %cst_205 [1] : vector<2x128xf32> to vector<2xf32>
    %954 = vector.shape_cast %953 : vector<2xf32> to vector<2x1xf32>
    %cst_206 = arith.constant 1.280000e+02 : f32
    %955 = vector.broadcast %cst_206 : f32 to vector<2x1xf32>
    %956 = arith.divf %954, %955 : vector<2x1xf32>
    %957 = vector.broadcast %956 : vector<2x1xf32> to vector<2x128xf32>
    %958 = arith.subf %952, %957 : vector<2x128xf32>
    %959 = arith.mulf %958, %958 : vector<2x128xf32>
    %cst_207 = arith.constant dense<0.000000e+00> : vector<2xf32>
    %960 = vector.multi_reduction <add>, %959, %cst_207 [1] : vector<2x128xf32> to vector<2xf32>
    %961 = vector.shape_cast %960 : vector<2xf32> to vector<2x1xf32>
    %cst_208 = arith.constant 1.280000e+02 : f32
    %962 = vector.broadcast %cst_208 : f32 to vector<2x1xf32>
    %963 = arith.divf %961, %962 : vector<2x1xf32>
    %964 = vector.broadcast %956 : vector<2x1xf32> to vector<2x128xf32>
    %965 = arith.subf %952, %964 : vector<2x128xf32>
    %cst_209 = arith.constant 9.99999974E-6 : f32
    %966 = vector.broadcast %cst_209 : f32 to vector<2x1xf32>
    %967 = arith.addf %963, %966 : vector<2x1xf32>
    %968 = math.rsqrt %967 : vector<2x1xf32>
    %969 = vector.broadcast %968 : vector<2x1xf32> to vector<2x128xf32>
    %970 = arith.mulf %965, %969 : vector<2x128xf32>
    %971 = vector.broadcast %4 : vector<1x128xf32> to vector<2x128xf32>
    %972 = arith.mulf %970, %971 : vector<2x128xf32>
    %973 = vector.broadcast %5 : vector<1x128xf32> to vector<2x128xf32>
    %974 = arith.addf %972, %973 : vector<2x128xf32>
    %c10_210 = arith.constant 10 : index
    %c0_211 = arith.constant 0 : index
    %c0_212 = arith.constant 0 : index
    %975 = vector.load %arg7[%c10_210, %c0_211, %c0_212] : memref<13x2x128xf32, #tpu.memory_space<vmem>>, vector<1x2x128xf32>
    %976 = vector.shape_cast %975 : vector<1x2x128xf32> to vector<2x128xf32>
    %977 = vector.shape_cast %974 : vector<2x128xf32> to vector<1x2x128xf32>
    tpu.vector_store %arg7[%c10_210, %c0_211, %c0_212], %977 {strides = array<i32>} : memref<13x2x128xf32, #tpu.memory_space<vmem>>, vector<1x2x128xf32>,
    %c11 = arith.constant 11 : index
    %c0_213 = arith.constant 0 : index
    %c0_214 = arith.constant 0 : index
    %978 = vector.load %arg0[%c11, %c0_213, %c0_214] : memref<13x2x128xbf16, #tpu.memory_space<vmem>>, vector<1x2x128xbf16>
    %979 = vector.shape_cast %978 : vector<1x2x128xbf16> to vector<2x128xbf16>
    %980 = arith.truncf %921 : vector<2x128xf32> to vector<2x128xbf16>
    %981 = tpu.concatenate %979, %980 in 1 : vector<2x128xbf16>, vector<2x128xbf16> -> vector<2x256xbf16>
    %cst_215 = arith.constant dense<0.000000e+00> : vector<2x512xf32>
    %982 = tpu.matmul %981, %0, %cst_215 {dimension_numbers = #tpu.dot_dimension_numbers<[1], [0], [0], [1], [0, 0, 1, 1], [], []>} : vector<2x256xbf16>, vector<256x512xbf16>, vector<2x512xf32> -> vector<2x512xf32>
    %983 = vector.broadcast %2 : vector<1x512xf32> to vector<2x512xf32>
    %984 = arith.addf %982, %983 : vector<2x512xf32>
    %985 = vector.extract_strided_slice %984 {offsets = [0, 0], sizes = [2, 128], strides = [1, 1]} : vector<2x512xf32> to vector<2x128xf32>
    %986 = arith.negf %985 : vector<2x128xf32>
    %987 = math.exp %986 : vector<2x128xf32>
    %cst_216 = arith.constant 1.000000e+00 : f32
    %988 = vector.broadcast %cst_216 : f32 to vector<2x128xf32>
    %989 = arith.addf %988, %987 : vector<2x128xf32>
    %990 = arith.divf %988, %989 : vector<2x128xf32>
    %991 = vector.extract_strided_slice %984 {offsets = [0, 128], sizes = [2, 128], strides = [1, 1]} : vector<2x512xf32> to vector<2x128xf32>
    %992 = arith.negf %991 : vector<2x128xf32>
    %993 = math.exp %992 : vector<2x128xf32>
    %cst_217 = arith.constant 1.000000e+00 : f32
    %994 = vector.broadcast %cst_217 : f32 to vector<2x128xf32>
    %995 = arith.addf %994, %993 : vector<2x128xf32>
    %996 = arith.divf %994, %995 : vector<2x128xf32>
    %997 = vector.extract_strided_slice %984 {offsets = [0, 256], sizes = [2, 128], strides = [1, 1]} : vector<2x512xf32> to vector<2x128xf32>
    %998 = math.tanh %997 : vector<2x128xf32>
    %999 = vector.extract_strided_slice %984 {offsets = [0, 384], sizes = [2, 128], strides = [1, 1]} : vector<2x512xf32> to vector<2x128xf32>
    %1000 = arith.negf %999 : vector<2x128xf32>
    %1001 = math.exp %1000 : vector<2x128xf32>
    %cst_218 = arith.constant 1.000000e+00 : f32
    %1002 = vector.broadcast %cst_218 : f32 to vector<2x128xf32>
    %1003 = arith.addf %1002, %1001 : vector<2x128xf32>
    %1004 = arith.divf %1002, %1003 : vector<2x128xf32>
    %1005 = arith.mulf %996, %919 : vector<2x128xf32>
    %1006 = arith.mulf %990, %998 : vector<2x128xf32>
    %1007 = arith.addf %1005, %1006 : vector<2x128xf32>
    %1008 = math.tanh %1007 : vector<2x128xf32>
    %1009 = arith.mulf %1004, %1008 : vector<2x128xf32>
    %1010 = arith.truncf %1009 : vector<2x128xf32> to vector<2x128xbf16>
    %1011 = arith.truncf %952 : vector<2x128xf32> to vector<2x128xbf16>
    %1012 = tpu.concatenate %1010, %1011 in 1 : vector<2x128xbf16>, vector<2x128xbf16> -> vector<2x256xbf16>
    %cst_219 = arith.constant dense<0.000000e+00> : vector<2x512xf32>
    %1013 = tpu.matmul %1012, %1, %cst_219 {dimension_numbers = #tpu.dot_dimension_numbers<[1], [0], [0], [1], [0, 0, 1, 1], [], []>} : vector<2x256xbf16>, vector<256x512xbf16>, vector<2x512xf32> -> vector<2x512xf32>
    %1014 = vector.broadcast %3 : vector<1x512xf32> to vector<2x512xf32>
    %1015 = arith.addf %1013, %1014 : vector<2x512xf32>
    %1016 = vector.extract_strided_slice %1015 {offsets = [0, 0], sizes = [2, 128], strides = [1, 1]} : vector<2x512xf32> to vector<2x128xf32>
    %1017 = arith.negf %1016 : vector<2x128xf32>
    %1018 = math.exp %1017 : vector<2x128xf32>
    %cst_220 = arith.constant 1.000000e+00 : f32
    %1019 = vector.broadcast %cst_220 : f32 to vector<2x128xf32>
    %1020 = arith.addf %1019, %1018 : vector<2x128xf32>
    %1021 = arith.divf %1019, %1020 : vector<2x128xf32>
    %1022 = vector.extract_strided_slice %1015 {offsets = [0, 128], sizes = [2, 128], strides = [1, 1]} : vector<2x512xf32> to vector<2x128xf32>
    %1023 = arith.negf %1022 : vector<2x128xf32>
    %1024 = math.exp %1023 : vector<2x128xf32>
    %cst_221 = arith.constant 1.000000e+00 : f32
    %1025 = vector.broadcast %cst_221 : f32 to vector<2x128xf32>
    %1026 = arith.addf %1025, %1024 : vector<2x128xf32>
    %1027 = arith.divf %1025, %1026 : vector<2x128xf32>
    %1028 = vector.extract_strided_slice %1015 {offsets = [0, 256], sizes = [2, 128], strides = [1, 1]} : vector<2x512xf32> to vector<2x128xf32>
    %1029 = math.tanh %1028 : vector<2x128xf32>
    %1030 = vector.extract_strided_slice %1015 {offsets = [0, 384], sizes = [2, 128], strides = [1, 1]} : vector<2x512xf32> to vector<2x128xf32>
    %1031 = arith.negf %1030 : vector<2x128xf32>
    %1032 = math.exp %1031 : vector<2x128xf32>
    %cst_222 = arith.constant 1.000000e+00 : f32
    %1033 = vector.broadcast %cst_222 : f32 to vector<2x128xf32>
    %1034 = arith.addf %1033, %1032 : vector<2x128xf32>
    %1035 = arith.divf %1033, %1034 : vector<2x128xf32>
    %1036 = arith.mulf %1027, %950 : vector<2x128xf32>
    %1037 = arith.mulf %1021, %1029 : vector<2x128xf32>
    %1038 = arith.addf %1036, %1037 : vector<2x128xf32>
    %1039 = math.tanh %1038 : vector<2x128xf32>
    %1040 = arith.mulf %1035, %1039 : vector<2x128xf32>
    %cst_223 = arith.constant dense<0.000000e+00> : vector<2xf32>
    %1041 = vector.multi_reduction <add>, %1040, %cst_223 [1] : vector<2x128xf32> to vector<2xf32>
    %1042 = vector.shape_cast %1041 : vector<2xf32> to vector<2x1xf32>
    %cst_224 = arith.constant 1.280000e+02 : f32
    %1043 = vector.broadcast %cst_224 : f32 to vector<2x1xf32>
    %1044 = arith.divf %1042, %1043 : vector<2x1xf32>
    %1045 = vector.broadcast %1044 : vector<2x1xf32> to vector<2x128xf32>
    %1046 = arith.subf %1040, %1045 : vector<2x128xf32>
    %1047 = arith.mulf %1046, %1046 : vector<2x128xf32>
    %cst_225 = arith.constant dense<0.000000e+00> : vector<2xf32>
    %1048 = vector.multi_reduction <add>, %1047, %cst_225 [1] : vector<2x128xf32> to vector<2xf32>
    %1049 = vector.shape_cast %1048 : vector<2xf32> to vector<2x1xf32>
    %cst_226 = arith.constant 1.280000e+02 : f32
    %1050 = vector.broadcast %cst_226 : f32 to vector<2x1xf32>
    %1051 = arith.divf %1049, %1050 : vector<2x1xf32>
    %1052 = vector.broadcast %1044 : vector<2x1xf32> to vector<2x128xf32>
    %1053 = arith.subf %1040, %1052 : vector<2x128xf32>
    %cst_227 = arith.constant 9.99999974E-6 : f32
    %1054 = vector.broadcast %cst_227 : f32 to vector<2x1xf32>
    %1055 = arith.addf %1051, %1054 : vector<2x1xf32>
    %1056 = math.rsqrt %1055 : vector<2x1xf32>
    %1057 = vector.broadcast %1056 : vector<2x1xf32> to vector<2x128xf32>
    %1058 = arith.mulf %1053, %1057 : vector<2x128xf32>
    %1059 = vector.broadcast %4 : vector<1x128xf32> to vector<2x128xf32>
    %1060 = arith.mulf %1058, %1059 : vector<2x128xf32>
    %1061 = vector.broadcast %5 : vector<1x128xf32> to vector<2x128xf32>
    %1062 = arith.addf %1060, %1061 : vector<2x128xf32>
    %c11_228 = arith.constant 11 : index
    %c0_229 = arith.constant 0 : index
    %c0_230 = arith.constant 0 : index
    %1063 = vector.load %arg7[%c11_228, %c0_229, %c0_230] : memref<13x2x128xf32, #tpu.memory_space<vmem>>, vector<1x2x128xf32>
    %1064 = vector.shape_cast %1063 : vector<1x2x128xf32> to vector<2x128xf32>
    %1065 = vector.shape_cast %1062 : vector<2x128xf32> to vector<1x2x128xf32>
    tpu.vector_store %arg7[%c11_228, %c0_229, %c0_230], %1065 {strides = array<i32>} : memref<13x2x128xf32, #tpu.memory_space<vmem>>, vector<1x2x128xf32>,
    %c12 = arith.constant 12 : index
    %c0_231 = arith.constant 0 : index
    %c0_232 = arith.constant 0 : index
    %1066 = vector.load %arg0[%c12, %c0_231, %c0_232] : memref<13x2x128xbf16, #tpu.memory_space<vmem>>, vector<1x2x128xbf16>
    %1067 = vector.shape_cast %1066 : vector<1x2x128xbf16> to vector<2x128xbf16>
    %1068 = arith.truncf %1009 : vector<2x128xf32> to vector<2x128xbf16>
    %1069 = tpu.concatenate %1067, %1068 in 1 : vector<2x128xbf16>, vector<2x128xbf16> -> vector<2x256xbf16>
    %cst_233 = arith.constant dense<0.000000e+00> : vector<2x512xf32>
    %1070 = tpu.matmul %1069, %0, %cst_233 {dimension_numbers = #tpu.dot_dimension_numbers<[1], [0], [0], [1], [0, 0, 1, 1], [], []>} : vector<2x256xbf16>, vector<256x512xbf16>, vector<2x512xf32> -> vector<2x512xf32>
    %1071 = vector.broadcast %2 : vector<1x512xf32> to vector<2x512xf32>
    %1072 = arith.addf %1070, %1071 : vector<2x512xf32>
    %1073 = vector.extract_strided_slice %1072 {offsets = [0, 0], sizes = [2, 128], strides = [1, 1]} : vector<2x512xf32> to vector<2x128xf32>
    %1074 = arith.negf %1073 : vector<2x128xf32>
    %1075 = math.exp %1074 : vector<2x128xf32>
    %cst_234 = arith.constant 1.000000e+00 : f32
    %1076 = vector.broadcast %cst_234 : f32 to vector<2x128xf32>
    %1077 = arith.addf %1076, %1075 : vector<2x128xf32>
    %1078 = arith.divf %1076, %1077 : vector<2x128xf32>
    %1079 = vector.extract_strided_slice %1072 {offsets = [0, 128], sizes = [2, 128], strides = [1, 1]} : vector<2x512xf32> to vector<2x128xf32>
    %1080 = arith.negf %1079 : vector<2x128xf32>
    %1081 = math.exp %1080 : vector<2x128xf32>
    %cst_235 = arith.constant 1.000000e+00 : f32
    %1082 = vector.broadcast %cst_235 : f32 to vector<2x128xf32>
    %1083 = arith.addf %1082, %1081 : vector<2x128xf32>
    %1084 = arith.divf %1082, %1083 : vector<2x128xf32>
    %1085 = vector.extract_strided_slice %1072 {offsets = [0, 256], sizes = [2, 128], strides = [1, 1]} : vector<2x512xf32> to vector<2x128xf32>
    %1086 = math.tanh %1085 : vector<2x128xf32>
    %1087 = vector.extract_strided_slice %1072 {offsets = [0, 384], sizes = [2, 128], strides = [1, 1]} : vector<2x512xf32> to vector<2x128xf32>
    %1088 = arith.negf %1087 : vector<2x128xf32>
    %1089 = math.exp %1088 : vector<2x128xf32>
    %cst_236 = arith.constant 1.000000e+00 : f32
    %1090 = vector.broadcast %cst_236 : f32 to vector<2x128xf32>
    %1091 = arith.addf %1090, %1089 : vector<2x128xf32>
    %1092 = arith.divf %1090, %1091 : vector<2x128xf32>
    %1093 = arith.mulf %1084, %1007 : vector<2x128xf32>
    %1094 = arith.mulf %1078, %1086 : vector<2x128xf32>
    %1095 = arith.addf %1093, %1094 : vector<2x128xf32>
    %1096 = math.tanh %1095 : vector<2x128xf32>
    %1097 = arith.mulf %1092, %1096 : vector<2x128xf32>
    %1098 = arith.truncf %1097 : vector<2x128xf32> to vector<2x128xbf16>
    %1099 = arith.truncf %1040 : vector<2x128xf32> to vector<2x128xbf16>
    %1100 = tpu.concatenate %1098, %1099 in 1 : vector<2x128xbf16>, vector<2x128xbf16> -> vector<2x256xbf16>
    %cst_237 = arith.constant dense<0.000000e+00> : vector<2x512xf32>
    %1101 = tpu.matmul %1100, %1, %cst_237 {dimension_numbers = #tpu.dot_dimension_numbers<[1], [0], [0], [1], [0, 0, 1, 1], [], []>} : vector<2x256xbf16>, vector<256x512xbf16>, vector<2x512xf32> -> vector<2x512xf32>
    %1102 = vector.broadcast %3 : vector<1x512xf32> to vector<2x512xf32>
    %1103 = arith.addf %1101, %1102 : vector<2x512xf32>
    %1104 = vector.extract_strided_slice %1103 {offsets = [0, 0], sizes = [2, 128], strides = [1, 1]} : vector<2x512xf32> to vector<2x128xf32>
    %1105 = arith.negf %1104 : vector<2x128xf32>
    %1106 = math.exp %1105 : vector<2x128xf32>
    %cst_238 = arith.constant 1.000000e+00 : f32
    %1107 = vector.broadcast %cst_238 : f32 to vector<2x128xf32>
    %1108 = arith.addf %1107, %1106 : vector<2x128xf32>
    %1109 = arith.divf %1107, %1108 : vector<2x128xf32>
    %1110 = vector.extract_strided_slice %1103 {offsets = [0, 128], sizes = [2, 128], strides = [1, 1]} : vector<2x512xf32> to vector<2x128xf32>
    %1111 = arith.negf %1110 : vector<2x128xf32>
    %1112 = math.exp %1111 : vector<2x128xf32>
    %cst_239 = arith.constant 1.000000e+00 : f32
    %1113 = vector.broadcast %cst_239 : f32 to vector<2x128xf32>
    %1114 = arith.addf %1113, %1112 : vector<2x128xf32>
    %1115 = arith.divf %1113, %1114 : vector<2x128xf32>
    %1116 = vector.extract_strided_slice %1103 {offsets = [0, 256], sizes = [2, 128], strides = [1, 1]} : vector<2x512xf32> to vector<2x128xf32>
    %1117 = math.tanh %1116 : vector<2x128xf32>
    %1118 = vector.extract_strided_slice %1103 {offsets = [0, 384], sizes = [2, 128], strides = [1, 1]} : vector<2x512xf32> to vector<2x128xf32>
    %1119 = arith.negf %1118 : vector<2x128xf32>
    %1120 = math.exp %1119 : vector<2x128xf32>
    %cst_240 = arith.constant 1.000000e+00 : f32
    %1121 = vector.broadcast %cst_240 : f32 to vector<2x128xf32>
    %1122 = arith.addf %1121, %1120 : vector<2x128xf32>
    %1123 = arith.divf %1121, %1122 : vector<2x128xf32>
    %1124 = arith.mulf %1115, %1038 : vector<2x128xf32>
    %1125 = arith.mulf %1109, %1117 : vector<2x128xf32>
    %1126 = arith.addf %1124, %1125 : vector<2x128xf32>
    %1127 = math.tanh %1126 : vector<2x128xf32>
    %1128 = arith.mulf %1123, %1127 : vector<2x128xf32>
    %cst_241 = arith.constant dense<0.000000e+00> : vector<2xf32>
    %1129 = vector.multi_reduction <add>, %1128, %cst_241 [1] : vector<2x128xf32> to vector<2xf32>
    %1130 = vector.shape_cast %1129 : vector<2xf32> to vector<2x1xf32>
    %cst_242 = arith.constant 1.280000e+02 : f32
    %1131 = vector.broadcast %cst_242 : f32 to vector<2x1xf32>
    %1132 = arith.divf %1130, %1131 : vector<2x1xf32>
    %1133 = vector.broadcast %1132 : vector<2x1xf32> to vector<2x128xf32>
    %1134 = arith.subf %1128, %1133 : vector<2x128xf32>
    %1135 = arith.mulf %1134, %1134 : vector<2x128xf32>
    %cst_243 = arith.constant dense<0.000000e+00> : vector<2xf32>
    %1136 = vector.multi_reduction <add>, %1135, %cst_243 [1] : vector<2x128xf32> to vector<2xf32>
    %1137 = vector.shape_cast %1136 : vector<2xf32> to vector<2x1xf32>
    %cst_244 = arith.constant 1.280000e+02 : f32
    %1138 = vector.broadcast %cst_244 : f32 to vector<2x1xf32>
    %1139 = arith.divf %1137, %1138 : vector<2x1xf32>
    %1140 = vector.broadcast %1132 : vector<2x1xf32> to vector<2x128xf32>
    %1141 = arith.subf %1128, %1140 : vector<2x128xf32>
    %cst_245 = arith.constant 9.99999974E-6 : f32
    %1142 = vector.broadcast %cst_245 : f32 to vector<2x1xf32>
    %1143 = arith.addf %1139, %1142 : vector<2x1xf32>
    %1144 = math.rsqrt %1143 : vector<2x1xf32>
    %1145 = vector.broadcast %1144 : vector<2x1xf32> to vector<2x128xf32>
    %1146 = arith.mulf %1141, %1145 : vector<2x128xf32>
    %1147 = vector.broadcast %4 : vector<1x128xf32> to vector<2x128xf32>
    %1148 = arith.mulf %1146, %1147 : vector<2x128xf32>
    %1149 = vector.broadcast %5 : vector<1x128xf32> to vector<2x128xf32>
    %1150 = arith.addf %1148, %1149 : vector<2x128xf32>
    %c12_246 = arith.constant 12 : index
    %c0_247 = arith.constant 0 : index
    %c0_248 = arith.constant 0 : index
    %1151 = vector.load %arg7[%c12_246, %c0_247, %c0_248] : memref<13x2x128xf32, #tpu.memory_space<vmem>>, vector<1x2x128xf32>
    %1152 = vector.shape_cast %1151 : vector<1x2x128xf32> to vector<2x128xf32>
    %1153 = vector.shape_cast %1150 : vector<2x128xf32> to vector<1x2x128xf32>
    tpu.vector_store %arg7[%c12_246, %c0_247, %c0_248], %1153 {strides = array<i32>} : memref<13x2x128xf32, #tpu.memory_space<vmem>>, vector<1x2x128xf32>,
    return
  }
}

module attributes {stable_mosaic.version = 11 : i64} {
  func.func @_dual_mlp_kernel(%arg0: memref<8x64xbf16, #tpu.memory_space<vmem>>, %arg1: memref<8x64xbf16, #tpu.memory_space<vmem>>, %arg2: memref<64x512xbf16, #tpu.memory_space<vmem>>, %arg3: memref<1x512xf32, #tpu.memory_space<vmem>>, %arg4: memref<512x64xbf16, #tpu.memory_space<vmem>>, %arg5: memref<1x64xf32, #tpu.memory_space<vmem>>, %arg6: memref<64x512xbf16, #tpu.memory_space<vmem>>, %arg7: memref<1x512xf32, #tpu.memory_space<vmem>>, %arg8: memref<512x64xbf16, #tpu.memory_space<vmem>>, %arg9: memref<1x64xf32, #tpu.memory_space<vmem>>, %arg10: memref<8x64xf32, #tpu.memory_space<vmem>>, %arg11: memref<8x64xf32, #tpu.memory_space<vmem>>) attributes {dimension_semantics = [], scalar_prefetch = 0 : i64, scratch_operands = 0 : i64, tpu.core_type = #tpu.core_type<tc>} {
    %c0 = arith.constant 0 : index
    %c0_0 = arith.constant 0 : index
    %0 = vector.load %arg0[%c0, %c0_0] : memref<8x64xbf16, #tpu.memory_space<vmem>>, vector<8x64xbf16>
    %c0_1 = arith.constant 0 : index
    %c0_2 = arith.constant 0 : index
    %1 = vector.load %arg2[%c0_1, %c0_2] : memref<64x512xbf16, #tpu.memory_space<vmem>>, vector<64x512xbf16>
    %c0_3 = arith.constant 0 : index
    %c0_4 = arith.constant 0 : index
    %2 = vector.load %arg3[%c0_3, %c0_4] : memref<1x512xf32, #tpu.memory_space<vmem>>, vector<1x512xf32>
    %c0_5 = arith.constant 0 : index
    %c0_6 = arith.constant 0 : index
    %3 = vector.load %arg4[%c0_5, %c0_6] : memref<512x64xbf16, #tpu.memory_space<vmem>>, vector<512x64xbf16>
    %c0_7 = arith.constant 0 : index
    %c0_8 = arith.constant 0 : index
    %4 = vector.load %arg5[%c0_7, %c0_8] : memref<1x64xf32, #tpu.memory_space<vmem>>, vector<1x64xf32>
    %cst = arith.constant dense<0.000000e+00> : vector<8x512xf32>
    %5 = tpu.matmul %0, %1, %cst {dimension_numbers = #tpu.dot_dimension_numbers<[1], [0], [0], [1], [0, 0, 1, 1], [], []>} : vector<8x64xbf16>, vector<64x512xbf16>, vector<8x512xf32> -> vector<8x512xf32>
    %6 = vector.broadcast %2 : vector<1x512xf32> to vector<8x512xf32>
    %7 = arith.addf %5, %6 : vector<8x512xf32>
    %cst_9 = arith.constant 0.000000e+00 : f32
    %8 = vector.broadcast %cst_9 : f32 to vector<8x512xf32>
    %9 = arith.maximumf %7, %8 : vector<8x512xf32>
    %10 = arith.truncf %9 : vector<8x512xf32> to vector<8x512xbf16>
    %cst_10 = arith.constant dense<0.000000e+00> : vector<8x64xf32>
    %11 = tpu.matmul %10, %3, %cst_10 {dimension_numbers = #tpu.dot_dimension_numbers<[1], [0], [0], [1], [0, 0, 1, 1], [], []>} : vector<8x512xbf16>, vector<512x64xbf16>, vector<8x64xf32> -> vector<8x64xf32>
    %12 = vector.broadcast %4 : vector<1x64xf32> to vector<8x64xf32>
    %13 = arith.addf %11, %12 : vector<8x64xf32>
    %c0_11 = arith.constant 0 : index
    %c0_12 = arith.constant 0 : index
    %14 = vector.load %arg10[%c0_11, %c0_12] : memref<8x64xf32, #tpu.memory_space<vmem>>, vector<8x64xf32>
    tpu.vector_store %arg10[%c0_11, %c0_12], %13 {strides = array<i32>} : memref<8x64xf32, #tpu.memory_space<vmem>>, vector<8x64xf32>,
    %c0_13 = arith.constant 0 : index
    %c0_14 = arith.constant 0 : index
    %15 = vector.load %arg1[%c0_13, %c0_14] : memref<8x64xbf16, #tpu.memory_space<vmem>>, vector<8x64xbf16>
    %c0_15 = arith.constant 0 : index
    %c0_16 = arith.constant 0 : index
    %16 = vector.load %arg6[%c0_15, %c0_16] : memref<64x512xbf16, #tpu.memory_space<vmem>>, vector<64x512xbf16>
    %c0_17 = arith.constant 0 : index
    %c0_18 = arith.constant 0 : index
    %17 = vector.load %arg7[%c0_17, %c0_18] : memref<1x512xf32, #tpu.memory_space<vmem>>, vector<1x512xf32>
    %c0_19 = arith.constant 0 : index
    %c0_20 = arith.constant 0 : index
    %18 = vector.load %arg8[%c0_19, %c0_20] : memref<512x64xbf16, #tpu.memory_space<vmem>>, vector<512x64xbf16>
    %c0_21 = arith.constant 0 : index
    %c0_22 = arith.constant 0 : index
    %19 = vector.load %arg9[%c0_21, %c0_22] : memref<1x64xf32, #tpu.memory_space<vmem>>, vector<1x64xf32>
    %cst_23 = arith.constant dense<0.000000e+00> : vector<8x512xf32>
    %20 = tpu.matmul %15, %16, %cst_23 {dimension_numbers = #tpu.dot_dimension_numbers<[1], [0], [0], [1], [0, 0, 1, 1], [], []>} : vector<8x64xbf16>, vector<64x512xbf16>, vector<8x512xf32> -> vector<8x512xf32>
    %21 = vector.broadcast %17 : vector<1x512xf32> to vector<8x512xf32>
    %22 = arith.addf %20, %21 : vector<8x512xf32>
    %cst_24 = arith.constant 0.000000e+00 : f32
    %23 = vector.broadcast %cst_24 : f32 to vector<8x512xf32>
    %24 = arith.maximumf %22, %23 : vector<8x512xf32>
    %25 = arith.truncf %24 : vector<8x512xf32> to vector<8x512xbf16>
    %cst_25 = arith.constant dense<0.000000e+00> : vector<8x64xf32>
    %26 = tpu.matmul %25, %18, %cst_25 {dimension_numbers = #tpu.dot_dimension_numbers<[1], [0], [0], [1], [0, 0, 1, 1], [], []>} : vector<8x512xbf16>, vector<512x64xbf16>, vector<8x64xf32> -> vector<8x64xf32>
    %27 = vector.broadcast %19 : vector<1x64xf32> to vector<8x64xf32>
    %28 = arith.addf %26, %27 : vector<8x64xf32>
    %c0_26 = arith.constant 0 : index
    %c0_27 = arith.constant 0 : index
    %29 = vector.load %arg11[%c0_26, %c0_27] : memref<8x64xf32, #tpu.memory_space<vmem>>, vector<8x64xf32>
    tpu.vector_store %arg11[%c0_26, %c0_27], %28 {strides = array<i32>} : memref<8x64xf32, #tpu.memory_space<vmem>>, vector<8x64xf32>,
    return
  }
}

</mosaic_0001>

<llo_original>
// kernel: reverse.0
$region0: #{reverse.0}
  %s0 = inlined_call_operand.vmem [shape: f32[2,3], index: 0, kind: input, shape index: {}]
  %s1 = inlined_call_operand.vmem [shape: f32[2,3], index: 1, kind: output, shape index: {}]
  %v2 = vlaneseq
  %v3 = vsub.s32 2, %v2
  %4 = vset.pattern.permute.xlu0 %v3
  $region1: #{reverse.0} parent=0
    #allocation0 [shape = 'u8[4096]{0}', space=vmem, size = 0x1000, scoped, tag = 'operand span for operand 0']
    #allocation1 [shape = 'u8[1024]{0}', space=vmem, size = 0x400, scoped, tag = 'packed  for operand 0']
    #allocation2 [shape = 'u8[4096]{0}', space=vmem, size = 0x1000, scoped, tag = 'operand span for operand 1']
    #allocation3 [shape = 'u8[1024]{0}', space=vmem, size = 0x400, scoped, tag = 'packed  for operand 1']
    // Predicated region
    $region2: #{reverse.0} parent=1 // pred_check
      _
    $region3: #{reverse.0} parent=1 // pred_check_branch
      %6 = sbr.rel (0) target = $region5
    $region4: #{reverse.0} parent=1 // pred_region
      // Predicated region
      $region6: #{reverse.0} parent=4 // pred_check
        _
      $region7: #{reverse.0} parent=4 // pred_check_branch
        %8 = sbr.rel target = $region9
      $region8: #{reverse.0} parent=4 // pred_region
        // Predicated region
        $region21: #{reverse.0} parent=8 // pred_check
          _
        $region22: #{reverse.0} parent=8 // pred_check_branch
          %24 = sbr.rel (0) target = $region24
        $region23: #{reverse.0} parent=8 // pred_region
          %s26 = ssub.s32 4, 1
          loop: start=0, step=1, limit=1
          $region25: #{reverse.0} parent=23 // loop_pre_header
            _
          $region26: #{reverse.0} parent=23 // loop_header
            %s28 = sphi 0, %s32
            %p29 = scmp.ge.s32.totalorder %s28, 1
            %s33 = sphi %s0, %s0
            %s34 = sphi [#allocation1], [#allocation1]
          $region27: #{reverse.0} parent=23 // loop_header_branch
            %31 = sbr.rel (%p29) target = $region31
          $region28: #{reverse.0} parent=23 // loop_body
            %v35 = vld [vmem:[%s33] sm:%s26]
            %36 = vst [vmem:[%s34] sm:%s26] %v35
          $region29: #{reverse.0} parent=23 // loop_footer
            %s32 = sadd.s32 1, %s28
          $region30: #{reverse.0} parent=23 // loop_footer_branch
            %27 = sbr.rel target = $region26
          $region31: #{reverse.0} parent=23 // loop_exit
            _
        $region24: #{reverse.0} parent=8 // pred_fallthru
          _
      $region9: #{reverse.0} parent=4 // pred_fallthru
        _
      // Predicated region
      $region10: #{reverse.0} parent=4 // pred_check
        _
      $region11: #{reverse.0} parent=4 // pred_check_branch
        %10 = sbr.rel (0) target = $region13
      $region12: #{reverse.0} parent=4 // pred_region
        %s12 = ssub.s32 4, 1
        loop: start=0, step=1, limit=1
        $region14: #{reverse.0} parent=12 // loop_pre_header
          _
        $region15: #{reverse.0} parent=12 // loop_header
          %s14 = sphi 0, %s18
          %p15 = scmp.ge.s32.totalorder %s14, 1
          %s19 = sphi %s0, %s0
          %s20 = sphi [#allocation1], [#allocation1]
        $region16: #{reverse.0} parent=12 // loop_header_branch
          %17 = sbr.rel (%p15) target = $region20
        $region17: #{reverse.0} parent=12 // loop_body
          %v21 = vld [vmem:[%s19] sm:%s12]
          %22 = vst [vmem:[%s20] sm:%s12] %v21
        $region18: #{reverse.0} parent=12 // loop_footer
          %s18 = sadd.s32 1, %s14
        $region19: #{reverse.0} parent=12 // loop_footer_branch
          %13 = sbr.rel target = $region15
        $region20: #{reverse.0} parent=12 // loop_exit
          _
      $region13: #{reverse.0} parent=4 // pred_fallthru
        _
    $region5: #{reverse.0} parent=1 // pred_fallthru
      _
    %37 = vnop
    %s39 = sshll.u32 1, 2
    %s40 = ssub.s32 %s39, 1
    %v41 = vld [vmem:[#allocation1] sm:%s40]
    %42 = vst [vmem:[#allocation0] sm:%s40] %v41
    %v43 = vld [vmem:[#allocation0] sm:$0xff]
    %44 = vperm.xlu0 %4, %v43
    %v45 = vpop.permute.xlu0 %44
    %46 = vst [vmem:[#allocation2] sm:$0xff] %v45
    %s48 = sshll.u32 1, 2
    %s49 = ssub.s32 %s48, 1
    %v51 = vld [vmem:[#allocation2] sm:%s49]
    %s52 = sshll.u32 1, 2
    %s53 = ssub.s32 %s52, 1
    %54 = vst [vmem:[#allocation3] sm:%s53] %v51
    // Predicated region
    $region32: #{reverse.0} parent=1 // pred_check
      _
    $region33: #{reverse.0} parent=1 // pred_check_branch
      %56 = sbr.rel (0) target = $region35
    $region34: #{reverse.0} parent=1 // pred_region
      // Predicated region
      $region36: #{reverse.0} parent=34 // pred_check
        _
      $region37: #{reverse.0} parent=34 // pred_check_branch
        %58 = sbr.rel target = $region39
      $region38: #{reverse.0} parent=34 // pred_region
        // Predicated region
        $region51: #{reverse.0} parent=38 // pred_check
          _
        $region52: #{reverse.0} parent=38 // pred_check_branch
          %74 = sbr.rel (0) target = $region54
        $region53: #{reverse.0} parent=38 // pred_region
          %s76 = ssub.s32 4, 1
          loop: start=0, step=1, limit=1
          $region55: #{reverse.0} parent=53 // loop_pre_header
            _
          $region56: #{reverse.0} parent=53 // loop_header
            %s78 = sphi 0, %s82
            %p79 = scmp.ge.s32.totalorder %s78, 1
            %s83 = sphi [#allocation3], [#allocation3]
            %s84 = sphi %s1, %s1
          $region57: #{reverse.0} parent=53 // loop_header_branch
            %81 = sbr.rel (%p79) target = $region61
          $region58: #{reverse.0} parent=53 // loop_body
            %v85 = vld [vmem:[%s83] sm:%s76]
            %86 = vst [vmem:[%s84] sm:%s76] %v85
          $region59: #{reverse.0} parent=53 // loop_footer
            %s82 = sadd.s32 1, %s78
          $region60: #{reverse.0} parent=53 // loop_footer_branch
            %77 = sbr.rel target = $region56
          $region61: #{reverse.0} parent=53 // loop_exit
            _
        $region54: #{reverse.0} parent=38 // pred_fallthru
          _
      $region39: #{reverse.0} parent=34 // pred_fallthru
        _
      // Predicated region
      $region40: #{reverse.0} parent=34 // pred_check
        _
      $region41: #{reverse.0} parent=34 // pred_check_branch
        %60 = sbr.rel (0) target = $region43
      $region42: #{reverse.0} parent=34 // pred_region
        %s62 = ssub.s32 4, 1
        loop: start=0, step=1, limit=1
        $region44: #{reverse.0} parent=42 // loop_pre_header
          _
        $region45: #{reverse.0} parent=42 // loop_header
          %s64 = sphi 0, %s68
          %p65 = scmp.ge.s32.totalorder %s64, 1
          %s69 = sphi [#allocation3], [#allocation3]
          %s70 = sphi %s1, %s1
        $region46: #{reverse.0} parent=42 // loop_header_branch
          %67 = sbr.rel (%p65) target = $region50
        $region47: #{reverse.0} parent=42 // loop_body
          %v71 = vld [vmem:[%s69] sm:%s62]
          %72 = vst [vmem:[%s70] sm:%s62] %v71
        $region48: #{reverse.0} parent=42 // loop_footer
          %s68 = sadd.s32 1, %s64
        $region49: #{reverse.0} parent=42 // loop_footer_branch
          %63 = sbr.rel target = $region45
        $region50: #{reverse.0} parent=42 // loop_exit
          _
      $region43: #{reverse.0} parent=34 // pred_fallthru
        _
    $region35: #{reverse.0} parent=1 // pred_fallthru
      _
    %87 = vnop

// kernel: lstm_model_forward.3
$region0: #{lstm_model_forward.3}
  #allocation0 [shape = 'u32[]', space=smem, size = 0x4, offset = 0x4, fixed_abs, tag = 'smem constant byte address 0x4 - core index']
  #allocation1 [shape = 'u32[144,128]{1,0:T(1,128)}', space=vmem, size = 0x12000, scoped, tag = 'internal scratch']
  %s0 = inlined_call_operand.vmem [shape: bf16[8,64], index: 0, kind: input, shape index: {}]
  %s1 = inlined_call_operand.vmem [shape: bf16[8,64], index: 1, kind: input, shape index: {}]
  %s2 = inlined_call_operand.vmem [shape: bf16[64,512], index: 2, kind: input, shape index: {}]
  %s3 = inlined_call_operand.vmem [shape: f32[1,512], index: 3, kind: input, shape index: {}]
  %s4 = inlined_call_operand.vmem [shape: bf16[512,64], index: 4, kind: input, shape index: {}]
  %s5 = inlined_call_operand.vmem [shape: f32[1,64], index: 5, kind: input, shape index: {}]
  %s6 = inlined_call_operand.vmem [shape: bf16[64,512], index: 6, kind: input, shape index: {}]
  %s7 = inlined_call_operand.vmem [shape: f32[1,512], index: 7, kind: input, shape index: {}]
  %s8 = inlined_call_operand.vmem [shape: bf16[512,64], index: 8, kind: input, shape index: {}]
  %s9 = inlined_call_operand.vmem [shape: f32[1,64], index: 9, kind: input, shape index: {}]
  %s10 = inlined_call_operand.vmem [shape: f32[8,64], index: 10, kind: output, shape index: {0}]
  %s11 = inlined_call_operand.vmem [shape: f32[8,64], index: 11, kind: output, shape index: {1}]
  %12 = xla_tuple %s10, %s11
  %s13 = sld [smem:[#allocation0]]
  $region58: #{lstm_model_forward.3} parent=0
    _
  %s15 = ssub.s32 1, %s13
  %s16 = scalar_select 0, %s15, %s13
  // Predicated region
  $region2: #{lstm_model_forward.3} parent=0 // pred_check
    _
  $region3: #{lstm_model_forward.3} parent=0 // pred_check_branch
    %18 = sbr.rel (0) target = $region5
  $region4: #{lstm_model_forward.3} parent=0 // pred_region
    _
  $region5: #{lstm_model_forward.3} parent=0 // pred_fallthru
    _
  // Predicated region
  $region6: #{lstm_model_forward.3} parent=0 // pred_check
    _
  $region7: #{lstm_model_forward.3} parent=0 // pred_check_branch
    %20 = sbr.rel (0) target = $region9
  $region8: #{lstm_model_forward.3} parent=0 // pred_region
    _
  $region9: #{lstm_model_forward.3} parent=0 // pred_fallthru
    _
  // Predicated region
  $region10: #{lstm_model_forward.3} parent=0 // pred_check
    _
  $region11: #{lstm_model_forward.3} parent=0 // pred_check_branch
    %22 = sbr.rel (0) target = $region13
  $region12: #{lstm_model_forward.3} parent=0 // pred_region
    _
  $region13: #{lstm_model_forward.3} parent=0 // pred_fallthru
    _
  // Predicated region
  $region14: #{lstm_model_forward.3} parent=0 // pred_check
    _
  $region15: #{lstm_model_forward.3} parent=0 // pred_check_branch
    %24 = sbr.rel (0) target = $region17
  $region16: #{lstm_model_forward.3} parent=0 // pred_region
    _
  $region17: #{lstm_model_forward.3} parent=0 // pred_fallthru
    _
  // Predicated region
  $region18: #{lstm_model_forward.3} parent=0 // pred_check
    _
  $region19: #{lstm_model_forward.3} parent=0 // pred_check_branch
    %26 = sbr.rel (0) target = $region21
  $region20: #{lstm_model_forward.3} parent=0 // pred_region
    _
  $region21: #{lstm_model_forward.3} parent=0 // pred_fallthru
    _
  // Predicated region
  $region22: #{lstm_model_forward.3} parent=0 // pred_check
    _
  $region23: #{lstm_model_forward.3} parent=0 // pred_check_branch
    %28 = sbr.rel (0) target = $region25
  $region24: #{lstm_model_forward.3} parent=0 // pred_region
    _
  $region25: #{lstm_model_forward.3} parent=0 // pred_fallthru
    _
  // Predicated region
  $region26: #{lstm_model_forward.3} parent=0 // pred_check
    _
  $region27: #{lstm_model_forward.3} parent=0 // pred_check_branch
    %30 = sbr.rel (0) target = $region29
  $region28: #{lstm_model_forward.3} parent=0 // pred_region
    _
  $region29: #{lstm_model_forward.3} parent=0 // pred_fallthru
    _
  // Predicated region
  $region30: #{lstm_model_forward.3} parent=0 // pred_check
    _
  $region31: #{lstm_model_forward.3} parent=0 // pred_check_branch
    %32 = sbr.rel (0) target = $region33
  $region32: #{lstm_model_forward.3} parent=0 // pred_region
    _
  $region33: #{lstm_model_forward.3} parent=0 // pred_fallthru
    _
  // Predicated region
  $region34: #{lstm_model_forward.3} parent=0 // pred_check
    _
  $region35: #{lstm_model_forward.3} parent=0 // pred_check_branch
    %34 = sbr.rel (0) target = $region37
  $region36: #{lstm_model_forward.3} parent=0 // pred_region
    _
  $region37: #{lstm_model_forward.3} parent=0 // pred_fallthru
    _
  // Predicated region
  $region38: #{lstm_model_forward.3} parent=0 // pred_check
    _
  $region39: #{lstm_model_forward.3} parent=0 // pred_check_branch
    %36 = sbr.rel (0) target = $region41
  $region40: #{lstm_model_forward.3} parent=0 // pred_region
    _
  $region41: #{lstm_model_forward.3} parent=0 // pred_fallthru
    _
  %v38 = vld [vmem:[%s0] sm:$0xf]
  %v39 = vld [vmem:[%s2] sm:$0xff]
  %v40 = vld [vmem:[%s2 + $0x8] sm:$0xff]
  %v41 = vld [vmem:[%s2 + $0x10] sm:$0xff]
  %v42 = vld [vmem:[%s2 + $0x18] sm:$0xff]
  %v43 = vld [vmem:[%s2 + $0x20] sm:$0xff]
  %v44 = vld [vmem:[%s2 + $0x28] sm:$0xff]
  %v45 = vld [vmem:[%s2 + $0x30] sm:$0xff]
  %v46 = vld [vmem:[%s2 + $0x38] sm:$0xff]
  %v47 = vld [vmem:[%s2 + $0x40] sm:$0xff]
  %v48 = vld [vmem:[%s2 + $0x48] sm:$0xff]
  %v49 = vld [vmem:[%s2 + $0x50] sm:$0xff]
  %v50 = vld [vmem:[%s2 + $0x58] sm:$0xff]
  %v51 = vld [vmem:[%s2 + $0x60] sm:$0xff]
  %v52 = vld [vmem:[%s2 + $0x68] sm:$0xff]
  %v53 = vld [vmem:[%s2 + $0x70] sm:$0xff]
  %v54 = vld [vmem:[%s2 + $0x78] sm:$0xff]
  %v55 = vld [vmem:[%s3] sm:$0xf]
  %v56 = vld [vmem:[%s4] sm:$0xf]
  %v57 = vld [vmem:[%s4 + $0x4] sm:$0xf]
  %v58 = vld [vmem:[%s4 + $0x8] sm:$0xf]
  %v59 = vld [vmem:[%s4 + $0xc] sm:$0xf]
  %v60 = vld [vmem:[%s4 + $0x10] sm:$0xf]
  %v61 = vld [vmem:[%s4 + $0x14] sm:$0xf]
  %v62 = vld [vmem:[%s4 + $0x18] sm:$0xf]
  %v63 = vld [vmem:[%s4 + $0x1c] sm:$0xf]
  %v64 = vld [vmem:[%s4 + $0x20] sm:$0xf]
  %v65 = vld [vmem:[%s4 + $0x24] sm:$0xf]
  %v66 = vld [vmem:[%s4 + $0x28] sm:$0xf]
  %v67 = vld [vmem:[%s4 + $0x2c] sm:$0xf]
  %v68 = vld [vmem:[%s4 + $0x30] sm:$0xf]
  %v69 = vld [vmem:[%s4 + $0x34] sm:$0xf]
  %v70 = vld [vmem:[%s4 + $0x38] sm:$0xf]
  %v71 = vld [vmem:[%s4 + $0x3c] sm:$0xf]
  %v72 = vld [vmem:[%s4 + $0x40] sm:$0xf]
  %v73 = vld [vmem:[%s4 + $0x44] sm:$0xf]
  %v74 = vld [vmem:[%s4 + $0x48] sm:$0xf]
  %v75 = vld [vmem:[%s4 + $0x4c] sm:$0xf]
  %v76 = vld [vmem:[%s4 + $0x50] sm:$0xf]
  %v77 = vld [vmem:[%s4 + $0x54] sm:$0xf]
  %v78 = vld [vmem:[%s4 + $0x58] sm:$0xf]
  %v79 = vld [vmem:[%s4 + $0x5c] sm:$0xf]
  %v80 = vld [vmem:[%s4 + $0x60] sm:$0xf]
  %v81 = vld [vmem:[%s4 + $0x64] sm:$0xf]
  %v82 = vld [vmem:[%s4 + $0x68] sm:$0xf]
  %v83 = vld [vmem:[%s4 + $0x6c] sm:$0xf]
  %v84 = vld [vmem:[%s4 + $0x70] sm:$0xf]
  %v85 = vld [vmem:[%s4 + $0x74] sm:$0xf]
  %v86 = vld [vmem:[%s4 + $0x78] sm:$0xf]
  %v87 = vld [vmem:[%s4 + $0x7c] sm:$0xf]
  %v88 = vld [vmem:[%s4 + $0x80] sm:$0xf]
  %v89 = vld [vmem:[%s4 + $0x84] sm:$0xf]
  %v90 = vld [vmem:[%s4 + $0x88] sm:$0xf]
  %v91 = vld [vmem:[%s4 + $0x8c] sm:$0xf]
  %v92 = vld [vmem:[%s4 + $0x90] sm:$0xf]
  %v93 = vld [vmem:[%s4 + $0x94] sm:$0xf]
  %v94 = vld [vmem:[%s4 + $0x98] sm:$0xf]
  %v95 = vld [vmem:[%s4 + $0x9c] sm:$0xf]
  %v96 = vld [vmem:[%s4 + $0xa0] sm:$0xf]
  %v97 = vld [vmem:[%s4 + $0xa4] sm:$0xf]
  %v98 = vld [vmem:[%s4 + $0xa8] sm:$0xf]
  %v99 = vld [vmem:[%s4 + $0xac] sm:$0xf]
  %v100 = vld [vmem:[%s4 + $0xb0] sm:$0xf]
  %v101 = vld [vmem:[%s4 + $0xb4] sm:$0xf]
  %v102 = vld [vmem:[%s4 + $0xb8] sm:$0xf]
  %v103 = vld [vmem:[%s4 + $0xbc] sm:$0xf]
  %v104 = vld [vmem:[%s4 + $0xc0] sm:$0xf]
  %v105 = vld [vmem:[%s4 + $0xc4] sm:$0xf]
  %v106 = vld [vmem:[%s4 + $0xc8] sm:$0xf]
  %v107 = vld [vmem:[%s4 + $0xcc] sm:$0xf]
  %v108 = vld [vmem:[%s4 + $0xd0] sm:$0xf]
  %v109 = vld [vmem:[%s4 + $0xd4] sm:$0xf]
  %v110 = vld [vmem:[%s4 + $0xd8] sm:$0xf]
  %v111 = vld [vmem:[%s4 + $0xdc] sm:$0xf]
  %v112 = vld [vmem:[%s4 + $0xe0] sm:$0xf]
  %v113 = vld [vmem:[%s4 + $0xe4] sm:$0xf]
  %v114 = vld [vmem:[%s4 + $0xe8] sm:$0xf]
  %v115 = vld [vmem:[%s4 + $0xec] sm:$0xf]
  %v116 = vld [vmem:[%s4 + $0xf0] sm:$0xf]
  %v117 = vld [vmem:[%s4 + $0xf4] sm:$0xf]
  %v118 = vld [vmem:[%s4 + $0xf8] sm:$0xf]
  %v119 = vld [vmem:[%s4 + $0xfc] sm:$0xf]
  %v120 = vld [vmem:[%s5] sm:$0x1]
  %v122 = vlaneseq
  %v123 = vshrl.u32 %v122, 7
  %v124 = vsub.s32 0, %v123
  %v125 = vrot.slane %v55, %v124
  %v126 = vlaneseq
  %v127 = vshrl.u32 %v126, 7
  %v128 = vsub.s32 1, %v127
  %v129 = vrot.slane %v55, %v128
  %v130 = vlaneseq
  %v131 = vshrl.u32 %v130, 7
  %v132 = vsub.s32 2, %v131
  %v133 = vrot.slane %v55, %v132
  %v134 = vlaneseq
  %v135 = vshrl.u32 %v134, 7
  %v136 = vsub.s32 3, %v135
  %v137 = vrot.slane %v55, %v136
  %v158 = vunpack.c.l.b16 %v39
  %v159 = vunpack.c.h.b16 %v39
  %v160 = vunpack.c.l.b16 %v40
  %v161 = vunpack.c.h.b16 %v40
  %v162 = vunpack.c.l.b16 %v41
  %v163 = vunpack.c.h.b16 %v41
  %v164 = vunpack.c.l.b16 %v42
  %v165 = vunpack.c.h.b16 %v42
  %v166 = vunpack.c.l.b16 %v43
  %v167 = vunpack.c.h.b16 %v43
  %v168 = vunpack.c.l.b16 %v44
  %v169 = vunpack.c.h.b16 %v44
  %v170 = vunpack.c.l.b16 %v45
  %v171 = vunpack.c.h.b16 %v45
  %v172 = vunpack.c.l.b16 %v46
  %v173 = vunpack.c.h.b16 %v46
  %v174 = vunpack.c.l.b16 %v47
  %v175 = vunpack.c.h.b16 %v47
  %v176 = vunpack.c.l.b16 %v48
  %v177 = vunpack.c.h.b16 %v48
  %v178 = vunpack.c.l.b16 %v49
  %v179 = vunpack.c.h.b16 %v49
  %v180 = vunpack.c.l.b16 %v50
  %v181 = vunpack.c.h.b16 %v50
  %v182 = vunpack.c.l.b16 %v51
  %v183 = vunpack.c.h.b16 %v51
  %v184 = vunpack.c.l.b16 %v52
  %v185 = vunpack.c.h.b16 %v52
  %v186 = vunpack.c.l.b16 %v53
  %v187 = vunpack.c.h.b16 %v53
  %v188 = vunpack.c.l.b16 %v54
  %v189 = vunpack.c.h.b16 %v54
  %v190 = vpack.c.b16 %v162, %v158
  %v191 = vpack.c.b16 %v163, %v159
  %v192 = vpack.c.b16 %v164, %v160
  %v193 = vpack.c.b16 %v165, %v161
  %v194 = vpack.c.b16 %v170, %v166
  %v195 = vpack.c.b16 %v171, %v167
  %v196 = vpack.c.b16 %v172, %v168
  %v197 = vpack.c.b16 %v173, %v169
  %v198 = vpack.c.b16 %v178, %v174
  %v199 = vpack.c.b16 %v179, %v175
  %v200 = vpack.c.b16 %v180, %v176
  %v201 = vpack.c.b16 %v181, %v177
  %v202 = vpack.c.b16 %v186, %v182
  %v203 = vpack.c.b16 %v187, %v183
  %v204 = vpack.c.b16 %v188, %v184
  %v205 = vpack.c.b16 %v189, %v185
  %vm222 = vcmask 523264
  %v224 = vsel %vm222, %v38, 0
  %226 = vmatprep.subr.bf16.mxu0 0
  %227 = vmatpush1.bf16.msra.mxu0 0
  %228 = vmatprep.subr.bf16.mxu0 0
  %229 = vmatpush1.bf16.msra.mxu0 0
  %230 = vmatprep.subr.bf16.mxu0 0
  %231 = vmatpush1.bf16.msra.mxu0 0
  %232 = vmatprep.subr.bf16.mxu0 0
  %233 = vmatpush1.bf16.msra.mxu0 0
  %234 = vmatprep.subr.bf16.mxu0 %v203
  %235 = vmatpush1.bf16.msra.mxu0 %v202
  %236 = vmatprep.subr.bf16.mxu0 %v199
  %237 = vmatpush1.bf16.msra.mxu0 %v198
  %238 = vmatprep.subr.bf16.mxu0 %v195
  %239 = vmatpush1.bf16.msra.mxu0 %v194
  %240 = vmatprep.subr.bf16.mxu0 %v191
  %241 = vmatpush1.bf16.msra.mxu0 %v190
  %242 = vmatprep.subr.bf16.mxu0 0
  %243 = vmatpush2.bf16.msra.mxu0 0
  %244 = vmatprep.subr.bf16.mxu0 0
  %245 = vmatpush2.bf16.msra.mxu0 0
  %246 = vmatprep.subr.bf16.mxu0 0
  %247 = vmatpush2.bf16.msra.mxu0 0
  %248 = vmatprep.subr.bf16.mxu0 0
  %249 = vmatpush2.bf16.msra.mxu0 0
  %250 = vmatprep.subr.bf16.mxu0 0
  %251 = vmatpush2.bf16.msra.mxu0 0
  %252 = vmatprep.subr.bf16.mxu0 0
  %253 = vmatpush2.bf16.msra.mxu0 0
  %254 = vmatprep.subr.bf16.mxu0 0
  %255 = vmatpush2.bf16.msra.mxu0 0
  %256 = vmatprep.subr.bf16.mxu0 0
  %257 = vmatpush2.bf16.msra.mxu0 0
  %258 = vmatprep.mubr.bf16.mxu0 0
  %259 = vmatmul.mubr.bf16.gmra.mxu0 %v224
  %v260 = vpop.f32.mrf.mxu0
  %v261 = vadd.f32 %v125, %v260
  %v262 = vpop.f32.mrf.mxu0
  %v263 = vadd.f32 %v129, %v262
  %v264 = vpop.f32.mrf.mxu0
  %v265 = vpop.f32.mrf.mxu0
  %266 = vdwg.mxu0
  %267 = vmatprep.subr.bf16.mxu0 0
  %268 = vmatpush1.bf16.msra.mxu0 0
  %269 = vmatprep.subr.bf16.mxu0 0
  %270 = vmatpush1.bf16.msra.mxu0 0
  %271 = vmatprep.subr.bf16.mxu0 0
  %272 = vmatpush1.bf16.msra.mxu0 0
  %273 = vmatprep.subr.bf16.mxu0 0
  %274 = vmatpush1.bf16.msra.mxu0 0
  %275 = vmatprep.subr.bf16.mxu0 %v205
  %276 = vmatpush1.bf16.msra.mxu0 %v204
  %277 = vmatprep.subr.bf16.mxu0 %v201
  %278 = vmatpush1.bf16.msra.mxu0 %v200
  %279 = vmatprep.subr.bf16.mxu0 %v197
  %280 = vmatpush1.bf16.msra.mxu0 %v196
  %281 = vmatprep.subr.bf16.mxu0 %v193
  %282 = vmatpush1.bf16.msra.mxu0 %v192
  %283 = vmatprep.subr.bf16.mxu0 0
  %284 = vmatpush2.bf16.msra.mxu0 0
  %285 = vmatprep.subr.bf16.mxu0 0
  %286 = vmatpush2.bf16.msra.mxu0 0
  %287 = vmatprep.subr.bf16.mxu0 0
  %288 = vmatpush2.bf16.msra.mxu0 0
  %289 = vmatprep.subr.bf16.mxu0 0
  %290 = vmatpush2.bf16.msra.mxu0 0
  %291 = vmatprep.subr.bf16.mxu0 0
  %292 = vmatpush2.bf16.msra.mxu0 0
  %293 = vmatprep.subr.bf16.mxu0 0
  %294 = vmatpush2.bf16.msra.mxu0 0
  %295 = vmatprep.subr.bf16.mxu0 0
  %296 = vmatpush2.bf16.msra.mxu0 0
  %297 = vmatprep.subr.bf16.mxu0 0
  %298 = vmatpush2.bf16.msra.mxu0 0
  %299 = vmatprep.mubr.bf16.mxu0 0
  %300 = vmatmul.mubr.bf16.gmra.mxu0 %v224
  %v301 = vpop.f32.mrf.mxu0
  %v302 = vadd.f32 %v133, %v301
  %v303 = vpop.f32.mrf.mxu0
  %v304 = vadd.f32 %v137, %v303
  %v305 = vpop.f32.mrf.mxu0
  %v306 = vpop.f32.mrf.mxu0
  %307 = vdwg.mxu0
  %v308 = vmax.f32 %v261, 0.0
  %v309 = vmax.f32 %v263, 0.0
  %v310 = vmax.f32 %v302, 0.0
  %v311 = vmax.f32 %v304, 0.0
  %v312 = vpack.c.bf16 %v308, %v308
  %v313 = vpack.c.bf16 %v309, %v309
  %v314 = vpack.c.bf16 %v310, %v310
  %v315 = vpack.c.bf16 %v311, %v311
  %v317 = vlaneseq
  %v318 = vshrl.u32 %v317, 7
  %v319 = vsub.s32 0, %v318
  %v320 = vrot.slane %v120, %v319
  %v386 = vunpack.c.l.b16 %v56
  %v387 = vunpack.c.l.b16 %v57
  %v388 = vunpack.c.l.b16 %v58
  %v389 = vunpack.c.l.b16 %v59
  %v390 = vunpack.c.l.b16 %v60
  %v391 = vunpack.c.l.b16 %v61
  %v392 = vunpack.c.l.b16 %v62
  %v393 = vunpack.c.l.b16 %v63
  %v394 = vunpack.c.l.b16 %v64
  %v395 = vunpack.c.l.b16 %v65
  %v396 = vunpack.c.l.b16 %v66
  %v397 = vunpack.c.l.b16 %v67
  %v398 = vunpack.c.l.b16 %v68
  %v399 = vunpack.c.l.b16 %v69
  %v400 = vunpack.c.l.b16 %v70
  %v401 = vunpack.c.l.b16 %v71
  %v402 = vunpack.c.l.b16 %v72
  %v403 = vunpack.c.l.b16 %v73
  %v404 = vunpack.c.l.b16 %v74
  %v405 = vunpack.c.l.b16 %v75
  %v406 = vunpack.c.l.b16 %v76
  %v407 = vunpack.c.l.b16 %v77
  %v408 = vunpack.c.l.b16 %v78
  %v409 = vunpack.c.l.b16 %v79
  %v410 = vunpack.c.l.b16 %v80
  %v411 = vunpack.c.l.b16 %v81
  %v412 = vunpack.c.l.b16 %v82
  %v413 = vunpack.c.l.b16 %v83
  %v414 = vunpack.c.l.b16 %v84
  %v415 = vunpack.c.l.b16 %v85
  %v416 = vunpack.c.l.b16 %v86
  %v417 = vunpack.c.l.b16 %v87
  %v418 = vunpack.c.l.b16 %v88
  %v419 = vunpack.c.l.b16 %v89
  %v420 = vunpack.c.l.b16 %v90
  %v421 = vunpack.c.l.b16 %v91
  %v422 = vunpack.c.l.b16 %v92
  %v423 = vunpack.c.l.b16 %v93
  %v424 = vunpack.c.l.b16 %v94
  %v425 = vunpack.c.l.b16 %v95
  %v426 = vunpack.c.l.b16 %v96
  %v427 = vunpack.c.l.b16 %v97
  %v428 = vunpack.c.l.b16 %v98
  %v429 = vunpack.c.l.b16 %v99
  %v430 = vunpack.c.l.b16 %v100
  %v431 = vunpack.c.l.b16 %v101
  %v432 = vunpack.c.l.b16 %v102
  %v433 = vunpack.c.l.b16 %v103
  %v434 = vunpack.c.l.b16 %v104
  %v435 = vunpack.c.l.b16 %v105
  %v436 = vunpack.c.l.b16 %v106
  %v437 = vunpack.c.l.b16 %v107
  %v438 = vunpack.c.l.b16 %v108
  %v439 = vunpack.c.l.b16 %v109
  %v440 = vunpack.c.l.b16 %v110
  %v441 = vunpack.c.l.b16 %v111
  %v442 = vunpack.c.l.b16 %v112
  %v443 = vunpack.c.l.b16 %v113
  %v444 = vunpack.c.l.b16 %v114
  %v445 = vunpack.c.l.b16 %v115
  %v446 = vunpack.c.l.b16 %v116
  %v447 = vunpack.c.l.b16 %v117
  %v448 = vunpack.c.l.b16 %v118
  %v449 = vunpack.c.l.b16 %v119
  %v450 = vpack.c.b16 %v387, %v386
  %v451 = vpack.c.b16 %v389, %v388
  %v452 = vpack.c.b16 %v391, %v390
  %v453 = vpack.c.b16 %v393, %v392
  %v454 = vpack.c.b16 %v395, %v394
  %v455 = vpack.c.b16 %v397, %v396
  %v456 = vpack.c.b16 %v399, %v398
  %v457 = vpack.c.b16 %v401, %v400
  %v458 = vpack.c.b16 %v403, %v402
  %v459 = vpack.c.b16 %v405, %v404
  %v460 = vpack.c.b16 %v407, %v406
  %v461 = vpack.c.b16 %v409, %v408
  %v462 = vpack.c.b16 %v411, %v410
  %v463 = vpack.c.b16 %v413, %v412
  %v464 = vpack.c.b16 %v415, %v414
  %v465 = vpack.c.b16 %v417, %v416
  %v466 = vpack.c.b16 %v419, %v418
  %v467 = vpack.c.b16 %v421, %v420
  %v468 = vpack.c.b16 %v423, %v422
  %v469 = vpack.c.b16 %v425, %v424
  %v470 = vpack.c.b16 %v427, %v426
  %v471 = vpack.c.b16 %v429, %v428
  %v472 = vpack.c.b16 %v431, %v430
  %v473 = vpack.c.b16 %v433, %v432
  %v474 = vpack.c.b16 %v435, %v434
  %v475 = vpack.c.b16 %v437, %v436
  %v476 = vpack.c.b16 %v439, %v438
  %v477 = vpack.c.b16 %v441, %v440
  %v478 = vpack.c.b16 %v443, %v442
  %v479 = vpack.c.b16 %v445, %v444
  %v480 = vpack.c.b16 %v447, %v446
  %v481 = vpack.c.b16 %v449, %v448
  %514 = vmatprep.subr.bf16.mxu0 0
  %515 = vmatpush1.bf16.msra.mxu0 %v457
  %516 = vmatprep.subr.bf16.mxu0 0
  %517 = vmatpush1.bf16.msra.mxu0 %v456
  %518 = vmatprep.subr.bf16.mxu0 0
  %519 = vmatpush1.bf16.msra.mxu0 %v455
  %520 = vmatprep.subr.bf16.mxu0 0
  %521 = vmatpush1.bf16.msra.mxu0 %v454
  %522 = vmatprep.subr.bf16.mxu0 0
  %523 = vmatpush1.bf16.msra.mxu0 %v453
  %524 = vmatprep.subr.bf16.mxu0 0
  %525 = vmatpush1.bf16.msra.mxu0 %v452
  %526 = vmatprep.subr.bf16.mxu0 0
  %527 = vmatpush1.bf16.msra.mxu0 %v451
  %528 = vmatprep.subr.bf16.mxu0 0
  %529 = vmatpush1.bf16.msra.mxu0 %v450
  %530 = vmatprep.subr.bf16.mxu0 0
  %531 = vmatpush2.bf16.msra.mxu0 %v465
  %532 = vmatprep.subr.bf16.mxu0 0
  %533 = vmatpush2.bf16.msra.mxu0 %v464
  %534 = vmatprep.subr.bf16.mxu0 0
  %535 = vmatpush2.bf16.msra.mxu0 %v463
  %536 = vmatprep.subr.bf16.mxu0 0
  %537 = vmatpush2.bf16.msra.mxu0 %v462
  %538 = vmatprep.subr.bf16.mxu0 0
  %539 = vmatpush2.bf16.msra.mxu0 %v461
  %540 = vmatprep.subr.bf16.mxu0 0
  %541 = vmatpush2.bf16.msra.mxu0 %v460
  %542 = vmatprep.subr.bf16.mxu0 0
  %543 = vmatpush2.bf16.msra.mxu0 %v459
  %544 = vmatprep.subr.bf16.mxu0 0
  %545 = vmatpush2.bf16.msra.mxu0 %v458
  %546 = vmatprep.mubr.bf16.mxu0 %v313
  %547 = vmatmul.mubr.bf16.gmra.mxu0 %v312
  %v548 = vpop.f32.mrf.mxu0
  %v549 = vadd.f32 %v320, %v548
  %v550 = vpop.f32.mrf.mxu0
  %v551 = vpop.f32.mrf.mxu0
  %v552 = vpop.f32.mrf.mxu0
  %553 = vdwg.mxu0
  %554 = vmatprep.subr.bf16.mxu0 0
  %555 = vmatpush1.bf16.msra.mxu0 %v473
  %556 = vmatprep.subr.bf16.mxu0 0
  %557 = vmatpush1.bf16.msra.mxu0 %v472
  %558 = vmatprep.subr.bf16.mxu0 0
  %559 = vmatpush1.bf16.msra.mxu0 %v471
  %560 = vmatprep.subr.bf16.mxu0 0
  %561 = vmatpush1.bf16.msra.mxu0 %v470
  %562 = vmatprep.subr.bf16.mxu0 0
  %563 = vmatpush1.bf16.msra.mxu0 %v469
  %564 = vmatprep.subr.bf16.mxu0 0
  %565 = vmatpush1.bf16.msra.mxu0 %v468
  %566 = vmatprep.subr.bf16.mxu0 0
  %567 = vmatpush1.bf16.msra.mxu0 %v467
  %568 = vmatprep.subr.bf16.mxu0 0
  %569 = vmatpush1.bf16.msra.mxu0 %v466
  %570 = vmatprep.subr.bf16.mxu0 0
  %571 = vmatpush2.bf16.msra.mxu0 %v481
  %572 = vmatprep.subr.bf16.mxu0 0
  %573 = vmatpush2.bf16.msra.mxu0 %v480
  %574 = vmatprep.subr.bf16.mxu0 0
  %575 = vmatpush2.bf16.msra.mxu0 %v479
  %576 = vmatprep.subr.bf16.mxu0 0
  %577 = vmatpush2.bf16.msra.mxu0 %v478
  %578 = vmatprep.subr.bf16.mxu0 0
  %579 = vmatpush2.bf16.msra.mxu0 %v477
  %580 = vmatprep.subr.bf16.mxu0 0
  %581 = vmatpush2.bf16.msra.mxu0 %v476
  %582 = vmatprep.subr.bf16.mxu0 0
  %583 = vmatpush2.bf16.msra.mxu0 %v475
  %584 = vmatprep.subr.bf16.mxu0 0
  %585 = vmatpush2.bf16.msra.mxu0 %v474
  %586 = vmatprep.mubr.bf16.mxu0 %v315
  %587 = vmatmul.mubr.bf16.gmra.mxu0 %v314
  %v588 = vpop.f32.mrf.mxu0
  %v589 = vadd.f32 %v549, %v588
  %v590 = vpop.f32.mrf.mxu0
  %v591 = vpop.f32.mrf.mxu0
  %v592 = vpop.f32.mrf.mxu0
  %593 = vdwg.mxu0
  %594 = vst.msk [vmem:[%s10] sm:$0xff] %vm222, %v589
  %v595 = vld [vmem:[%s1] sm:$0xf]
  %v596 = vld [vmem:[%s6] sm:$0xff]
  %v597 = vld [vmem:[%s6 + $0x8] sm:$0xff]
  %v598 = vld [vmem:[%s6 + $0x10] sm:$0xff]
  %v599 = vld [vmem:[%s6 + $0x18] sm:$0xff]
  %v600 = vld [vmem:[%s6 + $0x20] sm:$0xff]
  %v601 = vld [vmem:[%s6 + $0x28] sm:$0xff]
  %v602 = vld [vmem:[%s6 + $0x30] sm:$0xff]
  %v603 = vld [vmem:[%s6 + $0x38] sm:$0xff]
  %v604 = vld [vmem:[%s6 + $0x40] sm:$0xff]
  %v605 = vld [vmem:[%s6 + $0x48] sm:$0xff]
  %v606 = vld [vmem:[%s6 + $0x50] sm:$0xff]
  %v607 = vld [vmem:[%s6 + $0x58] sm:$0xff]
  %v608 = vld [vmem:[%s6 + $0x60] sm:$0xff]
  %v609 = vld [vmem:[%s6 + $0x68] sm:$0xff]
  %v610 = vld [vmem:[%s6 + $0x70] sm:$0xff]
  %v611 = vld [vmem:[%s6 + $0x78] sm:$0xff]
  %v612 = vld [vmem:[%s7] sm:$0xf]
  %v613 = vld [vmem:[%s8] sm:$0xf]
  %v614 = vld [vmem:[%s8 + $0x4] sm:$0xf]
  %v615 = vld [vmem:[%s8 + $0x8] sm:$0xf]
  %v616 = vld [vmem:[%s8 + $0xc] sm:$0xf]
  %v617 = vld [vmem:[%s8 + $0x10] sm:$0xf]
  %v618 = vld [vmem:[%s8 + $0x14] sm:$0xf]
  %v619 = vld [vmem:[%s8 + $0x18] sm:$0xf]
  %v620 = vld [vmem:[%s8 + $0x1c] sm:$0xf]
  %v621 = vld [vmem:[%s8 + $0x20] sm:$0xf]
  %v622 = vld [vmem:[%s8 + $0x24] sm:$0xf]
  %v623 = vld [vmem:[%s8 + $0x28] sm:$0xf]
  %v624 = vld [vmem:[%s8 + $0x2c] sm:$0xf]
  %v625 = vld [vmem:[%s8 + $0x30] sm:$0xf]
  %v626 = vld [vmem:[%s8 + $0x34] sm:$0xf]
  %v627 = vld [vmem:[%s8 + $0x38] sm:$0xf]
  %v628 = vld [vmem:[%s8 + $0x3c] sm:$0xf]
  %v629 = vld [vmem:[%s8 + $0x40] sm:$0xf]
  %v630 = vld [vmem:[%s8 + $0x44] sm:$0xf]
  %v631 = vld [vmem:[%s8 + $0x48] sm:$0xf]
  %v632 = vld [vmem:[%s8 + $0x4c] sm:$0xf]
  %v633 = vld [vmem:[%s8 + $0x50] sm:$0xf]
  %v634 = vld [vmem:[%s8 + $0x54] sm:$0xf]
  %v635 = vld [vmem:[%s8 + $0x58] sm:$0xf]
  %v636 = vld [vmem:[%s8 + $0x5c] sm:$0xf]
  %v637 = vld [vmem:[%s8 + $0x60] sm:$0xf]
  %v638 = vld [vmem:[%s8 + $0x64] sm:$0xf]
  %v639 = vld [vmem:[%s8 + $0x68] sm:$0xf]
  %v640 = vld [vmem:[%s8 + $0x6c] sm:$0xf]
  %v641 = vld [vmem:[%s8 + $0x70] sm:$0xf]
  %v642 = vld [vmem:[%s8 + $0x74] sm:$0xf]
  %v643 = vld [vmem:[%s8 + $0x78] sm:$0xf]
  %v644 = vld [vmem:[%s8 + $0x7c] sm:$0xf]
  %v645 = vld [vmem:[%s8 + $0x80] sm:$0xf]
  %v646 = vld [vmem:[%s8 + $0x84] sm:$0xf]
  %v647 = vld [vmem:[%s8 + $0x88] sm:$0xf]
  %v648 = vld [vmem:[%s8 + $0x8c] sm:$0xf]
  %v649 = vld [vmem:[%s8 + $0x90] sm:$0xf]
  %v650 = vld [vmem:[%s8 + $0x94] sm:$0xf]
  %v651 = vld [vmem:[%s8 + $0x98] sm:$0xf]
  %v652 = vld [vmem:[%s8 + $0x9c] sm:$0xf]
  %v653 = vld [vmem:[%s8 + $0xa0] sm:$0xf]
  %v654 = vld [vmem:[%s8 + $0xa4] sm:$0xf]
  %v655 = vld [vmem:[%s8 + $0xa8] sm:$0xf]
  %v656 = vld [vmem:[%s8 + $0xac] sm:$0xf]
  %v657 = vld [vmem:[%s8 + $0xb0] sm:$0xf]
  %v658 = vld [vmem:[%s8 + $0xb4] sm:$0xf]
  %v659 = vld [vmem:[%s8 + $0xb8] sm:$0xf]
  %v660 = vld [vmem:[%s8 + $0xbc] sm:$0xf]
  %v661 = vld [vmem:[%s8 + $0xc0] sm:$0xf]
  %v662 = vld [vmem:[%s8 + $0xc4] sm:$0xf]
  %v663 = vld [vmem:[%s8 + $0xc8] sm:$0xf]
  %v664 = vld [vmem:[%s8 + $0xcc] sm:$0xf]
  %v665 = vld [vmem:[%s8 + $0xd0] sm:$0xf]
  %v666 = vld [vmem:[%s8 + $0xd4] sm:$0xf]
  %v667 = vld [vmem:[%s8 + $0xd8] sm:$0xf]
  %v668 = vld [vmem:[%s8 + $0xdc] sm:$0xf]
  %v669 = vld [vmem:[%s8 + $0xe0] sm:$0xf]
  %v670 = vld [vmem:[%s8 + $0xe4] sm:$0xf]
  %v671 = vld [vmem:[%s8 + $0xe8] sm:$0xf]
  %v672 = vld [vmem:[%s8 + $0xec] sm:$0xf]
  %v673 = vld [vmem:[%s8 + $0xf0] sm:$0xf]
  %v674 = vld [vmem:[%s8 + $0xf4] sm:$0xf]
  %v675 = vld [vmem:[%s8 + $0xf8] sm:$0xf]
  %v676 = vld [vmem:[%s8 + $0xfc] sm:$0xf]
  %v677 = vld [vmem:[%s9] sm:$0x1]
  %v679 = vlaneseq
  %v680 = vshrl.u32 %v679, 7
  %v681 = vsub.s32 0, %v680
  %v682 = vrot.slane %v612, %v681
  %v683 = vlaneseq
  %v684 = vshrl.u32 %v683, 7
  %v685 = vsub.s32 1, %v684
  %v686 = vrot.slane %v612, %v685
  %v687 = vlaneseq
  %v688 = vshrl.u32 %v687, 7
  %v689 = vsub.s32 2, %v688
  %v690 = vrot.slane %v612, %v689
  %v691 = vlaneseq
  %v692 = vshrl.u32 %v691, 7
  %v693 = vsub.s32 3, %v692
  %v694 = vrot.slane %v612, %v693
  %v715 = vunpack.c.l.b16 %v596
  %v716 = vunpack.c.h.b16 %v596
  %v717 = vunpack.c.l.b16 %v597
  %v718 = vunpack.c.h.b16 %v597
  %v719 = vunpack.c.l.b16 %v598
  %v720 = vunpack.c.h.b16 %v598
  %v721 = vunpack.c.l.b16 %v599
  %v722 = vunpack.c.h.b16 %v599
  %v723 = vunpack.c.l.b16 %v600
  %v724 = vunpack.c.h.b16 %v600
  %v725 = vunpack.c.l.b16 %v601
  %v726 = vunpack.c.h.b16 %v601
  %v727 = vunpack.c.l.b16 %v602
  %v728 = vunpack.c.h.b16 %v602
  %v729 = vunpack.c.l.b16 %v603
  %v730 = vunpack.c.h.b16 %v603
  %v731 = vunpack.c.l.b16 %v604
  %v732 = vunpack.c.h.b16 %v604
  %v733 = vunpack.c.l.b16 %v605
  %v734 = vunpack.c.h.b16 %v605
  %v735 = vunpack.c.l.b16 %v606
  %v736 = vunpack.c.h.b16 %v606
  %v737 = vunpack.c.l.b16 %v607
  %v738 = vunpack.c.h.b16 %v607
  %v739 = vunpack.c.l.b16 %v608
  %v740 = vunpack.c.h.b16 %v608
  %v741 = vunpack.c.l.b16 %v609
  %v742 = vunpack.c.h.b16 %v609
  %v743 = vunpack.c.l.b16 %v610
  %v744 = vunpack.c.h.b16 %v610
  %v745 = vunpack.c.l.b16 %v611
  %v746 = vunpack.c.h.b16 %v611
  %v747 = vpack.c.b16 %v719, %v715
  %v748 = vpack.c.b16 %v720, %v716
  %v749 = vpack.c.b16 %v721, %v717
  %v750 = vpack.c.b16 %v722, %v718
  %v751 = vpack.c.b16 %v727, %v723
  %v752 = vpack.c.b16 %v728, %v724
  %v753 = vpack.c.b16 %v729, %v725
  %v754 = vpack.c.b16 %v730, %v726
  %v755 = vpack.c.b16 %v735, %v731
  %v756 = vpack.c.b16 %v736, %v732
  %v757 = vpack.c.b16 %v737, %v733
  %v758 = vpack.c.b16 %v738, %v734
  %v759 = vpack.c.b16 %v743, %v739
  %v760 = vpack.c.b16 %v744, %v740
  %v761 = vpack.c.b16 %v745, %v741
  %v762 = vpack.c.b16 %v746, %v742
  %v780 = vsel %vm222, %v595, 0
  %782 = vmatprep.subr.bf16.mxu0 0
  %783 = vmatpush1.bf16.msra.mxu0 0
  %784 = vmatprep.subr.bf16.mxu0 0
  %785 = vmatpush1.bf16.msra.mxu0 0
  %786 = vmatprep.subr.bf16.mxu0 0
  %787 = vmatpush1.bf16.msra.mxu0 0
  %788 = vmatprep.subr.bf16.mxu0 0
  %789 = vmatpush1.bf16.msra.mxu0 0
  %790 = vmatprep.subr.bf16.mxu0 %v760
  %791 = vmatpush1.bf16.msra.mxu0 %v759
  %792 = vmatprep.subr.bf16.mxu0 %v756
  %793 = vmatpush1.bf16.msra.mxu0 %v755
  %794 = vmatprep.subr.bf16.mxu0 %v752
  %795 = vmatpush1.bf16.msra.mxu0 %v751
  %796 = vmatprep.subr.bf16.mxu0 %v748
  %797 = vmatpush1.bf16.msra.mxu0 %v747
  %798 = vmatprep.subr.bf16.mxu0 0
  %799 = vmatpush2.bf16.msra.mxu0 0
  %800 = vmatprep.subr.bf16.mxu0 0
  %801 = vmatpush2.bf16.msra.mxu0 0
  %802 = vmatprep.subr.bf16.mxu0 0
  %803 = vmatpush2.bf16.msra.mxu0 0
  %804 = vmatprep.subr.bf16.mxu0 0
  %805 = vmatpush2.bf16.msra.mxu0 0
  %806 = vmatprep.subr.bf16.mxu0 0
  %807 = vmatpush2.bf16.msra.mxu0 0
  %808 = vmatprep.subr.bf16.mxu0 0
  %809 = vmatpush2.bf16.msra.mxu0 0
  %810 = vmatprep.subr.bf16.mxu0 0
  %811 = vmatpush2.bf16.msra.mxu0 0
  %812 = vmatprep.subr.bf16.mxu0 0
  %813 = vmatpush2.bf16.msra.mxu0 0
  %814 = vmatprep.mubr.bf16.mxu0 0
  %815 = vmatmul.mubr.bf16.gmra.mxu0 %v780
  %v816 = vpop.f32.mrf.mxu0
  %v817 = vadd.f32 %v682, %v816
  %v818 = vpop.f32.mrf.mxu0
  %v819 = vadd.f32 %v686, %v818
  %v820 = vpop.f32.mrf.mxu0
  %v821 = vpop.f32.mrf.mxu0
  %822 = vdwg.mxu0
  %823 = vmatprep.subr.bf16.mxu0 0
  %824 = vmatpush1.bf16.msra.mxu0 0
  %825 = vmatprep.subr.bf16.mxu0 0
  %826 = vmatpush1.bf16.msra.mxu0 0
  %827 = vmatprep.subr.bf16.mxu0 0
  %828 = vmatpush1.bf16.msra.mxu0 0
  %829 = vmatprep.subr.bf16.mxu0 0
  %830 = vmatpush1.bf16.msra.mxu0 0
  %831 = vmatprep.subr.bf16.mxu0 %v762
  %832 = vmatpush1.bf16.msra.mxu0 %v761
  %833 = vmatprep.subr.bf16.mxu0 %v758
  %834 = vmatpush1.bf16.msra.mxu0 %v757
  %835 = vmatprep.subr.bf16.mxu0 %v754
  %836 = vmatpush1.bf16.msra.mxu0 %v753
  %837 = vmatprep.subr.bf16.mxu0 %v750
  %838 = vmatpush1.bf16.msra.mxu0 %v749
  %839 = vmatprep.subr.bf16.mxu0 0
  %840 = vmatpush2.bf16.msra.mxu0 0
  %841 = vmatprep.subr.bf16.mxu0 0
  %842 = vmatpush2.bf16.msra.mxu0 0
  %843 = vmatprep.subr.bf16.mxu0 0
  %844 = vmatpush2.bf16.msra.mxu0 0
  %845 = vmatprep.subr.bf16.mxu0 0
  %846 = vmatpush2.bf16.msra.mxu0 0
  %847 = vmatprep.subr.bf16.mxu0 0
  %848 = vmatpush2.bf16.msra.mxu0 0
  %849 = vmatprep.subr.bf16.mxu0 0
  %850 = vmatpush2.bf16.msra.mxu0 0
  %851 = vmatprep.subr.bf16.mxu0 0
  %852 = vmatpush2.bf16.msra.mxu0 0
  %853 = vmatprep.subr.bf16.mxu0 0
  %854 = vmatpush2.bf16.msra.mxu0 0
  %855 = vmatprep.mubr.bf16.mxu0 0
  %856 = vmatmul.mubr.bf16.gmra.mxu0 %v780
  %v857 = vpop.f32.mrf.mxu0
  %v858 = vadd.f32 %v690, %v857
  %v859 = vpop.f32.mrf.mxu0
  %v860 = vadd.f32 %v694, %v859
  %v861 = vpop.f32.mrf.mxu0
  %v862 = vpop.f32.mrf.mxu0
  %863 = vdwg.mxu0
  %v864 = vmax.f32 %v817, 0.0
  %v865 = vmax.f32 %v819, 0.0
  %v866 = vmax.f32 %v858, 0.0
  %v867 = vmax.f32 %v860, 0.0
  %v868 = vpack.c.bf16 %v864, %v864
  %v869 = vpack.c.bf16 %v865, %v865
  %v870 = vpack.c.bf16 %v866, %v866
  %v871 = vpack.c.bf16 %v867, %v867
  %v873 = vlaneseq
  %v874 = vshrl.u32 %v873, 7
  %v875 = vsub.s32 0, %v874
  %v876 = vrot.slane %v677, %v875
  %v942 = vunpack.c.l.b16 %v613
  %v943 = vunpack.c.l.b16 %v614
  %v944 = vunpack.c.l.b16 %v615
  %v945 = vunpack.c.l.b16 %v616
  %v946 = vunpack.c.l.b16 %v617
  %v947 = vunpack.c.l.b16 %v618
  %v948 = vunpack.c.l.b16 %v619
  %v949 = vunpack.c.l.b16 %v620
  %v950 = vunpack.c.l.b16 %v621
  %v951 = vunpack.c.l.b16 %v622
  %v952 = vunpack.c.l.b16 %v623
  %v953 = vunpack.c.l.b16 %v624
  %v954 = vunpack.c.l.b16 %v625
  %v955 = vunpack.c.l.b16 %v626
  %v956 = vunpack.c.l.b16 %v627
  %v957 = vunpack.c.l.b16 %v628
  %v958 = vunpack.c.l.b16 %v629
  %v959 = vunpack.c.l.b16 %v630
  %v960 = vunpack.c.l.b16 %v631
  %v961 = vunpack.c.l.b16 %v632
  %v962 = vunpack.c.l.b16 %v633
  %v963 = vunpack.c.l.b16 %v634
  %v964 = vunpack.c.l.b16 %v635
  %v965 = vunpack.c.l.b16 %v636
  %v966 = vunpack.c.l.b16 %v637
  %v967 = vunpack.c.l.b16 %v638
  %v968 = vunpack.c.l.b16 %v639
  %v969 = vunpack.c.l.b16 %v640
  %v970 = vunpack.c.l.b16 %v641
  %v971 = vunpack.c.l.b16 %v642
  %v972 = vunpack.c.l.b16 %v643
  %v973 = vunpack.c.l.b16 %v644
  %v974 = vunpack.c.l.b16 %v645
  %v975 = vunpack.c.l.b16 %v646
  %v976 = vunpack.c.l.b16 %v647
  %v977 = vunpack.c.l.b16 %v648
  %v978 = vunpack.c.l.b16 %v649
  %v979 = vunpack.c.l.b16 %v650
  %v980 = vunpack.c.l.b16 %v651
  %v981 = vunpack.c.l.b16 %v652
  %v982 = vunpack.c.l.b16 %v653
  %v983 = vunpack.c.l.b16 %v654
  %v984 = vunpack.c.l.b16 %v655
  %v985 = vunpack.c.l.b16 %v656
  %v986 = vunpack.c.l.b16 %v657
  %v987 = vunpack.c.l.b16 %v658
  %v988 = vunpack.c.l.b16 %v659
  %v989 = vunpack.c.l.b16 %v660
  %v990 = vunpack.c.l.b16 %v661
  %v991 = vunpack.c.l.b16 %v662
  %v992 = vunpack.c.l.b16 %v663
  %v993 = vunpack.c.l.b16 %v664
  %v994 = vunpack.c.l.b16 %v665
  %v995 = vunpack.c.l.b16 %v666
  %v996 = vunpack.c.l.b16 %v667
  %v997 = vunpack.c.l.b16 %v668
  %v998 = vunpack.c.l.b16 %v669
  %v999 = vunpack.c.l.b16 %v670
  %v1000 = vunpack.c.l.b16 %v671
  %v1001 = vunpack.c.l.b16 %v672
  %v1002 = vunpack.c.l.b16 %v673
  %v1003 = vunpack.c.l.b16 %v674
  %v1004 = vunpack.c.l.b16 %v675
  %v1005 = vunpack.c.l.b16 %v676
  %v1006 = vpack.c.b16 %v943, %v942
  %v1007 = vpack.c.b16 %v945, %v944
  %v1008 = vpack.c.b16 %v947, %v946
  %v1009 = vpack.c.b16 %v949, %v948
  %v1010 = vpack.c.b16 %v951, %v950
  %v1011 = vpack.c.b16 %v953, %v952
  %v1012 = vpack.c.b16 %v955, %v954
  %v1013 = vpack.c.b16 %v957, %v956
  %v1014 = vpack.c.b16 %v959, %v958
  %v1015 = vpack.c.b16 %v961, %v960
  %v1016 = vpack.c.b16 %v963, %v962
  %v1017 = vpack.c.b16 %v965, %v964
  %v1018 = vpack.c.b16 %v967, %v966
  %v1019 = vpack.c.b16 %v969, %v968
  %v1020 = vpack.c.b16 %v971, %v970
  %v1021 = vpack.c.b16 %v973, %v972
  %v1022 = vpack.c.b16 %v975, %v974
  %v1023 = vpack.c.b16 %v977, %v976
  %v1024 = vpack.c.b16 %v979, %v978
  %v1025 = vpack.c.b16 %v981, %v980
  %v1026 = vpack.c.b16 %v983, %v982
  %v1027 = vpack.c.b16 %v985, %v984
  %v1028 = vpack.c.b16 %v987, %v986
  %v1029 = vpack.c.b16 %v989, %v988
  %v1030 = vpack.c.b16 %v991, %v990
  %v1031 = vpack.c.b16 %v993, %v992
  %v1032 = vpack.c.b16 %v995, %v994
  %v1033 = vpack.c.b16 %v997, %v996
  %v1034 = vpack.c.b16 %v999, %v998
  %v1035 = vpack.c.b16 %v1001, %v1000
  %v1036 = vpack.c.b16 %v1003, %v1002
  %v1037 = vpack.c.b16 %v1005, %v1004
  %1070 = vmatprep.subr.bf16.mxu0 0
  %1071 = vmatpush1.bf16.msra.mxu0 %v1013
  %1072 = vmatprep.subr.bf16.mxu0 0
  %1073 = vmatpush1.bf16.msra.mxu0 %v1012
  %1074 = vmatprep.subr.bf16.mxu0 0
  %1075 = vmatpush1.bf16.msra.mxu0 %v1011
  %1076 = vmatprep.subr.bf16.mxu0 0
  %1077 = vmatpush1.bf16.msra.mxu0 %v1010
  %1078 = vmatprep.subr.bf16.mxu0 0
  %1079 = vmatpush1.bf16.msra.mxu0 %v1009
  %1080 = vmatprep.subr.bf16.mxu0 0
  %1081 = vmatpush1.bf16.msra.mxu0 %v1008
  %1082 = vmatprep.subr.bf16.mxu0 0
  %1083 = vmatpush1.bf16.msra.mxu0 %v1007
  %1084 = vmatprep.subr.bf16.mxu0 0
  %1085 = vmatpush1.bf16.msra.mxu0 %v1006
  %1086 = vmatprep.subr.bf16.mxu0 0
  %1087 = vmatpush2.bf16.msra.mxu0 %v1021
  %1088 = vmatprep.subr.bf16.mxu0 0
  %1089 = vmatpush2.bf16.msra.mxu0 %v1020
  %1090 = vmatprep.subr.bf16.mxu0 0
  %1091 = vmatpush2.bf16.msra.mxu0 %v1019
  %1092 = vmatprep.subr.bf16.mxu0 0
  %1093 = vmatpush2.bf16.msra.mxu0 %v1018
  %1094 = vmatprep.subr.bf16.mxu0 0
  %1095 = vmatpush2.bf16.msra.mxu0 %v1017
  %1096 = vmatprep.subr.bf16.mxu0 0
  %1097 = vmatpush2.bf16.msra.mxu0 %v1016
  %1098 = vmatprep.subr.bf16.mxu0 0
  %1099 = vmatpush2.bf16.msra.mxu0 %v1015
  %1100 = vmatprep.subr.bf16.mxu0 0
  %1101 = vmatpush2.bf16.msra.mxu0 %v1014
  %1102 = vmatprep.mubr.bf16.mxu0 %v869
  %1103 = vmatmul.mubr.bf16.gmra.mxu0 %v868
  %v1104 = vpop.f32.mrf.mxu0
  %v1105 = vadd.f32 %v876, %v1104
  %v1106 = vpop.f32.mrf.mxu0
  %v1107 = vpop.f32.mrf.mxu0
  %v1108 = vpop.f32.mrf.mxu0
  %1109 = vdwg.mxu0
  %1110 = vmatprep.subr.bf16.mxu0 0
  %1111 = vmatpush1.bf16.msra.mxu0 %v1029
  %1112 = vmatprep.subr.bf16.mxu0 0
  %1113 = vmatpush1.bf16.msra.mxu0 %v1028
  %1114 = vmatprep.subr.bf16.mxu0 0
  %1115 = vmatpush1.bf16.msra.mxu0 %v1027
  %1116 = vmatprep.subr.bf16.mxu0 0
  %1117 = vmatpush1.bf16.msra.mxu0 %v1026
  %1118 = vmatprep.subr.bf16.mxu0 0
  %1119 = vmatpush1.bf16.msra.mxu0 %v1025
  %1120 = vmatprep.subr.bf16.mxu0 0
  %1121 = vmatpush1.bf16.msra.mxu0 %v1024
  %1122 = vmatprep.subr.bf16.mxu0 0
  %1123 = vmatpush1.bf16.msra.mxu0 %v1023
  %1124 = vmatprep.subr.bf16.mxu0 0
  %1125 = vmatpush1.bf16.msra.mxu0 %v1022
  %1126 = vmatprep.subr.bf16.mxu0 0
  %1127 = vmatpush2.bf16.msra.mxu0 %v1037
  %1128 = vmatprep.subr.bf16.mxu0 0
  %1129 = vmatpush2.bf16.msra.mxu0 %v1036
  %1130 = vmatprep.subr.bf16.mxu0 0
  %1131 = vmatpush2.bf16.msra.mxu0 %v1035
  %1132 = vmatprep.subr.bf16.mxu0 0
  %1133 = vmatpush2.bf16.msra.mxu0 %v1034
  %1134 = vmatprep.subr.bf16.mxu0 0
  %1135 = vmatpush2.bf16.msra.mxu0 %v1033
  %1136 = vmatprep.subr.bf16.mxu0 0
  %1137 = vmatpush2.bf16.msra.mxu0 %v1032
  %1138 = vmatprep.subr.bf16.mxu0 0
  %1139 = vmatpush2.bf16.msra.mxu0 %v1031
  %1140 = vmatprep.subr.bf16.mxu0 0
  %1141 = vmatpush2.bf16.msra.mxu0 %v1030
  %1142 = vmatprep.mubr.bf16.mxu0 %v871
  %1143 = vmatmul.mubr.bf16.gmra.mxu0 %v870
  %v1144 = vpop.f32.mrf.mxu0
  %v1145 = vadd.f32 %v1105, %v1144
  %v1146 = vpop.f32.mrf.mxu0
  %v1147 = vpop.f32.mrf.mxu0
  %v1148 = vpop.f32.mrf.mxu0
  %1149 = vdwg.mxu0
  %1150 = vst.msk [vmem:[%s11] sm:$0xff] %vm222, %v1145
  // Predicated region
  $region42: #{lstm_model_forward.3} parent=0 // pred_check
    _
  $region43: #{lstm_model_forward.3} parent=0 // pred_check_branch
    %1152 = sbr.rel (0) target = $region45
  $region44: #{lstm_model_forward.3} parent=0 // pred_region
    _
  $region45: #{lstm_model_forward.3} parent=0 // pred_fallthru
    _
  // Predicated region
  $region46: #{lstm_model_forward.3} parent=0 // pred_check
    _
  $region47: #{lstm_model_forward.3} parent=0 // pred_check_branch
    %1154 = sbr.rel (0) target = $region49
  $region48: #{lstm_model_forward.3} parent=0 // pred_region
    _
  $region49: #{lstm_model_forward.3} parent=0 // pred_fallthru
    _
  // Predicated region
  $region50: #{lstm_model_forward.3} parent=0 // pred_check
    _
  $region51: #{lstm_model_forward.3} parent=0 // pred_check_branch
    %1156 = sbr.rel (0) target = $region53
  $region52: #{lstm_model_forward.3} parent=0 // pred_region
    _
  $region53: #{lstm_model_forward.3} parent=0 // pred_fallthru
    _
  // Predicated region
  $region54: #{lstm_model_forward.3} parent=0 // pred_check
    _
  $region55: #{lstm_model_forward.3} parent=0 // pred_check_branch
    %1158 = sbr.rel (0) target = $region57
  $region56: #{lstm_model_forward.3} parent=0 // pred_region
    _
  $region57: #{lstm_model_forward.3} parent=0 // pred_fallthru
    _

// kernel: lstm_model_forward.2
$region0: #{lstm_model_forward.2}
  #allocation0 [shape = 'u32[]', space=smem, size = 0x4, offset = 0x4, fixed_abs, tag = 'smem constant byte address 0x4 - core index']
  #allocation1 [shape = 'u32[144,128]{1,0:T(1,128)}', space=vmem, size = 0x12000, scoped, tag = 'internal scratch']
  %s0 = inlined_call_operand.vmem [shape: bf16[13,2,128], index: 0, kind: input, shape index: {}]
  %s1 = inlined_call_operand.vmem [shape: bf16[256,512], index: 1, kind: input, shape index: {}]
  %s2 = inlined_call_operand.vmem [shape: f32[1,512], index: 2, kind: input, shape index: {}]
  %s3 = inlined_call_operand.hbm [shape: bf16[256,512], index: 3, kind: input, shape index: {}]
  %s4 = inlined_call_operand.vmem [shape: f32[1,512], index: 4, kind: input, shape index: {}]
  %s5 = inlined_call_operand.vmem [shape: f32[1,128], index: 5, kind: input, shape index: {}]
  %s6 = inlined_call_operand.vmem [shape: f32[1,128], index: 6, kind: input, shape index: {}]
  %s7 = inlined_call_operand.vmem [shape: f32[13,2,128], index: 7, kind: output, shape index: {}]
  %s8 = sld [smem:[#allocation0]]
  $region42: #{lstm_model_forward.2} parent=0
    _
  %s10 = ssub.s32 1, %s8
  %s11 = scalar_select 0, %s10, %s8
  $region1: #{lstm_model_forward.2} parent=0
    #allocation2 [shape = 'u8[262144]{0}', space=vmem, size = 0x40000, scoped, tag = 'input window, operand 3, single buffered']
    #allocation3 [shape = 's32[1]{0}', space=sflag, size = 0x4, scoped, tag = 'scoped memory for lstm_model_forward.2']
    %12 = vsyncpa [#allocation3], 0
    // Predicated region
    $region2: #{lstm_model_forward.2} parent=1 // pred_check
      _
    $region3: #{lstm_model_forward.2} parent=1 // pred_check_branch
      %14 = sbr.rel (0) target = $region5
    $region4: #{lstm_model_forward.2} parent=1 // pred_region
      _
    $region5: #{lstm_model_forward.2} parent=1 // pred_fallthru
      _
    // Predicated region
    $region6: #{lstm_model_forward.2} parent=1 // pred_check
      _
    $region7: #{lstm_model_forward.2} parent=1 // pred_check_branch
      %16 = sbr.rel (0) target = $region9
    $region8: #{lstm_model_forward.2} parent=1 // pred_region
      _
    $region9: #{lstm_model_forward.2} parent=1 // pred_fallthru
      _
    // Predicated region
    $region10: #{lstm_model_forward.2} parent=1 // pred_check
      _
    $region11: #{lstm_model_forward.2} parent=1 // pred_check_branch
      %18 = sbr.rel (0) target = $region13
    $region12: #{lstm_model_forward.2} parent=1 // pred_region
      _
    $region13: #{lstm_model_forward.2} parent=1 // pred_fallthru
      _
    // Predicated region
    $region14: #{lstm_model_forward.2} parent=1 // pred_check
      _
    $region15: #{lstm_model_forward.2} parent=1 // pred_check_branch
      %20 = sbr.rel (0) target = $region17
    $region16: #{lstm_model_forward.2} parent=1 // pred_region
      %s22 = ssub.s32 8192, 8192
      %23 = vsyncadd [#allocation3], %s22
      %s24 = sshll.u32 [#allocation2], 4
      %s25 = int_to_ptr.vmem [resolvable:$true] %s24
      %30 = dma.hbm_to_vmem [thread:$0]  %s3, 8192, %s25, [#allocation3], 256, 256, 16
    $region17: #{lstm_model_forward.2} parent=1 // pred_fallthru
      _
    // Predicated region
    $region18: #{lstm_model_forward.2} parent=1 // pred_check
      _
    $region19: #{lstm_model_forward.2} parent=1 // pred_check_branch
      %32 = sbr.rel (0) target = $region21
    $region20: #{lstm_model_forward.2} parent=1 // pred_region
      _
    $region21: #{lstm_model_forward.2} parent=1 // pred_fallthru
      _
    // Predicated region
    $region22: #{lstm_model_forward.2} parent=1 // pred_check
      _
    $region23: #{lstm_model_forward.2} parent=1 // pred_check_branch
      %34 = sbr.rel (0) target = $region25
    $region24: #{lstm_model_forward.2} parent=1 // pred_region
      _
    $region25: #{lstm_model_forward.2} parent=1 // pred_fallthru
      _
    // Predicated region
    $region26: #{lstm_model_forward.2} parent=1 // pred_check
      _
    $region27: #{lstm_model_forward.2} parent=1 // pred_check_branch
      %36 = sbr.rel (0) target = $region29
    $region28: #{lstm_model_forward.2} parent=1 // pred_region
      _
    $region29: #{lstm_model_forward.2} parent=1 // pred_fallthru
      _
    // Predicated region
    $region30: #{lstm_model_forward.2} parent=1 // pred_check
      _
    $region31: #{lstm_model_forward.2} parent=1 // pred_check_branch
      %38 = sbr.rel (0) target = $region33
    $region32: #{lstm_model_forward.2} parent=1 // pred_region
      %39 = dma.done [#allocation3], 8192
    $region33: #{lstm_model_forward.2} parent=1 // pred_fallthru
      _
    %v41 = vld [vmem:[%s1] sm:$0xff]
    %v42 = vld [vmem:[%s1 + $0x8] sm:$0xff]
    %v43 = vld [vmem:[%s1 + $0x10] sm:$0xff]
    %v44 = vld [vmem:[%s1 + $0x18] sm:$0xff]
    %v45 = vld [vmem:[%s1 + $0x20] sm:$0xff]
    %v46 = vld [vmem:[%s1 + $0x28] sm:$0xff]
    %v47 = vld [vmem:[%s1 + $0x30] sm:$0xff]
    %v48 = vld [vmem:[%s1 + $0x38] sm:$0xff]
    %v49 = vld [vmem:[%s1 + $0x40] sm:$0xff]
    %v50 = vld [vmem:[%s1 + $0x48] sm:$0xff]
    %v51 = vld [vmem:[%s1 + $0x50] sm:$0xff]
    %v52 = vld [vmem:[%s1 + $0x58] sm:$0xff]
    %v53 = vld [vmem:[%s1 + $0x60] sm:$0xff]
    %v54 = vld [vmem:[%s1 + $0x68] sm:$0xff]
    %v55 = vld [vmem:[%s1 + $0x70] sm:$0xff]
    %v56 = vld [vmem:[%s1 + $0x78] sm:$0xff]
    %v57 = vld [vmem:[%s1 + $0x80] sm:$0xff]
    %v58 = vld [vmem:[%s1 + $0x88] sm:$0xff]
    %v59 = vld [vmem:[%s1 + $0x90] sm:$0xff]
    %v60 = vld [vmem:[%s1 + $0x98] sm:$0xff]
    %v61 = vld [vmem:[%s1 + $0xa0] sm:$0xff]
    %v62 = vld [vmem:[%s1 + $0xa8] sm:$0xff]
    %v63 = vld [vmem:[%s1 + $0xb0] sm:$0xff]
    %v64 = vld [vmem:[%s1 + $0xb8] sm:$0xff]
    %v65 = vld [vmem:[%s1 + $0xc0] sm:$0xff]
    %v66 = vld [vmem:[%s1 + $0xc8] sm:$0xff]
    %v67 = vld [vmem:[%s1 + $0xd0] sm:$0xff]
    %v68 = vld [vmem:[%s1 + $0xd8] sm:$0xff]
    %v69 = vld [vmem:[%s1 + $0xe0] sm:$0xff]
    %v70 = vld [vmem:[%s1 + $0xe8] sm:$0xff]
    %v71 = vld [vmem:[%s1 + $0xf0] sm:$0xff]
    %v72 = vld [vmem:[%s1 + $0xf8] sm:$0xff]
    %v73 = vld [vmem:[%s1 + $0x100] sm:$0xff]
    %v74 = vld [vmem:[%s1 + $0x108] sm:$0xff]
    %v75 = vld [vmem:[%s1 + $0x110] sm:$0xff]
    %v76 = vld [vmem:[%s1 + $0x118] sm:$0xff]
    %v77 = vld [vmem:[%s1 + $0x120] sm:$0xff]
    %v78 = vld [vmem:[%s1 + $0x128] sm:$0xff]
    %v79 = vld [vmem:[%s1 + $0x130] sm:$0xff]
    %v80 = vld [vmem:[%s1 + $0x138] sm:$0xff]
    %v81 = vld [vmem:[%s1 + $0x140] sm:$0xff]
    %v82 = vld [vmem:[%s1 + $0x148] sm:$0xff]
    %v83 = vld [vmem:[%s1 + $0x150] sm:$0xff]
    %v84 = vld [vmem:[%s1 + $0x158] sm:$0xff]
    %v85 = vld [vmem:[%s1 + $0x160] sm:$0xff]
    %v86 = vld [vmem:[%s1 + $0x168] sm:$0xff]
    %v87 = vld [vmem:[%s1 + $0x170] sm:$0xff]
    %v88 = vld [vmem:[%s1 + $0x178] sm:$0xff]
    %v89 = vld [vmem:[%s1 + $0x180] sm:$0xff]
    %v90 = vld [vmem:[%s1 + $0x188] sm:$0xff]
    %v91 = vld [vmem:[%s1 + $0x190] sm:$0xff]
    %v92 = vld [vmem:[%s1 + $0x198] sm:$0xff]
    %v93 = vld [vmem:[%s1 + $0x1a0] sm:$0xff]
    %v94 = vld [vmem:[%s1 + $0x1a8] sm:$0xff]
    %v95 = vld [vmem:[%s1 + $0x1b0] sm:$0xff]
    %v96 = vld [vmem:[%s1 + $0x1b8] sm:$0xff]
    %v97 = vld [vmem:[%s1 + $0x1c0] sm:$0xff]
    %v98 = vld [vmem:[%s1 + $0x1c8] sm:$0xff]
    %v99 = vld [vmem:[%s1 + $0x1d0] sm:$0xff]
    %v100 = vld [vmem:[%s1 + $0x1d8] sm:$0xff]
    %v101 = vld [vmem:[%s1 + $0x1e0] sm:$0xff]
    %v102 = vld [vmem:[%s1 + $0x1e8] sm:$0xff]
    %v103 = vld [vmem:[%s1 + $0x1f0] sm:$0xff]
    %v104 = vld [vmem:[%s1 + $0x1f8] sm:$0xff]
    %v105 = vld [vmem:[#allocation2] sm:$0xff]
    %v106 = vld [vmem:[#allocation2 + $0x8] sm:$0xff]
    %v107 = vld [vmem:[#allocation2 + $0x10] sm:$0xff]
    %v108 = vld [vmem:[#allocation2 + $0x18] sm:$0xff]
    %v109 = vld [vmem:[#allocation2 + $0x20] sm:$0xff]
    %v110 = vld [vmem:[#allocation2 + $0x28] sm:$0xff]
    %v111 = vld [vmem:[#allocation2 + $0x30] sm:$0xff]
    %v112 = vld [vmem:[#allocation2 + $0x38] sm:$0xff]
    %v113 = vld [vmem:[#allocation2 + $0x40] sm:$0xff]
    %v114 = vld [vmem:[#allocation2 + $0x48] sm:$0xff]
    %v115 = vld [vmem:[#allocation2 + $0x50] sm:$0xff]
    %v116 = vld [vmem:[#allocation2 + $0x58] sm:$0xff]
    %v117 = vld [vmem:[#allocation2 + $0x60] sm:$0xff]
    %v118 = vld [vmem:[#allocation2 + $0x68] sm:$0xff]
    %v119 = vld [vmem:[#allocation2 + $0x70] sm:$0xff]
    %v120 = vld [vmem:[#allocation2 + $0x78] sm:$0xff]
    %v121 = vld [vmem:[#allocation2 + $0x80] sm:$0xff]
    %v122 = vld [vmem:[#allocation2 + $0x88] sm:$0xff]
    %v123 = vld [vmem:[#allocation2 + $0x90] sm:$0xff]
    %v124 = vld [vmem:[#allocation2 + $0x98] sm:$0xff]
    %v125 = vld [vmem:[#allocation2 + $0xa0] sm:$0xff]
    %v126 = vld [vmem:[#allocation2 + $0xa8] sm:$0xff]
    %v127 = vld [vmem:[#allocation2 + $0xb0] sm:$0xff]
    %v128 = vld [vmem:[#allocation2 + $0xb8] sm:$0xff]
    %v129 = vld [vmem:[#allocation2 + $0xc0] sm:$0xff]
    %v130 = vld [vmem:[#allocation2 + $0xc8] sm:$0xff]
    %v131 = vld [vmem:[#allocation2 + $0xd0] sm:$0xff]
    %v132 = vld [vmem:[#allocation2 + $0xd8] sm:$0xff]
    %v133 = vld [vmem:[#allocation2 + $0xe0] sm:$0xff]
    %v134 = vld [vmem:[#allocation2 + $0xe8] sm:$0xff]
    %v135 = vld [vmem:[#allocation2 + $0xf0] sm:$0xff]
    %v136 = vld [vmem:[#allocation2 + $0xf8] sm:$0xff]
    %v137 = vld [vmem:[#allocation2 + $0x100] sm:$0xff]
    %v138 = vld [vmem:[#allocation2 + $0x108] sm:$0xff]
    %v139 = vld [vmem:[#allocation2 + $0x110] sm:$0xff]
    %v140 = vld [vmem:[#allocation2 + $0x118] sm:$0xff]
    %v141 = vld [vmem:[#allocation2 + $0x120] sm:$0xff]
    %v142 = vld [vmem:[#allocation2 + $0x128] sm:$0xff]
    %v143 = vld [vmem:[#allocation2 + $0x130] sm:$0xff]
    %v144 = vld [vmem:[#allocation2 + $0x138] sm:$0xff]
    %v145 = vld [vmem:[#allocation2 + $0x140] sm:$0xff]
    %v146 = vld [vmem:[#allocation2 + $0x148] sm:$0xff]
    %v147 = vld [vmem:[#allocation2 + $0x150] sm:$0xff]
    %v148 = vld [vmem:[#allocation2 + $0x158] sm:$0xff]
    %v149 = vld [vmem:[#allocation2 + $0x160] sm:$0xff]
    %v150 = vld [vmem:[#allocation2 + $0x168] sm:$0xff]
    %v151 = vld [vmem:[#allocation2 + $0x170] sm:$0xff]
    %v152 = vld [vmem:[#allocation2 + $0x178] sm:$0xff]
    %v153 = vld [vmem:[#allocation2 + $0x180] sm:$0xff]
    %v154 = vld [vmem:[#allocation2 + $0x188] sm:$0xff]
    %v155 = vld [vmem:[#allocation2 + $0x190] sm:$0xff]
    %v156 = vld [vmem:[#allocation2 + $0x198] sm:$0xff]
    %v157 = vld [vmem:[#allocation2 + $0x1a0] sm:$0xff]
    %v158 = vld [vmem:[#allocation2 + $0x1a8] sm:$0xff]
    %v159 = vld [vmem:[#allocation2 + $0x1b0] sm:$0xff]
    %v160 = vld [vmem:[#allocation2 + $0x1b8] sm:$0xff]
    %v161 = vld [vmem:[#allocation2 + $0x1c0] sm:$0xff]
    %v162 = vld [vmem:[#allocation2 + $0x1c8] sm:$0xff]
    %v163 = vld [vmem:[#allocation2 + $0x1d0] sm:$0xff]
    %v164 = vld [vmem:[#allocation2 + $0x1d8] sm:$0xff]
    %v165 = vld [vmem:[#allocation2 + $0x1e0] sm:$0xff]
    %v166 = vld [vmem:[#allocation2 + $0x1e8] sm:$0xff]
    %v167 = vld [vmem:[#allocation2 + $0x1f0] sm:$0xff]
    %v168 = vld [vmem:[#allocation2 + $0x1f8] sm:$0xff]
    %v169 = vld [vmem:[%s2] sm:$0xf]
    %v170 = vld [vmem:[%s4] sm:$0xf]
    %v171 = vld [vmem:[%s5] sm:$0x1]
    %v172 = vld [vmem:[%s6] sm:$0x1]
    %v173 = vld [vmem:[%s0] sm:$0x1]
    %v175 = vlaneseq
    %v176 = vshrl.u32 %v175, 7
    %v177 = vsub.s32 0, %v176
    %v178 = vrot.slane %v169, %v177
    %v179 = vlaneseq
    %v180 = vshrl.u32 %v179, 7
    %v181 = vsub.s32 1, %v180
    %v182 = vrot.slane %v169, %v181
    %v183 = vlaneseq
    %v184 = vshrl.u32 %v183, 7
    %v185 = vsub.s32 2, %v184
    %v186 = vrot.slane %v169, %v185
    %v187 = vlaneseq
    %v188 = vshrl.u32 %v187, 7
    %v189 = vsub.s32 3, %v188
    %v190 = vrot.slane %v169, %v189
    %v259 = vunpack.c.l.b16 %v41
    %v260 = vunpack.c.h.b16 %v41
    %v261 = vunpack.c.l.b16 %v42
    %v262 = vunpack.c.h.b16 %v42
    %v263 = vunpack.c.l.b16 %v43
    %v264 = vunpack.c.h.b16 %v43
    %v265 = vunpack.c.l.b16 %v44
    %v266 = vunpack.c.h.b16 %v44
    %v267 = vunpack.c.l.b16 %v45
    %v268 = vunpack.c.h.b16 %v45
    %v269 = vunpack.c.l.b16 %v46
    %v270 = vunpack.c.h.b16 %v46
    %v271 = vunpack.c.l.b16 %v47
    %v272 = vunpack.c.h.b16 %v47
    %v273 = vunpack.c.l.b16 %v48
    %v274 = vunpack.c.h.b16 %v48
    %v275 = vunpack.c.l.b16 %v49
    %v276 = vunpack.c.h.b16 %v49
    %v277 = vunpack.c.l.b16 %v50
    %v278 = vunpack.c.h.b16 %v50
    %v279 = vunpack.c.l.b16 %v51
    %v280 = vunpack.c.h.b16 %v51
    %v281 = vunpack.c.l.b16 %v52
    %v282 = vunpack.c.h.b16 %v52
    %v283 = vunpack.c.l.b16 %v53
    %v284 = vunpack.c.h.b16 %v53
    %v285 = vunpack.c.l.b16 %v54
    %v286 = vunpack.c.h.b16 %v54
    %v287 = vunpack.c.l.b16 %v55
    %v288 = vunpack.c.h.b16 %v55
    %v289 = vunpack.c.l.b16 %v56
    %v290 = vunpack.c.h.b16 %v56
    %v291 = vunpack.c.l.b16 %v57
    %v292 = vunpack.c.h.b16 %v57
    %v293 = vunpack.c.l.b16 %v58
    %v294 = vunpack.c.h.b16 %v58
    %v295 = vunpack.c.l.b16 %v59
    %v296 = vunpack.c.h.b16 %v59
    %v297 = vunpack.c.l.b16 %v60
    %v298 = vunpack.c.h.b16 %v60
    %v299 = vunpack.c.l.b16 %v61
    %v300 = vunpack.c.h.b16 %v61
    %v301 = vunpack.c.l.b16 %v62
    %v302 = vunpack.c.h.b16 %v62
    %v303 = vunpack.c.l.b16 %v63
    %v304 = vunpack.c.h.b16 %v63
    %v305 = vunpack.c.l.b16 %v64
    %v306 = vunpack.c.h.b16 %v64
    %v307 = vunpack.c.l.b16 %v65
    %v308 = vunpack.c.h.b16 %v65
    %v309 = vunpack.c.l.b16 %v66
    %v310 = vunpack.c.h.b16 %v66
    %v311 = vunpack.c.l.b16 %v67
    %v312 = vunpack.c.h.b16 %v67
    %v313 = vunpack.c.l.b16 %v68
    %v314 = vunpack.c.h.b16 %v68
    %v315 = vunpack.c.l.b16 %v69
    %v316 = vunpack.c.h.b16 %v69
    %v317 = vunpack.c.l.b16 %v70
    %v318 = vunpack.c.h.b16 %v70
    %v319 = vunpack.c.l.b16 %v71
    %v320 = vunpack.c.h.b16 %v71
    %v321 = vunpack.c.l.b16 %v72
    %v322 = vunpack.c.h.b16 %v72
    %v323 = vunpack.c.l.b16 %v73
    %v324 = vunpack.c.h.b16 %v73
    %v325 = vunpack.c.l.b16 %v74
    %v326 = vunpack.c.h.b16 %v74
    %v327 = vunpack.c.l.b16 %v75
    %v328 = vunpack.c.h.b16 %v75
    %v329 = vunpack.c.l.b16 %v76
    %v330 = vunpack.c.h.b16 %v76
    %v331 = vunpack.c.l.b16 %v77
    %v332 = vunpack.c.h.b16 %v77
    %v333 = vunpack.c.l.b16 %v78
    %v334 = vunpack.c.h.b16 %v78
    %v335 = vunpack.c.l.b16 %v79
    %v336 = vunpack.c.h.b16 %v79
    %v337 = vunpack.c.l.b16 %v80
    %v338 = vunpack.c.h.b16 %v80
    %v339 = vunpack.c.l.b16 %v81
    %v340 = vunpack.c.h.b16 %v81
    %v341 = vunpack.c.l.b16 %v82
    %v342 = vunpack.c.h.b16 %v82
    %v343 = vunpack.c.l.b16 %v83
    %v344 = vunpack.c.h.b16 %v83
    %v345 = vunpack.c.l.b16 %v84
    %v346 = vunpack.c.h.b16 %v84
    %v347 = vunpack.c.l.b16 %v85
    %v348 = vunpack.c.h.b16 %v85
    %v349 = vunpack.c.l.b16 %v86
    %v350 = vunpack.c.h.b16 %v86
    %v351 = vunpack.c.l.b16 %v87
    %v352 = vunpack.c.h.b16 %v87
    %v353 = vunpack.c.l.b16 %v88
    %v354 = vunpack.c.h.b16 %v88
    %v355 = vunpack.c.l.b16 %v89
    %v356 = vunpack.c.h.b16 %v89
    %v357 = vunpack.c.l.b16 %v90
    %v358 = vunpack.c.h.b16 %v90
    %v359 = vunpack.c.l.b16 %v91
    %v360 = vunpack.c.h.b16 %v91
    %v361 = vunpack.c.l.b16 %v92
    %v362 = vunpack.c.h.b16 %v92
    %v363 = vunpack.c.l.b16 %v93
    %v364 = vunpack.c.h.b16 %v93
    %v365 = vunpack.c.l.b16 %v94
    %v366 = vunpack.c.h.b16 %v94
    %v367 = vunpack.c.l.b16 %v95
    %v368 = vunpack.c.h.b16 %v95
    %v369 = vunpack.c.l.b16 %v96
    %v370 = vunpack.c.h.b16 %v96
    %v371 = vunpack.c.l.b16 %v97
    %v372 = vunpack.c.h.b16 %v97
    %v373 = vunpack.c.l.b16 %v98
    %v374 = vunpack.c.h.b16 %v98
    %v375 = vunpack.c.l.b16 %v99
    %v376 = vunpack.c.h.b16 %v99
    %v377 = vunpack.c.l.b16 %v100
    %v378 = vunpack.c.h.b16 %v100
    %v379 = vunpack.c.l.b16 %v101
    %v380 = vunpack.c.h.b16 %v101
    %v381 = vunpack.c.l.b16 %v102
    %v382 = vunpack.c.h.b16 %v102
    %v383 = vunpack.c.l.b16 %v103
    %v384 = vunpack.c.h.b16 %v103
    %v385 = vunpack.c.l.b16 %v104
    %v386 = vunpack.c.h.b16 %v104
    %v387 = vpack.c.b16 %v263, %v259
    %v388 = vpack.c.b16 %v264, %v260
    %v389 = vpack.c.b16 %v265, %v261
    %v390 = vpack.c.b16 %v266, %v262
    %v391 = vpack.c.b16 %v271, %v267
    %v392 = vpack.c.b16 %v272, %v268
    %v393 = vpack.c.b16 %v273, %v269
    %v394 = vpack.c.b16 %v274, %v270
    %v395 = vpack.c.b16 %v279, %v275
    %v396 = vpack.c.b16 %v280, %v276
    %v397 = vpack.c.b16 %v281, %v277
    %v398 = vpack.c.b16 %v282, %v278
    %v399 = vpack.c.b16 %v287, %v283
    %v400 = vpack.c.b16 %v288, %v284
    %v401 = vpack.c.b16 %v289, %v285
    %v402 = vpack.c.b16 %v290, %v286
    %v403 = vpack.c.b16 %v295, %v291
    %v404 = vpack.c.b16 %v296, %v292
    %v405 = vpack.c.b16 %v297, %v293
    %v406 = vpack.c.b16 %v298, %v294
    %v407 = vpack.c.b16 %v303, %v299
    %v408 = vpack.c.b16 %v304, %v300
    %v409 = vpack.c.b16 %v305, %v301
    %v410 = vpack.c.b16 %v306, %v302
    %v411 = vpack.c.b16 %v311, %v307
    %v412 = vpack.c.b16 %v312, %v308
    %v413 = vpack.c.b16 %v313, %v309
    %v414 = vpack.c.b16 %v314, %v310
    %v415 = vpack.c.b16 %v319, %v315
    %v416 = vpack.c.b16 %v320, %v316
    %v417 = vpack.c.b16 %v321, %v317
    %v418 = vpack.c.b16 %v322, %v318
    %v419 = vpack.c.b16 %v327, %v323
    %v420 = vpack.c.b16 %v328, %v324
    %v421 = vpack.c.b16 %v329, %v325
    %v422 = vpack.c.b16 %v330, %v326
    %v423 = vpack.c.b16 %v335, %v331
    %v424 = vpack.c.b16 %v336, %v332
    %v425 = vpack.c.b16 %v337, %v333
    %v426 = vpack.c.b16 %v338, %v334
    %v427 = vpack.c.b16 %v343, %v339
    %v428 = vpack.c.b16 %v344, %v340
    %v429 = vpack.c.b16 %v345, %v341
    %v430 = vpack.c.b16 %v346, %v342
    %v431 = vpack.c.b16 %v351, %v347
    %v432 = vpack.c.b16 %v352, %v348
    %v433 = vpack.c.b16 %v353, %v349
    %v434 = vpack.c.b16 %v354, %v350
    %v435 = vpack.c.b16 %v359, %v355
    %v436 = vpack.c.b16 %v360, %v356
    %v437 = vpack.c.b16 %v361, %v357
    %v438 = vpack.c.b16 %v362, %v358
    %v439 = vpack.c.b16 %v367, %v363
    %v440 = vpack.c.b16 %v368, %v364
    %v441 = vpack.c.b16 %v369, %v365
    %v442 = vpack.c.b16 %v370, %v366
    %v443 = vpack.c.b16 %v375, %v371
    %v444 = vpack.c.b16 %v376, %v372
    %v445 = vpack.c.b16 %v377, %v373
    %v446 = vpack.c.b16 %v378, %v374
    %v447 = vpack.c.b16 %v383, %v379
    %v448 = vpack.c.b16 %v384, %v380
    %v449 = vpack.c.b16 %v385, %v381
    %v450 = vpack.c.b16 %v386, %v382
    %515 = vmatprep.subr.bf16.mxu0 %v416
    %516 = vmatpush1.bf16.msra.mxu0 %v415
    %517 = vmatprep.subr.bf16.mxu0 %v412
    %518 = vmatpush1.bf16.msra.mxu0 %v411
    %519 = vmatprep.subr.bf16.mxu0 %v408
    %520 = vmatpush1.bf16.msra.mxu0 %v407
    %521 = vmatprep.subr.bf16.mxu0 %v404
    %522 = vmatpush1.bf16.msra.mxu0 %v403
    %523 = vmatprep.subr.bf16.mxu0 %v400
    %524 = vmatpush1.bf16.msra.mxu0 %v399
    %525 = vmatprep.subr.bf16.mxu0 %v396
    %526 = vmatpush1.bf16.msra.mxu0 %v395
    %527 = vmatprep.subr.bf16.mxu0 %v392
    %528 = vmatpush1.bf16.msra.mxu0 %v391
    %529 = vmatprep.subr.bf16.mxu0 %v388
    %530 = vmatpush1.bf16.msra.mxu0 %v387
    %531 = vmatprep.subr.bf16.mxu0 %v448
    %532 = vmatpush2.bf16.msra.mxu0 %v447
    %533 = vmatprep.subr.bf16.mxu0 %v444
    %534 = vmatpush2.bf16.msra.mxu0 %v443
    %535 = vmatprep.subr.bf16.mxu0 %v440
    %536 = vmatpush2.bf16.msra.mxu0 %v439
    %537 = vmatprep.subr.bf16.mxu0 %v436
    %538 = vmatpush2.bf16.msra.mxu0 %v435
    %539 = vmatprep.subr.bf16.mxu0 %v432
    %540 = vmatpush2.bf16.msra.mxu0 %v431
    %541 = vmatprep.subr.bf16.mxu0 %v428
    %542 = vmatpush2.bf16.msra.mxu0 %v427
    %543 = vmatprep.subr.bf16.mxu0 %v424
    %544 = vmatpush2.bf16.msra.mxu0 %v423
    %545 = vmatprep.subr.bf16.mxu0 %v420
    %546 = vmatpush2.bf16.msra.mxu0 %v419
    %547 = vmatprep.mubr.bf16.mxu0 0
    %548 = vmatmul.mubr.bf16.gmra.mxu0 %v173
    %v549 = vpop.f32.mrf.mxu0
    %v550 = vadd.f32 %v178, %v549
    %v551 = vpop.f32.mrf.mxu0
    %v552 = vadd.f32 %v182, %v551
    %v553 = vpop.f32.mrf.mxu0
    %v554 = vpop.f32.mrf.mxu0
    %555 = vdwg.mxu0
    %556 = vmatprep.subr.bf16.mxu0 %v418
    %557 = vmatpush1.bf16.msra.mxu0 %v417
    %558 = vmatprep.subr.bf16.mxu0 %v414
    %559 = vmatpush1.bf16.msra.mxu0 %v413
    %560 = vmatprep.subr.bf16.mxu0 %v410
    %561 = vmatpush1.bf16.msra.mxu0 %v409
    %562 = vmatprep.subr.bf16.mxu0 %v406
    %563 = vmatpush1.bf16.msra.mxu0 %v405
    %564 = vmatprep.subr.bf16.mxu0 %v402
    %565 = vmatpush1.bf16.msra.mxu0 %v401
    %566 = vmatprep.subr.bf16.mxu0 %v398
    %567 = vmatpush1.bf16.msra.mxu0 %v397
    %568 = vmatprep.subr.bf16.mxu0 %v394
    %569 = vmatpush1.bf16.msra.mxu0 %v393
    %570 = vmatprep.subr.bf16.mxu0 %v390
    %571 = vmatpush1.bf16.msra.mxu0 %v389
    %572 = vmatprep.subr.bf16.mxu0 %v450
    %573 = vmatpush2.bf16.msra.mxu0 %v449
    %574 = vmatprep.subr.bf16.mxu0 %v446
    %575 = vmatpush2.bf16.msra.mxu0 %v445
    %576 = vmatprep.subr.bf16.mxu0 %v442
    %577 = vmatpush2.bf16.msra.mxu0 %v441
    %578 = vmatprep.subr.bf16.mxu0 %v438
    %579 = vmatpush2.bf16.msra.mxu0 %v437
    %580 = vmatprep.subr.bf16.mxu0 %v434
    %581 = vmatpush2.bf16.msra.mxu0 %v433
    %582 = vmatprep.subr.bf16.mxu0 %v430
    %583 = vmatpush2.bf16.msra.mxu0 %v429
    %584 = vmatprep.subr.bf16.mxu0 %v426
    %585 = vmatpush2.bf16.msra.mxu0 %v425
    %586 = vmatprep.subr.bf16.mxu0 %v422
    %587 = vmatpush2.bf16.msra.mxu0 %v421
    %588 = vmatprep.mubr.bf16.mxu0 0
    %589 = vmatmul.mubr.bf16.gmra.mxu0 %v173
    %v590 = vpop.f32.mrf.mxu0
    %v591 = vadd.f32 %v186, %v590
    %v592 = vpop.f32.mrf.mxu0
    %v593 = vadd.f32 %v190, %v592
    %v594 = vpop.f32.mrf.mxu0
    %v595 = vpop.f32.mrf.mxu0
    %596 = vdwg.mxu0
    %v597 = vxor.u32 %v550, 2147483648
    %v598 = vmul.f32 %v597, 1.442695
    %v599 = vpow.pop %v598
    %v600 = vadd.f32 %v599, 1.0
    %v601 = vrcp.pop %v600
    %v602 = vmul.f32 1.0, %v601
    %v603 = vxor.u32 %v552, 2147483648
    %v604 = vmul.f32 %v603, 1.442695
    %v605 = vpow.pop %v604
    %v606 = vadd.f32 %v605, 1.0
    %v607 = vrcp.pop %v606
    %v608 = vmul.f32 1.0, %v607
    %v609 = vtanh.pop %v591
    %v610 = vxor.u32 %v593, 2147483648
    %v611 = vmul.f32 %v610, 1.442695
    %v612 = vpow.pop %v611
    %v613 = vadd.f32 %v612, 1.0
    %v614 = vrcp.pop %v613
    %v615 = vmul.f32 1.0, %v614
    %v616 = vmul.f32 %v608, 0.0
    %v617 = vmul.f32 %v602, %v609
    %v618 = vadd.f32 %v616, %v617
    %v619 = vtanh.pop %v618
    %v620 = vmul.f32 %v615, %v619
    %v621 = vpack.c.bf16 %v620, %v620
    %v623 = vlaneseq
    %v624 = vshrl.u32 %v623, 7
    %v625 = vsub.s32 0, %v624
    %v626 = vrot.slane %v170, %v625
    %v627 = vlaneseq
    %v628 = vshrl.u32 %v627, 7
    %v629 = vsub.s32 1, %v628
    %v630 = vrot.slane %v170, %v629
    %v631 = vlaneseq
    %v632 = vshrl.u32 %v631, 7
    %v633 = vsub.s32 2, %v632
    %v634 = vrot.slane %v170, %v633
    %v635 = vlaneseq
    %v636 = vshrl.u32 %v635, 7
    %v637 = vsub.s32 3, %v636
    %v638 = vrot.slane %v170, %v637
    %v707 = vunpack.c.l.b16 %v105
    %v708 = vunpack.c.h.b16 %v105
    %v709 = vunpack.c.l.b16 %v106
    %v710 = vunpack.c.h.b16 %v106
    %v711 = vunpack.c.l.b16 %v107
    %v712 = vunpack.c.h.b16 %v107
    %v713 = vunpack.c.l.b16 %v108
    %v714 = vunpack.c.h.b16 %v108
    %v715 = vunpack.c.l.b16 %v109
    %v716 = vunpack.c.h.b16 %v109
    %v717 = vunpack.c.l.b16 %v110
    %v718 = vunpack.c.h.b16 %v110
    %v719 = vunpack.c.l.b16 %v111
    %v720 = vunpack.c.h.b16 %v111
    %v721 = vunpack.c.l.b16 %v112
    %v722 = vunpack.c.h.b16 %v112
    %v723 = vunpack.c.l.b16 %v113
    %v724 = vunpack.c.h.b16 %v113
    %v725 = vunpack.c.l.b16 %v114
    %v726 = vunpack.c.h.b16 %v114
    %v727 = vunpack.c.l.b16 %v115
    %v728 = vunpack.c.h.b16 %v115
    %v729 = vunpack.c.l.b16 %v116
    %v730 = vunpack.c.h.b16 %v116
    %v731 = vunpack.c.l.b16 %v117
    %v732 = vunpack.c.h.b16 %v117
    %v733 = vunpack.c.l.b16 %v118
    %v734 = vunpack.c.h.b16 %v118
    %v735 = vunpack.c.l.b16 %v119
    %v736 = vunpack.c.h.b16 %v119
    %v737 = vunpack.c.l.b16 %v120
    %v738 = vunpack.c.h.b16 %v120
    %v739 = vunpack.c.l.b16 %v121
    %v740 = vunpack.c.h.b16 %v121
    %v741 = vunpack.c.l.b16 %v122
    %v742 = vunpack.c.h.b16 %v122
    %v743 = vunpack.c.l.b16 %v123
    %v744 = vunpack.c.h.b16 %v123
    %v745 = vunpack.c.l.b16 %v124
    %v746 = vunpack.c.h.b16 %v124
    %v747 = vunpack.c.l.b16 %v125
    %v748 = vunpack.c.h.b16 %v125
    %v749 = vunpack.c.l.b16 %v126
    %v750 = vunpack.c.h.b16 %v126
    %v751 = vunpack.c.l.b16 %v127
    %v752 = vunpack.c.h.b16 %v127
    %v753 = vunpack.c.l.b16 %v128
    %v754 = vunpack.c.h.b16 %v128
    %v755 = vunpack.c.l.b16 %v129
    %v756 = vunpack.c.h.b16 %v129
    %v757 = vunpack.c.l.b16 %v130
    %v758 = vunpack.c.h.b16 %v130
    %v759 = vunpack.c.l.b16 %v131
    %v760 = vunpack.c.h.b16 %v131
    %v761 = vunpack.c.l.b16 %v132
    %v762 = vunpack.c.h.b16 %v132
    %v763 = vunpack.c.l.b16 %v133
    %v764 = vunpack.c.h.b16 %v133
    %v765 = vunpack.c.l.b16 %v134
    %v766 = vunpack.c.h.b16 %v134
    %v767 = vunpack.c.l.b16 %v135
    %v768 = vunpack.c.h.b16 %v135
    %v769 = vunpack.c.l.b16 %v136
    %v770 = vunpack.c.h.b16 %v136
    %v771 = vunpack.c.l.b16 %v137
    %v772 = vunpack.c.h.b16 %v137
    %v773 = vunpack.c.l.b16 %v138
    %v774 = vunpack.c.h.b16 %v138
    %v775 = vunpack.c.l.b16 %v139
    %v776 = vunpack.c.h.b16 %v139
    %v777 = vunpack.c.l.b16 %v140
    %v778 = vunpack.c.h.b16 %v140
    %v779 = vunpack.c.l.b16 %v141
    %v780 = vunpack.c.h.b16 %v141
    %v781 = vunpack.c.l.b16 %v142
    %v782 = vunpack.c.h.b16 %v142
    %v783 = vunpack.c.l.b16 %v143
    %v784 = vunpack.c.h.b16 %v143
    %v785 = vunpack.c.l.b16 %v144
    %v786 = vunpack.c.h.b16 %v144
    %v787 = vunpack.c.l.b16 %v145
    %v788 = vunpack.c.h.b16 %v145
    %v789 = vunpack.c.l.b16 %v146
    %v790 = vunpack.c.h.b16 %v146
    %v791 = vunpack.c.l.b16 %v147
    %v792 = vunpack.c.h.b16 %v147
    %v793 = vunpack.c.l.b16 %v148
    %v794 = vunpack.c.h.b16 %v148
    %v795 = vunpack.c.l.b16 %v149
    %v796 = vunpack.c.h.b16 %v149
    %v797 = vunpack.c.l.b16 %v150
    %v798 = vunpack.c.h.b16 %v150
    %v799 = vunpack.c.l.b16 %v151
    %v800 = vunpack.c.h.b16 %v151
    %v801 = vunpack.c.l.b16 %v152
    %v802 = vunpack.c.h.b16 %v152
    %v803 = vunpack.c.l.b16 %v153
    %v804 = vunpack.c.h.b16 %v153
    %v805 = vunpack.c.l.b16 %v154
    %v806 = vunpack.c.h.b16 %v154
    %v807 = vunpack.c.l.b16 %v155
    %v808 = vunpack.c.h.b16 %v155
    %v809 = vunpack.c.l.b16 %v156
    %v810 = vunpack.c.h.b16 %v156
    %v811 = vunpack.c.l.b16 %v157
    %v812 = vunpack.c.h.b16 %v157
    %v813 = vunpack.c.l.b16 %v158
    %v814 = vunpack.c.h.b16 %v158
    %v815 = vunpack.c.l.b16 %v159
    %v816 = vunpack.c.h.b16 %v159
    %v817 = vunpack.c.l.b16 %v160
    %v818 = vunpack.c.h.b16 %v160
    %v819 = vunpack.c.l.b16 %v161
    %v820 = vunpack.c.h.b16 %v161
    %v821 = vunpack.c.l.b16 %v162
    %v822 = vunpack.c.h.b16 %v162
    %v823 = vunpack.c.l.b16 %v163
    %v824 = vunpack.c.h.b16 %v163
    %v825 = vunpack.c.l.b16 %v164
    %v826 = vunpack.c.h.b16 %v164
    %v827 = vunpack.c.l.b16 %v165
    %v828 = vunpack.c.h.b16 %v165
    %v829 = vunpack.c.l.b16 %v166
    %v830 = vunpack.c.h.b16 %v166
    %v831 = vunpack.c.l.b16 %v167
    %v832 = vunpack.c.h.b16 %v167
    %v833 = vunpack.c.l.b16 %v168
    %v834 = vunpack.c.h.b16 %v168
    %v835 = vpack.c.b16 %v711, %v707
    %v836 = vpack.c.b16 %v712, %v708
    %v837 = vpack.c.b16 %v713, %v709
    %v838 = vpack.c.b16 %v714, %v710
    %v839 = vpack.c.b16 %v719, %v715
    %v840 = vpack.c.b16 %v720, %v716
    %v841 = vpack.c.b16 %v721, %v717
    %v842 = vpack.c.b16 %v722, %v718
    %v843 = vpack.c.b16 %v727, %v723
    %v844 = vpack.c.b16 %v728, %v724
    %v845 = vpack.c.b16 %v729, %v725
    %v846 = vpack.c.b16 %v730, %v726
    %v847 = vpack.c.b16 %v735, %v731
    %v848 = vpack.c.b16 %v736, %v732
    %v849 = vpack.c.b16 %v737, %v733
    %v850 = vpack.c.b16 %v738, %v734
    %v851 = vpack.c.b16 %v743, %v739
    %v852 = vpack.c.b16 %v744, %v740
    %v853 = vpack.c.b16 %v745, %v741
    %v854 = vpack.c.b16 %v746, %v742
    %v855 = vpack.c.b16 %v751, %v747
    %v856 = vpack.c.b16 %v752, %v748
    %v857 = vpack.c.b16 %v753, %v749
    %v858 = vpack.c.b16 %v754, %v750
    %v859 = vpack.c.b16 %v759, %v755
    %v860 = vpack.c.b16 %v760, %v756
    %v861 = vpack.c.b16 %v761, %v757
    %v862 = vpack.c.b16 %v762, %v758
    %v863 = vpack.c.b16 %v767, %v763
    %v864 = vpack.c.b16 %v768, %v764
    %v865 = vpack.c.b16 %v769, %v765
    %v866 = vpack.c.b16 %v770, %v766
    %v867 = vpack.c.b16 %v775, %v771
    %v868 = vpack.c.b16 %v776, %v772
    %v869 = vpack.c.b16 %v777, %v773
    %v870 = vpack.c.b16 %v778, %v774
    %v871 = vpack.c.b16 %v783, %v779
    %v872 = vpack.c.b16 %v784, %v780
    %v873 = vpack.c.b16 %v785, %v781
    %v874 = vpack.c.b16 %v786, %v782
    %v875 = vpack.c.b16 %v791, %v787
    %v876 = vpack.c.b16 %v792, %v788
    %v877 = vpack.c.b16 %v793, %v789
    %v878 = vpack.c.b16 %v794, %v790
    %v879 = vpack.c.b16 %v799, %v795
    %v880 = vpack.c.b16 %v800, %v796
    %v881 = vpack.c.b16 %v801, %v797
    %v882 = vpack.c.b16 %v802, %v798
    %v883 = vpack.c.b16 %v807, %v803
    %v884 = vpack.c.b16 %v808, %v804
    %v885 = vpack.c.b16 %v809, %v805
    %v886 = vpack.c.b16 %v810, %v806
    %v887 = vpack.c.b16 %v815, %v811
    %v888 = vpack.c.b16 %v816, %v812
    %v889 = vpack.c.b16 %v817, %v813
    %v890 = vpack.c.b16 %v818, %v814
    %v891 = vpack.c.b16 %v823, %v819
    %v892 = vpack.c.b16 %v824, %v820
    %v893 = vpack.c.b16 %v825, %v821
    %v894 = vpack.c.b16 %v826, %v822
    %v895 = vpack.c.b16 %v831, %v827
    %v896 = vpack.c.b16 %v832, %v828
    %v897 = vpack.c.b16 %v833, %v829
    %v898 = vpack.c.b16 %v834, %v830
    %963 = vmatprep.subr.bf16.mxu0 %v864
    %964 = vmatpush1.bf16.msra.mxu0 %v863
    %965 = vmatprep.subr.bf16.mxu0 %v860
    %966 = vmatpush1.bf16.msra.mxu0 %v859
    %967 = vmatprep.subr.bf16.mxu0 %v856
    %968 = vmatpush1.bf16.msra.mxu0 %v855
    %969 = vmatprep.subr.bf16.mxu0 %v852
    %970 = vmatpush1.bf16.msra.mxu0 %v851
    %971 = vmatprep.subr.bf16.mxu0 %v848
    %972 = vmatpush1.bf16.msra.mxu0 %v847
    %973 = vmatprep.subr.bf16.mxu0 %v844
    %974 = vmatpush1.bf16.msra.mxu0 %v843
    %975 = vmatprep.subr.bf16.mxu0 %v840
    %976 = vmatpush1.bf16.msra.mxu0 %v839
    %977 = vmatprep.subr.bf16.mxu0 %v836
    %978 = vmatpush1.bf16.msra.mxu0 %v835
    %979 = vmatprep.subr.bf16.mxu0 %v896
    %980 = vmatpush2.bf16.msra.mxu0 %v895
    %981 = vmatprep.subr.bf16.mxu0 %v892
    %982 = vmatpush2.bf16.msra.mxu0 %v891
    %983 = vmatprep.subr.bf16.mxu0 %v888
    %984 = vmatpush2.bf16.msra.mxu0 %v887
    %985 = vmatprep.subr.bf16.mxu0 %v884
    %986 = vmatpush2.bf16.msra.mxu0 %v883
    %987 = vmatprep.subr.bf16.mxu0 %v880
    %988 = vmatpush2.bf16.msra.mxu0 %v879
    %989 = vmatprep.subr.bf16.mxu0 %v876
    %990 = vmatpush2.bf16.msra.mxu0 %v875
    %991 = vmatprep.subr.bf16.mxu0 %v872
    %992 = vmatpush2.bf16.msra.mxu0 %v871
    %993 = vmatprep.subr.bf16.mxu0 %v868
    %994 = vmatpush2.bf16.msra.mxu0 %v867
    %995 = vmatprep.mubr.bf16.mxu0 0
    %996 = vmatmul.mubr.bf16.gmra.mxu0 %v621
    %v997 = vpop.f32.mrf.mxu0
    %v998 = vadd.f32 %v626, %v997
    %v999 = vpop.f32.mrf.mxu0
    %v1000 = vadd.f32 %v630, %v999
    %v1001 = vpop.f32.mrf.mxu0
    %v1002 = vpop.f32.mrf.mxu0
    %1003 = vdwg.mxu0
    %1004 = vmatprep.subr.bf16.mxu0 %v866
    %1005 = vmatpush1.bf16.msra.mxu0 %v865
    %1006 = vmatprep.subr.bf16.mxu0 %v862
    %1007 = vmatpush1.bf16.msra.mxu0 %v861
    %1008 = vmatprep.subr.bf16.mxu0 %v858
    %1009 = vmatpush1.bf16.msra.mxu0 %v857
    %1010 = vmatprep.subr.bf16.mxu0 %v854
    %1011 = vmatpush1.bf16.msra.mxu0 %v853
    %1012 = vmatprep.subr.bf16.mxu0 %v850
    %1013 = vmatpush1.bf16.msra.mxu0 %v849
    %1014 = vmatprep.subr.bf16.mxu0 %v846
    %1015 = vmatpush1.bf16.msra.mxu0 %v845
    %1016 = vmatprep.subr.bf16.mxu0 %v842
    %1017 = vmatpush1.bf16.msra.mxu0 %v841
    %1018 = vmatprep.subr.bf16.mxu0 %v838
    %1019 = vmatpush1.bf16.msra.mxu0 %v837
    %1020 = vmatprep.subr.bf16.mxu0 %v898
    %1021 = vmatpush2.bf16.msra.mxu0 %v897
    %1022 = vmatprep.subr.bf16.mxu0 %v894
    %1023 = vmatpush2.bf16.msra.mxu0 %v893
    %1024 = vmatprep.subr.bf16.mxu0 %v890
    %1025 = vmatpush2.bf16.msra.mxu0 %v889
    %1026 = vmatprep.subr.bf16.mxu0 %v886
    %1027 = vmatpush2.bf16.msra.mxu0 %v885
    %1028 = vmatprep.subr.bf16.mxu0 %v882
    %1029 = vmatpush2.bf16.msra.mxu0 %v881
    %1030 = vmatprep.subr.bf16.mxu0 %v878
    %1031 = vmatpush2.bf16.msra.mxu0 %v877
    %1032 = vmatprep.subr.bf16.mxu0 %v874
    %1033 = vmatpush2.bf16.msra.mxu0 %v873
    %1034 = vmatprep.subr.bf16.mxu0 %v870
    %1035 = vmatpush2.bf16.msra.mxu0 %v869
    %1036 = vmatprep.mubr.bf16.mxu0 0
    %1037 = vmatmul.mubr.bf16.gmra.mxu0 %v621
    %v1038 = vpop.f32.mrf.mxu0
    %v1039 = vadd.f32 %v634, %v1038
    %v1040 = vpop.f32.mrf.mxu0
    %v1041 = vadd.f32 %v638, %v1040
    %v1042 = vpop.f32.mrf.mxu0
    %v1043 = vpop.f32.mrf.mxu0
    %1044 = vdwg.mxu0
    %v1045 = vxor.u32 %v998, 2147483648
    %v1046 = vmul.f32 %v1045, 1.442695
    %v1047 = vpow.pop %v1046
    %v1048 = vadd.f32 %v1047, 1.0
    %v1049 = vrcp.pop %v1048
    %v1050 = vmul.f32 1.0, %v1049
    %v1051 = vxor.u32 %v1000, 2147483648
    %v1052 = vmul.f32 %v1051, 1.442695
    %v1053 = vpow.pop %v1052
    %v1054 = vadd.f32 %v1053, 1.0
    %v1055 = vrcp.pop %v1054
    %v1056 = vmul.f32 1.0, %v1055
    %v1057 = vtanh.pop %v1039
    %v1058 = vxor.u32 %v1041, 2147483648
    %v1059 = vmul.f32 %v1058, 1.442695
    %v1060 = vpow.pop %v1059
    %v1061 = vadd.f32 %v1060, 1.0
    %v1062 = vrcp.pop %v1061
    %v1063 = vmul.f32 1.0, %v1062
    %v1064 = vmul.f32 %v1056, 0.0
    %v1065 = vmul.f32 %v1050, %v1057
    %v1066 = vadd.f32 %v1064, %v1065
    %v1067 = vtanh.pop %v1066
    %v1068 = vmul.f32 %v1063, %v1067
    %vm1069 = vcmask 1041408
    %v1070 = vsel %vm1069, %v1068, 0.0
    %1071 = vadd.xlane.f32.xlu0 %v1070
    %v1072 = vpop.xlane.xlu0 %1071
    %v1073 = vrcp.pop 128.0
    %v1074 = vmul.f32 %v1072, %v1073
    %v1075 = vsub.f32 %v1068, %v1074
    %v1076 = vmul.f32 %v1075, %v1075
    %v1077 = vsel %vm1069, %v1076, 0.0
    %1078 = vadd.xlane.f32.xlu0 %v1077
    %v1079 = vpop.xlane.xlu0 %1078
    %v1080 = vmul.f32 %v1079, %v1073
    %v1081 = vadd.f32 %v1080, 1e-05
    %v1082 = vrsqrt.pop %v1081
    %v1083 = vmul.f32 %v1075, %v1082
    %v1085 = vlaneseq
    %v1086 = vshrl.u32 %v1085, 7
    %v1087 = vsub.s32 0, %v1086
    %v1088 = vrot.slane %v171, %v1087
    %v1090 = vmul.f32 %v1083, %v1088
    %v1092 = vlaneseq
    %v1093 = vshrl.u32 %v1092, 7
    %v1094 = vsub.s32 0, %v1093
    %v1095 = vrot.slane %v172, %v1094
    %v1097 = vadd.f32 %v1090, %v1095
    %1098 = vst [vmem:[%s7] sm:$0x3] %v1097
    %s1099 = scalar_lea.vmem %s0, 1
    %v1100 = vld [vmem:[%s1099] sm:$0x1]
    %1101 = vmatprep.subr.bf16.mxu0 %v416
    %1102 = vmatpush1.bf16.msra.mxu0 %v415
    %1103 = vmatprep.subr.bf16.mxu0 %v412
    %1104 = vmatpush1.bf16.msra.mxu0 %v411
    %1105 = vmatprep.subr.bf16.mxu0 %v408
    %1106 = vmatpush1.bf16.msra.mxu0 %v407
    %1107 = vmatprep.subr.bf16.mxu0 %v404
    %1108 = vmatpush1.bf16.msra.mxu0 %v403
    %1109 = vmatprep.subr.bf16.mxu0 %v400
    %1110 = vmatpush1.bf16.msra.mxu0 %v399
    %1111 = vmatprep.subr.bf16.mxu0 %v396
    %1112 = vmatpush1.bf16.msra.mxu0 %v395
    %1113 = vmatprep.subr.bf16.mxu0 %v392
    %1114 = vmatpush1.bf16.msra.mxu0 %v391
    %1115 = vmatprep.subr.bf16.mxu0 %v388
    %1116 = vmatpush1.bf16.msra.mxu0 %v387
    %1117 = vmatprep.subr.bf16.mxu0 %v448
    %1118 = vmatpush2.bf16.msra.mxu0 %v447
    %1119 = vmatprep.subr.bf16.mxu0 %v444
    %1120 = vmatpush2.bf16.msra.mxu0 %v443
    %1121 = vmatprep.subr.bf16.mxu0 %v440
    %1122 = vmatpush2.bf16.msra.mxu0 %v439
    %1123 = vmatprep.subr.bf16.mxu0 %v436
    %1124 = vmatpush2.bf16.msra.mxu0 %v435
    %1125 = vmatprep.subr.bf16.mxu0 %v432
    %1126 = vmatpush2.bf16.msra.mxu0 %v431
    %1127 = vmatprep.subr.bf16.mxu0 %v428
    %1128 = vmatpush2.bf16.msra.mxu0 %v427
    %1129 = vmatprep.subr.bf16.mxu0 %v424
    %1130 = vmatpush2.bf16.msra.mxu0 %v423
    %1131 = vmatprep.subr.bf16.mxu0 %v420
    %1132 = vmatpush2.bf16.msra.mxu0 %v419
    %1133 = vmatprep.mubr.bf16.mxu0 %v621
    %1134 = vmatmul.mubr.bf16.gmra.mxu0 %v1100
    %v1135 = vpop.f32.mrf.mxu0
    %v1136 = vadd.f32 %v178, %v1135
    %v1137 = vpop.f32.mrf.mxu0
    %v1138 = vadd.f32 %v182, %v1137
    %v1139 = vpop.f32.mrf.mxu0
    %v1140 = vpop.f32.mrf.mxu0
    %1141 = vdwg.mxu0
    %1142 = vmatprep.subr.bf16.mxu0 %v418
    %1143 = vmatpush1.bf16.msra.mxu0 %v417
    %1144 = vmatprep.subr.bf16.mxu0 %v414
    %1145 = vmatpush1.bf16.msra.mxu0 %v413
    %1146 = vmatprep.subr.bf16.mxu0 %v410
    %1147 = vmatpush1.bf16.msra.mxu0 %v409
    %1148 = vmatprep.subr.bf16.mxu0 %v406
    %1149 = vmatpush1.bf16.msra.mxu0 %v405
    %1150 = vmatprep.subr.bf16.mxu0 %v402
    %1151 = vmatpush1.bf16.msra.mxu0 %v401
    %1152 = vmatprep.subr.bf16.mxu0 %v398
    %1153 = vmatpush1.bf16.msra.mxu0 %v397
    %1154 = vmatprep.subr.bf16.mxu0 %v394
    %1155 = vmatpush1.bf16.msra.mxu0 %v393
    %1156 = vmatprep.subr.bf16.mxu0 %v390
    %1157 = vmatpush1.bf16.msra.mxu0 %v389
    %1158 = vmatprep.subr.bf16.mxu0 %v450
    %1159 = vmatpush2.bf16.msra.mxu0 %v449
    %1160 = vmatprep.subr.bf16.mxu0 %v446
    %1161 = vmatpush2.bf16.msra.mxu0 %v445
    %1162 = vmatprep.subr.bf16.mxu0 %v442
    %1163 = vmatpush2.bf16.msra.mxu0 %v441
    %1164 = vmatprep.subr.bf16.mxu0 %v438
    %1165 = vmatpush2.bf16.msra.mxu0 %v437
    %1166 = vmatprep.subr.bf16.mxu0 %v434
    %1167 = vmatpush2.bf16.msra.mxu0 %v433
    %1168 = vmatprep.subr.bf16.mxu0 %v430
    %1169 = vmatpush2.bf16.msra.mxu0 %v429
    %1170 = vmatprep.subr.bf16.mxu0 %v426
    %1171 = vmatpush2.bf16.msra.mxu0 %v425
    %1172 = vmatprep.subr.bf16.mxu0 %v422
    %1173 = vmatpush2.bf16.msra.mxu0 %v421
    %1174 = vmatprep.mubr.bf16.mxu0 %v621
    %1175 = vmatmul.mubr.bf16.gmra.mxu0 %v1100
    %v1176 = vpop.f32.mrf.mxu0
    %v1177 = vadd.f32 %v186, %v1176
    %v1178 = vpop.f32.mrf.mxu0
    %v1179 = vadd.f32 %v190, %v1178
    %v1180 = vpop.f32.mrf.mxu0
    %v1181 = vpop.f32.mrf.mxu0
    %1182 = vdwg.mxu0
    %v1183 = vxor.u32 %v1136, 2147483648
    %v1184 = vmul.f32 %v1183, 1.442695
    %v1185 = vpow.pop %v1184
    %v1186 = vadd.f32 %v1185, 1.0
    %v1187 = vrcp.pop %v1186
    %v1188 = vmul.f32 1.0, %v1187
    %v1189 = vxor.u32 %v1138, 2147483648
    %v1190 = vmul.f32 %v1189, 1.442695
    %v1191 = vpow.pop %v1190
    %v1192 = vadd.f32 %v1191, 1.0
    %v1193 = vrcp.pop %v1192
    %v1194 = vmul.f32 1.0, %v1193
    %v1195 = vtanh.pop %v1177
    %v1196 = vxor.u32 %v1179, 2147483648
    %v1197 = vmul.f32 %v1196, 1.442695
    %v1198 = vpow.pop %v1197
    %v1199 = vadd.f32 %v1198, 1.0
    %v1200 = vrcp.pop %v1199
    %v1201 = vmul.f32 1.0, %v1200
    %v1202 = vmul.f32 %v1194, %v618
    %v1203 = vmul.f32 %v1188, %v1195
    %v1204 = vadd.f32 %v1202, %v1203
    %v1205 = vtanh.pop %v1204
    %v1206 = vmul.f32 %v1201, %v1205
    %v1207 = vpack.c.bf16 %v1206, %v1206
    %v1208 = vpack.c.bf16 %v1068, %v1068
    %1209 = vmatprep.subr.bf16.mxu0 %v864
    %1210 = vmatpush1.bf16.msra.mxu0 %v863
    %1211 = vmatprep.subr.bf16.mxu0 %v860
    %1212 = vmatpush1.bf16.msra.mxu0 %v859
    %1213 = vmatprep.subr.bf16.mxu0 %v856
    %1214 = vmatpush1.bf16.msra.mxu0 %v855
    %1215 = vmatprep.subr.bf16.mxu0 %v852
    %1216 = vmatpush1.bf16.msra.mxu0 %v851
    %1217 = vmatprep.subr.bf16.mxu0 %v848
    %1218 = vmatpush1.bf16.msra.mxu0 %v847
    %1219 = vmatprep.subr.bf16.mxu0 %v844
    %1220 = vmatpush1.bf16.msra.mxu0 %v843
    %1221 = vmatprep.subr.bf16.mxu0 %v840
    %1222 = vmatpush1.bf16.msra.mxu0 %v839
    %1223 = vmatprep.subr.bf16.mxu0 %v836
    %1224 = vmatpush1.bf16.msra.mxu0 %v835
    %1225 = vmatprep.subr.bf16.mxu0 %v896
    %1226 = vmatpush2.bf16.msra.mxu0 %v895
    %1227 = vmatprep.subr.bf16.mxu0 %v892
    %1228 = vmatpush2.bf16.msra.mxu0 %v891
    %1229 = vmatprep.subr.bf16.mxu0 %v888
    %1230 = vmatpush2.bf16.msra.mxu0 %v887
    %1231 = vmatprep.subr.bf16.mxu0 %v884
    %1232 = vmatpush2.bf16.msra.mxu0 %v883
    %1233 = vmatprep.subr.bf16.mxu0 %v880
    %1234 = vmatpush2.bf16.msra.mxu0 %v879
    %1235 = vmatprep.subr.bf16.mxu0 %v876
    %1236 = vmatpush2.bf16.msra.mxu0 %v875
    %1237 = vmatprep.subr.bf16.mxu0 %v872
    %1238 = vmatpush2.bf16.msra.mxu0 %v871
    %1239 = vmatprep.subr.bf16.mxu0 %v868
    %1240 = vmatpush2.bf16.msra.mxu0 %v867
    %1241 = vmatprep.mubr.bf16.mxu0 %v1208
    %1242 = vmatmul.mubr.bf16.gmra.mxu0 %v1207
    %v1243 = vpop.f32.mrf.mxu0
    %v1244 = vadd.f32 %v626, %v1243
    %v1245 = vpop.f32.mrf.mxu0
    %v1246 = vadd.f32 %v630, %v1245
    %v1247 = vpop.f32.mrf.mxu0
    %v1248 = vpop.f32.mrf.mxu0
    %1249 = vdwg.mxu0
    %1250 = vmatprep.subr.bf16.mxu0 %v866
    %1251 = vmatpush1.bf16.msra.mxu0 %v865
    %1252 = vmatprep.subr.bf16.mxu0 %v862
    %1253 = vmatpush1.bf16.msra.mxu0 %v861
    %1254 = vmatprep.subr.bf16.mxu0 %v858
    %1255 = vmatpush1.bf16.msra.mxu0 %v857
    %1256 = vmatprep.subr.bf16.mxu0 %v854
    %1257 = vmatpush1.bf16.msra.mxu0 %v853
    %1258 = vmatprep.subr.bf16.mxu0 %v850
    %1259 = vmatpush1.bf16.msra.mxu0 %v849
    %1260 = vmatprep.subr.bf16.mxu0 %v846
    %1261 = vmatpush1.bf16.msra.mxu0 %v845
    %1262 = vmatprep.subr.bf16.mxu0 %v842
    %1263 = vmatpush1.bf16.msra.mxu0 %v841
    %1264 = vmatprep.subr.bf16.mxu0 %v838
    %1265 = vmatpush1.bf16.msra.mxu0 %v837
    %1266 = vmatprep.subr.bf16.mxu0 %v898
    %1267 = vmatpush2.bf16.msra.mxu0 %v897
    %1268 = vmatprep.subr.bf16.mxu0 %v894
    %1269 = vmatpush2.bf16.msra.mxu0 %v893
    %1270 = vmatprep.subr.bf16.mxu0 %v890
    %1271 = vmatpush2.bf16.msra.mxu0 %v889
    %1272 = vmatprep.subr.bf16.mxu0 %v886
    %1273 = vmatpush2.bf16.msra.mxu0 %v885
    %1274 = vmatprep.subr.bf16.mxu0 %v882
    %1275 = vmatpush2.bf16.msra.mxu0 %v881
    %1276 = vmatprep.subr.bf16.mxu0 %v878
    %1277 = vmatpush2.bf16.msra.mxu0 %v877
    %1278 = vmatprep.subr.bf16.mxu0 %v874
    %1279 = vmatpush2.bf16.msra.mxu0 %v873
    %1280 = vmatprep.subr.bf16.mxu0 %v870
    %1281 = vmatpush2.bf16.msra.mxu0 %v869
    %1282 = vmatprep.mubr.bf16.mxu0 %v1208
    %1283 = vmatmul.mubr.bf16.gmra.mxu0 %v1207
    %v1284 = vpop.f32.mrf.mxu0
    %v1285 = vadd.f32 %v634, %v1284
    %v1286 = vpop.f32.mrf.mxu0
    %v1287 = vadd.f32 %v638, %v1286
    %v1288 = vpop.f32.mrf.mxu0
    %v1289 = vpop.f32.mrf.mxu0
    %1290 = vdwg.mxu0
    %v1291 = vxor.u32 %v1244, 2147483648
    %v1292 = vmul.f32 %v1291, 1.442695
    %v1293 = vpow.pop %v1292
    %v1294 = vadd.f32 %v1293, 1.0
    %v1295 = vrcp.pop %v1294
    %v1296 = vmul.f32 1.0, %v1295
    %v1297 = vxor.u32 %v1246, 2147483648
    %v1298 = vmul.f32 %v1297, 1.442695
    %v1299 = vpow.pop %v1298
    %v1300 = vadd.f32 %v1299, 1.0
    %v1301 = vrcp.pop %v1300
    %v1302 = vmul.f32 1.0, %v1301
    %v1303 = vtanh.pop %v1285
    %v1304 = vxor.u32 %v1287, 2147483648
    %v1305 = vmul.f32 %v1304, 1.442695
    %v1306 = vpow.pop %v1305
    %v1307 = vadd.f32 %v1306, 1.0
    %v1308 = vrcp.pop %v1307
    %v1309 = vmul.f32 1.0, %v1308
    %v1310 = vmul.f32 %v1302, %v1066
    %v1311 = vmul.f32 %v1296, %v1303
    %v1312 = vadd.f32 %v1310, %v1311
    %v1313 = vtanh.pop %v1312
    %v1314 = vmul.f32 %v1309, %v1313
    %v1315 = vsel %vm1069, %v1314, 0.0
    %1316 = vadd.xlane.f32.xlu0 %v1315
    %v1317 = vpop.xlane.xlu0 %1316
    %v1318 = vmul.f32 %v1317, %v1073
    %v1319 = vsub.f32 %v1314, %v1318
    %v1320 = vmul.f32 %v1319, %v1319
    %v1321 = vsel %vm1069, %v1320, 0.0
    %1322 = vadd.xlane.f32.xlu0 %v1321
    %v1323 = vpop.xlane.xlu0 %1322
    %v1324 = vmul.f32 %v1323, %v1073
    %v1325 = vadd.f32 %v1324, 1e-05
    %v1326 = vrsqrt.pop %v1325
    %v1327 = vmul.f32 %v1319, %v1326
    %v1328 = vmul.f32 %v1327, %v1088
    %v1329 = vadd.f32 %v1328, %v1095
    %s1330 = scalar_lea.vmem %s7, 2
    %1331 = vst [vmem:[%s1330] sm:$0x3] %v1329
    %s1332 = scalar_lea.vmem %s0, 2
    %v1333 = vld [vmem:[%s1332] sm:$0x1]
    %1334 = vmatprep.subr.bf16.mxu0 %v416
    %1335 = vmatpush1.bf16.msra.mxu0 %v415
    %1336 = vmatprep.subr.bf16.mxu0 %v412
    %1337 = vmatpush1.bf16.msra.mxu0 %v411
    %1338 = vmatprep.subr.bf16.mxu0 %v408
    %1339 = vmatpush1.bf16.msra.mxu0 %v407
    %1340 = vmatprep.subr.bf16.mxu0 %v404
    %1341 = vmatpush1.bf16.msra.mxu0 %v403
    %1342 = vmatprep.subr.bf16.mxu0 %v400
    %1343 = vmatpush1.bf16.msra.mxu0 %v399
    %1344 = vmatprep.subr.bf16.mxu0 %v396
    %1345 = vmatpush1.bf16.msra.mxu0 %v395
    %1346 = vmatprep.subr.bf16.mxu0 %v392
    %1347 = vmatpush1.bf16.msra.mxu0 %v391
    %1348 = vmatprep.subr.bf16.mxu0 %v388
    %1349 = vmatpush1.bf16.msra.mxu0 %v387
    %1350 = vmatprep.subr.bf16.mxu0 %v448
    %1351 = vmatpush2.bf16.msra.mxu0 %v447
    %1352 = vmatprep.subr.bf16.mxu0 %v444
    %1353 = vmatpush2.bf16.msra.mxu0 %v443
    %1354 = vmatprep.subr.bf16.mxu0 %v440
    %1355 = vmatpush2.bf16.msra.mxu0 %v439
    %1356 = vmatprep.subr.bf16.mxu0 %v436
    %1357 = vmatpush2.bf16.msra.mxu0 %v435
    %1358 = vmatprep.subr.bf16.mxu0 %v432
    %1359 = vmatpush2.bf16.msra.mxu0 %v431
    %1360 = vmatprep.subr.bf16.mxu0 %v428
    %1361 = vmatpush2.bf16.msra.mxu0 %v427
    %1362 = vmatprep.subr.bf16.mxu0 %v424
    %1363 = vmatpush2.bf16.msra.mxu0 %v423
    %1364 = vmatprep.subr.bf16.mxu0 %v420
    %1365 = vmatpush2.bf16.msra.mxu0 %v419
    %1366 = vmatprep.mubr.bf16.mxu0 %v1207
    %1367 = vmatmul.mubr.bf16.gmra.mxu0 %v1333
    %v1368 = vpop.f32.mrf.mxu0
    %v1369 = vadd.f32 %v178, %v1368
    %v1370 = vpop.f32.mrf.mxu0
    %v1371 = vadd.f32 %v182, %v1370
    %v1372 = vpop.f32.mrf.mxu0
    %v1373 = vpop.f32.mrf.mxu0
    %1374 = vdwg.mxu0
    %1375 = vmatprep.subr.bf16.mxu0 %v418
    %1376 = vmatpush1.bf16.msra.mxu0 %v417
    %1377 = vmatprep.subr.bf16.mxu0 %v414
    %1378 = vmatpush1.bf16.msra.mxu0 %v413
    %1379 = vmatprep.subr.bf16.mxu0 %v410
    %1380 = vmatpush1.bf16.msra.mxu0 %v409
    %1381 = vmatprep.subr.bf16.mxu0 %v406
    %1382 = vmatpush1.bf16.msra.mxu0 %v405
    %1383 = vmatprep.subr.bf16.mxu0 %v402
    %1384 = vmatpush1.bf16.msra.mxu0 %v401
    %1385 = vmatprep.subr.bf16.mxu0 %v398
    %1386 = vmatpush1.bf16.msra.mxu0 %v397
    %1387 = vmatprep.subr.bf16.mxu0 %v394
    %1388 = vmatpush1.bf16.msra.mxu0 %v393
    %1389 = vmatprep.subr.bf16.mxu0 %v390
    %1390 = vmatpush1.bf16.msra.mxu0 %v389
    %1391 = vmatprep.subr.bf16.mxu0 %v450
    %1392 = vmatpush2.bf16.msra.mxu0 %v449
    %1393 = vmatprep.subr.bf16.mxu0 %v446
    %1394 = vmatpush2.bf16.msra.mxu0 %v445
    %1395 = vmatprep.subr.bf16.mxu0 %v442
    %1396 = vmatpush2.bf16.msra.mxu0 %v441
    %1397 = vmatprep.subr.bf16.mxu0 %v438
    %1398 = vmatpush2.bf16.msra.mxu0 %v437
    %1399 = vmatprep.subr.bf16.mxu0 %v434
    %1400 = vmatpush2.bf16.msra.mxu0 %v433
    %1401 = vmatprep.subr.bf16.mxu0 %v430
    %1402 = vmatpush2.bf16.msra.mxu0 %v429
    %1403 = vmatprep.subr.bf16.mxu0 %v426
    %1404 = vmatpush2.bf16.msra.mxu0 %v425
    %1405 = vmatprep.subr.bf16.mxu0 %v422
    %1406 = vmatpush2.bf16.msra.mxu0 %v421
    %1407 = vmatprep.mubr.bf16.mxu0 %v1207
    %1408 = vmatmul.mubr.bf16.gmra.mxu0 %v1333
    %v1409 = vpop.f32.mrf.mxu0
    %v1410 = vadd.f32 %v186, %v1409
    %v1411 = vpop.f32.mrf.mxu0
    %v1412 = vadd.f32 %v190, %v1411
    %v1413 = vpop.f32.mrf.mxu0
    %v1414 = vpop.f32.mrf.mxu0
    %1415 = vdwg.mxu0
    %v1416 = vxor.u32 %v1369, 2147483648
    %v1417 = vmul.f32 %v1416, 1.442695
    %v1418 = vpow.pop %v1417
    %v1419 = vadd.f32 %v1418, 1.0
    %v1420 = vrcp.pop %v1419
    %v1421 = vmul.f32 1.0, %v1420
    %v1422 = vxor.u32 %v1371, 2147483648
    %v1423 = vmul.f32 %v1422, 1.442695
    %v1424 = vpow.pop %v1423
    %v1425 = vadd.f32 %v1424, 1.0
    %v1426 = vrcp.pop %v1425
    %v1427 = vmul.f32 1.0, %v1426
    %v1428 = vtanh.pop %v1410
    %v1429 = vxor.u32 %v1412, 2147483648
    %v1430 = vmul.f32 %v1429, 1.442695
    %v1431 = vpow.pop %v1430
    %v1432 = vadd.f32 %v1431, 1.0
    %v1433 = vrcp.pop %v1432
    %v1434 = vmul.f32 1.0, %v1433
    %v1435 = vmul.f32 %v1427, %v1204
    %v1436 = vmul.f32 %v1421, %v1428
    %v1437 = vadd.f32 %v1435, %v1436
    %v1438 = vtanh.pop %v1437
    %v1439 = vmul.f32 %v1434, %v1438
    %v1440 = vpack.c.bf16 %v1439, %v1439
    %v1441 = vpack.c.bf16 %v1314, %v1314
    %1442 = vmatprep.subr.bf16.mxu0 %v864
    %1443 = vmatpush1.bf16.msra.mxu0 %v863
    %1444 = vmatprep.subr.bf16.mxu0 %v860
    %1445 = vmatpush1.bf16.msra.mxu0 %v859
    %1446 = vmatprep.subr.bf16.mxu0 %v856
    %1447 = vmatpush1.bf16.msra.mxu0 %v855
    %1448 = vmatprep.subr.bf16.mxu0 %v852
    %1449 = vmatpush1.bf16.msra.mxu0 %v851
    %1450 = vmatprep.subr.bf16.mxu0 %v848
    %1451 = vmatpush1.bf16.msra.mxu0 %v847
    %1452 = vmatprep.subr.bf16.mxu0 %v844
    %1453 = vmatpush1.bf16.msra.mxu0 %v843
    %1454 = vmatprep.subr.bf16.mxu0 %v840
    %1455 = vmatpush1.bf16.msra.mxu0 %v839
    %1456 = vmatprep.subr.bf16.mxu0 %v836
    %1457 = vmatpush1.bf16.msra.mxu0 %v835
    %1458 = vmatprep.subr.bf16.mxu0 %v896
    %1459 = vmatpush2.bf16.msra.mxu0 %v895
    %1460 = vmatprep.subr.bf16.mxu0 %v892
    %1461 = vmatpush2.bf16.msra.mxu0 %v891
    %1462 = vmatprep.subr.bf16.mxu0 %v888
    %1463 = vmatpush2.bf16.msra.mxu0 %v887
    %1464 = vmatprep.subr.bf16.mxu0 %v884
    %1465 = vmatpush2.bf16.msra.mxu0 %v883
    %1466 = vmatprep.subr.bf16.mxu0 %v880
    %1467 = vmatpush2.bf16.msra.mxu0 %v879
    %1468 = vmatprep.subr.bf16.mxu0 %v876
    %1469 = vmatpush2.bf16.msra.mxu0 %v875
    %1470 = vmatprep.subr.bf16.mxu0 %v872
    %1471 = vmatpush2.bf16.msra.mxu0 %v871
    %1472 = vmatprep.subr.bf16.mxu0 %v868
    %1473 = vmatpush2.bf16.msra.mxu0 %v867
    %1474 = vmatprep.mubr.bf16.mxu0 %v1441
    %1475 = vmatmul.mubr.bf16.gmra.mxu0 %v1440
    %v1476 = vpop.f32.mrf.mxu0
    %v1477 = vadd.f32 %v626, %v1476
    %v1478 = vpop.f32.mrf.mxu0
    %v1479 = vadd.f32 %v630, %v1478
    %v1480 = vpop.f32.mrf.mxu0
    %v1481 = vpop.f32.mrf.mxu0
    %1482 = vdwg.mxu0
    %1483 = vmatprep.subr.bf16.mxu0 %v866
    %1484 = vmatpush1.bf16.msra.mxu0 %v865
    %1485 = vmatprep.subr.bf16.mxu0 %v862
    %1486 = vmatpush1.bf16.msra.mxu0 %v861
    %1487 = vmatprep.subr.bf16.mxu0 %v858
    %1488 = vmatpush1.bf16.msra.mxu0 %v857
    %1489 = vmatprep.subr.bf16.mxu0 %v854
    %1490 = vmatpush1.bf16.msra.mxu0 %v853
    %1491 = vmatprep.subr.bf16.mxu0 %v850
    %1492 = vmatpush1.bf16.msra.mxu0 %v849
    %1493 = vmatprep.subr.bf16.mxu0 %v846
    %1494 = vmatpush1.bf16.msra.mxu0 %v845
    %1495 = vmatprep.subr.bf16.mxu0 %v842
    %1496 = vmatpush1.bf16.msra.mxu0 %v841
    %1497 = vmatprep.subr.bf16.mxu0 %v838
    %1498 = vmatpush1.bf16.msra.mxu0 %v837
    %1499 = vmatprep.subr.bf16.mxu0 %v898
    %1500 = vmatpush2.bf16.msra.mxu0 %v897
    %1501 = vmatprep.subr.bf16.mxu0 %v894
    %1502 = vmatpush2.bf16.msra.mxu0 %v893
    %1503 = vmatprep.subr.bf16.mxu0 %v890
    %1504 = vmatpush2.bf16.msra.mxu0 %v889
    %1505 = vmatprep.subr.bf16.mxu0 %v886
    %1506 = vmatpush2.bf16.msra.mxu0 %v885
    %1507 = vmatprep.subr.bf16.mxu0 %v882
    %1508 = vmatpush2.bf16.msra.mxu0 %v881
    %1509 = vmatprep.subr.bf16.mxu0 %v878
    %1510 = vmatpush2.bf16.msra.mxu0 %v877
    %1511 = vmatprep.subr.bf16.mxu0 %v874
    %1512 = vmatpush2.bf16.msra.mxu0 %v873
    %1513 = vmatprep.subr.bf16.mxu0 %v870
    %1514 = vmatpush2.bf16.msra.mxu0 %v869
    %1515 = vmatprep.mubr.bf16.mxu0 %v1441
    %1516 = vmatmul.mubr.bf16.gmra.mxu0 %v1440
    %v1517 = vpop.f32.mrf.mxu0
    %v1518 = vadd.f32 %v634, %v1517
    %v1519 = vpop.f32.mrf.mxu0
    %v1520 = vadd.f32 %v638, %v1519
    %v1521 = vpop.f32.mrf.mxu0
    %v1522 = vpop.f32.mrf.mxu0
    %1523 = vdwg.mxu0
    %v1524 = vxor.u32 %v1477, 2147483648
    %v1525 = vmul.f32 %v1524, 1.442695
    %v1526 = vpow.pop %v1525
    %v1527 = vadd.f32 %v1526, 1.0
    %v1528 = vrcp.pop %v1527
    %v1529 = vmul.f32 1.0, %v1528
    %v1530 = vxor.u32 %v1479, 2147483648
    %v1531 = vmul.f32 %v1530, 1.442695
    %v1532 = vpow.pop %v1531
    %v1533 = vadd.f32 %v1532, 1.0
    %v1534 = vrcp.pop %v1533
    %v1535 = vmul.f32 1.0, %v1534
    %v1536 = vtanh.pop %v1518
    %v1537 = vxor.u32 %v1520, 2147483648
    %v1538 = vmul.f32 %v1537, 1.442695
    %v1539 = vpow.pop %v1538
    %v1540 = vadd.f32 %v1539, 1.0
    %v1541 = vrcp.pop %v1540
    %v1542 = vmul.f32 1.0, %v1541
    %v1543 = vmul.f32 %v1535, %v1312
    %v1544 = vmul.f32 %v1529, %v1536
    %v1545 = vadd.f32 %v1543, %v1544
    %v1546 = vtanh.pop %v1545
    %v1547 = vmul.f32 %v1542, %v1546
    %v1548 = vsel %vm1069, %v1547, 0.0
    %1549 = vadd.xlane.f32.xlu0 %v1548
    %v1550 = vpop.xlane.xlu0 %1549
    %v1551 = vmul.f32 %v1550, %v1073
    %v1552 = vsub.f32 %v1547, %v1551
    %v1553 = vmul.f32 %v1552, %v1552
    %v1554 = vsel %vm1069, %v1553, 0.0
    %1555 = vadd.xlane.f32.xlu0 %v1554
    %v1556 = vpop.xlane.xlu0 %1555
    %v1557 = vmul.f32 %v1556, %v1073
    %v1558 = vadd.f32 %v1557, 1e-05
    %v1559 = vrsqrt.pop %v1558
    %v1560 = vmul.f32 %v1552, %v1559
    %v1561 = vmul.f32 %v1560, %v1088
    %v1562 = vadd.f32 %v1561, %v1095
    %s1563 = scalar_lea.vmem %s7, 4
    %1564 = vst [vmem:[%s1563] sm:$0x3] %v1562
    %s1565 = scalar_lea.vmem %s0, 3
    %v1566 = vld [vmem:[%s1565] sm:$0x1]
    %1567 = vmatprep.subr.bf16.mxu0 %v416
    %1568 = vmatpush1.bf16.msra.mxu0 %v415
    %1569 = vmatprep.subr.bf16.mxu0 %v412
    %1570 = vmatpush1.bf16.msra.mxu0 %v411
    %1571 = vmatprep.subr.bf16.mxu0 %v408
    %1572 = vmatpush1.bf16.msra.mxu0 %v407
    %1573 = vmatprep.subr.bf16.mxu0 %v404
    %1574 = vmatpush1.bf16.msra.mxu0 %v403
    %1575 = vmatprep.subr.bf16.mxu0 %v400
    %1576 = vmatpush1.bf16.msra.mxu0 %v399
    %1577 = vmatprep.subr.bf16.mxu0 %v396
    %1578 = vmatpush1.bf16.msra.mxu0 %v395
    %1579 = vmatprep.subr.bf16.mxu0 %v392
    %1580 = vmatpush1.bf16.msra.mxu0 %v391
    %1581 = vmatprep.subr.bf16.mxu0 %v388
    %1582 = vmatpush1.bf16.msra.mxu0 %v387
    %1583 = vmatprep.subr.bf16.mxu0 %v448
    %1584 = vmatpush2.bf16.msra.mxu0 %v447
    %1585 = vmatprep.subr.bf16.mxu0 %v444
    %1586 = vmatpush2.bf16.msra.mxu0 %v443
    %1587 = vmatprep.subr.bf16.mxu0 %v440
    %1588 = vmatpush2.bf16.msra.mxu0 %v439
    %1589 = vmatprep.subr.bf16.mxu0 %v436
    %1590 = vmatpush2.bf16.msra.mxu0 %v435
    %1591 = vmatprep.subr.bf16.mxu0 %v432
    %1592 = vmatpush2.bf16.msra.mxu0 %v431
    %1593 = vmatprep.subr.bf16.mxu0 %v428
    %1594 = vmatpush2.bf16.msra.mxu0 %v427
    %1595 = vmatprep.subr.bf16.mxu0 %v424
    %1596 = vmatpush2.bf16.msra.mxu0 %v423
    %1597 = vmatprep.subr.bf16.mxu0 %v420
    %1598 = vmatpush2.bf16.msra.mxu0 %v419
    %1599 = vmatprep.mubr.bf16.mxu0 %v1440
    %1600 = vmatmul.mubr.bf16.gmra.mxu0 %v1566
    %v1601 = vpop.f32.mrf.mxu0
    %v1602 = vadd.f32 %v178, %v1601
    %v1603 = vpop.f32.mrf.mxu0
    %v1604 = vadd.f32 %v182, %v1603
    %v1605 = vpop.f32.mrf.mxu0
    %v1606 = vpop.f32.mrf.mxu0
    %1607 = vdwg.mxu0
    %1608 = vmatprep.subr.bf16.mxu0 %v418
    %1609 = vmatpush1.bf16.msra.mxu0 %v417
    %1610 = vmatprep.subr.bf16.mxu0 %v414
    %1611 = vmatpush1.bf16.msra.mxu0 %v413
    %1612 = vmatprep.subr.bf16.mxu0 %v410
    %1613 = vmatpush1.bf16.msra.mxu0 %v409
    %1614 = vmatprep.subr.bf16.mxu0 %v406
    %1615 = vmatpush1.bf16.msra.mxu0 %v405
    %1616 = vmatprep.subr.bf16.mxu0 %v402
    %1617 = vmatpush1.bf16.msra.mxu0 %v401
    %1618 = vmatprep.subr.bf16.mxu0 %v398
    %1619 = vmatpush1.bf16.msra.mxu0 %v397
    %1620 = vmatprep.subr.bf16.mxu0 %v394
    %1621 = vmatpush1.bf16.msra.mxu0 %v393
    %1622 = vmatprep.subr.bf16.mxu0 %v390
    %1623 = vmatpush1.bf16.msra.mxu0 %v389
    %1624 = vmatprep.subr.bf16.mxu0 %v450
    %1625 = vmatpush2.bf16.msra.mxu0 %v449
    %1626 = vmatprep.subr.bf16.mxu0 %v446
    %1627 = vmatpush2.bf16.msra.mxu0 %v445
    %1628 = vmatprep.subr.bf16.mxu0 %v442
    %1629 = vmatpush2.bf16.msra.mxu0 %v441
    %1630 = vmatprep.subr.bf16.mxu0 %v438
    %1631 = vmatpush2.bf16.msra.mxu0 %v437
    %1632 = vmatprep.subr.bf16.mxu0 %v434
    %1633 = vmatpush2.bf16.msra.mxu0 %v433
    %1634 = vmatprep.subr.bf16.mxu0 %v430
    %1635 = vmatpush2.bf16.msra.mxu0 %v429
    %1636 = vmatprep.subr.bf16.mxu0 %v426
    %1637 = vmatpush2.bf16.msra.mxu0 %v425
    %1638 = vmatprep.subr.bf16.mxu0 %v422
    %1639 = vmatpush2.bf16.msra.mxu0 %v421
    %1640 = vmatprep.mubr.bf16.mxu0 %v1440
    %1641 = vmatmul.mubr.bf16.gmra.mxu0 %v1566
    %v1642 = vpop.f32.mrf.mxu0
    %v1643 = vadd.f32 %v186, %v1642
    %v1644 = vpop.f32.mrf.mxu0
    %v1645 = vadd.f32 %v190, %v1644
    %v1646 = vpop.f32.mrf.mxu0
    %v1647 = vpop.f32.mrf.mxu0
    %1648 = vdwg.mxu0
    %v1649 = vxor.u32 %v1602, 2147483648
    %v1650 = vmul.f32 %v1649, 1.442695
    %v1651 = vpow.pop %v1650
    %v1652 = vadd.f32 %v1651, 1.0
    %v1653 = vrcp.pop %v1652
    %v1654 = vmul.f32 1.0, %v1653
    %v1655 = vxor.u32 %v1604, 2147483648
    %v1656 = vmul.f32 %v1655, 1.442695
    %v1657 = vpow.pop %v1656
    %v1658 = vadd.f32 %v1657, 1.0
    %v1659 = vrcp.pop %v1658
    %v1660 = vmul.f32 1.0, %v1659
    %v1661 = vtanh.pop %v1643
    %v1662 = vxor.u32 %v1645, 2147483648
    %v1663 = vmul.f32 %v1662, 1.442695
    %v1664 = vpow.pop %v1663
    %v1665 = vadd.f32 %v1664, 1.0
    %v1666 = vrcp.pop %v1665
    %v1667 = vmul.f32 1.0, %v1666
    %v1668 = vmul.f32 %v1660, %v1437
    %v1669 = vmul.f32 %v1654, %v1661
    %v1670 = vadd.f32 %v1668, %v1669
    %v1671 = vtanh.pop %v1670
    %v1672 = vmul.f32 %v1667, %v1671
    %v1673 = vpack.c.bf16 %v1672, %v1672
    %v1674 = vpack.c.bf16 %v1547, %v1547
    %1675 = vmatprep.subr.bf16.mxu0 %v864
    %1676 = vmatpush1.bf16.msra.mxu0 %v863
    %1677 = vmatprep.subr.bf16.mxu0 %v860
    %1678 = vmatpush1.bf16.msra.mxu0 %v859
    %1679 = vmatprep.subr.bf16.mxu0 %v856
    %1680 = vmatpush1.bf16.msra.mxu0 %v855
    %1681 = vmatprep.subr.bf16.mxu0 %v852
    %1682 = vmatpush1.bf16.msra.mxu0 %v851
    %1683 = vmatprep.subr.bf16.mxu0 %v848
    %1684 = vmatpush1.bf16.msra.mxu0 %v847
    %1685 = vmatprep.subr.bf16.mxu0 %v844
    %1686 = vmatpush1.bf16.msra.mxu0 %v843
    %1687 = vmatprep.subr.bf16.mxu0 %v840
    %1688 = vmatpush1.bf16.msra.mxu0 %v839
    %1689 = vmatprep.subr.bf16.mxu0 %v836
    %1690 = vmatpush1.bf16.msra.mxu0 %v835
    %1691 = vmatprep.subr.bf16.mxu0 %v896
    %1692 = vmatpush2.bf16.msra.mxu0 %v895
    %1693 = vmatprep.subr.bf16.mxu0 %v892
    %1694 = vmatpush2.bf16.msra.mxu0 %v891
    %1695 = vmatprep.subr.bf16.mxu0 %v888
    %1696 = vmatpush2.bf16.msra.mxu0 %v887
    %1697 = vmatprep.subr.bf16.mxu0 %v884
    %1698 = vmatpush2.bf16.msra.mxu0 %v883
    %1699 = vmatprep.subr.bf16.mxu0 %v880
    %1700 = vmatpush2.bf16.msra.mxu0 %v879
    %1701 = vmatprep.subr.bf16.mxu0 %v876
    %1702 = vmatpush2.bf16.msra.mxu0 %v875
    %1703 = vmatprep.subr.bf16.mxu0 %v872
    %1704 = vmatpush2.bf16.msra.mxu0 %v871
    %1705 = vmatprep.subr.bf16.mxu0 %v868
    %1706 = vmatpush2.bf16.msra.mxu0 %v867
    %1707 = vmatprep.mubr.bf16.mxu0 %v1674
    %1708 = vmatmul.mubr.bf16.gmra.mxu0 %v1673
    %v1709 = vpop.f32.mrf.mxu0
    %v1710 = vadd.f32 %v626, %v1709
    %v1711 = vpop.f32.mrf.mxu0
    %v1712 = vadd.f32 %v630, %v1711
    %v1713 = vpop.f32.mrf.mxu0
    %v1714 = vpop.f32.mrf.mxu0
    %1715 = vdwg.mxu0
    %1716 = vmatprep.subr.bf16.mxu0 %v866
    %1717 = vmatpush1.bf16.msra.mxu0 %v865
    %1718 = vmatprep.subr.bf16.mxu0 %v862
    %1719 = vmatpush1.bf16.msra.mxu0 %v861
    %1720 = vmatprep.subr.bf16.mxu0 %v858
    %1721 = vmatpush1.bf16.msra.mxu0 %v857
    %1722 = vmatprep.subr.bf16.mxu0 %v854
    %1723 = vmatpush1.bf16.msra.mxu0 %v853
    %1724 = vmatprep.subr.bf16.mxu0 %v850
    %1725 = vmatpush1.bf16.msra.mxu0 %v849
    %1726 = vmatprep.subr.bf16.mxu0 %v846
    %1727 = vmatpush1.bf16.msra.mxu0 %v845
    %1728 = vmatprep.subr.bf16.mxu0 %v842
    %1729 = vmatpush1.bf16.msra.mxu0 %v841
    %1730 = vmatprep.subr.bf16.mxu0 %v838
    %1731 = vmatpush1.bf16.msra.mxu0 %v837
    %1732 = vmatprep.subr.bf16.mxu0 %v898
    %1733 = vmatpush2.bf16.msra.mxu0 %v897
    %1734 = vmatprep.subr.bf16.mxu0 %v894
    %1735 = vmatpush2.bf16.msra.mxu0 %v893
    %1736 = vmatprep.subr.bf16.mxu0 %v890
    %1737 = vmatpush2.bf16.msra.mxu0 %v889
    %1738 = vmatprep.subr.bf16.mxu0 %v886
    %1739 = vmatpush2.bf16.msra.mxu0 %v885
    %1740 = vmatprep.subr.bf16.mxu0 %v882
    %1741 = vmatpush2.bf16.msra.mxu0 %v881
    %1742 = vmatprep.subr.bf16.mxu0 %v878
    %1743 = vmatpush2.bf16.msra.mxu0 %v877
    %1744 = vmatprep.subr.bf16.mxu0 %v874
    %1745 = vmatpush2.bf16.msra.mxu0 %v873
    %1746 = vmatprep.subr.bf16.mxu0 %v870
    %1747 = vmatpush2.bf16.msra.mxu0 %v869
    %1748 = vmatprep.mubr.bf16.mxu0 %v1674
    %1749 = vmatmul.mubr.bf16.gmra.mxu0 %v1673
    %v1750 = vpop.f32.mrf.mxu0
    %v1751 = vadd.f32 %v634, %v1750
    %v1752 = vpop.f32.mrf.mxu0
    %v1753 = vadd.f32 %v638, %v1752
    %v1754 = vpop.f32.mrf.mxu0
    %v1755 = vpop.f32.mrf.mxu0
    %1756 = vdwg.mxu0
    %v1757 = vxor.u32 %v1710, 2147483648
    %v1758 = vmul.f32 %v1757, 1.442695
    %v1759 = vpow.pop %v1758
    %v1760 = vadd.f32 %v1759, 1.0
    %v1761 = vrcp.pop %v1760
    %v1762 = vmul.f32 1.0, %v1761
    %v1763 = vxor.u32 %v1712, 2147483648
    %v1764 = vmul.f32 %v1763, 1.442695
    %v1765 = vpow.pop %v1764
    %v1766 = vadd.f32 %v1765, 1.0
    %v1767 = vrcp.pop %v1766
    %v1768 = vmul.f32 1.0, %v1767
    %v1769 = vtanh.pop %v1751
    %v1770 = vxor.u32 %v1753, 2147483648
    %v1771 = vmul.f32 %v1770, 1.442695
    %v1772 = vpow.pop %v1771
    %v1773 = vadd.f32 %v1772, 1.0
    %v1774 = vrcp.pop %v1773
    %v1775 = vmul.f32 1.0, %v1774
    %v1776 = vmul.f32 %v1768, %v1545
    %v1777 = vmul.f32 %v1762, %v1769
    %v1778 = vadd.f32 %v1776, %v1777
    %v1779 = vtanh.pop %v1778
    %v1780 = vmul.f32 %v1775, %v1779
    %v1781 = vsel %vm1069, %v1780, 0.0
    %1782 = vadd.xlane.f32.xlu0 %v1781
    %v1783 = vpop.xlane.xlu0 %1782
    %v1784 = vmul.f32 %v1783, %v1073
    %v1785 = vsub.f32 %v1780, %v1784
    %v1786 = vmul.f32 %v1785, %v1785
    %v1787 = vsel %vm1069, %v1786, 0.0
    %1788 = vadd.xlane.f32.xlu0 %v1787
    %v1789 = vpop.xlane.xlu0 %1788
    %v1790 = vmul.f32 %v1789, %v1073
    %v1791 = vadd.f32 %v1790, 1e-05
    %v1792 = vrsqrt.pop %v1791
    %v1793 = vmul.f32 %v1785, %v1792
    %v1794 = vmul.f32 %v1793, %v1088
    %v1795 = vadd.f32 %v1794, %v1095
    %s1796 = scalar_lea.vmem %s7, 6
    %1797 = vst [vmem:[%s1796] sm:$0x3] %v1795
    %s1798 = scalar_lea.vmem %s0, 4
    %v1799 = vld [vmem:[%s1798] sm:$0x1]
    %1800 = vmatprep.subr.bf16.mxu0 %v416
    %1801 = vmatpush1.bf16.msra.mxu0 %v415
    %1802 = vmatprep.subr.bf16.mxu0 %v412
    %1803 = vmatpush1.bf16.msra.mxu0 %v411
    %1804 = vmatprep.subr.bf16.mxu0 %v408
    %1805 = vmatpush1.bf16.msra.mxu0 %v407
    %1806 = vmatprep.subr.bf16.mxu0 %v404
    %1807 = vmatpush1.bf16.msra.mxu0 %v403
    %1808 = vmatprep.subr.bf16.mxu0 %v400
    %1809 = vmatpush1.bf16.msra.mxu0 %v399
    %1810 = vmatprep.subr.bf16.mxu0 %v396
    %1811 = vmatpush1.bf16.msra.mxu0 %v395
    %1812 = vmatprep.subr.bf16.mxu0 %v392
    %1813 = vmatpush1.bf16.msra.mxu0 %v391
    %1814 = vmatprep.subr.bf16.mxu0 %v388
    %1815 = vmatpush1.bf16.msra.mxu0 %v387
    %1816 = vmatprep.subr.bf16.mxu0 %v448
    %1817 = vmatpush2.bf16.msra.mxu0 %v447
    %1818 = vmatprep.subr.bf16.mxu0 %v444
    %1819 = vmatpush2.bf16.msra.mxu0 %v443
    %1820 = vmatprep.subr.bf16.mxu0 %v440
    %1821 = vmatpush2.bf16.msra.mxu0 %v439
    %1822 = vmatprep.subr.bf16.mxu0 %v436
    %1823 = vmatpush2.bf16.msra.mxu0 %v435
    %1824 = vmatprep.subr.bf16.mxu0 %v432
    %1825 = vmatpush2.bf16.msra.mxu0 %v431
    %1826 = vmatprep.subr.bf16.mxu0 %v428
    %1827 = vmatpush2.bf16.msra.mxu0 %v427
    %1828 = vmatprep.subr.bf16.mxu0 %v424
    %1829 = vmatpush2.bf16.msra.mxu0 %v423
    %1830 = vmatprep.subr.bf16.mxu0 %v420
    %1831 = vmatpush2.bf16.msra.mxu0 %v419
    %1832 = vmatprep.mubr.bf16.mxu0 %v1673
    %1833 = vmatmul.mubr.bf16.gmra.mxu0 %v1799
    %v1834 = vpop.f32.mrf.mxu0
    %v1835 = vadd.f32 %v178, %v1834
    %v1836 = vpop.f32.mrf.mxu0
    %v1837 = vadd.f32 %v182, %v1836
    %v1838 = vpop.f32.mrf.mxu0
    %v1839 = vpop.f32.mrf.mxu0
    %1840 = vdwg.mxu0
    %1841 = vmatprep.subr.bf16.mxu0 %v418
    %1842 = vmatpush1.bf16.msra.mxu0 %v417
    %1843 = vmatprep.subr.bf16.mxu0 %v414
    %1844 = vmatpush1.bf16.msra.mxu0 %v413
    %1845 = vmatprep.subr.bf16.mxu0 %v410
    %1846 = vmatpush1.bf16.msra.mxu0 %v409
    %1847 = vmatprep.subr.bf16.mxu0 %v406
    %1848 = vmatpush1.bf16.msra.mxu0 %v405
    %1849 = vmatprep.subr.bf16.mxu0 %v402
    %1850 = vmatpush1.bf16.msra.mxu0 %v401
    %1851 = vmatprep.subr.bf16.mxu0 %v398
    %1852 = vmatpush1.bf16.msra.mxu0 %v397
    %1853 = vmatprep.subr.bf16.mxu0 %v394
    %1854 = vmatpush1.bf16.msra.mxu0 %v393
    %1855 = vmatprep.subr.bf16.mxu0 %v390
    %1856 = vmatpush1.bf16.msra.mxu0 %v389
    %1857 = vmatprep.subr.bf16.mxu0 %v450
    %1858 = vmatpush2.bf16.msra.mxu0 %v449
    %1859 = vmatprep.subr.bf16.mxu0 %v446
    %1860 = vmatpush2.bf16.msra.mxu0 %v445
    %1861 = vmatprep.subr.bf16.mxu0 %v442
    %1862 = vmatpush2.bf16.msra.mxu0 %v441
    %1863 = vmatprep.subr.bf16.mxu0 %v438
    %1864 = vmatpush2.bf16.msra.mxu0 %v437
    %1865 = vmatprep.subr.bf16.mxu0 %v434
    %1866 = vmatpush2.bf16.msra.mxu0 %v433
    %1867 = vmatprep.subr.bf16.mxu0 %v430
    %1868 = vmatpush2.bf16.msra.mxu0 %v429
    %1869 = vmatprep.subr.bf16.mxu0 %v426
    %1870 = vmatpush2.bf16.msra.mxu0 %v425
    %1871 = vmatprep.subr.bf16.mxu0 %v422
    %1872 = vmatpush2.bf16.msra.mxu0 %v421
    %1873 = vmatprep.mubr.bf16.mxu0 %v1673
    %1874 = vmatmul.mubr.bf16.gmra.mxu0 %v1799
    %v1875 = vpop.f32.mrf.mxu0
    %v1876 = vadd.f32 %v186, %v1875
    %v1877 = vpop.f32.mrf.mxu0
    %v1878 = vadd.f32 %v190, %v1877
    %v1879 = vpop.f32.mrf.mxu0
    %v1880 = vpop.f32.mrf.mxu0
    %1881 = vdwg.mxu0
    %v1882 = vxor.u32 %v1835, 2147483648
    %v1883 = vmul.f32 %v1882, 1.442695
    %v1884 = vpow.pop %v1883
    %v1885 = vadd.f32 %v1884, 1.0
    %v1886 = vrcp.pop %v1885
    %v1887 = vmul.f32 1.0, %v1886
    %v1888 = vxor.u32 %v1837, 2147483648
    %v1889 = vmul.f32 %v1888, 1.442695
    %v1890 = vpow.pop %v1889
    %v1891 = vadd.f32 %v1890, 1.0
    %v1892 = vrcp.pop %v1891
    %v1893 = vmul.f32 1.0, %v1892
    %v1894 = vtanh.pop %v1876
    %v1895 = vxor.u32 %v1878, 2147483648
    %v1896 = vmul.f32 %v1895, 1.442695
    %v1897 = vpow.pop %v1896
    %v1898 = vadd.f32 %v1897, 1.0
    %v1899 = vrcp.pop %v1898
    %v1900 = vmul.f32 1.0, %v1899
    %v1901 = vmul.f32 %v1893, %v1670
    %v1902 = vmul.f32 %v1887, %v1894
    %v1903 = vadd.f32 %v1901, %v1902
    %v1904 = vtanh.pop %v1903
    %v1905 = vmul.f32 %v1900, %v1904
    %v1906 = vpack.c.bf16 %v1905, %v1905
    %v1907 = vpack.c.bf16 %v1780, %v1780
    %1908 = vmatprep.subr.bf16.mxu0 %v864
    %1909 = vmatpush1.bf16.msra.mxu0 %v863
    %1910 = vmatprep.subr.bf16.mxu0 %v860
    %1911 = vmatpush1.bf16.msra.mxu0 %v859
    %1912 = vmatprep.subr.bf16.mxu0 %v856
    %1913 = vmatpush1.bf16.msra.mxu0 %v855
    %1914 = vmatprep.subr.bf16.mxu0 %v852
    %1915 = vmatpush1.bf16.msra.mxu0 %v851
    %1916 = vmatprep.subr.bf16.mxu0 %v848
    %1917 = vmatpush1.bf16.msra.mxu0 %v847
    %1918 = vmatprep.subr.bf16.mxu0 %v844
    %1919 = vmatpush1.bf16.msra.mxu0 %v843
    %1920 = vmatprep.subr.bf16.mxu0 %v840
    %1921 = vmatpush1.bf16.msra.mxu0 %v839
    %1922 = vmatprep.subr.bf16.mxu0 %v836
    %1923 = vmatpush1.bf16.msra.mxu0 %v835
    %1924 = vmatprep.subr.bf16.mxu0 %v896
    %1925 = vmatpush2.bf16.msra.mxu0 %v895
    %1926 = vmatprep.subr.bf16.mxu0 %v892
    %1927 = vmatpush2.bf16.msra.mxu0 %v891
    %1928 = vmatprep.subr.bf16.mxu0 %v888
    %1929 = vmatpush2.bf16.msra.mxu0 %v887
    %1930 = vmatprep.subr.bf16.mxu0 %v884
    %1931 = vmatpush2.bf16.msra.mxu0 %v883
    %1932 = vmatprep.subr.bf16.mxu0 %v880
    %1933 = vmatpush2.bf16.msra.mxu0 %v879
    %1934 = vmatprep.subr.bf16.mxu0 %v876
    %1935 = vmatpush2.bf16.msra.mxu0 %v875
    %1936 = vmatprep.subr.bf16.mxu0 %v872
    %1937 = vmatpush2.bf16.msra.mxu0 %v871
    %1938 = vmatprep.subr.bf16.mxu0 %v868
    %1939 = vmatpush2.bf16.msra.mxu0 %v867
    %1940 = vmatprep.mubr.bf16.mxu0 %v1907
    %1941 = vmatmul.mubr.bf16.gmra.mxu0 %v1906
    %v1942 = vpop.f32.mrf.mxu0
    %v1943 = vadd.f32 %v626, %v1942
    %v1944 = vpop.f32.mrf.mxu0
    %v1945 = vadd.f32 %v630, %v1944
    %v1946 = vpop.f32.mrf.mxu0
    %v1947 = vpop.f32.mrf.mxu0
    %1948 = vdwg.mxu0
    %1949 = vmatprep.subr.bf16.mxu0 %v866
    %1950 = vmatpush1.bf16.msra.mxu0 %v865
    %1951 = vmatprep.subr.bf16.mxu0 %v862
    %1952 = vmatpush1.bf16.msra.mxu0 %v861
    %1953 = vmatprep.subr.bf16.mxu0 %v858
    %1954 = vmatpush1.bf16.msra.mxu0 %v857
    %1955 = vmatprep.subr.bf16.mxu0 %v854
    %1956 = vmatpush1.bf16.msra.mxu0 %v853
    %1957 = vmatprep.subr.bf16.mxu0 %v850
    %1958 = vmatpush1.bf16.msra.mxu0 %v849
    %1959 = vmatprep.subr.bf16.mxu0 %v846
    %1960 = vmatpush1.bf16.msra.mxu0 %v845
    %1961 = vmatprep.subr.bf16.mxu0 %v842
    %1962 = vmatpush1.bf16.msra.mxu0 %v841
    %1963 = vmatprep.subr.bf16.mxu0 %v838
    %1964 = vmatpush1.bf16.msra.mxu0 %v837
    %1965 = vmatprep.subr.bf16.mxu0 %v898
    %1966 = vmatpush2.bf16.msra.mxu0 %v897
    %1967 = vmatprep.subr.bf16.mxu0 %v894
    %1968 = vmatpush2.bf16.msra.mxu0 %v893
    %1969 = vmatprep.subr.bf16.mxu0 %v890
    %1970 = vmatpush2.bf16.msra.mxu0 %v889
    %1971 = vmatprep.subr.bf16.mxu0 %v886
    %1972 = vmatpush2.bf16.msra.mxu0 %v885
    %1973 = vmatprep.subr.bf16.mxu0 %v882
    %1974 = vmatpush2.bf16.msra.mxu0 %v881
    %1975 = vmatprep.subr.bf16.mxu0 %v878
    %1976 = vmatpush2.bf16.msra.mxu0 %v877
    %1977 = vmatprep.subr.bf16.mxu0 %v874
    %1978 = vmatpush2.bf16.msra.mxu0 %v873
    %1979 = vmatprep.subr.bf16.mxu0 %v870
    %1980 = vmatpush2.bf16.msra.mxu0 %v869
    %1981 = vmatprep.mubr.bf16.mxu0 %v1907
    %1982 = vmatmul.mubr.bf16.gmra.mxu0 %v1906
    %v1983 = vpop.f32.mrf.mxu0
    %v1984 = vadd.f32 %v634, %v1983
    %v1985 = vpop.f32.mrf.mxu0
    %v1986 = vadd.f32 %v638, %v1985
    %v1987 = vpop.f32.mrf.mxu0
    %v1988 = vpop.f32.mrf.mxu0
    %1989 = vdwg.mxu0
    %v1990 = vxor.u32 %v1943, 2147483648
    %v1991 = vmul.f32 %v1990, 1.442695
    %v1992 = vpow.pop %v1991
    %v1993 = vadd.f32 %v1992, 1.0
    %v1994 = vrcp.pop %v1993
    %v1995 = vmul.f32 1.0, %v1994
    %v1996 = vxor.u32 %v1945, 2147483648
    %v1997 = vmul.f32 %v1996, 1.442695
    %v1998 = vpow.pop %v1997
    %v1999 = vadd.f32 %v1998, 1.0
    %v2000 = vrcp.pop %v1999
    %v2001 = vmul.f32 1.0, %v2000
    %v2002 = vtanh.pop %v1984
    %v2003 = vxor.u32 %v1986, 2147483648
    %v2004 = vmul.f32 %v2003, 1.442695
    %v2005 = vpow.pop %v2004
    %v2006 = vadd.f32 %v2005, 1.0
    %v2007 = vrcp.pop %v2006
    %v2008 = vmul.f32 1.0, %v2007
    %v2009 = vmul.f32 %v2001, %v1778
    %v2010 = vmul.f32 %v1995, %v2002
    %v2011 = vadd.f32 %v2009, %v2010
    %v2012 = vtanh.pop %v2011
    %v2013 = vmul.f32 %v2008, %v2012
    %v2014 = vsel %vm1069, %v2013, 0.0
    %2015 = vadd.xlane.f32.xlu0 %v2014
    %v2016 = vpop.xlane.xlu0 %2015
    %v2017 = vmul.f32 %v2016, %v1073
    %v2018 = vsub.f32 %v2013, %v2017
    %v2019 = vmul.f32 %v2018, %v2018
    %v2020 = vsel %vm1069, %v2019, 0.0
    %2021 = vadd.xlane.f32.xlu0 %v2020
    %v2022 = vpop.xlane.xlu0 %2021
    %v2023 = vmul.f32 %v2022, %v1073
    %v2024 = vadd.f32 %v2023, 1e-05
    %v2025 = vrsqrt.pop %v2024
    %v2026 = vmul.f32 %v2018, %v2025
    %v2027 = vmul.f32 %v2026, %v1088
    %v2028 = vadd.f32 %v2027, %v1095
    %s2029 = scalar_lea.vmem %s7, 8
    %2030 = vst [vmem:[%s2029] sm:$0x3] %v2028
    %s2031 = scalar_lea.vmem %s0, 5
    %v2032 = vld [vmem:[%s2031] sm:$0x1]
    %2033 = vmatprep.subr.bf16.mxu0 %v416
    %2034 = vmatpush1.bf16.msra.mxu0 %v415
    %2035 = vmatprep.subr.bf16.mxu0 %v412
    %2036 = vmatpush1.bf16.msra.mxu0 %v411
    %2037 = vmatprep.subr.bf16.mxu0 %v408
    %2038 = vmatpush1.bf16.msra.mxu0 %v407
    %2039 = vmatprep.subr.bf16.mxu0 %v404
    %2040 = vmatpush1.bf16.msra.mxu0 %v403
    %2041 = vmatprep.subr.bf16.mxu0 %v400
    %2042 = vmatpush1.bf16.msra.mxu0 %v399
    %2043 = vmatprep.subr.bf16.mxu0 %v396
    %2044 = vmatpush1.bf16.msra.mxu0 %v395
    %2045 = vmatprep.subr.bf16.mxu0 %v392
    %2046 = vmatpush1.bf16.msra.mxu0 %v391
    %2047 = vmatprep.subr.bf16.mxu0 %v388
    %2048 = vmatpush1.bf16.msra.mxu0 %v387
    %2049 = vmatprep.subr.bf16.mxu0 %v448
    %2050 = vmatpush2.bf16.msra.mxu0 %v447
    %2051 = vmatprep.subr.bf16.mxu0 %v444
    %2052 = vmatpush2.bf16.msra.mxu0 %v443
    %2053 = vmatprep.subr.bf16.mxu0 %v440
    %2054 = vmatpush2.bf16.msra.mxu0 %v439
    %2055 = vmatprep.subr.bf16.mxu0 %v436
    %2056 = vmatpush2.bf16.msra.mxu0 %v435
    %2057 = vmatprep.subr.bf16.mxu0 %v432
    %2058 = vmatpush2.bf16.msra.mxu0 %v431
    %2059 = vmatprep.subr.bf16.mxu0 %v428
    %2060 = vmatpush2.bf16.msra.mxu0 %v427
    %2061 = vmatprep.subr.bf16.mxu0 %v424
    %2062 = vmatpush2.bf16.msra.mxu0 %v423
    %2063 = vmatprep.subr.bf16.mxu0 %v420
    %2064 = vmatpush2.bf16.msra.mxu0 %v419
    %2065 = vmatprep.mubr.bf16.mxu0 %v1906
    %2066 = vmatmul.mubr.bf16.gmra.mxu0 %v2032
    %v2067 = vpop.f32.mrf.mxu0
    %v2068 = vadd.f32 %v178, %v2067
    %v2069 = vpop.f32.mrf.mxu0
    %v2070 = vadd.f32 %v182, %v2069
    %v2071 = vpop.f32.mrf.mxu0
    %v2072 = vpop.f32.mrf.mxu0
    %2073 = vdwg.mxu0
    %2074 = vmatprep.subr.bf16.mxu0 %v418
    %2075 = vmatpush1.bf16.msra.mxu0 %v417
    %2076 = vmatprep.subr.bf16.mxu0 %v414
    %2077 = vmatpush1.bf16.msra.mxu0 %v413
    %2078 = vmatprep.subr.bf16.mxu0 %v410
    %2079 = vmatpush1.bf16.msra.mxu0 %v409
    %2080 = vmatprep.subr.bf16.mxu0 %v406
    %2081 = vmatpush1.bf16.msra.mxu0 %v405
    %2082 = vmatprep.subr.bf16.mxu0 %v402
    %2083 = vmatpush1.bf16.msra.mxu0 %v401
    %2084 = vmatprep.subr.bf16.mxu0 %v398
    %2085 = vmatpush1.bf16.msra.mxu0 %v397
    %2086 = vmatprep.subr.bf16.mxu0 %v394
    %2087 = vmatpush1.bf16.msra.mxu0 %v393
    %2088 = vmatprep.subr.bf16.mxu0 %v390
    %2089 = vmatpush1.bf16.msra.mxu0 %v389
    %2090 = vmatprep.subr.bf16.mxu0 %v450
    %2091 = vmatpush2.bf16.msra.mxu0 %v449
    %2092 = vmatprep.subr.bf16.mxu0 %v446
    %2093 = vmatpush2.bf16.msra.mxu0 %v445
    %2094 = vmatprep.subr.bf16.mxu0 %v442
    %2095 = vmatpush2.bf16.msra.mxu0 %v441
    %2096 = vmatprep.subr.bf16.mxu0 %v438
    %2097 = vmatpush2.bf16.msra.mxu0 %v437
    %2098 = vmatprep.subr.bf16.mxu0 %v434
    %2099 = vmatpush2.bf16.msra.mxu0 %v433
    %2100 = vmatprep.subr.bf16.mxu0 %v430
    %2101 = vmatpush2.bf16.msra.mxu0 %v429
    %2102 = vmatprep.subr.bf16.mxu0 %v426
    %2103 = vmatpush2.bf16.msra.mxu0 %v425
    %2104 = vmatprep.subr.bf16.mxu0 %v422
    %2105 = vmatpush2.bf16.msra.mxu0 %v421
    %2106 = vmatprep.mubr.bf16.mxu0 %v1906
    %2107 = vmatmul.mubr.bf16.gmra.mxu0 %v2032
    %v2108 = vpop.f32.mrf.mxu0
    %v2109 = vadd.f32 %v186, %v2108
    %v2110 = vpop.f32.mrf.mxu0
    %v2111 = vadd.f32 %v190, %v2110
    %v2112 = vpop.f32.mrf.mxu0
    %v2113 = vpop.f32.mrf.mxu0
    %2114 = vdwg.mxu0
    %v2115 = vxor.u32 %v2068, 2147483648
    %v2116 = vmul.f32 %v2115, 1.442695
    %v2117 = vpow.pop %v2116
    %v2118 = vadd.f32 %v2117, 1.0
    %v2119 = vrcp.pop %v2118
    %v2120 = vmul.f32 1.0, %v2119
    %v2121 = vxor.u32 %v2070, 2147483648
    %v2122 = vmul.f32 %v2121, 1.442695
    %v2123 = vpow.pop %v2122
    %v2124 = vadd.f32 %v2123, 1.0
    %v2125 = vrcp.pop %v2124
    %v2126 = vmul.f32 1.0, %v2125
    %v2127 = vtanh.pop %v2109
    %v2128 = vxor.u32 %v2111, 2147483648
    %v2129 = vmul.f32 %v2128, 1.442695
    %v2130 = vpow.pop %v2129
    %v2131 = vadd.f32 %v2130, 1.0
    %v2132 = vrcp.pop %v2131
    %v2133 = vmul.f32 1.0, %v2132
    %v2134 = vmul.f32 %v2126, %v1903
    %v2135 = vmul.f32 %v2120, %v2127
    %v2136 = vadd.f32 %v2134, %v2135
    %v2137 = vtanh.pop %v2136
    %v2138 = vmul.f32 %v2133, %v2137
    %v2139 = vpack.c.bf16 %v2138, %v2138
    %v2140 = vpack.c.bf16 %v2013, %v2013
    %2141 = vmatprep.subr.bf16.mxu0 %v864
    %2142 = vmatpush1.bf16.msra.mxu0 %v863
    %2143 = vmatprep.subr.bf16.mxu0 %v860
    %2144 = vmatpush1.bf16.msra.mxu0 %v859
    %2145 = vmatprep.subr.bf16.mxu0 %v856
    %2146 = vmatpush1.bf16.msra.mxu0 %v855
    %2147 = vmatprep.subr.bf16.mxu0 %v852
    %2148 = vmatpush1.bf16.msra.mxu0 %v851
    %2149 = vmatprep.subr.bf16.mxu0 %v848
    %2150 = vmatpush1.bf16.msra.mxu0 %v847
    %2151 = vmatprep.subr.bf16.mxu0 %v844
    %2152 = vmatpush1.bf16.msra.mxu0 %v843
    %2153 = vmatprep.subr.bf16.mxu0 %v840
    %2154 = vmatpush1.bf16.msra.mxu0 %v839
    %2155 = vmatprep.subr.bf16.mxu0 %v836
    %2156 = vmatpush1.bf16.msra.mxu0 %v835
    %2157 = vmatprep.subr.bf16.mxu0 %v896
    %2158 = vmatpush2.bf16.msra.mxu0 %v895
    %2159 = vmatprep.subr.bf16.mxu0 %v892
    %2160 = vmatpush2.bf16.msra.mxu0 %v891
    %2161 = vmatprep.subr.bf16.mxu0 %v888
    %2162 = vmatpush2.bf16.msra.mxu0 %v887
    %2163 = vmatprep.subr.bf16.mxu0 %v884
    %2164 = vmatpush2.bf16.msra.mxu0 %v883
    %2165 = vmatprep.subr.bf16.mxu0 %v880
    %2166 = vmatpush2.bf16.msra.mxu0 %v879
    %2167 = vmatprep.subr.bf16.mxu0 %v876
    %2168 = vmatpush2.bf16.msra.mxu0 %v875
    %2169 = vmatprep.subr.bf16.mxu0 %v872
    %2170 = vmatpush2.bf16.msra.mxu0 %v871
    %2171 = vmatprep.subr.bf16.mxu0 %v868
    %2172 = vmatpush2.bf16.msra.mxu0 %v867
    %2173 = vmatprep.mubr.bf16.mxu0 %v2140
    %2174 = vmatmul.mubr.bf16.gmra.mxu0 %v2139
    %v2175 = vpop.f32.mrf.mxu0
    %v2176 = vadd.f32 %v626, %v2175
    %v2177 = vpop.f32.mrf.mxu0
    %v2178 = vadd.f32 %v630, %v2177
    %v2179 = vpop.f32.mrf.mxu0
    %v2180 = vpop.f32.mrf.mxu0
    %2181 = vdwg.mxu0
    %2182 = vmatprep.subr.bf16.mxu0 %v866
    %2183 = vmatpush1.bf16.msra.mxu0 %v865
    %2184 = vmatprep.subr.bf16.mxu0 %v862
    %2185 = vmatpush1.bf16.msra.mxu0 %v861
    %2186 = vmatprep.subr.bf16.mxu0 %v858
    %2187 = vmatpush1.bf16.msra.mxu0 %v857
    %2188 = vmatprep.subr.bf16.mxu0 %v854
    %2189 = vmatpush1.bf16.msra.mxu0 %v853
    %2190 = vmatprep.subr.bf16.mxu0 %v850
    %2191 = vmatpush1.bf16.msra.mxu0 %v849
    %2192 = vmatprep.subr.bf16.mxu0 %v846
    %2193 = vmatpush1.bf16.msra.mxu0 %v845
    %2194 = vmatprep.subr.bf16.mxu0 %v842
    %2195 = vmatpush1.bf16.msra.mxu0 %v841
    %2196 = vmatprep.subr.bf16.mxu0 %v838
    %2197 = vmatpush1.bf16.msra.mxu0 %v837
    %2198 = vmatprep.subr.bf16.mxu0 %v898
    %2199 = vmatpush2.bf16.msra.mxu0 %v897
    %2200 = vmatprep.subr.bf16.mxu0 %v894
    %2201 = vmatpush2.bf16.msra.mxu0 %v893
    %2202 = vmatprep.subr.bf16.mxu0 %v890
    %2203 = vmatpush2.bf16.msra.mxu0 %v889
    %2204 = vmatprep.subr.bf16.mxu0 %v886
    %2205 = vmatpush2.bf16.msra.mxu0 %v885
    %2206 = vmatprep.subr.bf16.mxu0 %v882
    %2207 = vmatpush2.bf16.msra.mxu0 %v881
    %2208 = vmatprep.subr.bf16.mxu0 %v878
    %2209 = vmatpush2.bf16.msra.mxu0 %v877
    %2210 = vmatprep.subr.bf16.mxu0 %v874
    %2211 = vmatpush2.bf16.msra.mxu0 %v873
    %2212 = vmatprep.subr.bf16.mxu0 %v870
    %2213 = vmatpush2.bf16.msra.mxu0 %v869
    %2214 = vmatprep.mubr.bf16.mxu0 %v2140
    %2215 = vmatmul.mubr.bf16.gmra.mxu0 %v2139
    %v2216 = vpop.f32.mrf.mxu0
    %v2217 = vadd.f32 %v634, %v2216
    %v2218 = vpop.f32.mrf.mxu0
    %v2219 = vadd.f32 %v638, %v2218
    %v2220 = vpop.f32.mrf.mxu0
    %v2221 = vpop.f32.mrf.mxu0
    %2222 = vdwg.mxu0
    %v2223 = vxor.u32 %v2176, 2147483648
    %v2224 = vmul.f32 %v2223, 1.442695
    %v2225 = vpow.pop %v2224
    %v2226 = vadd.f32 %v2225, 1.0
    %v2227 = vrcp.pop %v2226
    %v2228 = vmul.f32 1.0, %v2227
    %v2229 = vxor.u32 %v2178, 2147483648
    %v2230 = vmul.f32 %v2229, 1.442695
    %v2231 = vpow.pop %v2230
    %v2232 = vadd.f32 %v2231, 1.0
    %v2233 = vrcp.pop %v2232
    %v2234 = vmul.f32 1.0, %v2233
    %v2235 = vtanh.pop %v2217
    %v2236 = vxor.u32 %v2219, 2147483648
    %v2237 = vmul.f32 %v2236, 1.442695
    %v2238 = vpow.pop %v2237
    %v2239 = vadd.f32 %v2238, 1.0
    %v2240 = vrcp.pop %v2239
    %v2241 = vmul.f32 1.0, %v2240
    %v2242 = vmul.f32 %v2234, %v2011
    %v2243 = vmul.f32 %v2228, %v2235
    %v2244 = vadd.f32 %v2242, %v2243
    %v2245 = vtanh.pop %v2244
    %v2246 = vmul.f32 %v2241, %v2245
    %v2247 = vsel %vm1069, %v2246, 0.0
    %2248 = vadd.xlane.f32.xlu0 %v2247
    %v2249 = vpop.xlane.xlu0 %2248
    %v2250 = vmul.f32 %v2249, %v1073
    %v2251 = vsub.f32 %v2246, %v2250
    %v2252 = vmul.f32 %v2251, %v2251
    %v2253 = vsel %vm1069, %v2252, 0.0
    %2254 = vadd.xlane.f32.xlu0 %v2253
    %v2255 = vpop.xlane.xlu0 %2254
    %v2256 = vmul.f32 %v2255, %v1073
    %v2257 = vadd.f32 %v2256, 1e-05
    %v2258 = vrsqrt.pop %v2257
    %v2259 = vmul.f32 %v2251, %v2258
    %v2260 = vmul.f32 %v2259, %v1088
    %v2261 = vadd.f32 %v2260, %v1095
    %s2262 = scalar_lea.vmem %s7, 10
    %2263 = vst [vmem:[%s2262] sm:$0x3] %v2261
    %s2264 = scalar_lea.vmem %s0, 6
    %v2265 = vld [vmem:[%s2264] sm:$0x1]
    %2266 = vmatprep.subr.bf16.mxu0 %v416
    %2267 = vmatpush1.bf16.msra.mxu0 %v415
    %2268 = vmatprep.subr.bf16.mxu0 %v412
    %2269 = vmatpush1.bf16.msra.mxu0 %v411
    %2270 = vmatprep.subr.bf16.mxu0 %v408
    %2271 = vmatpush1.bf16.msra.mxu0 %v407
    %2272 = vmatprep.subr.bf16.mxu0 %v404
    %2273 = vmatpush1.bf16.msra.mxu0 %v403
    %2274 = vmatprep.subr.bf16.mxu0 %v400
    %2275 = vmatpush1.bf16.msra.mxu0 %v399
    %2276 = vmatprep.subr.bf16.mxu0 %v396
    %2277 = vmatpush1.bf16.msra.mxu0 %v395
    %2278 = vmatprep.subr.bf16.mxu0 %v392
    %2279 = vmatpush1.bf16.msra.mxu0 %v391
    %2280 = vmatprep.subr.bf16.mxu0 %v388
    %2281 = vmatpush1.bf16.msra.mxu0 %v387
    %2282 = vmatprep.subr.bf16.mxu0 %v448
    %2283 = vmatpush2.bf16.msra.mxu0 %v447
    %2284 = vmatprep.subr.bf16.mxu0 %v444
    %2285 = vmatpush2.bf16.msra.mxu0 %v443
    %2286 = vmatprep.subr.bf16.mxu0 %v440
    %2287 = vmatpush2.bf16.msra.mxu0 %v439
    %2288 = vmatprep.subr.bf16.mxu0 %v436
    %2289 = vmatpush2.bf16.msra.mxu0 %v435
    %2290 = vmatprep.subr.bf16.mxu0 %v432
    %2291 = vmatpush2.bf16.msra.mxu0 %v431
    %2292 = vmatprep.subr.bf16.mxu0 %v428
    %2293 = vmatpush2.bf16.msra.mxu0 %v427
    %2294 = vmatprep.subr.bf16.mxu0 %v424
    %2295 = vmatpush2.bf16.msra.mxu0 %v423
    %2296 = vmatprep.subr.bf16.mxu0 %v420
    %2297 = vmatpush2.bf16.msra.mxu0 %v419
    %2298 = vmatprep.mubr.bf16.mxu0 %v2139
    %2299 = vmatmul.mubr.bf16.gmra.mxu0 %v2265
    %v2300 = vpop.f32.mrf.mxu0
    %v2301 = vadd.f32 %v178, %v2300
    %v2302 = vpop.f32.mrf.mxu0
    %v2303 = vadd.f32 %v182, %v2302
    %v2304 = vpop.f32.mrf.mxu0
    %v2305 = vpop.f32.mrf.mxu0
    %2306 = vdwg.mxu0
    %2307 = vmatprep.subr.bf16.mxu0 %v418
    %2308 = vmatpush1.bf16.msra.mxu0 %v417
    %2309 = vmatprep.subr.bf16.mxu0 %v414
    %2310 = vmatpush1.bf16.msra.mxu0 %v413
    %2311 = vmatprep.subr.bf16.mxu0 %v410
    %2312 = vmatpush1.bf16.msra.mxu0 %v409
    %2313 = vmatprep.subr.bf16.mxu0 %v406
    %2314 = vmatpush1.bf16.msra.mxu0 %v405
    %2315 = vmatprep.subr.bf16.mxu0 %v402
    %2316 = vmatpush1.bf16.msra.mxu0 %v401
    %2317 = vmatprep.subr.bf16.mxu0 %v398
    %2318 = vmatpush1.bf16.msra.mxu0 %v397
    %2319 = vmatprep.subr.bf16.mxu0 %v394
    %2320 = vmatpush1.bf16.msra.mxu0 %v393
    %2321 = vmatprep.subr.bf16.mxu0 %v390
    %2322 = vmatpush1.bf16.msra.mxu0 %v389
    %2323 = vmatprep.subr.bf16.mxu0 %v450
    %2324 = vmatpush2.bf16.msra.mxu0 %v449
    %2325 = vmatprep.subr.bf16.mxu0 %v446
    %2326 = vmatpush2.bf16.msra.mxu0 %v445
    %2327 = vmatprep.subr.bf16.mxu0 %v442
    %2328 = vmatpush2.bf16.msra.mxu0 %v441
    %2329 = vmatprep.subr.bf16.mxu0 %v438
    %2330 = vmatpush2.bf16.msra.mxu0 %v437
    %2331 = vmatprep.subr.bf16.mxu0 %v434
    %2332 = vmatpush2.bf16.msra.mxu0 %v433
    %2333 = vmatprep.subr.bf16.mxu0 %v430
    %2334 = vmatpush2.bf16.msra.mxu0 %v429
    %2335 = vmatprep.subr.bf16.mxu0 %v426
    %2336 = vmatpush2.bf16.msra.mxu0 %v425
    %2337 = vmatprep.subr.bf16.mxu0 %v422
    %2338 = vmatpush2.bf16.msra.mxu0 %v421
    %2339 = vmatprep.mubr.bf16.mxu0 %v2139
    %2340 = vmatmul.mubr.bf16.gmra.mxu0 %v2265
    %v2341 = vpop.f32.mrf.mxu0
    %v2342 = vadd.f32 %v186, %v2341
    %v2343 = vpop.f32.mrf.mxu0
    %v2344 = vadd.f32 %v190, %v2343
    %v2345 = vpop.f32.mrf.mxu0
    %v2346 = vpop.f32.mrf.mxu0
    %2347 = vdwg.mxu0
    %v2348 = vxor.u32 %v2301, 2147483648
    %v2349 = vmul.f32 %v2348, 1.442695
    %v2350 = vpow.pop %v2349
    %v2351 = vadd.f32 %v2350, 1.0
    %v2352 = vrcp.pop %v2351
    %v2353 = vmul.f32 1.0, %v2352
    %v2354 = vxor.u32 %v2303, 2147483648
    %v2355 = vmul.f32 %v2354, 1.442695
    %v2356 = vpow.pop %v2355
    %v2357 = vadd.f32 %v2356, 1.0
    %v2358 = vrcp.pop %v2357
    %v2359 = vmul.f32 1.0, %v2358
    %v2360 = vtanh.pop %v2342
    %v2361 = vxor.u32 %v2344, 2147483648
    %v2362 = vmul.f32 %v2361, 1.442695
    %v2363 = vpow.pop %v2362
    %v2364 = vadd.f32 %v2363, 1.0
    %v2365 = vrcp.pop %v2364
    %v2366 = vmul.f32 1.0, %v2365
    %v2367 = vmul.f32 %v2359, %v2136
    %v2368 = vmul.f32 %v2353, %v2360
    %v2369 = vadd.f32 %v2367, %v2368
    %v2370 = vtanh.pop %v2369
    %v2371 = vmul.f32 %v2366, %v2370
    %v2372 = vpack.c.bf16 %v2371, %v2371
    %v2373 = vpack.c.bf16 %v2246, %v2246
    %2374 = vmatprep.subr.bf16.mxu0 %v864
    %2375 = vmatpush1.bf16.msra.mxu0 %v863
    %2376 = vmatprep.subr.bf16.mxu0 %v860
    %2377 = vmatpush1.bf16.msra.mxu0 %v859
    %2378 = vmatprep.subr.bf16.mxu0 %v856
    %2379 = vmatpush1.bf16.msra.mxu0 %v855
    %2380 = vmatprep.subr.bf16.mxu0 %v852
    %2381 = vmatpush1.bf16.msra.mxu0 %v851
    %2382 = vmatprep.subr.bf16.mxu0 %v848
    %2383 = vmatpush1.bf16.msra.mxu0 %v847
    %2384 = vmatprep.subr.bf16.mxu0 %v844
    %2385 = vmatpush1.bf16.msra.mxu0 %v843
    %2386 = vmatprep.subr.bf16.mxu0 %v840
    %2387 = vmatpush1.bf16.msra.mxu0 %v839
    %2388 = vmatprep.subr.bf16.mxu0 %v836
    %2389 = vmatpush1.bf16.msra.mxu0 %v835
    %2390 = vmatprep.subr.bf16.mxu0 %v896
    %2391 = vmatpush2.bf16.msra.mxu0 %v895
    %2392 = vmatprep.subr.bf16.mxu0 %v892
    %2393 = vmatpush2.bf16.msra.mxu0 %v891
    %2394 = vmatprep.subr.bf16.mxu0 %v888
    %2395 = vmatpush2.bf16.msra.mxu0 %v887
    %2396 = vmatprep.subr.bf16.mxu0 %v884
    %2397 = vmatpush2.bf16.msra.mxu0 %v883
    %2398 = vmatprep.subr.bf16.mxu0 %v880
    %2399 = vmatpush2.bf16.msra.mxu0 %v879
    %2400 = vmatprep.subr.bf16.mxu0 %v876
    %2401 = vmatpush2.bf16.msra.mxu0 %v875
    %2402 = vmatprep.subr.bf16.mxu0 %v872
    %2403 = vmatpush2.bf16.msra.mxu0 %v871
    %2404 = vmatprep.subr.bf16.mxu0 %v868
    %2405 = vmatpush2.bf16.msra.mxu0 %v867
    %2406 = vmatprep.mubr.bf16.mxu0 %v2373
    %2407 = vmatmul.mubr.bf16.gmra.mxu0 %v2372
    %v2408 = vpop.f32.mrf.mxu0
    %v2409 = vadd.f32 %v626, %v2408
    %v2410 = vpop.f32.mrf.mxu0
    %v2411 = vadd.f32 %v630, %v2410
    %v2412 = vpop.f32.mrf.mxu0
    %v2413 = vpop.f32.mrf.mxu0
    %2414 = vdwg.mxu0
    %2415 = vmatprep.subr.bf16.mxu0 %v866
    %2416 = vmatpush1.bf16.msra.mxu0 %v865
    %2417 = vmatprep.subr.bf16.mxu0 %v862
    %2418 = vmatpush1.bf16.msra.mxu0 %v861
    %2419 = vmatprep.subr.bf16.mxu0 %v858
    %2420 = vmatpush1.bf16.msra.mxu0 %v857
    %2421 = vmatprep.subr.bf16.mxu0 %v854
    %2422 = vmatpush1.bf16.msra.mxu0 %v853
    %2423 = vmatprep.subr.bf16.mxu0 %v850
    %2424 = vmatpush1.bf16.msra.mxu0 %v849
    %2425 = vmatprep.subr.bf16.mxu0 %v846
    %2426 = vmatpush1.bf16.msra.mxu0 %v845
    %2427 = vmatprep.subr.bf16.mxu0 %v842
    %2428 = vmatpush1.bf16.msra.mxu0 %v841
    %2429 = vmatprep.subr.bf16.mxu0 %v838
    %2430 = vmatpush1.bf16.msra.mxu0 %v837
    %2431 = vmatprep.subr.bf16.mxu0 %v898
    %2432 = vmatpush2.bf16.msra.mxu0 %v897
    %2433 = vmatprep.subr.bf16.mxu0 %v894
    %2434 = vmatpush2.bf16.msra.mxu0 %v893
    %2435 = vmatprep.subr.bf16.mxu0 %v890
    %2436 = vmatpush2.bf16.msra.mxu0 %v889
    %2437 = vmatprep.subr.bf16.mxu0 %v886
    %2438 = vmatpush2.bf16.msra.mxu0 %v885
    %2439 = vmatprep.subr.bf16.mxu0 %v882
    %2440 = vmatpush2.bf16.msra.mxu0 %v881
    %2441 = vmatprep.subr.bf16.mxu0 %v878
    %2442 = vmatpush2.bf16.msra.mxu0 %v877
    %2443 = vmatprep.subr.bf16.mxu0 %v874
    %2444 = vmatpush2.bf16.msra.mxu0 %v873
    %2445 = vmatprep.subr.bf16.mxu0 %v870
    %2446 = vmatpush2.bf16.msra.mxu0 %v869
    %2447 = vmatprep.mubr.bf16.mxu0 %v2373
    %2448 = vmatmul.mubr.bf16.gmra.mxu0 %v2372
    %v2449 = vpop.f32.mrf.mxu0
    %v2450 = vadd.f32 %v634, %v2449
    %v2451 = vpop.f32.mrf.mxu0
    %v2452 = vadd.f32 %v638, %v2451
    %v2453 = vpop.f32.mrf.mxu0
    %v2454 = vpop.f32.mrf.mxu0
    %2455 = vdwg.mxu0
    %v2456 = vxor.u32 %v2409, 2147483648
    %v2457 = vmul.f32 %v2456, 1.442695
    %v2458 = vpow.pop %v2457
    %v2459 = vadd.f32 %v2458, 1.0
    %v2460 = vrcp.pop %v2459
    %v2461 = vmul.f32 1.0, %v2460
    %v2462 = vxor.u32 %v2411, 2147483648
    %v2463 = vmul.f32 %v2462, 1.442695
    %v2464 = vpow.pop %v2463
    %v2465 = vadd.f32 %v2464, 1.0
    %v2466 = vrcp.pop %v2465
    %v2467 = vmul.f32 1.0, %v2466
    %v2468 = vtanh.pop %v2450
    %v2469 = vxor.u32 %v2452, 2147483648
    %v2470 = vmul.f32 %v2469, 1.442695
    %v2471 = vpow.pop %v2470
    %v2472 = vadd.f32 %v2471, 1.0
    %v2473 = vrcp.pop %v2472
    %v2474 = vmul.f32 1.0, %v2473
    %v2475 = vmul.f32 %v2467, %v2244
    %v2476 = vmul.f32 %v2461, %v2468
    %v2477 = vadd.f32 %v2475, %v2476
    %v2478 = vtanh.pop %v2477
    %v2479 = vmul.f32 %v2474, %v2478
    %v2480 = vsel %vm1069, %v2479, 0.0
    %2481 = vadd.xlane.f32.xlu0 %v2480
    %v2482 = vpop.xlane.xlu0 %2481
    %v2483 = vmul.f32 %v2482, %v1073
    %v2484 = vsub.f32 %v2479, %v2483
    %v2485 = vmul.f32 %v2484, %v2484
    %v2486 = vsel %vm1069, %v2485, 0.0
    %2487 = vadd.xlane.f32.xlu0 %v2486
    %v2488 = vpop.xlane.xlu0 %2487
    %v2489 = vmul.f32 %v2488, %v1073
    %v2490 = vadd.f32 %v2489, 1e-05
    %v2491 = vrsqrt.pop %v2490
    %v2492 = vmul.f32 %v2484, %v2491
    %v2493 = vmul.f32 %v2492, %v1088
    %v2494 = vadd.f32 %v2493, %v1095
    %s2495 = scalar_lea.vmem %s7, 12
    %2496 = vst [vmem:[%s2495] sm:$0x3] %v2494
    %s2497 = scalar_lea.vmem %s0, 7
    %v2498 = vld [vmem:[%s2497] sm:$0x1]
    %2499 = vmatprep.subr.bf16.mxu0 %v416
    %2500 = vmatpush1.bf16.msra.mxu0 %v415
    %2501 = vmatprep.subr.bf16.mxu0 %v412
    %2502 = vmatpush1.bf16.msra.mxu0 %v411
    %2503 = vmatprep.subr.bf16.mxu0 %v408
    %2504 = vmatpush1.bf16.msra.mxu0 %v407
    %2505 = vmatprep.subr.bf16.mxu0 %v404
    %2506 = vmatpush1.bf16.msra.mxu0 %v403
    %2507 = vmatprep.subr.bf16.mxu0 %v400
    %2508 = vmatpush1.bf16.msra.mxu0 %v399
    %2509 = vmatprep.subr.bf16.mxu0 %v396
    %2510 = vmatpush1.bf16.msra.mxu0 %v395
    %2511 = vmatprep.subr.bf16.mxu0 %v392
    %2512 = vmatpush1.bf16.msra.mxu0 %v391
    %2513 = vmatprep.subr.bf16.mxu0 %v388
    %2514 = vmatpush1.bf16.msra.mxu0 %v387
    %2515 = vmatprep.subr.bf16.mxu0 %v448
    %2516 = vmatpush2.bf16.msra.mxu0 %v447
    %2517 = vmatprep.subr.bf16.mxu0 %v444
    %2518 = vmatpush2.bf16.msra.mxu0 %v443
    %2519 = vmatprep.subr.bf16.mxu0 %v440
    %2520 = vmatpush2.bf16.msra.mxu0 %v439
    %2521 = vmatprep.subr.bf16.mxu0 %v436
    %2522 = vmatpush2.bf16.msra.mxu0 %v435
    %2523 = vmatprep.subr.bf16.mxu0 %v432
    %2524 = vmatpush2.bf16.msra.mxu0 %v431
    %2525 = vmatprep.subr.bf16.mxu0 %v428
    %2526 = vmatpush2.bf16.msra.mxu0 %v427
    %2527 = vmatprep.subr.bf16.mxu0 %v424
    %2528 = vmatpush2.bf16.msra.mxu0 %v423
    %2529 = vmatprep.subr.bf16.mxu0 %v420
    %2530 = vmatpush2.bf16.msra.mxu0 %v419
    %2531 = vmatprep.mubr.bf16.mxu0 %v2372
    %2532 = vmatmul.mubr.bf16.gmra.mxu0 %v2498
    %v2533 = vpop.f32.mrf.mxu0
    %v2534 = vadd.f32 %v178, %v2533
    %v2535 = vpop.f32.mrf.mxu0
    %v2536 = vadd.f32 %v182, %v2535
    %v2537 = vpop.f32.mrf.mxu0
    %v2538 = vpop.f32.mrf.mxu0
    %2539 = vdwg.mxu0
    %2540 = vmatprep.subr.bf16.mxu0 %v418
    %2541 = vmatpush1.bf16.msra.mxu0 %v417
    %2542 = vmatprep.subr.bf16.mxu0 %v414
    %2543 = vmatpush1.bf16.msra.mxu0 %v413
    %2544 = vmatprep.subr.bf16.mxu0 %v410
    %2545 = vmatpush1.bf16.msra.mxu0 %v409
    %2546 = vmatprep.subr.bf16.mxu0 %v406
    %2547 = vmatpush1.bf16.msra.mxu0 %v405
    %2548 = vmatprep.subr.bf16.mxu0 %v402
    %2549 = vmatpush1.bf16.msra.mxu0 %v401
    %2550 = vmatprep.subr.bf16.mxu0 %v398
    %2551 = vmatpush1.bf16.msra.mxu0 %v397
    %2552 = vmatprep.subr.bf16.mxu0 %v394
    %2553 = vmatpush1.bf16.msra.mxu0 %v393
    %2554 = vmatprep.subr.bf16.mxu0 %v390
    %2555 = vmatpush1.bf16.msra.mxu0 %v389
    %2556 = vmatprep.subr.bf16.mxu0 %v450
    %2557 = vmatpush2.bf16.msra.mxu0 %v449
    %2558 = vmatprep.subr.bf16.mxu0 %v446
    %2559 = vmatpush2.bf16.msra.mxu0 %v445
    %2560 = vmatprep.subr.bf16.mxu0 %v442
    %2561 = vmatpush2.bf16.msra.mxu0 %v441
    %2562 = vmatprep.subr.bf16.mxu0 %v438
    %2563 = vmatpush2.bf16.msra.mxu0 %v437
    %2564 = vmatprep.subr.bf16.mxu0 %v434
    %2565 = vmatpush2.bf16.msra.mxu0 %v433
    %2566 = vmatprep.subr.bf16.mxu0 %v430
    %2567 = vmatpush2.bf16.msra.mxu0 %v429
    %2568 = vmatprep.subr.bf16.mxu0 %v426
    %2569 = vmatpush2.bf16.msra.mxu0 %v425
    %2570 = vmatprep.subr.bf16.mxu0 %v422
    %2571 = vmatpush2.bf16.msra.mxu0 %v421
    %2572 = vmatprep.mubr.bf16.mxu0 %v2372
    %2573 = vmatmul.mubr.bf16.gmra.mxu0 %v2498
    %v2574 = vpop.f32.mrf.mxu0
    %v2575 = vadd.f32 %v186, %v2574
    %v2576 = vpop.f32.mrf.mxu0
    %v2577 = vadd.f32 %v190, %v2576
    %v2578 = vpop.f32.mrf.mxu0
    %v2579 = vpop.f32.mrf.mxu0
    %2580 = vdwg.mxu0
    %v2581 = vxor.u32 %v2534, 2147483648
    %v2582 = vmul.f32 %v2581, 1.442695
    %v2583 = vpow.pop %v2582
    %v2584 = vadd.f32 %v2583, 1.0
    %v2585 = vrcp.pop %v2584
    %v2586 = vmul.f32 1.0, %v2585
    %v2587 = vxor.u32 %v2536, 2147483648
    %v2588 = vmul.f32 %v2587, 1.442695
    %v2589 = vpow.pop %v2588
    %v2590 = vadd.f32 %v2589, 1.0
    %v2591 = vrcp.pop %v2590
    %v2592 = vmul.f32 1.0, %v2591
    %v2593 = vtanh.pop %v2575
    %v2594 = vxor.u32 %v2577, 2147483648
    %v2595 = vmul.f32 %v2594, 1.442695
    %v2596 = vpow.pop %v2595
    %v2597 = vadd.f32 %v2596, 1.0
    %v2598 = vrcp.pop %v2597
    %v2599 = vmul.f32 1.0, %v2598
    %v2600 = vmul.f32 %v2592, %v2369
    %v2601 = vmul.f32 %v2586, %v2593
    %v2602 = vadd.f32 %v2600, %v2601
    %v2603 = vtanh.pop %v2602
    %v2604 = vmul.f32 %v2599, %v2603
    %v2605 = vpack.c.bf16 %v2604, %v2604
    %v2606 = vpack.c.bf16 %v2479, %v2479
    %2607 = vmatprep.subr.bf16.mxu0 %v864
    %2608 = vmatpush1.bf16.msra.mxu0 %v863
    %2609 = vmatprep.subr.bf16.mxu0 %v860
    %2610 = vmatpush1.bf16.msra.mxu0 %v859
    %2611 = vmatprep.subr.bf16.mxu0 %v856
    %2612 = vmatpush1.bf16.msra.mxu0 %v855
    %2613 = vmatprep.subr.bf16.mxu0 %v852
    %2614 = vmatpush1.bf16.msra.mxu0 %v851
    %2615 = vmatprep.subr.bf16.mxu0 %v848
    %2616 = vmatpush1.bf16.msra.mxu0 %v847
    %2617 = vmatprep.subr.bf16.mxu0 %v844
    %2618 = vmatpush1.bf16.msra.mxu0 %v843
    %2619 = vmatprep.subr.bf16.mxu0 %v840
    %2620 = vmatpush1.bf16.msra.mxu0 %v839
    %2621 = vmatprep.subr.bf16.mxu0 %v836
    %2622 = vmatpush1.bf16.msra.mxu0 %v835
    %2623 = vmatprep.subr.bf16.mxu0 %v896
    %2624 = vmatpush2.bf16.msra.mxu0 %v895
    %2625 = vmatprep.subr.bf16.mxu0 %v892
    %2626 = vmatpush2.bf16.msra.mxu0 %v891
    %2627 = vmatprep.subr.bf16.mxu0 %v888
    %2628 = vmatpush2.bf16.msra.mxu0 %v887
    %2629 = vmatprep.subr.bf16.mxu0 %v884
    %2630 = vmatpush2.bf16.msra.mxu0 %v883
    %2631 = vmatprep.subr.bf16.mxu0 %v880
    %2632 = vmatpush2.bf16.msra.mxu0 %v879
    %2633 = vmatprep.subr.bf16.mxu0 %v876
    %2634 = vmatpush2.bf16.msra.mxu0 %v875
    %2635 = vmatprep.subr.bf16.mxu0 %v872
    %2636 = vmatpush2.bf16.msra.mxu0 %v871
    %2637 = vmatprep.subr.bf16.mxu0 %v868
    %2638 = vmatpush2.bf16.msra.mxu0 %v867
    %2639 = vmatprep.mubr.bf16.mxu0 %v2606
    %2640 = vmatmul.mubr.bf16.gmra.mxu0 %v2605
    %v2641 = vpop.f32.mrf.mxu0
    %v2642 = vadd.f32 %v626, %v2641
    %v2643 = vpop.f32.mrf.mxu0
    %v2644 = vadd.f32 %v630, %v2643
    %v2645 = vpop.f32.mrf.mxu0
    %v2646 = vpop.f32.mrf.mxu0
    %2647 = vdwg.mxu0
    %2648 = vmatprep.subr.bf16.mxu0 %v866
    %2649 = vmatpush1.bf16.msra.mxu0 %v865
    %2650 = vmatprep.subr.bf16.mxu0 %v862
    %2651 = vmatpush1.bf16.msra.mxu0 %v861
    %2652 = vmatprep.subr.bf16.mxu0 %v858
    %2653 = vmatpush1.bf16.msra.mxu0 %v857
    %2654 = vmatprep.subr.bf16.mxu0 %v854
    %2655 = vmatpush1.bf16.msra.mxu0 %v853
    %2656 = vmatprep.subr.bf16.mxu0 %v850
    %2657 = vmatpush1.bf16.msra.mxu0 %v849
    %2658 = vmatprep.subr.bf16.mxu0 %v846
    %2659 = vmatpush1.bf16.msra.mxu0 %v845
    %2660 = vmatprep.subr.bf16.mxu0 %v842
    %2661 = vmatpush1.bf16.msra.mxu0 %v841
    %2662 = vmatprep.subr.bf16.mxu0 %v838
    %2663 = vmatpush1.bf16.msra.mxu0 %v837
    %2664 = vmatprep.subr.bf16.mxu0 %v898
    %2665 = vmatpush2.bf16.msra.mxu0 %v897
    %2666 = vmatprep.subr.bf16.mxu0 %v894
    %2667 = vmatpush2.bf16.msra.mxu0 %v893
    %2668 = vmatprep.subr.bf16.mxu0 %v890
    %2669 = vmatpush2.bf16.msra.mxu0 %v889
    %2670 = vmatprep.subr.bf16.mxu0 %v886
    %2671 = vmatpush2.bf16.msra.mxu0 %v885
    %2672 = vmatprep.subr.bf16.mxu0 %v882
    %2673 = vmatpush2.bf16.msra.mxu0 %v881
    %2674 = vmatprep.subr.bf16.mxu0 %v878
    %2675 = vmatpush2.bf16.msra.mxu0 %v877
    %2676 = vmatprep.subr.bf16.mxu0 %v874
    %2677 = vmatpush2.bf16.msra.mxu0 %v873
    %2678 = vmatprep.subr.bf16.mxu0 %v870
    %2679 = vmatpush2.bf16.msra.mxu0 %v869
    %2680 = vmatprep.mubr.bf16.mxu0 %v2606
    %2681 = vmatmul.mubr.bf16.gmra.mxu0 %v2605
    %v2682 = vpop.f32.mrf.mxu0
    %v2683 = vadd.f32 %v634, %v2682
    %v2684 = vpop.f32.mrf.mxu0
    %v2685 = vadd.f32 %v638, %v2684
    %v2686 = vpop.f32.mrf.mxu0
    %v2687 = vpop.f32.mrf.mxu0
    %2688 = vdwg.mxu0
    %v2689 = vxor.u32 %v2642, 2147483648
    %v2690 = vmul.f32 %v2689, 1.442695
    %v2691 = vpow.pop %v2690
    %v2692 = vadd.f32 %v2691, 1.0
    %v2693 = vrcp.pop %v2692
    %v2694 = vmul.f32 1.0, %v2693
    %v2695 = vxor.u32 %v2644, 2147483648
    %v2696 = vmul.f32 %v2695, 1.442695
    %v2697 = vpow.pop %v2696
    %v2698 = vadd.f32 %v2697, 1.0
    %v2699 = vrcp.pop %v2698
    %v2700 = vmul.f32 1.0, %v2699
    %v2701 = vtanh.pop %v2683
    %v2702 = vxor.u32 %v2685, 2147483648
    %v2703 = vmul.f32 %v2702, 1.442695
    %v2704 = vpow.pop %v2703
    %v2705 = vadd.f32 %v2704, 1.0
    %v2706 = vrcp.pop %v2705
    %v2707 = vmul.f32 1.0, %v2706
    %v2708 = vmul.f32 %v2700, %v2477
    %v2709 = vmul.f32 %v2694, %v2701
    %v2710 = vadd.f32 %v2708, %v2709
    %v2711 = vtanh.pop %v2710
    %v2712 = vmul.f32 %v2707, %v2711
    %v2713 = vsel %vm1069, %v2712, 0.0
    %2714 = vadd.xlane.f32.xlu0 %v2713
    %v2715 = vpop.xlane.xlu0 %2714
    %v2716 = vmul.f32 %v2715, %v1073
    %v2717 = vsub.f32 %v2712, %v2716
    %v2718 = vmul.f32 %v2717, %v2717
    %v2719 = vsel %vm1069, %v2718, 0.0
    %2720 = vadd.xlane.f32.xlu0 %v2719
    %v2721 = vpop.xlane.xlu0 %2720
    %v2722 = vmul.f32 %v2721, %v1073
    %v2723 = vadd.f32 %v2722, 1e-05
    %v2724 = vrsqrt.pop %v2723
    %v2725 = vmul.f32 %v2717, %v2724
    %v2726 = vmul.f32 %v2725, %v1088
    %v2727 = vadd.f32 %v2726, %v1095
    %s2728 = scalar_lea.vmem %s7, 14
    %2729 = vst [vmem:[%s2728] sm:$0x3] %v2727
    %s2730 = scalar_lea.vmem %s0, 8
    %v2731 = vld [vmem:[%s2730] sm:$0x1]
    %2732 = vmatprep.subr.bf16.mxu0 %v416
    %2733 = vmatpush1.bf16.msra.mxu0 %v415
    %2734 = vmatprep.subr.bf16.mxu0 %v412
    %2735 = vmatpush1.bf16.msra.mxu0 %v411
    %2736 = vmatprep.subr.bf16.mxu0 %v408
    %2737 = vmatpush1.bf16.msra.mxu0 %v407
    %2738 = vmatprep.subr.bf16.mxu0 %v404
    %2739 = vmatpush1.bf16.msra.mxu0 %v403
    %2740 = vmatprep.subr.bf16.mxu0 %v400
    %2741 = vmatpush1.bf16.msra.mxu0 %v399
    %2742 = vmatprep.subr.bf16.mxu0 %v396
    %2743 = vmatpush1.bf16.msra.mxu0 %v395
    %2744 = vmatprep.subr.bf16.mxu0 %v392
    %2745 = vmatpush1.bf16.msra.mxu0 %v391
    %2746 = vmatprep.subr.bf16.mxu0 %v388
    %2747 = vmatpush1.bf16.msra.mxu0 %v387
    %2748 = vmatprep.subr.bf16.mxu0 %v448
    %2749 = vmatpush2.bf16.msra.mxu0 %v447
    %2750 = vmatprep.subr.bf16.mxu0 %v444
    %2751 = vmatpush2.bf16.msra.mxu0 %v443
    %2752 = vmatprep.subr.bf16.mxu0 %v440
    %2753 = vmatpush2.bf16.msra.mxu0 %v439
    %2754 = vmatprep.subr.bf16.mxu0 %v436
    %2755 = vmatpush2.bf16.msra.mxu0 %v435
    %2756 = vmatprep.subr.bf16.mxu0 %v432
    %2757 = vmatpush2.bf16.msra.mxu0 %v431
    %2758 = vmatprep.subr.bf16.mxu0 %v428
    %2759 = vmatpush2.bf16.msra.mxu0 %v427
    %2760 = vmatprep.subr.bf16.mxu0 %v424
    %2761 = vmatpush2.bf16.msra.mxu0 %v423
    %2762 = vmatprep.subr.bf16.mxu0 %v420
    %2763 = vmatpush2.bf16.msra.mxu0 %v419
    %2764 = vmatprep.mubr.bf16.mxu0 %v2605
    %2765 = vmatmul.mubr.bf16.gmra.mxu0 %v2731
    %v2766 = vpop.f32.mrf.mxu0
    %v2767 = vadd.f32 %v178, %v2766
    %v2768 = vpop.f32.mrf.mxu0
    %v2769 = vadd.f32 %v182, %v2768
    %v2770 = vpop.f32.mrf.mxu0
    %v2771 = vpop.f32.mrf.mxu0
    %2772 = vdwg.mxu0
    %2773 = vmatprep.subr.bf16.mxu0 %v418
    %2774 = vmatpush1.bf16.msra.mxu0 %v417
    %2775 = vmatprep.subr.bf16.mxu0 %v414
    %2776 = vmatpush1.bf16.msra.mxu0 %v413
    %2777 = vmatprep.subr.bf16.mxu0 %v410
    %2778 = vmatpush1.bf16.msra.mxu0 %v409
    %2779 = vmatprep.subr.bf16.mxu0 %v406
    %2780 = vmatpush1.bf16.msra.mxu0 %v405
    %2781 = vmatprep.subr.bf16.mxu0 %v402
    %2782 = vmatpush1.bf16.msra.mxu0 %v401
    %2783 = vmatprep.subr.bf16.mxu0 %v398
    %2784 = vmatpush1.bf16.msra.mxu0 %v397
    %2785 = vmatprep.subr.bf16.mxu0 %v394
    %2786 = vmatpush1.bf16.msra.mxu0 %v393
    %2787 = vmatprep.subr.bf16.mxu0 %v390
    %2788 = vmatpush1.bf16.msra.mxu0 %v389
    %2789 = vmatprep.subr.bf16.mxu0 %v450
    %2790 = vmatpush2.bf16.msra.mxu0 %v449
    %2791 = vmatprep.subr.bf16.mxu0 %v446
    %2792 = vmatpush2.bf16.msra.mxu0 %v445
    %2793 = vmatprep.subr.bf16.mxu0 %v442
    %2794 = vmatpush2.bf16.msra.mxu0 %v441
    %2795 = vmatprep.subr.bf16.mxu0 %v438
    %2796 = vmatpush2.bf16.msra.mxu0 %v437
    %2797 = vmatprep.subr.bf16.mxu0 %v434
    %2798 = vmatpush2.bf16.msra.mxu0 %v433
    %2799 = vmatprep.subr.bf16.mxu0 %v430
    %2800 = vmatpush2.bf16.msra.mxu0 %v429
    %2801 = vmatprep.subr.bf16.mxu0 %v426
    %2802 = vmatpush2.bf16.msra.mxu0 %v425
    %2803 = vmatprep.subr.bf16.mxu0 %v422
    %2804 = vmatpush2.bf16.msra.mxu0 %v421
    %2805 = vmatprep.mubr.bf16.mxu0 %v2605
    %2806 = vmatmul.mubr.bf16.gmra.mxu0 %v2731
    %v2807 = vpop.f32.mrf.mxu0
    %v2808 = vadd.f32 %v186, %v2807
    %v2809 = vpop.f32.mrf.mxu0
    %v2810 = vadd.f32 %v190, %v2809
    %v2811 = vpop.f32.mrf.mxu0
    %v2812 = vpop.f32.mrf.mxu0
    %2813 = vdwg.mxu0
    %v2814 = vxor.u32 %v2767, 2147483648
    %v2815 = vmul.f32 %v2814, 1.442695
    %v2816 = vpow.pop %v2815
    %v2817 = vadd.f32 %v2816, 1.0
    %v2818 = vrcp.pop %v2817
    %v2819 = vmul.f32 1.0, %v2818
    %v2820 = vxor.u32 %v2769, 2147483648
    %v2821 = vmul.f32 %v2820, 1.442695
    %v2822 = vpow.pop %v2821
    %v2823 = vadd.f32 %v2822, 1.0
    %v2824 = vrcp.pop %v2823
    %v2825 = vmul.f32 1.0, %v2824
    %v2826 = vtanh.pop %v2808
    %v2827 = vxor.u32 %v2810, 2147483648
    %v2828 = vmul.f32 %v2827, 1.442695
    %v2829 = vpow.pop %v2828
    %v2830 = vadd.f32 %v2829, 1.0
    %v2831 = vrcp.pop %v2830
    %v2832 = vmul.f32 1.0, %v2831
    %v2833 = vmul.f32 %v2825, %v2602
    %v2834 = vmul.f32 %v2819, %v2826
    %v2835 = vadd.f32 %v2833, %v2834
    %v2836 = vtanh.pop %v2835
    %v2837 = vmul.f32 %v2832, %v2836
    %v2838 = vpack.c.bf16 %v2837, %v2837
    %v2839 = vpack.c.bf16 %v2712, %v2712
    %2840 = vmatprep.subr.bf16.mxu0 %v864
    %2841 = vmatpush1.bf16.msra.mxu0 %v863
    %2842 = vmatprep.subr.bf16.mxu0 %v860
    %2843 = vmatpush1.bf16.msra.mxu0 %v859
    %2844 = vmatprep.subr.bf16.mxu0 %v856
    %2845 = vmatpush1.bf16.msra.mxu0 %v855
    %2846 = vmatprep.subr.bf16.mxu0 %v852
    %2847 = vmatpush1.bf16.msra.mxu0 %v851
    %2848 = vmatprep.subr.bf16.mxu0 %v848
    %2849 = vmatpush1.bf16.msra.mxu0 %v847
    %2850 = vmatprep.subr.bf16.mxu0 %v844
    %2851 = vmatpush1.bf16.msra.mxu0 %v843
    %2852 = vmatprep.subr.bf16.mxu0 %v840
    %2853 = vmatpush1.bf16.msra.mxu0 %v839
    %2854 = vmatprep.subr.bf16.mxu0 %v836
    %2855 = vmatpush1.bf16.msra.mxu0 %v835
    %2856 = vmatprep.subr.bf16.mxu0 %v896
    %2857 = vmatpush2.bf16.msra.mxu0 %v895
    %2858 = vmatprep.subr.bf16.mxu0 %v892
    %2859 = vmatpush2.bf16.msra.mxu0 %v891
    %2860 = vmatprep.subr.bf16.mxu0 %v888
    %2861 = vmatpush2.bf16.msra.mxu0 %v887
    %2862 = vmatprep.subr.bf16.mxu0 %v884
    %2863 = vmatpush2.bf16.msra.mxu0 %v883
    %2864 = vmatprep.subr.bf16.mxu0 %v880
    %2865 = vmatpush2.bf16.msra.mxu0 %v879
    %2866 = vmatprep.subr.bf16.mxu0 %v876
    %2867 = vmatpush2.bf16.msra.mxu0 %v875
    %2868 = vmatprep.subr.bf16.mxu0 %v872
    %2869 = vmatpush2.bf16.msra.mxu0 %v871
    %2870 = vmatprep.subr.bf16.mxu0 %v868
    %2871 = vmatpush2.bf16.msra.mxu0 %v867
    %2872 = vmatprep.mubr.bf16.mxu0 %v2839
    %2873 = vmatmul.mubr.bf16.gmra.mxu0 %v2838
    %v2874 = vpop.f32.mrf.mxu0
    %v2875 = vadd.f32 %v626, %v2874
    %v2876 = vpop.f32.mrf.mxu0
    %v2877 = vadd.f32 %v630, %v2876
    %v2878 = vpop.f32.mrf.mxu0
    %v2879 = vpop.f32.mrf.mxu0
    %2880 = vdwg.mxu0
    %2881 = vmatprep.subr.bf16.mxu0 %v866
    %2882 = vmatpush1.bf16.msra.mxu0 %v865
    %2883 = vmatprep.subr.bf16.mxu0 %v862
    %2884 = vmatpush1.bf16.msra.mxu0 %v861
    %2885 = vmatprep.subr.bf16.mxu0 %v858
    %2886 = vmatpush1.bf16.msra.mxu0 %v857
    %2887 = vmatprep.subr.bf16.mxu0 %v854
    %2888 = vmatpush1.bf16.msra.mxu0 %v853
    %2889 = vmatprep.subr.bf16.mxu0 %v850
    %2890 = vmatpush1.bf16.msra.mxu0 %v849
    %2891 = vmatprep.subr.bf16.mxu0 %v846
    %2892 = vmatpush1.bf16.msra.mxu0 %v845
    %2893 = vmatprep.subr.bf16.mxu0 %v842
    %2894 = vmatpush1.bf16.msra.mxu0 %v841
    %2895 = vmatprep.subr.bf16.mxu0 %v838
    %2896 = vmatpush1.bf16.msra.mxu0 %v837
    %2897 = vmatprep.subr.bf16.mxu0 %v898
    %2898 = vmatpush2.bf16.msra.mxu0 %v897
    %2899 = vmatprep.subr.bf16.mxu0 %v894
    %2900 = vmatpush2.bf16.msra.mxu0 %v893
    %2901 = vmatprep.subr.bf16.mxu0 %v890
    %2902 = vmatpush2.bf16.msra.mxu0 %v889
    %2903 = vmatprep.subr.bf16.mxu0 %v886
    %2904 = vmatpush2.bf16.msra.mxu0 %v885
    %2905 = vmatprep.subr.bf16.mxu0 %v882
    %2906 = vmatpush2.bf16.msra.mxu0 %v881
    %2907 = vmatprep.subr.bf16.mxu0 %v878
    %2908 = vmatpush2.bf16.msra.mxu0 %v877
    %2909 = vmatprep.subr.bf16.mxu0 %v874
    %2910 = vmatpush2.bf16.msra.mxu0 %v873
    %2911 = vmatprep.subr.bf16.mxu0 %v870
    %2912 = vmatpush2.bf16.msra.mxu0 %v869
    %2913 = vmatprep.mubr.bf16.mxu0 %v2839
    %2914 = vmatmul.mubr.bf16.gmra.mxu0 %v2838
    %v2915 = vpop.f32.mrf.mxu0
    %v2916 = vadd.f32 %v634, %v2915
    %v2917 = vpop.f32.mrf.mxu0
    %v2918 = vadd.f32 %v638, %v2917
    %v2919 = vpop.f32.mrf.mxu0
    %v2920 = vpop.f32.mrf.mxu0
    %2921 = vdwg.mxu0
    %v2922 = vxor.u32 %v2875, 2147483648
    %v2923 = vmul.f32 %v2922, 1.442695
    %v2924 = vpow.pop %v2923
    %v2925 = vadd.f32 %v2924, 1.0
    %v2926 = vrcp.pop %v2925
    %v2927 = vmul.f32 1.0, %v2926
    %v2928 = vxor.u32 %v2877, 2147483648
    %v2929 = vmul.f32 %v2928, 1.442695
    %v2930 = vpow.pop %v2929
    %v2931 = vadd.f32 %v2930, 1.0
    %v2932 = vrcp.pop %v2931
    %v2933 = vmul.f32 1.0, %v2932
    %v2934 = vtanh.pop %v2916
    %v2935 = vxor.u32 %v2918, 2147483648
    %v2936 = vmul.f32 %v2935, 1.442695
    %v2937 = vpow.pop %v2936
    %v2938 = vadd.f32 %v2937, 1.0
    %v2939 = vrcp.pop %v2938
    %v2940 = vmul.f32 1.0, %v2939
    %v2941 = vmul.f32 %v2933, %v2710
    %v2942 = vmul.f32 %v2927, %v2934
    %v2943 = vadd.f32 %v2941, %v2942
    %v2944 = vtanh.pop %v2943
    %v2945 = vmul.f32 %v2940, %v2944
    %v2946 = vsel %vm1069, %v2945, 0.0
    %2947 = vadd.xlane.f32.xlu0 %v2946
    %v2948 = vpop.xlane.xlu0 %2947
    %v2949 = vmul.f32 %v2948, %v1073
    %v2950 = vsub.f32 %v2945, %v2949
    %v2951 = vmul.f32 %v2950, %v2950
    %v2952 = vsel %vm1069, %v2951, 0.0
    %2953 = vadd.xlane.f32.xlu0 %v2952
    %v2954 = vpop.xlane.xlu0 %2953
    %v2955 = vmul.f32 %v2954, %v1073
    %v2956 = vadd.f32 %v2955, 1e-05
    %v2957 = vrsqrt.pop %v2956
    %v2958 = vmul.f32 %v2950, %v2957
    %v2959 = vmul.f32 %v2958, %v1088
    %v2960 = vadd.f32 %v2959, %v1095
    %s2961 = scalar_lea.vmem %s7, 16
    %2962 = vst [vmem:[%s2961] sm:$0x3] %v2960
    %s2963 = scalar_lea.vmem %s0, 9
    %v2964 = vld [vmem:[%s2963] sm:$0x1]
    %2965 = vmatprep.subr.bf16.mxu0 %v416
    %2966 = vmatpush1.bf16.msra.mxu0 %v415
    %2967 = vmatprep.subr.bf16.mxu0 %v412
    %2968 = vmatpush1.bf16.msra.mxu0 %v411
    %2969 = vmatprep.subr.bf16.mxu0 %v408
    %2970 = vmatpush1.bf16.msra.mxu0 %v407
    %2971 = vmatprep.subr.bf16.mxu0 %v404
    %2972 = vmatpush1.bf16.msra.mxu0 %v403
    %2973 = vmatprep.subr.bf16.mxu0 %v400
    %2974 = vmatpush1.bf16.msra.mxu0 %v399
    %2975 = vmatprep.subr.bf16.mxu0 %v396
    %2976 = vmatpush1.bf16.msra.mxu0 %v395
    %2977 = vmatprep.subr.bf16.mxu0 %v392
    %2978 = vmatpush1.bf16.msra.mxu0 %v391
    %2979 = vmatprep.subr.bf16.mxu0 %v388
    %2980 = vmatpush1.bf16.msra.mxu0 %v387
    %2981 = vmatprep.subr.bf16.mxu0 %v448
    %2982 = vmatpush2.bf16.msra.mxu0 %v447
    %2983 = vmatprep.subr.bf16.mxu0 %v444
    %2984 = vmatpush2.bf16.msra.mxu0 %v443
    %2985 = vmatprep.subr.bf16.mxu0 %v440
    %2986 = vmatpush2.bf16.msra.mxu0 %v439
    %2987 = vmatprep.subr.bf16.mxu0 %v436
    %2988 = vmatpush2.bf16.msra.mxu0 %v435
    %2989 = vmatprep.subr.bf16.mxu0 %v432
    %2990 = vmatpush2.bf16.msra.mxu0 %v431
    %2991 = vmatprep.subr.bf16.mxu0 %v428
    %2992 = vmatpush2.bf16.msra.mxu0 %v427
    %2993 = vmatprep.subr.bf16.mxu0 %v424
    %2994 = vmatpush2.bf16.msra.mxu0 %v423
    %2995 = vmatprep.subr.bf16.mxu0 %v420
    %2996 = vmatpush2.bf16.msra.mxu0 %v419
    %2997 = vmatprep.mubr.bf16.mxu0 %v2838
    %2998 = vmatmul.mubr.bf16.gmra.mxu0 %v2964
    %v2999 = vpop.f32.mrf.mxu0
    %v3000 = vadd.f32 %v178, %v2999
    %v3001 = vpop.f32.mrf.mxu0
    %v3002 = vadd.f32 %v182, %v3001
    %v3003 = vpop.f32.mrf.mxu0
    %v3004 = vpop.f32.mrf.mxu0
    %3005 = vdwg.mxu0
    %3006 = vmatprep.subr.bf16.mxu0 %v418
    %3007 = vmatpush1.bf16.msra.mxu0 %v417
    %3008 = vmatprep.subr.bf16.mxu0 %v414
    %3009 = vmatpush1.bf16.msra.mxu0 %v413
    %3010 = vmatprep.subr.bf16.mxu0 %v410
    %3011 = vmatpush1.bf16.msra.mxu0 %v409
    %3012 = vmatprep.subr.bf16.mxu0 %v406
    %3013 = vmatpush1.bf16.msra.mxu0 %v405
    %3014 = vmatprep.subr.bf16.mxu0 %v402
    %3015 = vmatpush1.bf16.msra.mxu0 %v401
    %3016 = vmatprep.subr.bf16.mxu0 %v398
    %3017 = vmatpush1.bf16.msra.mxu0 %v397
    %3018 = vmatprep.subr.bf16.mxu0 %v394
    %3019 = vmatpush1.bf16.msra.mxu0 %v393
    %3020 = vmatprep.subr.bf16.mxu0 %v390
    %3021 = vmatpush1.bf16.msra.mxu0 %v389
    %3022 = vmatprep.subr.bf16.mxu0 %v450
    %3023 = vmatpush2.bf16.msra.mxu0 %v449
    %3024 = vmatprep.subr.bf16.mxu0 %v446
    %3025 = vmatpush2.bf16.msra.mxu0 %v445
    %3026 = vmatprep.subr.bf16.mxu0 %v442
    %3027 = vmatpush2.bf16.msra.mxu0 %v441
    %3028 = vmatprep.subr.bf16.mxu0 %v438
    %3029 = vmatpush2.bf16.msra.mxu0 %v437
    %3030 = vmatprep.subr.bf16.mxu0 %v434
    %3031 = vmatpush2.bf16.msra.mxu0 %v433
    %3032 = vmatprep.subr.bf16.mxu0 %v430
    %3033 = vmatpush2.bf16.msra.mxu0 %v429
    %3034 = vmatprep.subr.bf16.mxu0 %v426
    %3035 = vmatpush2.bf16.msra.mxu0 %v425
    %3036 = vmatprep.subr.bf16.mxu0 %v422
    %3037 = vmatpush2.bf16.msra.mxu0 %v421
    %3038 = vmatprep.mubr.bf16.mxu0 %v2838
    %3039 = vmatmul.mubr.bf16.gmra.mxu0 %v2964
    %v3040 = vpop.f32.mrf.mxu0
    %v3041 = vadd.f32 %v186, %v3040
    %v3042 = vpop.f32.mrf.mxu0
    %v3043 = vadd.f32 %v190, %v3042
    %v3044 = vpop.f32.mrf.mxu0
    %v3045 = vpop.f32.mrf.mxu0
    %3046 = vdwg.mxu0
    %v3047 = vxor.u32 %v3000, 2147483648
    %v3048 = vmul.f32 %v3047, 1.442695
    %v3049 = vpow.pop %v3048
    %v3050 = vadd.f32 %v3049, 1.0
    %v3051 = vrcp.pop %v3050
    %v3052 = vmul.f32 1.0, %v3051
    %v3053 = vxor.u32 %v3002, 2147483648
    %v3054 = vmul.f32 %v3053, 1.442695
    %v3055 = vpow.pop %v3054
    %v3056 = vadd.f32 %v3055, 1.0
    %v3057 = vrcp.pop %v3056
    %v3058 = vmul.f32 1.0, %v3057
    %v3059 = vtanh.pop %v3041
    %v3060 = vxor.u32 %v3043, 2147483648
    %v3061 = vmul.f32 %v3060, 1.442695
    %v3062 = vpow.pop %v3061
    %v3063 = vadd.f32 %v3062, 1.0
    %v3064 = vrcp.pop %v3063
    %v3065 = vmul.f32 1.0, %v3064
    %v3066 = vmul.f32 %v3058, %v2835
    %v3067 = vmul.f32 %v3052, %v3059
    %v3068 = vadd.f32 %v3066, %v3067
    %v3069 = vtanh.pop %v3068
    %v3070 = vmul.f32 %v3065, %v3069
    %v3071 = vpack.c.bf16 %v3070, %v3070
    %v3072 = vpack.c.bf16 %v2945, %v2945
    %3073 = vmatprep.subr.bf16.mxu0 %v864
    %3074 = vmatpush1.bf16.msra.mxu0 %v863
    %3075 = vmatprep.subr.bf16.mxu0 %v860
    %3076 = vmatpush1.bf16.msra.mxu0 %v859
    %3077 = vmatprep.subr.bf16.mxu0 %v856
    %3078 = vmatpush1.bf16.msra.mxu0 %v855
    %3079 = vmatprep.subr.bf16.mxu0 %v852
    %3080 = vmatpush1.bf16.msra.mxu0 %v851
    %3081 = vmatprep.subr.bf16.mxu0 %v848
    %3082 = vmatpush1.bf16.msra.mxu0 %v847
    %3083 = vmatprep.subr.bf16.mxu0 %v844
    %3084 = vmatpush1.bf16.msra.mxu0 %v843
    %3085 = vmatprep.subr.bf16.mxu0 %v840
    %3086 = vmatpush1.bf16.msra.mxu0 %v839
    %3087 = vmatprep.subr.bf16.mxu0 %v836
    %3088 = vmatpush1.bf16.msra.mxu0 %v835
    %3089 = vmatprep.subr.bf16.mxu0 %v896
    %3090 = vmatpush2.bf16.msra.mxu0 %v895
    %3091 = vmatprep.subr.bf16.mxu0 %v892
    %3092 = vmatpush2.bf16.msra.mxu0 %v891
    %3093 = vmatprep.subr.bf16.mxu0 %v888
    %3094 = vmatpush2.bf16.msra.mxu0 %v887
    %3095 = vmatprep.subr.bf16.mxu0 %v884
    %3096 = vmatpush2.bf16.msra.mxu0 %v883
    %3097 = vmatprep.subr.bf16.mxu0 %v880
    %3098 = vmatpush2.bf16.msra.mxu0 %v879
    %3099 = vmatprep.subr.bf16.mxu0 %v876
    %3100 = vmatpush2.bf16.msra.mxu0 %v875
    %3101 = vmatprep.subr.bf16.mxu0 %v872
    %3102 = vmatpush2.bf16.msra.mxu0 %v871
    %3103 = vmatprep.subr.bf16.mxu0 %v868
    %3104 = vmatpush2.bf16.msra.mxu0 %v867
    %3105 = vmatprep.mubr.bf16.mxu0 %v3072
    %3106 = vmatmul.mubr.bf16.gmra.mxu0 %v3071
    %v3107 = vpop.f32.mrf.mxu0
    %v3108 = vadd.f32 %v626, %v3107
    %v3109 = vpop.f32.mrf.mxu0
    %v3110 = vadd.f32 %v630, %v3109
    %v3111 = vpop.f32.mrf.mxu0
    %v3112 = vpop.f32.mrf.mxu0
    %3113 = vdwg.mxu0
    %3114 = vmatprep.subr.bf16.mxu0 %v866
    %3115 = vmatpush1.bf16.msra.mxu0 %v865
    %3116 = vmatprep.subr.bf16.mxu0 %v862
    %3117 = vmatpush1.bf16.msra.mxu0 %v861
    %3118 = vmatprep.subr.bf16.mxu0 %v858
    %3119 = vmatpush1.bf16.msra.mxu0 %v857
    %3120 = vmatprep.subr.bf16.mxu0 %v854
    %3121 = vmatpush1.bf16.msra.mxu0 %v853
    %3122 = vmatprep.subr.bf16.mxu0 %v850
    %3123 = vmatpush1.bf16.msra.mxu0 %v849
    %3124 = vmatprep.subr.bf16.mxu0 %v846
    %3125 = vmatpush1.bf16.msra.mxu0 %v845
    %3126 = vmatprep.subr.bf16.mxu0 %v842
    %3127 = vmatpush1.bf16.msra.mxu0 %v841
    %3128 = vmatprep.subr.bf16.mxu0 %v838
    %3129 = vmatpush1.bf16.msra.mxu0 %v837
    %3130 = vmatprep.subr.bf16.mxu0 %v898
    %3131 = vmatpush2.bf16.msra.mxu0 %v897
    %3132 = vmatprep.subr.bf16.mxu0 %v894
    %3133 = vmatpush2.bf16.msra.mxu0 %v893
    %3134 = vmatprep.subr.bf16.mxu0 %v890
    %3135 = vmatpush2.bf16.msra.mxu0 %v889
    %3136 = vmatprep.subr.bf16.mxu0 %v886
    %3137 = vmatpush2.bf16.msra.mxu0 %v885
    %3138 = vmatprep.subr.bf16.mxu0 %v882
    %3139 = vmatpush2.bf16.msra.mxu0 %v881
    %3140 = vmatprep.subr.bf16.mxu0 %v878
    %3141 = vmatpush2.bf16.msra.mxu0 %v877
    %3142 = vmatprep.subr.bf16.mxu0 %v874
    %3143 = vmatpush2.bf16.msra.mxu0 %v873
    %3144 = vmatprep.subr.bf16.mxu0 %v870
    %3145 = vmatpush2.bf16.msra.mxu0 %v869
    %3146 = vmatprep.mubr.bf16.mxu0 %v3072
    %3147 = vmatmul.mubr.bf16.gmra.mxu0 %v3071
    %v3148 = vpop.f32.mrf.mxu0
    %v3149 = vadd.f32 %v634, %v3148
    %v3150 = vpop.f32.mrf.mxu0
    %v3151 = vadd.f32 %v638, %v3150
    %v3152 = vpop.f32.mrf.mxu0
    %v3153 = vpop.f32.mrf.mxu0
    %3154 = vdwg.mxu0
    %v3155 = vxor.u32 %v3108, 2147483648
    %v3156 = vmul.f32 %v3155, 1.442695
    %v3157 = vpow.pop %v3156
    %v3158 = vadd.f32 %v3157, 1.0
    %v3159 = vrcp.pop %v3158
    %v3160 = vmul.f32 1.0, %v3159
    %v3161 = vxor.u32 %v3110, 2147483648
    %v3162 = vmul.f32 %v3161, 1.442695
    %v3163 = vpow.pop %v3162
    %v3164 = vadd.f32 %v3163, 1.0
    %v3165 = vrcp.pop %v3164
    %v3166 = vmul.f32 1.0, %v3165
    %v3167 = vtanh.pop %v3149
    %v3168 = vxor.u32 %v3151, 2147483648
    %v3169 = vmul.f32 %v3168, 1.442695
    %v3170 = vpow.pop %v3169
    %v3171 = vadd.f32 %v3170, 1.0
    %v3172 = vrcp.pop %v3171
    %v3173 = vmul.f32 1.0, %v3172
    %v3174 = vmul.f32 %v3166, %v2943
    %v3175 = vmul.f32 %v3160, %v3167
    %v3176 = vadd.f32 %v3174, %v3175
    %v3177 = vtanh.pop %v3176
    %v3178 = vmul.f32 %v3173, %v3177
    %v3179 = vsel %vm1069, %v3178, 0.0
    %3180 = vadd.xlane.f32.xlu0 %v3179
    %v3181 = vpop.xlane.xlu0 %3180
    %v3182 = vmul.f32 %v3181, %v1073
    %v3183 = vsub.f32 %v3178, %v3182
    %v3184 = vmul.f32 %v3183, %v3183
    %v3185 = vsel %vm1069, %v3184, 0.0
    %3186 = vadd.xlane.f32.xlu0 %v3185
    %v3187 = vpop.xlane.xlu0 %3186
    %v3188 = vmul.f32 %v3187, %v1073
    %v3189 = vadd.f32 %v3188, 1e-05
    %v3190 = vrsqrt.pop %v3189
    %v3191 = vmul.f32 %v3183, %v3190
    %v3192 = vmul.f32 %v3191, %v1088
    %v3193 = vadd.f32 %v3192, %v1095
    %s3194 = scalar_lea.vmem %s7, 18
    %3195 = vst [vmem:[%s3194] sm:$0x3] %v3193
    %s3196 = scalar_lea.vmem %s0, 10
    %v3197 = vld [vmem:[%s3196] sm:$0x1]
    %3198 = vmatprep.subr.bf16.mxu0 %v416
    %3199 = vmatpush1.bf16.msra.mxu0 %v415
    %3200 = vmatprep.subr.bf16.mxu0 %v412
    %3201 = vmatpush1.bf16.msra.mxu0 %v411
    %3202 = vmatprep.subr.bf16.mxu0 %v408
    %3203 = vmatpush1.bf16.msra.mxu0 %v407
    %3204 = vmatprep.subr.bf16.mxu0 %v404
    %3205 = vmatpush1.bf16.msra.mxu0 %v403
    %3206 = vmatprep.subr.bf16.mxu0 %v400
    %3207 = vmatpush1.bf16.msra.mxu0 %v399
    %3208 = vmatprep.subr.bf16.mxu0 %v396
    %3209 = vmatpush1.bf16.msra.mxu0 %v395
    %3210 = vmatprep.subr.bf16.mxu0 %v392
    %3211 = vmatpush1.bf16.msra.mxu0 %v391
    %3212 = vmatprep.subr.bf16.mxu0 %v388
    %3213 = vmatpush1.bf16.msra.mxu0 %v387
    %3214 = vmatprep.subr.bf16.mxu0 %v448
    %3215 = vmatpush2.bf16.msra.mxu0 %v447
    %3216 = vmatprep.subr.bf16.mxu0 %v444
    %3217 = vmatpush2.bf16.msra.mxu0 %v443
    %3218 = vmatprep.subr.bf16.mxu0 %v440
    %3219 = vmatpush2.bf16.msra.mxu0 %v439
    %3220 = vmatprep.subr.bf16.mxu0 %v436
    %3221 = vmatpush2.bf16.msra.mxu0 %v435
    %3222 = vmatprep.subr.bf16.mxu0 %v432
    %3223 = vmatpush2.bf16.msra.mxu0 %v431
    %3224 = vmatprep.subr.bf16.mxu0 %v428
    %3225 = vmatpush2.bf16.msra.mxu0 %v427
    %3226 = vmatprep.subr.bf16.mxu0 %v424
    %3227 = vmatpush2.bf16.msra.mxu0 %v423
    %3228 = vmatprep.subr.bf16.mxu0 %v420
    %3229 = vmatpush2.bf16.msra.mxu0 %v419
    %3230 = vmatprep.mubr.bf16.mxu0 %v3071
    %3231 = vmatmul.mubr.bf16.gmra.mxu0 %v3197
    %v3232 = vpop.f32.mrf.mxu0
    %v3233 = vadd.f32 %v178, %v3232
    %v3234 = vpop.f32.mrf.mxu0
    %v3235 = vadd.f32 %v182, %v3234
    %v3236 = vpop.f32.mrf.mxu0
    %v3237 = vpop.f32.mrf.mxu0
    %3238 = vdwg.mxu0
    %3239 = vmatprep.subr.bf16.mxu0 %v418
    %3240 = vmatpush1.bf16.msra.mxu0 %v417
    %3241 = vmatprep.subr.bf16.mxu0 %v414
    %3242 = vmatpush1.bf16.msra.mxu0 %v413
    %3243 = vmatprep.subr.bf16.mxu0 %v410
    %3244 = vmatpush1.bf16.msra.mxu0 %v409
    %3245 = vmatprep.subr.bf16.mxu0 %v406
    %3246 = vmatpush1.bf16.msra.mxu0 %v405
    %3247 = vmatprep.subr.bf16.mxu0 %v402
    %3248 = vmatpush1.bf16.msra.mxu0 %v401
    %3249 = vmatprep.subr.bf16.mxu0 %v398
    %3250 = vmatpush1.bf16.msra.mxu0 %v397
    %3251 = vmatprep.subr.bf16.mxu0 %v394
    %3252 = vmatpush1.bf16.msra.mxu0 %v393
    %3253 = vmatprep.subr.bf16.mxu0 %v390
    %3254 = vmatpush1.bf16.msra.mxu0 %v389
    %3255 = vmatprep.subr.bf16.mxu0 %v450
    %3256 = vmatpush2.bf16.msra.mxu0 %v449
    %3257 = vmatprep.subr.bf16.mxu0 %v446
    %3258 = vmatpush2.bf16.msra.mxu0 %v445
    %3259 = vmatprep.subr.bf16.mxu0 %v442
    %3260 = vmatpush2.bf16.msra.mxu0 %v441
    %3261 = vmatprep.subr.bf16.mxu0 %v438
    %3262 = vmatpush2.bf16.msra.mxu0 %v437
    %3263 = vmatprep.subr.bf16.mxu0 %v434
    %3264 = vmatpush2.bf16.msra.mxu0 %v433
    %3265 = vmatprep.subr.bf16.mxu0 %v430
    %3266 = vmatpush2.bf16.msra.mxu0 %v429
    %3267 = vmatprep.subr.bf16.mxu0 %v426
    %3268 = vmatpush2.bf16.msra.mxu0 %v425
    %3269 = vmatprep.subr.bf16.mxu0 %v422
    %3270 = vmatpush2.bf16.msra.mxu0 %v421
    %3271 = vmatprep.mubr.bf16.mxu0 %v3071
    %3272 = vmatmul.mubr.bf16.gmra.mxu0 %v3197
    %v3273 = vpop.f32.mrf.mxu0
    %v3274 = vadd.f32 %v186, %v3273
    %v3275 = vpop.f32.mrf.mxu0
    %v3276 = vadd.f32 %v190, %v3275
    %v3277 = vpop.f32.mrf.mxu0
    %v3278 = vpop.f32.mrf.mxu0
    %3279 = vdwg.mxu0
    %v3280 = vxor.u32 %v3233, 2147483648
    %v3281 = vmul.f32 %v3280, 1.442695
    %v3282 = vpow.pop %v3281
    %v3283 = vadd.f32 %v3282, 1.0
    %v3284 = vrcp.pop %v3283
    %v3285 = vmul.f32 1.0, %v3284
    %v3286 = vxor.u32 %v3235, 2147483648
    %v3287 = vmul.f32 %v3286, 1.442695
    %v3288 = vpow.pop %v3287
    %v3289 = vadd.f32 %v3288, 1.0
    %v3290 = vrcp.pop %v3289
    %v3291 = vmul.f32 1.0, %v3290
    %v3292 = vtanh.pop %v3274
    %v3293 = vxor.u32 %v3276, 2147483648
    %v3294 = vmul.f32 %v3293, 1.442695
    %v3295 = vpow.pop %v3294
    %v3296 = vadd.f32 %v3295, 1.0
    %v3297 = vrcp.pop %v3296
    %v3298 = vmul.f32 1.0, %v3297
    %v3299 = vmul.f32 %v3291, %v3068
    %v3300 = vmul.f32 %v3285, %v3292
    %v3301 = vadd.f32 %v3299, %v3300
    %v3302 = vtanh.pop %v3301
    %v3303 = vmul.f32 %v3298, %v3302
    %v3304 = vpack.c.bf16 %v3303, %v3303
    %v3305 = vpack.c.bf16 %v3178, %v3178
    %3306 = vmatprep.subr.bf16.mxu0 %v864
    %3307 = vmatpush1.bf16.msra.mxu0 %v863
    %3308 = vmatprep.subr.bf16.mxu0 %v860
    %3309 = vmatpush1.bf16.msra.mxu0 %v859
    %3310 = vmatprep.subr.bf16.mxu0 %v856
    %3311 = vmatpush1.bf16.msra.mxu0 %v855
    %3312 = vmatprep.subr.bf16.mxu0 %v852
    %3313 = vmatpush1.bf16.msra.mxu0 %v851
    %3314 = vmatprep.subr.bf16.mxu0 %v848
    %3315 = vmatpush1.bf16.msra.mxu0 %v847
    %3316 = vmatprep.subr.bf16.mxu0 %v844
    %3317 = vmatpush1.bf16.msra.mxu0 %v843
    %3318 = vmatprep.subr.bf16.mxu0 %v840
    %3319 = vmatpush1.bf16.msra.mxu0 %v839
    %3320 = vmatprep.subr.bf16.mxu0 %v836
    %3321 = vmatpush1.bf16.msra.mxu0 %v835
    %3322 = vmatprep.subr.bf16.mxu0 %v896
    %3323 = vmatpush2.bf16.msra.mxu0 %v895
    %3324 = vmatprep.subr.bf16.mxu0 %v892
    %3325 = vmatpush2.bf16.msra.mxu0 %v891
    %3326 = vmatprep.subr.bf16.mxu0 %v888
    %3327 = vmatpush2.bf16.msra.mxu0 %v887
    %3328 = vmatprep.subr.bf16.mxu0 %v884
    %3329 = vmatpush2.bf16.msra.mxu0 %v883
    %3330 = vmatprep.subr.bf16.mxu0 %v880
    %3331 = vmatpush2.bf16.msra.mxu0 %v879
    %3332 = vmatprep.subr.bf16.mxu0 %v876
    %3333 = vmatpush2.bf16.msra.mxu0 %v875
    %3334 = vmatprep.subr.bf16.mxu0 %v872
    %3335 = vmatpush2.bf16.msra.mxu0 %v871
    %3336 = vmatprep.subr.bf16.mxu0 %v868
    %3337 = vmatpush2.bf16.msra.mxu0 %v867
    %3338 = vmatprep.mubr.bf16.mxu0 %v3305
    %3339 = vmatmul.mubr.bf16.gmra.mxu0 %v3304
    %v3340 = vpop.f32.mrf.mxu0
    %v3341 = vadd.f32 %v626, %v3340
    %v3342 = vpop.f32.mrf.mxu0
    %v3343 = vadd.f32 %v630, %v3342
    %v3344 = vpop.f32.mrf.mxu0
    %v3345 = vpop.f32.mrf.mxu0
    %3346 = vdwg.mxu0
    %3347 = vmatprep.subr.bf16.mxu0 %v866
    %3348 = vmatpush1.bf16.msra.mxu0 %v865
    %3349 = vmatprep.subr.bf16.mxu0 %v862
    %3350 = vmatpush1.bf16.msra.mxu0 %v861
    %3351 = vmatprep.subr.bf16.mxu0 %v858
    %3352 = vmatpush1.bf16.msra.mxu0 %v857
    %3353 = vmatprep.subr.bf16.mxu0 %v854
    %3354 = vmatpush1.bf16.msra.mxu0 %v853
    %3355 = vmatprep.subr.bf16.mxu0 %v850
    %3356 = vmatpush1.bf16.msra.mxu0 %v849
    %3357 = vmatprep.subr.bf16.mxu0 %v846
    %3358 = vmatpush1.bf16.msra.mxu0 %v845
    %3359 = vmatprep.subr.bf16.mxu0 %v842
    %3360 = vmatpush1.bf16.msra.mxu0 %v841
    %3361 = vmatprep.subr.bf16.mxu0 %v838
    %3362 = vmatpush1.bf16.msra.mxu0 %v837
    %3363 = vmatprep.subr.bf16.mxu0 %v898
    %3364 = vmatpush2.bf16.msra.mxu0 %v897
    %3365 = vmatprep.subr.bf16.mxu0 %v894
    %3366 = vmatpush2.bf16.msra.mxu0 %v893
    %3367 = vmatprep.subr.bf16.mxu0 %v890
    %3368 = vmatpush2.bf16.msra.mxu0 %v889
    %3369 = vmatprep.subr.bf16.mxu0 %v886
    %3370 = vmatpush2.bf16.msra.mxu0 %v885
    %3371 = vmatprep.subr.bf16.mxu0 %v882
    %3372 = vmatpush2.bf16.msra.mxu0 %v881
    %3373 = vmatprep.subr.bf16.mxu0 %v878
    %3374 = vmatpush2.bf16.msra.mxu0 %v877
    %3375 = vmatprep.subr.bf16.mxu0 %v874
    %3376 = vmatpush2.bf16.msra.mxu0 %v873
    %3377 = vmatprep.subr.bf16.mxu0 %v870
    %3378 = vmatpush2.bf16.msra.mxu0 %v869
    %3379 = vmatprep.mubr.bf16.mxu0 %v3305
    %3380 = vmatmul.mubr.bf16.gmra.mxu0 %v3304
    %v3381 = vpop.f32.mrf.mxu0
    %v3382 = vadd.f32 %v634, %v3381
    %v3383 = vpop.f32.mrf.mxu0
    %v3384 = vadd.f32 %v638, %v3383
    %v3385 = vpop.f32.mrf.mxu0
    %v3386 = vpop.f32.mrf.mxu0
    %3387 = vdwg.mxu0
    %v3388 = vxor.u32 %v3341, 2147483648
    %v3389 = vmul.f32 %v3388, 1.442695
    %v3390 = vpow.pop %v3389
    %v3391 = vadd.f32 %v3390, 1.0
    %v3392 = vrcp.pop %v3391
    %v3393 = vmul.f32 1.0, %v3392
    %v3394 = vxor.u32 %v3343, 2147483648
    %v3395 = vmul.f32 %v3394, 1.442695
    %v3396 = vpow.pop %v3395
    %v3397 = vadd.f32 %v3396, 1.0
    %v3398 = vrcp.pop %v3397
    %v3399 = vmul.f32 1.0, %v3398
    %v3400 = vtanh.pop %v3382
    %v3401 = vxor.u32 %v3384, 2147483648
    %v3402 = vmul.f32 %v3401, 1.442695
    %v3403 = vpow.pop %v3402
    %v3404 = vadd.f32 %v3403, 1.0
    %v3405 = vrcp.pop %v3404
    %v3406 = vmul.f32 1.0, %v3405
    %v3407 = vmul.f32 %v3399, %v3176
    %v3408 = vmul.f32 %v3393, %v3400
    %v3409 = vadd.f32 %v3407, %v3408
    %v3410 = vtanh.pop %v3409
    %v3411 = vmul.f32 %v3406, %v3410
    %v3412 = vsel %vm1069, %v3411, 0.0
    %3413 = vadd.xlane.f32.xlu0 %v3412
    %v3414 = vpop.xlane.xlu0 %3413
    %v3415 = vmul.f32 %v3414, %v1073
    %v3416 = vsub.f32 %v3411, %v3415
    %v3417 = vmul.f32 %v3416, %v3416
    %v3418 = vsel %vm1069, %v3417, 0.0
    %3419 = vadd.xlane.f32.xlu0 %v3418
    %v3420 = vpop.xlane.xlu0 %3419
    %v3421 = vmul.f32 %v3420, %v1073
    %v3422 = vadd.f32 %v3421, 1e-05
    %v3423 = vrsqrt.pop %v3422
    %v3424 = vmul.f32 %v3416, %v3423
    %v3425 = vmul.f32 %v3424, %v1088
    %v3426 = vadd.f32 %v3425, %v1095
    %s3427 = scalar_lea.vmem %s7, 20
    %3428 = vst [vmem:[%s3427] sm:$0x3] %v3426
    %s3429 = scalar_lea.vmem %s0, 11
    %v3430 = vld [vmem:[%s3429] sm:$0x1]
    %3431 = vmatprep.subr.bf16.mxu0 %v416
    %3432 = vmatpush1.bf16.msra.mxu0 %v415
    %3433 = vmatprep.subr.bf16.mxu0 %v412
    %3434 = vmatpush1.bf16.msra.mxu0 %v411
    %3435 = vmatprep.subr.bf16.mxu0 %v408
    %3436 = vmatpush1.bf16.msra.mxu0 %v407
    %3437 = vmatprep.subr.bf16.mxu0 %v404
    %3438 = vmatpush1.bf16.msra.mxu0 %v403
    %3439 = vmatprep.subr.bf16.mxu0 %v400
    %3440 = vmatpush1.bf16.msra.mxu0 %v399
    %3441 = vmatprep.subr.bf16.mxu0 %v396
    %3442 = vmatpush1.bf16.msra.mxu0 %v395
    %3443 = vmatprep.subr.bf16.mxu0 %v392
    %3444 = vmatpush1.bf16.msra.mxu0 %v391
    %3445 = vmatprep.subr.bf16.mxu0 %v388
    %3446 = vmatpush1.bf16.msra.mxu0 %v387
    %3447 = vmatprep.subr.bf16.mxu0 %v448
    %3448 = vmatpush2.bf16.msra.mxu0 %v447
    %3449 = vmatprep.subr.bf16.mxu0 %v444
    %3450 = vmatpush2.bf16.msra.mxu0 %v443
    %3451 = vmatprep.subr.bf16.mxu0 %v440
    %3452 = vmatpush2.bf16.msra.mxu0 %v439
    %3453 = vmatprep.subr.bf16.mxu0 %v436
    %3454 = vmatpush2.bf16.msra.mxu0 %v435
    %3455 = vmatprep.subr.bf16.mxu0 %v432
    %3456 = vmatpush2.bf16.msra.mxu0 %v431
    %3457 = vmatprep.subr.bf16.mxu0 %v428
    %3458 = vmatpush2.bf16.msra.mxu0 %v427
    %3459 = vmatprep.subr.bf16.mxu0 %v424
    %3460 = vmatpush2.bf16.msra.mxu0 %v423
    %3461 = vmatprep.subr.bf16.mxu0 %v420
    %3462 = vmatpush2.bf16.msra.mxu0 %v419
    %3463 = vmatprep.mubr.bf16.mxu0 %v3304
    %3464 = vmatmul.mubr.bf16.gmra.mxu0 %v3430
    %v3465 = vpop.f32.mrf.mxu0
    %v3466 = vadd.f32 %v178, %v3465
    %v3467 = vpop.f32.mrf.mxu0
    %v3468 = vadd.f32 %v182, %v3467
    %v3469 = vpop.f32.mrf.mxu0
    %v3470 = vpop.f32.mrf.mxu0
    %3471 = vdwg.mxu0
    %3472 = vmatprep.subr.bf16.mxu0 %v418
    %3473 = vmatpush1.bf16.msra.mxu0 %v417
    %3474 = vmatprep.subr.bf16.mxu0 %v414
    %3475 = vmatpush1.bf16.msra.mxu0 %v413
    %3476 = vmatprep.subr.bf16.mxu0 %v410
    %3477 = vmatpush1.bf16.msra.mxu0 %v409
    %3478 = vmatprep.subr.bf16.mxu0 %v406
    %3479 = vmatpush1.bf16.msra.mxu0 %v405
    %3480 = vmatprep.subr.bf16.mxu0 %v402
    %3481 = vmatpush1.bf16.msra.mxu0 %v401
    %3482 = vmatprep.subr.bf16.mxu0 %v398
    %3483 = vmatpush1.bf16.msra.mxu0 %v397
    %3484 = vmatprep.subr.bf16.mxu0 %v394
    %3485 = vmatpush1.bf16.msra.mxu0 %v393
    %3486 = vmatprep.subr.bf16.mxu0 %v390
    %3487 = vmatpush1.bf16.msra.mxu0 %v389
    %3488 = vmatprep.subr.bf16.mxu0 %v450
    %3489 = vmatpush2.bf16.msra.mxu0 %v449
    %3490 = vmatprep.subr.bf16.mxu0 %v446
    %3491 = vmatpush2.bf16.msra.mxu0 %v445
    %3492 = vmatprep.subr.bf16.mxu0 %v442
    %3493 = vmatpush2.bf16.msra.mxu0 %v441
    %3494 = vmatprep.subr.bf16.mxu0 %v438
    %3495 = vmatpush2.bf16.msra.mxu0 %v437
    %3496 = vmatprep.subr.bf16.mxu0 %v434
    %3497 = vmatpush2.bf16.msra.mxu0 %v433
    %3498 = vmatprep.subr.bf16.mxu0 %v430
    %3499 = vmatpush2.bf16.msra.mxu0 %v429
    %3500 = vmatprep.subr.bf16.mxu0 %v426
    %3501 = vmatpush2.bf16.msra.mxu0 %v425
    %3502 = vmatprep.subr.bf16.mxu0 %v422
    %3503 = vmatpush2.bf16.msra.mxu0 %v421
    %3504 = vmatprep.mubr.bf16.mxu0 %v3304
    %3505 = vmatmul.mubr.bf16.gmra.mxu0 %v3430
    %v3506 = vpop.f32.mrf.mxu0
    %v3507 = vadd.f32 %v186, %v3506
    %v3508 = vpop.f32.mrf.mxu0
    %v3509 = vadd.f32 %v190, %v3508
    %v3510 = vpop.f32.mrf.mxu0
    %v3511 = vpop.f32.mrf.mxu0
    %3512 = vdwg.mxu0
    %v3513 = vxor.u32 %v3466, 2147483648
    %v3514 = vmul.f32 %v3513, 1.442695
    %v3515 = vpow.pop %v3514
    %v3516 = vadd.f32 %v3515, 1.0
    %v3517 = vrcp.pop %v3516
    %v3518 = vmul.f32 1.0, %v3517
    %v3519 = vxor.u32 %v3468, 2147483648
    %v3520 = vmul.f32 %v3519, 1.442695
    %v3521 = vpow.pop %v3520
    %v3522 = vadd.f32 %v3521, 1.0
    %v3523 = vrcp.pop %v3522
    %v3524 = vmul.f32 1.0, %v3523
    %v3525 = vtanh.pop %v3507
    %v3526 = vxor.u32 %v3509, 2147483648
    %v3527 = vmul.f32 %v3526, 1.442695
    %v3528 = vpow.pop %v3527
    %v3529 = vadd.f32 %v3528, 1.0
    %v3530 = vrcp.pop %v3529
    %v3531 = vmul.f32 1.0, %v3530
    %v3532 = vmul.f32 %v3524, %v3301
    %v3533 = vmul.f32 %v3518, %v3525
    %v3534 = vadd.f32 %v3532, %v3533
    %v3535 = vtanh.pop %v3534
    %v3536 = vmul.f32 %v3531, %v3535
    %v3537 = vpack.c.bf16 %v3536, %v3536
    %v3538 = vpack.c.bf16 %v3411, %v3411
    %3539 = vmatprep.subr.bf16.mxu0 %v864
    %3540 = vmatpush1.bf16.msra.mxu0 %v863
    %3541 = vmatprep.subr.bf16.mxu0 %v860
    %3542 = vmatpush1.bf16.msra.mxu0 %v859
    %3543 = vmatprep.subr.bf16.mxu0 %v856
    %3544 = vmatpush1.bf16.msra.mxu0 %v855
    %3545 = vmatprep.subr.bf16.mxu0 %v852
    %3546 = vmatpush1.bf16.msra.mxu0 %v851
    %3547 = vmatprep.subr.bf16.mxu0 %v848
    %3548 = vmatpush1.bf16.msra.mxu0 %v847
    %3549 = vmatprep.subr.bf16.mxu0 %v844
    %3550 = vmatpush1.bf16.msra.mxu0 %v843
    %3551 = vmatprep.subr.bf16.mxu0 %v840
    %3552 = vmatpush1.bf16.msra.mxu0 %v839
    %3553 = vmatprep.subr.bf16.mxu0 %v836
    %3554 = vmatpush1.bf16.msra.mxu0 %v835
    %3555 = vmatprep.subr.bf16.mxu0 %v896
    %3556 = vmatpush2.bf16.msra.mxu0 %v895
    %3557 = vmatprep.subr.bf16.mxu0 %v892
    %3558 = vmatpush2.bf16.msra.mxu0 %v891
    %3559 = vmatprep.subr.bf16.mxu0 %v888
    %3560 = vmatpush2.bf16.msra.mxu0 %v887
    %3561 = vmatprep.subr.bf16.mxu0 %v884
    %3562 = vmatpush2.bf16.msra.mxu0 %v883
    %3563 = vmatprep.subr.bf16.mxu0 %v880
    %3564 = vmatpush2.bf16.msra.mxu0 %v879
    %3565 = vmatprep.subr.bf16.mxu0 %v876
    %3566 = vmatpush2.bf16.msra.mxu0 %v875
    %3567 = vmatprep.subr.bf16.mxu0 %v872
    %3568 = vmatpush2.bf16.msra.mxu0 %v871
    %3569 = vmatprep.subr.bf16.mxu0 %v868
    %3570 = vmatpush2.bf16.msra.mxu0 %v867
    %3571 = vmatprep.mubr.bf16.mxu0 %v3538
    %3572 = vmatmul.mubr.bf16.gmra.mxu0 %v3537
    %v3573 = vpop.f32.mrf.mxu0
    %v3574 = vadd.f32 %v626, %v3573
    %v3575 = vpop.f32.mrf.mxu0
    %v3576 = vadd.f32 %v630, %v3575
    %v3577 = vpop.f32.mrf.mxu0
    %v3578 = vpop.f32.mrf.mxu0
    %3579 = vdwg.mxu0
    %3580 = vmatprep.subr.bf16.mxu0 %v866
    %3581 = vmatpush1.bf16.msra.mxu0 %v865
    %3582 = vmatprep.subr.bf16.mxu0 %v862
    %3583 = vmatpush1.bf16.msra.mxu0 %v861
    %3584 = vmatprep.subr.bf16.mxu0 %v858
    %3585 = vmatpush1.bf16.msra.mxu0 %v857
    %3586 = vmatprep.subr.bf16.mxu0 %v854
    %3587 = vmatpush1.bf16.msra.mxu0 %v853
    %3588 = vmatprep.subr.bf16.mxu0 %v850
    %3589 = vmatpush1.bf16.msra.mxu0 %v849
    %3590 = vmatprep.subr.bf16.mxu0 %v846
    %3591 = vmatpush1.bf16.msra.mxu0 %v845
    %3592 = vmatprep.subr.bf16.mxu0 %v842
    %3593 = vmatpush1.bf16.msra.mxu0 %v841
    %3594 = vmatprep.subr.bf16.mxu0 %v838
    %3595 = vmatpush1.bf16.msra.mxu0 %v837
    %3596 = vmatprep.subr.bf16.mxu0 %v898
    %3597 = vmatpush2.bf16.msra.mxu0 %v897
    %3598 = vmatprep.subr.bf16.mxu0 %v894
    %3599 = vmatpush2.bf16.msra.mxu0 %v893
    %3600 = vmatprep.subr.bf16.mxu0 %v890
    %3601 = vmatpush2.bf16.msra.mxu0 %v889
    %3602 = vmatprep.subr.bf16.mxu0 %v886
    %3603 = vmatpush2.bf16.msra.mxu0 %v885
    %3604 = vmatprep.subr.bf16.mxu0 %v882
    %3605 = vmatpush2.bf16.msra.mxu0 %v881
    %3606 = vmatprep.subr.bf16.mxu0 %v878
    %3607 = vmatpush2.bf16.msra.mxu0 %v877
    %3608 = vmatprep.subr.bf16.mxu0 %v874
    %3609 = vmatpush2.bf16.msra.mxu0 %v873
    %3610 = vmatprep.subr.bf16.mxu0 %v870
    %3611 = vmatpush2.bf16.msra.mxu0 %v869
    %3612 = vmatprep.mubr.bf16.mxu0 %v3538
    %3613 = vmatmul.mubr.bf16.gmra.mxu0 %v3537
    %v3614 = vpop.f32.mrf.mxu0
    %v3615 = vadd.f32 %v634, %v3614
    %v3616 = vpop.f32.mrf.mxu0
    %v3617 = vadd.f32 %v638, %v3616
    %v3618 = vpop.f32.mrf.mxu0
    %v3619 = vpop.f32.mrf.mxu0
    %3620 = vdwg.mxu0
    %v3621 = vxor.u32 %v3574, 2147483648
    %v3622 = vmul.f32 %v3621, 1.442695
    %v3623 = vpow.pop %v3622
    %v3624 = vadd.f32 %v3623, 1.0
    %v3625 = vrcp.pop %v3624
    %v3626 = vmul.f32 1.0, %v3625
    %v3627 = vxor.u32 %v3576, 2147483648
    %v3628 = vmul.f32 %v3627, 1.442695
    %v3629 = vpow.pop %v3628
    %v3630 = vadd.f32 %v3629, 1.0
    %v3631 = vrcp.pop %v3630
    %v3632 = vmul.f32 1.0, %v3631
    %v3633 = vtanh.pop %v3615
    %v3634 = vxor.u32 %v3617, 2147483648
    %v3635 = vmul.f32 %v3634, 1.442695
    %v3636 = vpow.pop %v3635
    %v3637 = vadd.f32 %v3636, 1.0
    %v3638 = vrcp.pop %v3637
    %v3639 = vmul.f32 1.0, %v3638
    %v3640 = vmul.f32 %v3632, %v3409
    %v3641 = vmul.f32 %v3626, %v3633
    %v3642 = vadd.f32 %v3640, %v3641
    %v3643 = vtanh.pop %v3642
    %v3644 = vmul.f32 %v3639, %v3643
    %v3645 = vsel %vm1069, %v3644, 0.0
    %3646 = vadd.xlane.f32.xlu0 %v3645
    %v3647 = vpop.xlane.xlu0 %3646
    %v3648 = vmul.f32 %v3647, %v1073
    %v3649 = vsub.f32 %v3644, %v3648
    %v3650 = vmul.f32 %v3649, %v3649
    %v3651 = vsel %vm1069, %v3650, 0.0
    %3652 = vadd.xlane.f32.xlu0 %v3651
    %v3653 = vpop.xlane.xlu0 %3652
    %v3654 = vmul.f32 %v3653, %v1073
    %v3655 = vadd.f32 %v3654, 1e-05
    %v3656 = vrsqrt.pop %v3655
    %v3657 = vmul.f32 %v3649, %v3656
    %v3658 = vmul.f32 %v3657, %v1088
    %v3659 = vadd.f32 %v3658, %v1095
    %s3660 = scalar_lea.vmem %s7, 22
    %3661 = vst [vmem:[%s3660] sm:$0x3] %v3659
    %s3662 = scalar_lea.vmem %s0, 12
    %v3663 = vld [vmem:[%s3662] sm:$0x1]
    %3664 = vmatprep.subr.bf16.mxu0 %v416
    %3665 = vmatpush1.bf16.msra.mxu0 %v415
    %3666 = vmatprep.subr.bf16.mxu0 %v412
    %3667 = vmatpush1.bf16.msra.mxu0 %v411
    %3668 = vmatprep.subr.bf16.mxu0 %v408
    %3669 = vmatpush1.bf16.msra.mxu0 %v407
    %3670 = vmatprep.subr.bf16.mxu0 %v404
    %3671 = vmatpush1.bf16.msra.mxu0 %v403
    %3672 = vmatprep.subr.bf16.mxu0 %v400
    %3673 = vmatpush1.bf16.msra.mxu0 %v399
    %3674 = vmatprep.subr.bf16.mxu0 %v396
    %3675 = vmatpush1.bf16.msra.mxu0 %v395
    %3676 = vmatprep.subr.bf16.mxu0 %v392
    %3677 = vmatpush1.bf16.msra.mxu0 %v391
    %3678 = vmatprep.subr.bf16.mxu0 %v388
    %3679 = vmatpush1.bf16.msra.mxu0 %v387
    %3680 = vmatprep.subr.bf16.mxu0 %v448
    %3681 = vmatpush2.bf16.msra.mxu0 %v447
    %3682 = vmatprep.subr.bf16.mxu0 %v444
    %3683 = vmatpush2.bf16.msra.mxu0 %v443
    %3684 = vmatprep.subr.bf16.mxu0 %v440
    %3685 = vmatpush2.bf16.msra.mxu0 %v439
    %3686 = vmatprep.subr.bf16.mxu0 %v436
    %3687 = vmatpush2.bf16.msra.mxu0 %v435
    %3688 = vmatprep.subr.bf16.mxu0 %v432
    %3689 = vmatpush2.bf16.msra.mxu0 %v431
    %3690 = vmatprep.subr.bf16.mxu0 %v428
    %3691 = vmatpush2.bf16.msra.mxu0 %v427
    %3692 = vmatprep.subr.bf16.mxu0 %v424
    %3693 = vmatpush2.bf16.msra.mxu0 %v423
    %3694 = vmatprep.subr.bf16.mxu0 %v420
    %3695 = vmatpush2.bf16.msra.mxu0 %v419
    %3696 = vmatprep.mubr.bf16.mxu0 %v3537
    %3697 = vmatmul.mubr.bf16.gmra.mxu0 %v3663
    %v3698 = vpop.f32.mrf.mxu0
    %v3699 = vadd.f32 %v178, %v3698
    %v3700 = vpop.f32.mrf.mxu0
    %v3701 = vadd.f32 %v182, %v3700
    %v3702 = vpop.f32.mrf.mxu0
    %v3703 = vpop.f32.mrf.mxu0
    %3704 = vdwg.mxu0
    %3705 = vmatprep.subr.bf16.mxu0 %v418
    %3706 = vmatpush1.bf16.msra.mxu0 %v417
    %3707 = vmatprep.subr.bf16.mxu0 %v414
    %3708 = vmatpush1.bf16.msra.mxu0 %v413
    %3709 = vmatprep.subr.bf16.mxu0 %v410
    %3710 = vmatpush1.bf16.msra.mxu0 %v409
    %3711 = vmatprep.subr.bf16.mxu0 %v406
    %3712 = vmatpush1.bf16.msra.mxu0 %v405
    %3713 = vmatprep.subr.bf16.mxu0 %v402
    %3714 = vmatpush1.bf16.msra.mxu0 %v401
    %3715 = vmatprep.subr.bf16.mxu0 %v398
    %3716 = vmatpush1.bf16.msra.mxu0 %v397
    %3717 = vmatprep.subr.bf16.mxu0 %v394
    %3718 = vmatpush1.bf16.msra.mxu0 %v393
    %3719 = vmatprep.subr.bf16.mxu0 %v390
    %3720 = vmatpush1.bf16.msra.mxu0 %v389
    %3721 = vmatprep.subr.bf16.mxu0 %v450
    %3722 = vmatpush2.bf16.msra.mxu0 %v449
    %3723 = vmatprep.subr.bf16.mxu0 %v446
    %3724 = vmatpush2.bf16.msra.mxu0 %v445
    %3725 = vmatprep.subr.bf16.mxu0 %v442
    %3726 = vmatpush2.bf16.msra.mxu0 %v441
    %3727 = vmatprep.subr.bf16.mxu0 %v438
    %3728 = vmatpush2.bf16.msra.mxu0 %v437
    %3729 = vmatprep.subr.bf16.mxu0 %v434
    %3730 = vmatpush2.bf16.msra.mxu0 %v433
    %3731 = vmatprep.subr.bf16.mxu0 %v430
    %3732 = vmatpush2.bf16.msra.mxu0 %v429
    %3733 = vmatprep.subr.bf16.mxu0 %v426
    %3734 = vmatpush2.bf16.msra.mxu0 %v425
    %3735 = vmatprep.subr.bf16.mxu0 %v422
    %3736 = vmatpush2.bf16.msra.mxu0 %v421
    %3737 = vmatprep.mubr.bf16.mxu0 %v3537
    %3738 = vmatmul.mubr.bf16.gmra.mxu0 %v3663
    %v3739 = vpop.f32.mrf.mxu0
    %v3740 = vadd.f32 %v186, %v3739
    %v3741 = vpop.f32.mrf.mxu0
    %v3742 = vadd.f32 %v190, %v3741
    %v3743 = vpop.f32.mrf.mxu0
    %v3744 = vpop.f32.mrf.mxu0
    %3745 = vdwg.mxu0
    %v3746 = vxor.u32 %v3699, 2147483648
    %v3747 = vmul.f32 %v3746, 1.442695
    %v3748 = vpow.pop %v3747
    %v3749 = vadd.f32 %v3748, 1.0
    %v3750 = vrcp.pop %v3749
    %v3751 = vmul.f32 1.0, %v3750
    %v3752 = vxor.u32 %v3701, 2147483648
    %v3753 = vmul.f32 %v3752, 1.442695
    %v3754 = vpow.pop %v3753
    %v3755 = vadd.f32 %v3754, 1.0
    %v3756 = vrcp.pop %v3755
    %v3757 = vmul.f32 1.0, %v3756
    %v3758 = vtanh.pop %v3740
    %v3759 = vxor.u32 %v3742, 2147483648
    %v3760 = vmul.f32 %v3759, 1.442695
    %v3761 = vpow.pop %v3760
    %v3762 = vadd.f32 %v3761, 1.0
    %v3763 = vrcp.pop %v3762
    %v3764 = vmul.f32 1.0, %v3763
    %v3765 = vmul.f32 %v3757, %v3534
    %v3766 = vmul.f32 %v3751, %v3758
    %v3767 = vadd.f32 %v3765, %v3766
    %v3768 = vtanh.pop %v3767
    %v3769 = vmul.f32 %v3764, %v3768
    %v3770 = vpack.c.bf16 %v3769, %v3769
    %v3771 = vpack.c.bf16 %v3644, %v3644
    %3772 = vmatprep.subr.bf16.mxu0 %v864
    %3773 = vmatpush1.bf16.msra.mxu0 %v863
    %3774 = vmatprep.subr.bf16.mxu0 %v860
    %3775 = vmatpush1.bf16.msra.mxu0 %v859
    %3776 = vmatprep.subr.bf16.mxu0 %v856
    %3777 = vmatpush1.bf16.msra.mxu0 %v855
    %3778 = vmatprep.subr.bf16.mxu0 %v852
    %3779 = vmatpush1.bf16.msra.mxu0 %v851
    %3780 = vmatprep.subr.bf16.mxu0 %v848
    %3781 = vmatpush1.bf16.msra.mxu0 %v847
    %3782 = vmatprep.subr.bf16.mxu0 %v844
    %3783 = vmatpush1.bf16.msra.mxu0 %v843
    %3784 = vmatprep.subr.bf16.mxu0 %v840
    %3785 = vmatpush1.bf16.msra.mxu0 %v839
    %3786 = vmatprep.subr.bf16.mxu0 %v836
    %3787 = vmatpush1.bf16.msra.mxu0 %v835
    %3788 = vmatprep.subr.bf16.mxu0 %v896
    %3789 = vmatpush2.bf16.msra.mxu0 %v895
    %3790 = vmatprep.subr.bf16.mxu0 %v892
    %3791 = vmatpush2.bf16.msra.mxu0 %v891
    %3792 = vmatprep.subr.bf16.mxu0 %v888
    %3793 = vmatpush2.bf16.msra.mxu0 %v887
    %3794 = vmatprep.subr.bf16.mxu0 %v884
    %3795 = vmatpush2.bf16.msra.mxu0 %v883
    %3796 = vmatprep.subr.bf16.mxu0 %v880
    %3797 = vmatpush2.bf16.msra.mxu0 %v879
    %3798 = vmatprep.subr.bf16.mxu0 %v876
    %3799 = vmatpush2.bf16.msra.mxu0 %v875
    %3800 = vmatprep.subr.bf16.mxu0 %v872
    %3801 = vmatpush2.bf16.msra.mxu0 %v871
    %3802 = vmatprep.subr.bf16.mxu0 %v868
    %3803 = vmatpush2.bf16.msra.mxu0 %v867
    %3804 = vmatprep.mubr.bf16.mxu0 %v3771
    %3805 = vmatmul.mubr.bf16.gmra.mxu0 %v3770
    %v3806 = vpop.f32.mrf.mxu0
    %v3807 = vadd.f32 %v626, %v3806
    %v3808 = vpop.f32.mrf.mxu0
    %v3809 = vadd.f32 %v630, %v3808
    %v3810 = vpop.f32.mrf.mxu0
    %v3811 = vpop.f32.mrf.mxu0
    %3812 = vdwg.mxu0
    %3813 = vmatprep.subr.bf16.mxu0 %v866
    %3814 = vmatpush1.bf16.msra.mxu0 %v865
    %3815 = vmatprep.subr.bf16.mxu0 %v862
    %3816 = vmatpush1.bf16.msra.mxu0 %v861
    %3817 = vmatprep.subr.bf16.mxu0 %v858
    %3818 = vmatpush1.bf16.msra.mxu0 %v857
    %3819 = vmatprep.subr.bf16.mxu0 %v854
    %3820 = vmatpush1.bf16.msra.mxu0 %v853
    %3821 = vmatprep.subr.bf16.mxu0 %v850
    %3822 = vmatpush1.bf16.msra.mxu0 %v849
    %3823 = vmatprep.subr.bf16.mxu0 %v846
    %3824 = vmatpush1.bf16.msra.mxu0 %v845
    %3825 = vmatprep.subr.bf16.mxu0 %v842
    %3826 = vmatpush1.bf16.msra.mxu0 %v841
    %3827 = vmatprep.subr.bf16.mxu0 %v838
    %3828 = vmatpush1.bf16.msra.mxu0 %v837
    %3829 = vmatprep.subr.bf16.mxu0 %v898
    %3830 = vmatpush2.bf16.msra.mxu0 %v897
    %3831 = vmatprep.subr.bf16.mxu0 %v894
    %3832 = vmatpush2.bf16.msra.mxu0 %v893
    %3833 = vmatprep.subr.bf16.mxu0 %v890
    %3834 = vmatpush2.bf16.msra.mxu0 %v889
    %3835 = vmatprep.subr.bf16.mxu0 %v886
    %3836 = vmatpush2.bf16.msra.mxu0 %v885
    %3837 = vmatprep.subr.bf16.mxu0 %v882
    %3838 = vmatpush2.bf16.msra.mxu0 %v881
    %3839 = vmatprep.subr.bf16.mxu0 %v878
    %3840 = vmatpush2.bf16.msra.mxu0 %v877
    %3841 = vmatprep.subr.bf16.mxu0 %v874
    %3842 = vmatpush2.bf16.msra.mxu0 %v873
    %3843 = vmatprep.subr.bf16.mxu0 %v870
    %3844 = vmatpush2.bf16.msra.mxu0 %v869
    %3845 = vmatprep.mubr.bf16.mxu0 %v3771
    %3846 = vmatmul.mubr.bf16.gmra.mxu0 %v3770
    %v3847 = vpop.f32.mrf.mxu0
    %v3848 = vadd.f32 %v634, %v3847
    %v3849 = vpop.f32.mrf.mxu0
    %v3850 = vadd.f32 %v638, %v3849
    %v3851 = vpop.f32.mrf.mxu0
    %v3852 = vpop.f32.mrf.mxu0
    %3853 = vdwg.mxu0
    %v3854 = vxor.u32 %v3807, 2147483648
    %v3855 = vmul.f32 %v3854, 1.442695
    %v3856 = vpow.pop %v3855
    %v3857 = vadd.f32 %v3856, 1.0
    %v3858 = vrcp.pop %v3857
    %v3859 = vmul.f32 1.0, %v3858
    %v3860 = vxor.u32 %v3809, 2147483648
    %v3861 = vmul.f32 %v3860, 1.442695
    %v3862 = vpow.pop %v3861
    %v3863 = vadd.f32 %v3862, 1.0
    %v3864 = vrcp.pop %v3863
    %v3865 = vmul.f32 1.0, %v3864
    %v3866 = vtanh.pop %v3848
    %v3867 = vxor.u32 %v3850, 2147483648
    %v3868 = vmul.f32 %v3867, 1.442695
    %v3869 = vpow.pop %v3868
    %v3870 = vadd.f32 %v3869, 1.0
    %v3871 = vrcp.pop %v3870
    %v3872 = vmul.f32 1.0, %v3871
    %v3873 = vmul.f32 %v3865, %v3642
    %v3874 = vmul.f32 %v3859, %v3866
    %v3875 = vadd.f32 %v3873, %v3874
    %v3876 = vtanh.pop %v3875
    %v3877 = vmul.f32 %v3872, %v3876
    %v3878 = vsel %vm1069, %v3877, 0.0
    %3879 = vadd.xlane.f32.xlu0 %v3878
    %v3880 = vpop.xlane.xlu0 %3879
    %v3881 = vmul.f32 %v3880, %v1073
    %v3882 = vsub.f32 %v3877, %v3881
    %v3883 = vmul.f32 %v3882, %v3882
    %v3884 = vsel %vm1069, %v3883, 0.0
    %3885 = vadd.xlane.f32.xlu0 %v3884
    %v3886 = vpop.xlane.xlu0 %3885
    %v3887 = vmul.f32 %v3886, %v1073
    %v3888 = vadd.f32 %v3887, 1e-05
    %v3889 = vrsqrt.pop %v3888
    %v3890 = vmul.f32 %v3882, %v3889
    %v3891 = vmul.f32 %v3890, %v1088
    %v3892 = vadd.f32 %v3891, %v1095
    %s3893 = scalar_lea.vmem %s7, 24
    %3894 = vst [vmem:[%s3893] sm:$0x3] %v3892
    // Predicated region
    $region34: #{lstm_model_forward.2} parent=1 // pred_check
      _
    $region35: #{lstm_model_forward.2} parent=1 // pred_check_branch
      %3896 = sbr.rel (0) target = $region37
    $region36: #{lstm_model_forward.2} parent=1 // pred_region
      _
    $region37: #{lstm_model_forward.2} parent=1 // pred_fallthru
      _
    // Predicated region
    $region38: #{lstm_model_forward.2} parent=1 // pred_check
      _
    $region39: #{lstm_model_forward.2} parent=1 // pred_check_branch
      %3898 = sbr.rel (0) target = $region41
    $region40: #{lstm_model_forward.2} parent=1 // pred_region
      _
    $region41: #{lstm_model_forward.2} parent=1 // pred_fallthru
      _
    %3899 = vsyncpa [#allocation3], 1

</llo_original>
